<compile_context>
chip_gen: v7x
topology: tpu7x:2x2x1
jax: 0.10.0
libtpu: 0.0.40
codegen_flags: <defaults>
</compile_context>

<pallas_src>
import functools

import jax
import jax.numpy as jnp
from jax import lax
from jax.experimental import pallas as pl
from jax.experimental.pallas import tpu as pltpu

_EPS = 1e-5
_SQRT_HALF = 0.7071067811865476
# MXU operand dtype. fp32 keeps bit-level parity with the PyTorch reference;
# on v6e/v7x flip to jnp.bfloat16 for full MXU throughput (accumulation stays
# fp32 via preferred_element_type). Elementwise math stays fp32 everywhere.
_MATMUL_DTYPE = jnp.float32


def _dot(a, b):
    return jnp.dot(a.astype(_MATMUL_DTYPE), b.astype(_MATMUL_DTYPE),
                   preferred_element_type=jnp.float32)


def _sparsemax_cols(z):
    # Sort-free sparsemax along axis 0 (features); batch lane-dense in axis 1.
    #   cnt_i  = #{j : z_j >= z_i},  ssum_i = sum_{j : z_j >= z_i} z_j
    #   i in support  <=>  1 + cnt_i * z_i > ssum_i
    #   tau = (sum_{support} z - 1) / |support|,  out = max(0, z - tau)
    z = z - jnp.max(z, axis=0, keepdims=True)
    ge = (z[None, :, :] >= z[:, None, :]).astype(jnp.float32)   # (D, D, B)
    cnt = jnp.sum(ge, axis=1)                                   # (D, B)
    ssum = jnp.sum(ge * z[None, :, :], axis=1)                  # (D, B)
    supp = (1.0 + cnt * z) > ssum
    k = jnp.max(jnp.where(supp, cnt, 0.0), axis=0, keepdims=True)
    s = jnp.sum(jnp.where(supp, z, 0.0), axis=0, keepdims=True)
    tau = (s - 1.0) / k
    return jnp.maximum(z - tau, 0.0)


# ----------------------------------------------------------------------------
# Fused kernel: whole forward after the (folded) input BN, one grid step per
# block of k_vb virtual batches.  Activations stay in VMEM/vregs.
# ----------------------------------------------------------------------------
def _tabnet_fused_kernel(x_ref, w0_ref, wg_ref, at_ref, fc_ref, vec_ref,
                         y_ref, masks_ref, *, d_d, n_shared, n_dep, n_steps,
                         k_vb):
    inp_dim, bb = x_ref.shape
    nh2 = w0_ref.shape[0]
    nh = nh2 // 2
    out_dim = fc_ref.shape[0]
    n_glu = n_shared + n_dep
    n_ft = 1 + n_steps
    at_base = 2 + 2 * n_ft * n_glu
    vb = bb // k_vb

    def col(idx, length):
        # one packed parameter column: (length, 1), broadcasts across lanes
        return vec_ref[0:length, idx:idx + 1]

    def bn(h, g_idx):
        # training-mode GhostBatchNorm: per-virtual-batch stats over groups of
        # `vb` lanes (static lane-aligned slices -> no relayout)
        c = h.shape[0]
        if k_vb == 1:
            mean = jnp.mean(h, axis=1, keepdims=True)
            var = jnp.mean((h - mean) ** 2, axis=1, keepdims=True)
            hn = (h - mean) * lax.rsqrt(var + _EPS)
        else:
            parts = []
            for j in range(k_vb):
                hj = h[:, j * vb:(j + 1) * vb]
                m = jnp.mean(hj, axis=1, keepdims=True)
                v = jnp.mean((hj - m) ** 2, axis=1, keepdims=True)
                parts.append((hj - m) * lax.rsqrt(v + _EPS))
            hn = jnp.concatenate(parts, axis=1)
        return hn * col(g_idx, c) + col(g_idx + 1, c)

    def glu(h, w_t, li):
        # z^T = W^T @ h^T -> (2*nh, bb) lane-dense; value/gate are static
        # sublane slices.  Linear bias dropped (cancels under batch-stat BN).
        z = bn(_dot(w_t, h), 2 + 2 * li)
        return z[:nh, :] * jax.nn.sigmoid(z[nh:, :])

    def feat_trans(h, ft):
        li0 = ft * n_glu
        h = glu(h, w0_ref[...], li0)
        for l in range(1, n_shared):
            h = (h + glu(h, wg_ref[l - 1], li0 + l)) * _SQRT_HALF
        for d in range(n_dep):
            h = (h + glu(h, wg_ref[(n_shared - 1) + ft * n_dep + d],
                         li0 + n_shared + d)) * _SQRT_HALF
        return h

    # input-level BatchNorm1d folded into per-feature scale/shift (cols 0, 1)
    x = x_ref[...] * col(0, inp_dim) + col(1, inp_dim)        # (inp_dim, bb)

    # zero step
    x_a = feat_trans(x, 0)[d_d:, :]                           # (d_a, bb)
    out = jnp.zeros((d_d, bb), jnp.float32)

    # decision steps (priors stay all-ones: the reference's prior update is a
    # local rebinding inside AttentiveTransformer that never escapes)
    for s in range(n_steps):
        # attentive logits kept in fp32 so sparsemax support matches reference
        a = bn(jnp.dot(at_ref[s], x_a, preferred_element_type=jnp.float32),
               at_base + 2 * s)
        mask = _sparsemax_cols(a)                             # (inp_dim, bb)
        masks_ref[s] = mask
        x_te = feat_trans(x * mask, 1 + s)
        out = out + jnp.maximum(x_te[:d_d, :], 0.0)
        x_a = x_te[d_d:, :]

    y_ref[...] = _dot(fc_ref[...], out) + col(at_base + 2 * n_steps, out_dim)


# ----------------------------------------------------------------------------
# Forward pass (single pallas_call)
# ----------------------------------------------------------------------------
def _choose_block(B, vbs, max_k):
    """Pick (block_b, k_vb, nb): k_vb virtual batches per grid step."""
    if B <= vbs:
        return B, 1, 1          # single full-batch chunk
    assert B % vbs == 0, "batch must be a multiple of vbs (GBN chunking)"
    n_chunks = B // vbs
    k = 1
    for cand in range(min(max_k, n_chunks), 0, -1):
        if n_chunks % cand == 0:
            k = cand
            break
    # keep >= 2 grid steps when possible so v7x megacore can split the work
    while k > 1 and n_chunks // k < 2:
        k2 = k - 1
        while k2 > 1 and n_chunks % k2 != 0:
            k2 -= 1
        k = k2
    return k * vbs, k, n_chunks // k


def tabnet_forward(x, params, *, d_d, n_shared, n_dep, n_steps, vbs=128,
                   max_k=8):
    B, inp_dim = x.shape
    out_dim = params["fc_t"].shape[0]
    block_b, k_vb, nb = _choose_block(B, vbs, max_k)

    # Fold the input-level BatchNorm1d (plain, full-batch statistics) into a
    # per-feature scale/shift applied inside the fused kernel.
    mean = jnp.mean(x, axis=0)
    var = jnp.mean((x - mean) ** 2, axis=0)
    scale = params["bn0_g"] * lax.rsqrt(var + _EPS)
    shift = params["bn0_b"] - mean * scale
    vec_rows = params["vecs_static"].shape[0]
    bn0_cols = jnp.zeros((vec_rows, 2), jnp.float32)
    bn0_cols = bn0_cols.at[:inp_dim, 0].set(scale)
    bn0_cols = bn0_cols.at[:inp_dim, 1].set(shift)
    vecs = jnp.concatenate([bn0_cols, params["vecs_static"]], axis=1)

    kernel = functools.partial(_tabnet_fused_kernel, d_d=d_d,
                               n_shared=n_shared, n_dep=n_dep,
                               n_steps=n_steps, k_vb=k_vb)

    def rep(arr):   # whole array, same block at every grid step
        nd = arr.ndim
        return pl.BlockSpec(arr.shape, lambda i, nd=nd: (0,) * nd)

    weights = (params["w0_t"], params["wg_t"], params["at_t"],
               params["fc_t"], vecs)

    # Lane-dense outputs: batch in the last (lane) dim; transposed back below.
    y_t, masks_t = pl.pallas_call(
        kernel,
        out_shape=(jax.ShapeDtypeStruct((out_dim, B), jnp.float32),
                   jax.ShapeDtypeStruct((n_steps, inp_dim, B), jnp.float32)),
        grid=(nb,),
        in_specs=[pl.BlockSpec((inp_dim, block_b), lambda i: (0, i))]
                 + [rep(w) for w in weights],
        out_specs=(pl.BlockSpec((out_dim, block_b), lambda i: (0, i)),
                   pl.BlockSpec((n_steps, inp_dim, block_b),
                                lambda i: (0, 0, i))),
        compiler_params=pltpu.CompilerParams(
            dimension_semantics=("parallel",),
            # explicit budget: safe on v7x (64 MiB physical) and lifts the
            # 16 MiB scoped default on v5e
            vmem_limit_bytes=48 * 1024 * 1024),
    )(x.T, *weights)

    y = y_t.T
    masks = [masks_t[s].T for s in range(n_steps)]
    return y, masks


# ----------------------------------------------------------------------------
# Parameter construction (PyTorch-equivalent layout, packed & pre-transposed)
# ----------------------------------------------------------------------------
def init_params(key, inp_dim, final_out_dim, d_d, d_a, n_shared, n_dep,
                n_steps):
    nh = d_d + d_a
    nh2 = 2 * nh
    n_ft = 1 + n_steps               # zero_step + decision steps
    n_glu = n_shared + n_dep
    kit = iter(jax.random.split(key, 128))

    def lin_w_t(ind, outd):          # transposed Linear weight: (out, in)
        return (jax.random.normal(next(kit), (outd, ind), jnp.float32)
                / jnp.sqrt(jnp.float32(ind)))

    w0_t = lin_w_t(inp_dim, nh2)                       # shared GLU 0
    n_wg = (n_shared - 1) + n_ft * n_dep               # all nh->2nh GLUs
    if n_wg > 0:
        wg_t = jnp.stack([lin_w_t(nh, nh2) for _ in range(n_wg)])
    else:
        wg_t = jnp.zeros((1, nh2, nh), jnp.float32)    # never read
    at_t = jnp.stack([lin_w_t(d_a, inp_dim) for _ in range(n_steps)])
    fc_t = lin_w_t(d_d, final_out_dim)
    fc_b = jax.random.normal(next(kit), (final_out_dim,), jnp.float32) * 0.01

    # Pack every per-layer gamma/beta vector plus fc bias into one column
    # slab (feature dim in sublanes, one column per vector).
    vec_rows = max(nh2, inp_dim, final_out_dim)

    def pad_col(v):
        return jnp.pad(v, (0, vec_rows - v.shape[0]))[:, None]

    cols = []
    for _ in range(n_ft * n_glu):                      # GLU BN gamma/beta
        cols.append(pad_col(jnp.ones((nh2,), jnp.float32)))
        cols.append(pad_col(jnp.zeros((nh2,), jnp.float32)))
    for _ in range(n_steps):                           # attentive BN gamma/beta
        cols.append(pad_col(jnp.ones((inp_dim,), jnp.float32)))
        cols.append(pad_col(jnp.zeros((inp_dim,), jnp.float32)))
    cols.append(pad_col(fc_b))                         # final fc bias
    vecs_static = jnp.concatenate(cols, axis=1)

    # GLU/attentive Linear biases omitted: exactly cancelled by batch-stat BN.
    return {
        "bn0_g": jnp.ones((inp_dim,), jnp.float32),
        "bn0_b": jnp.zeros((inp_dim,), jnp.float32),
        "w0_t": w0_t,
        "wg_t": wg_t,
        "at_t": at_t,
        "fc_t": fc_t,
        "vecs_static": vecs_static,
    }


if __name__ == "__main__":
    # Small synthetic configuration.
    B, inp_dim, final_out_dim = 8, 16, 4
    d_d, d_a, n_shared, n_dep, n_steps = 8, 8, 2, 2, 3

    key = jax.random.PRNGKey(0)
    kx, kp = jax.random.split(key)
    x = jax.random.normal(kx, (B, inp_dim), jnp.float32)
    params = init_params(kp, inp_dim, final_out_dim, d_d, d_a,
                         n_shared, n_dep, n_steps)

    fwd = jax.jit(functools.partial(tabnet_forward, d_d=d_d,
                                    n_shared=n_shared, n_dep=n_dep,
                                    n_steps=n_steps))
    y, masks = fwd(x, params)
    jax.block_until_ready(y)
    jax.block_until_ready(masks)

    assert y.shape == (B, final_out_dim)
    assert len(masks) == n_steps and masks[0].shape == (B, inp_dim)
    assert bool(jnp.all(jnp.isfinite(y)))
    # sparsemax masks are a distribution over features (rows sum to 1)
    assert bool(jnp.allclose(jnp.sum(masks[0], axis=-1), 1.0, atol=1e-4))
    print("KERNEL_OK")
</pallas_src>

<mosaic_0001>
module attributes {stable_mosaic.version = 11 : i64} {
  func.func @_tabnet_fused_kernel(%arg0: i32, %arg1: memref<16x8xf32, #tpu.memory_space<vmem>>, %arg2: memref<32x16xf32, #tpu.memory_space<vmem>>, %arg3: memref<9x32x16xf32, #tpu.memory_space<vmem>>, %arg4: memref<3x16x8xf32, #tpu.memory_space<vmem>>, %arg5: memref<4x8xf32, #tpu.memory_space<vmem>>, %arg6: memref<32x41xf32, #tpu.memory_space<vmem>>, %arg7: memref<4x8xf32, #tpu.memory_space<vmem>>, %arg8: memref<3x16x8xf32, #tpu.memory_space<vmem>>) attributes {dimension_semantics = [#tpu.dimension_semantics<parallel>], iteration_bounds = array<i64: 1>, scalar_prefetch = 0 : i64, scratch_operands = 0 : i64, tpu.core_type = #tpu.core_type<tc>, window_params = [{transform_indices = @transform_0, window_bounds = array<i64: 16, 8>}, {pipeline_mode = #tpu.pipeline_mode<synchronous>, transform_indices = @transform_1, window_bounds = array<i64: 32, 16>}, {pipeline_mode = #tpu.pipeline_mode<synchronous>, transform_indices = @transform_2, window_bounds = array<i64: 9, 32, 16>}, {pipeline_mode = #tpu.pipeline_mode<synchronous>, transform_indices = @transform_3, window_bounds = array<i64: 3, 16, 8>}, {pipeline_mode = #tpu.pipeline_mode<synchronous>, transform_indices = @transform_4, window_bounds = array<i64: 4, 8>}, {pipeline_mode = #tpu.pipeline_mode<synchronous>, transform_indices = @transform_5, window_bounds = array<i64: 32, 41>}, {transform_indices = @transform_6, window_bounds = array<i64: 4, 8>}, {transform_indices = @transform_7, window_bounds = array<i64: 3, 16, 8>}]} {
    %c0 = arith.constant 0 : index
    %c0_0 = arith.constant 0 : index
    %0 = vector.load %arg1[%c0, %c0_0] : memref<16x8xf32, #tpu.memory_space<vmem>>, vector<16x8xf32>
    %c0_1 = arith.constant 0 : index
    %c0_2 = arith.constant 0 : index
    %1 = vector.load %arg6[%c0_1, %c0_2] : memref<32x41xf32, #tpu.memory_space<vmem>>, vector<16x1xf32>
    %2 = vector.broadcast %1 : vector<16x1xf32> to vector<16x8xf32>
    %3 = arith.mulf %0, %2 : vector<16x8xf32>
    %c0_3 = arith.constant 0 : index
    %c1 = arith.constant 1 : index
    %4 = vector.load %arg6[%c0_3, %c1] : memref<32x41xf32, #tpu.memory_space<vmem>>, vector<16x1xf32>
    %5 = vector.broadcast %4 : vector<16x1xf32> to vector<16x8xf32>
    %6 = arith.addf %3, %5 : vector<16x8xf32>
    %c0_4 = arith.constant 0 : index
    %c0_5 = arith.constant 0 : index
    %7 = vector.load %arg2[%c0_4, %c0_5] : memref<32x16xf32, #tpu.memory_space<vmem>>, vector<32x16xf32>
    %cst = arith.constant dense<0.000000e+00> : vector<32x8xf32>
    %8 = tpu.matmul %7, %6, %cst {dimension_numbers = #tpu.dot_dimension_numbers<[1], [0], [0], [1], [0, 0, 1, 1], [], []>} : vector<32x16xf32>, vector<16x8xf32>, vector<32x8xf32> -> vector<32x8xf32>
    %cst_6 = arith.constant dense<0.000000e+00> : vector<32xf32>
    %9 = vector.multi_reduction <add>, %8, %cst_6 [1] : vector<32x8xf32> to vector<32xf32>
    %10 = vector.shape_cast %9 : vector<32xf32> to vector<32x1xf32>
    %cst_7 = arith.constant 8.000000e+00 : f32
    %11 = vector.broadcast %cst_7 : f32 to vector<32x1xf32>
    %12 = arith.divf %10, %11 : vector<32x1xf32>
    %13 = vector.broadcast %12 : vector<32x1xf32> to vector<32x8xf32>
    %14 = arith.subf %8, %13 : vector<32x8xf32>
    %15 = arith.mulf %14, %14 : vector<32x8xf32>
    %cst_8 = arith.constant dense<0.000000e+00> : vector<32xf32>
    %16 = vector.multi_reduction <add>, %15, %cst_8 [1] : vector<32x8xf32> to vector<32xf32>
    %17 = vector.shape_cast %16 : vector<32xf32> to vector<32x1xf32>
    %cst_9 = arith.constant 8.000000e+00 : f32
    %18 = vector.broadcast %cst_9 : f32 to vector<32x1xf32>
    %19 = arith.divf %17, %18 : vector<32x1xf32>
    %20 = vector.broadcast %12 : vector<32x1xf32> to vector<32x8xf32>
    %21 = arith.subf %8, %20 : vector<32x8xf32>
    %cst_10 = arith.constant 9.99999974E-6 : f32
    %22 = vector.broadcast %cst_10 : f32 to vector<32x1xf32>
    %23 = arith.addf %19, %22 : vector<32x1xf32>
    %24 = math.rsqrt %23 : vector<32x1xf32>
    %25 = vector.broadcast %24 : vector<32x1xf32> to vector<32x8xf32>
    %26 = arith.mulf %21, %25 : vector<32x8xf32>
    %c0_11 = arith.constant 0 : index
    %c2 = arith.constant 2 : index
    %27 = vector.load %arg6[%c0_11, %c2] : memref<32x41xf32, #tpu.memory_space<vmem>>, vector<32x1xf32>
    %28 = vector.broadcast %27 : vector<32x1xf32> to vector<32x8xf32>
    %29 = arith.mulf %26, %28 : vector<32x8xf32>
    %c0_12 = arith.constant 0 : index
    %c3 = arith.constant 3 : index
    %30 = vector.load %arg6[%c0_12, %c3] : memref<32x41xf32, #tpu.memory_space<vmem>>, vector<32x1xf32>
    %31 = vector.broadcast %30 : vector<32x1xf32> to vector<32x8xf32>
    %32 = arith.addf %29, %31 : vector<32x8xf32>
    %33 = vector.extract_strided_slice %32 {offsets = [0, 0], sizes = [16, 8], strides = [1, 1]} : vector<32x8xf32> to vector<16x8xf32>
    %34 = vector.extract_strided_slice %32 {offsets = [16, 0], sizes = [16, 8], strides = [1, 1]} : vector<32x8xf32> to vector<16x8xf32>
    %35 = arith.negf %34 : vector<16x8xf32>
    %36 = math.exp %35 : vector<16x8xf32>
    %cst_13 = arith.constant 1.000000e+00 : f32
    %37 = vector.broadcast %cst_13 : f32 to vector<16x8xf32>
    %38 = arith.addf %37, %36 : vector<16x8xf32>
    %39 = arith.divf %37, %38 : vector<16x8xf32>
    %40 = arith.mulf %33, %39 : vector<16x8xf32>
    %c0_14 = arith.constant 0 : index
    %c0_15 = arith.constant 0 : index
    %c0_16 = arith.constant 0 : index
    %41 = vector.load %arg3[%c0_14, %c0_15, %c0_16] : memref<9x32x16xf32, #tpu.memory_space<vmem>>, vector<1x32x16xf32>
    %42 = vector.shape_cast %41 : vector<1x32x16xf32> to vector<32x16xf32>
    %cst_17 = arith.constant dense<0.000000e+00> : vector<32x8xf32>
    %43 = tpu.matmul %42, %40, %cst_17 {dimension_numbers = #tpu.dot_dimension_numbers<[1], [0], [0], [1], [0, 0, 1, 1], [], []>} : vector<32x16xf32>, vector<16x8xf32>, vector<32x8xf32> -> vector<32x8xf32>
    %cst_18 = arith.constant dense<0.000000e+00> : vector<32xf32>
    %44 = vector.multi_reduction <add>, %43, %cst_18 [1] : vector<32x8xf32> to vector<32xf32>
    %45 = vector.shape_cast %44 : vector<32xf32> to vector<32x1xf32>
    %cst_19 = arith.constant 8.000000e+00 : f32
    %46 = vector.broadcast %cst_19 : f32 to vector<32x1xf32>
    %47 = arith.divf %45, %46 : vector<32x1xf32>
    %48 = vector.broadcast %47 : vector<32x1xf32> to vector<32x8xf32>
    %49 = arith.subf %43, %48 : vector<32x8xf32>
    %50 = arith.mulf %49, %49 : vector<32x8xf32>
    %cst_20 = arith.constant dense<0.000000e+00> : vector<32xf32>
    %51 = vector.multi_reduction <add>, %50, %cst_20 [1] : vector<32x8xf32> to vector<32xf32>
    %52 = vector.shape_cast %51 : vector<32xf32> to vector<32x1xf32>
    %cst_21 = arith.constant 8.000000e+00 : f32
    %53 = vector.broadcast %cst_21 : f32 to vector<32x1xf32>
    %54 = arith.divf %52, %53 : vector<32x1xf32>
    %55 = vector.broadcast %47 : vector<32x1xf32> to vector<32x8xf32>
    %56 = arith.subf %43, %55 : vector<32x8xf32>
    %cst_22 = arith.constant 9.99999974E-6 : f32
    %57 = vector.broadcast %cst_22 : f32 to vector<32x1xf32>
    %58 = arith.addf %54, %57 : vector<32x1xf32>
    %59 = math.rsqrt %58 : vector<32x1xf32>
    %60 = vector.broadcast %59 : vector<32x1xf32> to vector<32x8xf32>
    %61 = arith.mulf %56, %60 : vector<32x8xf32>
    %c0_23 = arith.constant 0 : index
    %c4 = arith.constant 4 : index
    %62 = vector.load %arg6[%c0_23, %c4] : memref<32x41xf32, #tpu.memory_space<vmem>>, vector<32x1xf32>
    %63 = vector.broadcast %62 : vector<32x1xf32> to vector<32x8xf32>
    %64 = arith.mulf %61, %63 : vector<32x8xf32>
    %c0_24 = arith.constant 0 : index
    %c5 = arith.constant 5 : index
    %65 = vector.load %arg6[%c0_24, %c5] : memref<32x41xf32, #tpu.memory_space<vmem>>, vector<32x1xf32>
    %66 = vector.broadcast %65 : vector<32x1xf32> to vector<32x8xf32>
    %67 = arith.addf %64, %66 : vector<32x8xf32>
    %68 = vector.extract_strided_slice %67 {offsets = [0, 0], sizes = [16, 8], strides = [1, 1]} : vector<32x8xf32> to vector<16x8xf32>
    %69 = vector.extract_strided_slice %67 {offsets = [16, 0], sizes = [16, 8], strides = [1, 1]} : vector<32x8xf32> to vector<16x8xf32>
    %70 = arith.negf %69 : vector<16x8xf32>
    %71 = math.exp %70 : vector<16x8xf32>
    %cst_25 = arith.constant 1.000000e+00 : f32
    %72 = vector.broadcast %cst_25 : f32 to vector<16x8xf32>
    %73 = arith.addf %72, %71 : vector<16x8xf32>
    %74 = arith.divf %72, %73 : vector<16x8xf32>
    %75 = arith.mulf %68, %74 : vector<16x8xf32>
    %76 = arith.addf %40, %75 : vector<16x8xf32>
    %cst_26 = arith.constant 0.707106769 : f32
    %77 = vector.broadcast %cst_26 : f32 to vector<16x8xf32>
    %78 = arith.mulf %76, %77 : vector<16x8xf32>
    %c1_27 = arith.constant 1 : index
    %c0_28 = arith.constant 0 : index
    %c0_29 = arith.constant 0 : index
    %79 = vector.load %arg3[%c1_27, %c0_28, %c0_29] : memref<9x32x16xf32, #tpu.memory_space<vmem>>, vector<1x32x16xf32>
    %80 = vector.shape_cast %79 : vector<1x32x16xf32> to vector<32x16xf32>
    %cst_30 = arith.constant dense<0.000000e+00> : vector<32x8xf32>
    %81 = tpu.matmul %80, %78, %cst_30 {dimension_numbers = #tpu.dot_dimension_numbers<[1], [0], [0], [1], [0, 0, 1, 1], [], []>} : vector<32x16xf32>, vector<16x8xf32>, vector<32x8xf32> -> vector<32x8xf32>
    %cst_31 = arith.constant dense<0.000000e+00> : vector<32xf32>
    %82 = vector.multi_reduction <add>, %81, %cst_31 [1] : vector<32x8xf32> to vector<32xf32>
    %83 = vector.shape_cast %82 : vector<32xf32> to vector<32x1xf32>
    %cst_32 = arith.constant 8.000000e+00 : f32
    %84 = vector.broadcast %cst_32 : f32 to vector<32x1xf32>
    %85 = arith.divf %83, %84 : vector<32x1xf32>
    %86 = vector.broadcast %85 : vector<32x1xf32> to vector<32x8xf32>
    %87 = arith.subf %81, %86 : vector<32x8xf32>
    %88 = arith.mulf %87, %87 : vector<32x8xf32>
    %cst_33 = arith.constant dense<0.000000e+00> : vector<32xf32>
    %89 = vector.multi_reduction <add>, %88, %cst_33 [1] : vector<32x8xf32> to vector<32xf32>
    %90 = vector.shape_cast %89 : vector<32xf32> to vector<32x1xf32>
    %cst_34 = arith.constant 8.000000e+00 : f32
    %91 = vector.broadcast %cst_34 : f32 to vector<32x1xf32>
    %92 = arith.divf %90, %91 : vector<32x1xf32>
    %93 = vector.broadcast %85 : vector<32x1xf32> to vector<32x8xf32>
    %94 = arith.subf %81, %93 : vector<32x8xf32>
    %cst_35 = arith.constant 9.99999974E-6 : f32
    %95 = vector.broadcast %cst_35 : f32 to vector<32x1xf32>
    %96 = arith.addf %92, %95 : vector<32x1xf32>
    %97 = math.rsqrt %96 : vector<32x1xf32>
    %98 = vector.broadcast %97 : vector<32x1xf32> to vector<32x8xf32>
    %99 = arith.mulf %94, %98 : vector<32x8xf32>
    %c0_36 = arith.constant 0 : index
    %c6 = arith.constant 6 : index
    %100 = vector.load %arg6[%c0_36, %c6] : memref<32x41xf32, #tpu.memory_space<vmem>>, vector<32x1xf32>
    %101 = vector.broadcast %100 : vector<32x1xf32> to vector<32x8xf32>
    %102 = arith.mulf %99, %101 : vector<32x8xf32>
    %c0_37 = arith.constant 0 : index
    %c7 = arith.constant 7 : index
    %103 = vector.load %arg6[%c0_37, %c7] : memref<32x41xf32, #tpu.memory_space<vmem>>, vector<32x1xf32>
    %104 = vector.broadcast %103 : vector<32x1xf32> to vector<32x8xf32>
    %105 = arith.addf %102, %104 : vector<32x8xf32>
    %106 = vector.extract_strided_slice %105 {offsets = [0, 0], sizes = [16, 8], strides = [1, 1]} : vector<32x8xf32> to vector<16x8xf32>
    %107 = vector.extract_strided_slice %105 {offsets = [16, 0], sizes = [16, 8], strides = [1, 1]} : vector<32x8xf32> to vector<16x8xf32>
    %108 = arith.negf %107 : vector<16x8xf32>
    %109 = math.exp %108 : vector<16x8xf32>
    %cst_38 = arith.constant 1.000000e+00 : f32
    %110 = vector.broadcast %cst_38 : f32 to vector<16x8xf32>
    %111 = arith.addf %110, %109 : vector<16x8xf32>
    %112 = arith.divf %110, %111 : vector<16x8xf32>
    %113 = arith.mulf %106, %112 : vector<16x8xf32>
    %114 = arith.addf %78, %113 : vector<16x8xf32>
    %cst_39 = arith.constant 0.707106769 : f32
    %115 = vector.broadcast %cst_39 : f32 to vector<16x8xf32>
    %116 = arith.mulf %114, %115 : vector<16x8xf32>
    %c2_40 = arith.constant 2 : index
    %c0_41 = arith.constant 0 : index
    %c0_42 = arith.constant 0 : index
    %117 = vector.load %arg3[%c2_40, %c0_41, %c0_42] : memref<9x32x16xf32, #tpu.memory_space<vmem>>, vector<1x32x16xf32>
    %118 = vector.shape_cast %117 : vector<1x32x16xf32> to vector<32x16xf32>
    %cst_43 = arith.constant dense<0.000000e+00> : vector<32x8xf32>
    %119 = tpu.matmul %118, %116, %cst_43 {dimension_numbers = #tpu.dot_dimension_numbers<[1], [0], [0], [1], [0, 0, 1, 1], [], []>} : vector<32x16xf32>, vector<16x8xf32>, vector<32x8xf32> -> vector<32x8xf32>
    %cst_44 = arith.constant dense<0.000000e+00> : vector<32xf32>
    %120 = vector.multi_reduction <add>, %119, %cst_44 [1] : vector<32x8xf32> to vector<32xf32>
    %121 = vector.shape_cast %120 : vector<32xf32> to vector<32x1xf32>
    %cst_45 = arith.constant 8.000000e+00 : f32
    %122 = vector.broadcast %cst_45 : f32 to vector<32x1xf32>
    %123 = arith.divf %121, %122 : vector<32x1xf32>
    %124 = vector.broadcast %123 : vector<32x1xf32> to vector<32x8xf32>
    %125 = arith.subf %119, %124 : vector<32x8xf32>
    %126 = arith.mulf %125, %125 : vector<32x8xf32>
    %cst_46 = arith.constant dense<0.000000e+00> : vector<32xf32>
    %127 = vector.multi_reduction <add>, %126, %cst_46 [1] : vector<32x8xf32> to vector<32xf32>
    %128 = vector.shape_cast %127 : vector<32xf32> to vector<32x1xf32>
    %cst_47 = arith.constant 8.000000e+00 : f32
    %129 = vector.broadcast %cst_47 : f32 to vector<32x1xf32>
    %130 = arith.divf %128, %129 : vector<32x1xf32>
    %131 = vector.broadcast %123 : vector<32x1xf32> to vector<32x8xf32>
    %132 = arith.subf %119, %131 : vector<32x8xf32>
    %cst_48 = arith.constant 9.99999974E-6 : f32
    %133 = vector.broadcast %cst_48 : f32 to vector<32x1xf32>
    %134 = arith.addf %130, %133 : vector<32x1xf32>
    %135 = math.rsqrt %134 : vector<32x1xf32>
    %136 = vector.broadcast %135 : vector<32x1xf32> to vector<32x8xf32>
    %137 = arith.mulf %132, %136 : vector<32x8xf32>
    %c0_49 = arith.constant 0 : index
    %c8 = arith.constant 8 : index
    %138 = vector.load %arg6[%c0_49, %c8] : memref<32x41xf32, #tpu.memory_space<vmem>>, vector<32x1xf32>
    %139 = vector.broadcast %138 : vector<32x1xf32> to vector<32x8xf32>
    %140 = arith.mulf %137, %139 : vector<32x8xf32>
    %c0_50 = arith.constant 0 : index
    %c9 = arith.constant 9 : index
    %141 = vector.load %arg6[%c0_50, %c9] : memref<32x41xf32, #tpu.memory_space<vmem>>, vector<32x1xf32>
    %142 = vector.broadcast %141 : vector<32x1xf32> to vector<32x8xf32>
    %143 = arith.addf %140, %142 : vector<32x8xf32>
    %144 = vector.extract_strided_slice %143 {offsets = [0, 0], sizes = [16, 8], strides = [1, 1]} : vector<32x8xf32> to vector<16x8xf32>
    %145 = vector.extract_strided_slice %143 {offsets = [16, 0], sizes = [16, 8], strides = [1, 1]} : vector<32x8xf32> to vector<16x8xf32>
    %146 = arith.negf %145 : vector<16x8xf32>
    %147 = math.exp %146 : vector<16x8xf32>
    %cst_51 = arith.constant 1.000000e+00 : f32
    %148 = vector.broadcast %cst_51 : f32 to vector<16x8xf32>
    %149 = arith.addf %148, %147 : vector<16x8xf32>
    %150 = arith.divf %148, %149 : vector<16x8xf32>
    %151 = arith.mulf %144, %150 : vector<16x8xf32>
    %152 = arith.addf %116, %151 : vector<16x8xf32>
    %cst_52 = arith.constant 0.707106769 : f32
    %153 = vector.broadcast %cst_52 : f32 to vector<16x8xf32>
    %154 = arith.mulf %152, %153 : vector<16x8xf32>
    %155 = vector.extract_strided_slice %154 {offsets = [8, 0], sizes = [8, 8], strides = [1, 1]} : vector<16x8xf32> to vector<8x8xf32>
    %cst_53 = arith.constant 0.000000e+00 : f32
    %156 = vector.broadcast %cst_53 : f32 to vector<8x8xf32>
    %c0_54 = arith.constant 0 : index
    %c0_55 = arith.constant 0 : index
    %c0_56 = arith.constant 0 : index
    %157 = vector.load %arg4[%c0_54, %c0_55, %c0_56] : memref<3x16x8xf32, #tpu.memory_space<vmem>>, vector<1x16x8xf32>
    %158 = vector.shape_cast %157 : vector<1x16x8xf32> to vector<16x8xf32>
    %cst_57 = arith.constant dense<0.000000e+00> : vector<16x8xf32>
    %159 = tpu.matmul %158, %155, %cst_57 {dimension_numbers = #tpu.dot_dimension_numbers<[1], [0], [0], [1], [0, 0, 1, 1], [], []>} : vector<16x8xf32>, vector<8x8xf32>, vector<16x8xf32> -> vector<16x8xf32>
    %cst_58 = arith.constant dense<0.000000e+00> : vector<16xf32>
    %160 = vector.multi_reduction <add>, %159, %cst_58 [1] : vector<16x8xf32> to vector<16xf32>
    %161 = vector.shape_cast %160 : vector<16xf32> to vector<16x1xf32>
    %cst_59 = arith.constant 8.000000e+00 : f32
    %162 = vector.broadcast %cst_59 : f32 to vector<16x1xf32>
    %163 = arith.divf %161, %162 : vector<16x1xf32>
    %164 = vector.broadcast %163 : vector<16x1xf32> to vector<16x8xf32>
    %165 = arith.subf %159, %164 : vector<16x8xf32>
    %166 = arith.mulf %165, %165 : vector<16x8xf32>
    %cst_60 = arith.constant dense<0.000000e+00> : vector<16xf32>
    %167 = vector.multi_reduction <add>, %166, %cst_60 [1] : vector<16x8xf32> to vector<16xf32>
    %168 = vector.shape_cast %167 : vector<16xf32> to vector<16x1xf32>
    %cst_61 = arith.constant 8.000000e+00 : f32
    %169 = vector.broadcast %cst_61 : f32 to vector<16x1xf32>
    %170 = arith.divf %168, %169 : vector<16x1xf32>
    %171 = vector.broadcast %163 : vector<16x1xf32> to vector<16x8xf32>
    %172 = arith.subf %159, %171 : vector<16x8xf32>
    %cst_62 = arith.constant 9.99999974E-6 : f32
    %173 = vector.broadcast %cst_62 : f32 to vector<16x1xf32>
    %174 = arith.addf %170, %173 : vector<16x1xf32>
    %175 = math.rsqrt %174 : vector<16x1xf32>
    %176 = vector.broadcast %175 : vector<16x1xf32> to vector<16x8xf32>
    %177 = arith.mulf %172, %176 : vector<16x8xf32>
    %c0_63 = arith.constant 0 : index
    %c34 = arith.constant 34 : index
    %178 = vector.load %arg6[%c0_63, %c34] : memref<32x41xf32, #tpu.memory_space<vmem>>, vector<16x1xf32>
    %179 = vector.broadcast %178 : vector<16x1xf32> to vector<16x8xf32>
    %180 = arith.mulf %177, %179 : vector<16x8xf32>
    %c0_64 = arith.constant 0 : index
    %c35 = arith.constant 35 : index
    %181 = vector.load %arg6[%c0_64, %c35] : memref<32x41xf32, #tpu.memory_space<vmem>>, vector<16x1xf32>
    %182 = vector.broadcast %181 : vector<16x1xf32> to vector<16x8xf32>
    %183 = arith.addf %180, %182 : vector<16x8xf32>
    %cst_65 = arith.constant dense<0xFF800000> : vector<8xf32>
    %184 = vector.multi_reduction <maximumf>, %183, %cst_65 [0] : vector<16x8xf32> to vector<8xf32>
    %185 = vector.shape_cast %184 : vector<8xf32> to vector<1x8xf32>
    %186 = vector.broadcast %185 : vector<1x8xf32> to vector<16x8xf32>
    %187 = arith.subf %183, %186 : vector<16x8xf32>
    %188 = vector.shape_cast %187 : vector<16x8xf32> to vector<1x16x8xf32>
    %189 = vector.shape_cast %187 : vector<16x8xf32> to vector<16x1x8xf32>
    %190 = vector.broadcast %188 : vector<1x16x8xf32> to vector<16x16x8xf32>
    %191 = vector.broadcast %189 : vector<16x1x8xf32> to vector<16x16x8xf32>
    %192 = arith.cmpf oge, %190, %191 : vector<16x16x8xf32>
    %193 = arith.extui %192 : vector<16x16x8xi1> to vector<16x16x8xi32>
    %194 = arith.sitofp %193 : vector<16x16x8xi32> to vector<16x16x8xf32>
    %cst_66 = arith.constant dense<0.000000e+00> : vector<16x8xf32>
    %195 = vector.multi_reduction <add>, %194, %cst_66 [1] : vector<16x16x8xf32> to vector<16x8xf32>
    %196 = vector.shape_cast %187 : vector<16x8xf32> to vector<1x16x8xf32>
    %197 = vector.broadcast %196 : vector<1x16x8xf32> to vector<16x16x8xf32>
    %198 = arith.mulf %194, %197 : vector<16x16x8xf32>
    %cst_67 = arith.constant dense<0.000000e+00> : vector<16x8xf32>
    %199 = vector.multi_reduction <add>, %198, %cst_67 [1] : vector<16x16x8xf32> to vector<16x8xf32>
    %200 = arith.mulf %195, %187 : vector<16x8xf32>
    %cst_68 = arith.constant 1.000000e+00 : f32
    %201 = vector.broadcast %cst_68 : f32 to vector<16x8xf32>
    %202 = arith.addf %201, %200 : vector<16x8xf32>
    %203 = arith.cmpf ogt, %202, %199 : vector<16x8xf32>
    %cst_69 = arith.constant 0.000000e+00 : f32
    %204 = vector.broadcast %cst_69 : f32 to vector<16x8xf32>
    %205 = arith.select %203, %195, %204 : vector<16x8xi1>, vector<16x8xf32>
    %cst_70 = arith.constant dense<0xFF800000> : vector<8xf32>
    %206 = vector.multi_reduction <maximumf>, %205, %cst_70 [0] : vector<16x8xf32> to vector<8xf32>
    %207 = vector.shape_cast %206 : vector<8xf32> to vector<1x8xf32>
    %cst_71 = arith.constant 0.000000e+00 : f32
    %208 = vector.broadcast %cst_71 : f32 to vector<16x8xf32>
    %209 = arith.select %203, %187, %208 : vector<16x8xi1>, vector<16x8xf32>
    %cst_72 = arith.constant dense<0.000000e+00> : vector<8xf32>
    %210 = vector.multi_reduction <add>, %209, %cst_72 [0] : vector<16x8xf32> to vector<8xf32>
    %211 = vector.shape_cast %210 : vector<8xf32> to vector<1x8xf32>
    %cst_73 = arith.constant 1.000000e+00 : f32
    %212 = vector.broadcast %cst_73 : f32 to vector<1x8xf32>
    %213 = arith.subf %211, %212 : vector<1x8xf32>
    %214 = arith.divf %213, %207 : vector<1x8xf32>
    %215 = vector.broadcast %214 : vector<1x8xf32> to vector<16x8xf32>
    %216 = arith.subf %187, %215 : vector<16x8xf32>
    %cst_74 = arith.constant 0.000000e+00 : f32
    %217 = vector.broadcast %cst_74 : f32 to vector<16x8xf32>
    %218 = arith.maximumf %216, %217 : vector<16x8xf32>
    %c0_75 = arith.constant 0 : index
    %c0_76 = arith.constant 0 : index
    %c0_77 = arith.constant 0 : index
    %219 = vector.load %arg8[%c0_75, %c0_76, %c0_77] : memref<3x16x8xf32, #tpu.memory_space<vmem>>, vector<1x16x8xf32>
    %220 = vector.shape_cast %219 : vector<1x16x8xf32> to vector<16x8xf32>
    %221 = vector.shape_cast %218 : vector<16x8xf32> to vector<1x16x8xf32>
    tpu.vector_store %arg8[%c0_75, %c0_76, %c0_77], %221 {strides = array<i32>} : memref<3x16x8xf32, #tpu.memory_space<vmem>>, vector<1x16x8xf32>,
    %222 = arith.mulf %6, %218 : vector<16x8xf32>
    %c0_78 = arith.constant 0 : index
    %c0_79 = arith.constant 0 : index
    %223 = vector.load %arg2[%c0_78, %c0_79] : memref<32x16xf32, #tpu.memory_space<vmem>>, vector<32x16xf32>
    %cst_80 = arith.constant dense<0.000000e+00> : vector<32x8xf32>
    %224 = tpu.matmul %223, %222, %cst_80 {dimension_numbers = #tpu.dot_dimension_numbers<[1], [0], [0], [1], [0, 0, 1, 1], [], []>} : vector<32x16xf32>, vector<16x8xf32>, vector<32x8xf32> -> vector<32x8xf32>
    %cst_81 = arith.constant dense<0.000000e+00> : vector<32xf32>
    %225 = vector.multi_reduction <add>, %224, %cst_81 [1] : vector<32x8xf32> to vector<32xf32>
    %226 = vector.shape_cast %225 : vector<32xf32> to vector<32x1xf32>
    %cst_82 = arith.constant 8.000000e+00 : f32
    %227 = vector.broadcast %cst_82 : f32 to vector<32x1xf32>
    %228 = arith.divf %226, %227 : vector<32x1xf32>
    %229 = vector.broadcast %228 : vector<32x1xf32> to vector<32x8xf32>
    %230 = arith.subf %224, %229 : vector<32x8xf32>
    %231 = arith.mulf %230, %230 : vector<32x8xf32>
    %cst_83 = arith.constant dense<0.000000e+00> : vector<32xf32>
    %232 = vector.multi_reduction <add>, %231, %cst_83 [1] : vector<32x8xf32> to vector<32xf32>
    %233 = vector.shape_cast %232 : vector<32xf32> to vector<32x1xf32>
    %cst_84 = arith.constant 8.000000e+00 : f32
    %234 = vector.broadcast %cst_84 : f32 to vector<32x1xf32>
    %235 = arith.divf %233, %234 : vector<32x1xf32>
    %236 = vector.broadcast %228 : vector<32x1xf32> to vector<32x8xf32>
    %237 = arith.subf %224, %236 : vector<32x8xf32>
    %cst_85 = arith.constant 9.99999974E-6 : f32
    %238 = vector.broadcast %cst_85 : f32 to vector<32x1xf32>
    %239 = arith.addf %235, %238 : vector<32x1xf32>
    %240 = math.rsqrt %239 : vector<32x1xf32>
    %241 = vector.broadcast %240 : vector<32x1xf32> to vector<32x8xf32>
    %242 = arith.mulf %237, %241 : vector<32x8xf32>
    %c0_86 = arith.constant 0 : index
    %c10 = arith.constant 10 : index
    %243 = vector.load %arg6[%c0_86, %c10] : memref<32x41xf32, #tpu.memory_space<vmem>>, vector<32x1xf32>
    %244 = vector.broadcast %243 : vector<32x1xf32> to vector<32x8xf32>
    %245 = arith.mulf %242, %244 : vector<32x8xf32>
    %c0_87 = arith.constant 0 : index
    %c11 = arith.constant 11 : index
    %246 = vector.load %arg6[%c0_87, %c11] : memref<32x41xf32, #tpu.memory_space<vmem>>, vector<32x1xf32>
    %247 = vector.broadcast %246 : vector<32x1xf32> to vector<32x8xf32>
    %248 = arith.addf %245, %247 : vector<32x8xf32>
    %249 = vector.extract_strided_slice %248 {offsets = [0, 0], sizes = [16, 8], strides = [1, 1]} : vector<32x8xf32> to vector<16x8xf32>
    %250 = vector.extract_strided_slice %248 {offsets = [16, 0], sizes = [16, 8], strides = [1, 1]} : vector<32x8xf32> to vector<16x8xf32>
    %251 = arith.negf %250 : vector<16x8xf32>
    %252 = math.exp %251 : vector<16x8xf32>
    %cst_88 = arith.constant 1.000000e+00 : f32
    %253 = vector.broadcast %cst_88 : f32 to vector<16x8xf32>
    %254 = arith.addf %253, %252 : vector<16x8xf32>
    %255 = arith.divf %253, %254 : vector<16x8xf32>
    %256 = arith.mulf %249, %255 : vector<16x8xf32>
    %c0_89 = arith.constant 0 : index
    %c0_90 = arith.constant 0 : index
    %c0_91 = arith.constant 0 : index
    %257 = vector.load %arg3[%c0_89, %c0_90, %c0_91] : memref<9x32x16xf32, #tpu.memory_space<vmem>>, vector<1x32x16xf32>
    %258 = vector.shape_cast %257 : vector<1x32x16xf32> to vector<32x16xf32>
    %cst_92 = arith.constant dense<0.000000e+00> : vector<32x8xf32>
    %259 = tpu.matmul %258, %256, %cst_92 {dimension_numbers = #tpu.dot_dimension_numbers<[1], [0], [0], [1], [0, 0, 1, 1], [], []>} : vector<32x16xf32>, vector<16x8xf32>, vector<32x8xf32> -> vector<32x8xf32>
    %cst_93 = arith.constant dense<0.000000e+00> : vector<32xf32>
    %260 = vector.multi_reduction <add>, %259, %cst_93 [1] : vector<32x8xf32> to vector<32xf32>
    %261 = vector.shape_cast %260 : vector<32xf32> to vector<32x1xf32>
    %cst_94 = arith.constant 8.000000e+00 : f32
    %262 = vector.broadcast %cst_94 : f32 to vector<32x1xf32>
    %263 = arith.divf %261, %262 : vector<32x1xf32>
    %264 = vector.broadcast %263 : vector<32x1xf32> to vector<32x8xf32>
    %265 = arith.subf %259, %264 : vector<32x8xf32>
    %266 = arith.mulf %265, %265 : vector<32x8xf32>
    %cst_95 = arith.constant dense<0.000000e+00> : vector<32xf32>
    %267 = vector.multi_reduction <add>, %266, %cst_95 [1] : vector<32x8xf32> to vector<32xf32>
    %268 = vector.shape_cast %267 : vector<32xf32> to vector<32x1xf32>
    %cst_96 = arith.constant 8.000000e+00 : f32
    %269 = vector.broadcast %cst_96 : f32 to vector<32x1xf32>
    %270 = arith.divf %268, %269 : vector<32x1xf32>
    %271 = vector.broadcast %263 : vector<32x1xf32> to vector<32x8xf32>
    %272 = arith.subf %259, %271 : vector<32x8xf32>
    %cst_97 = arith.constant 9.99999974E-6 : f32
    %273 = vector.broadcast %cst_97 : f32 to vector<32x1xf32>
    %274 = arith.addf %270, %273 : vector<32x1xf32>
    %275 = math.rsqrt %274 : vector<32x1xf32>
    %276 = vector.broadcast %275 : vector<32x1xf32> to vector<32x8xf32>
    %277 = arith.mulf %272, %276 : vector<32x8xf32>
    %c0_98 = arith.constant 0 : index
    %c12 = arith.constant 12 : index
    %278 = vector.load %arg6[%c0_98, %c12] : memref<32x41xf32, #tpu.memory_space<vmem>>, vector<32x1xf32>
    %279 = vector.broadcast %278 : vector<32x1xf32> to vector<32x8xf32>
    %280 = arith.mulf %277, %279 : vector<32x8xf32>
    %c0_99 = arith.constant 0 : index
    %c13 = arith.constant 13 : index
    %281 = vector.load %arg6[%c0_99, %c13] : memref<32x41xf32, #tpu.memory_space<vmem>>, vector<32x1xf32>
    %282 = vector.broadcast %281 : vector<32x1xf32> to vector<32x8xf32>
    %283 = arith.addf %280, %282 : vector<32x8xf32>
    %284 = vector.extract_strided_slice %283 {offsets = [0, 0], sizes = [16, 8], strides = [1, 1]} : vector<32x8xf32> to vector<16x8xf32>
    %285 = vector.extract_strided_slice %283 {offsets = [16, 0], sizes = [16, 8], strides = [1, 1]} : vector<32x8xf32> to vector<16x8xf32>
    %286 = arith.negf %285 : vector<16x8xf32>
    %287 = math.exp %286 : vector<16x8xf32>
    %cst_100 = arith.constant 1.000000e+00 : f32
    %288 = vector.broadcast %cst_100 : f32 to vector<16x8xf32>
    %289 = arith.addf %288, %287 : vector<16x8xf32>
    %290 = arith.divf %288, %289 : vector<16x8xf32>
    %291 = arith.mulf %284, %290 : vector<16x8xf32>
    %292 = arith.addf %256, %291 : vector<16x8xf32>
    %cst_101 = arith.constant 0.707106769 : f32
    %293 = vector.broadcast %cst_101 : f32 to vector<16x8xf32>
    %294 = arith.mulf %292, %293 : vector<16x8xf32>
    %c3_102 = arith.constant 3 : index
    %c0_103 = arith.constant 0 : index
    %c0_104 = arith.constant 0 : index
    %295 = vector.load %arg3[%c3_102, %c0_103, %c0_104] : memref<9x32x16xf32, #tpu.memory_space<vmem>>, vector<1x32x16xf32>
    %296 = vector.shape_cast %295 : vector<1x32x16xf32> to vector<32x16xf32>
    %cst_105 = arith.constant dense<0.000000e+00> : vector<32x8xf32>
    %297 = tpu.matmul %296, %294, %cst_105 {dimension_numbers = #tpu.dot_dimension_numbers<[1], [0], [0], [1], [0, 0, 1, 1], [], []>} : vector<32x16xf32>, vector<16x8xf32>, vector<32x8xf32> -> vector<32x8xf32>
    %cst_106 = arith.constant dense<0.000000e+00> : vector<32xf32>
    %298 = vector.multi_reduction <add>, %297, %cst_106 [1] : vector<32x8xf32> to vector<32xf32>
    %299 = vector.shape_cast %298 : vector<32xf32> to vector<32x1xf32>
    %cst_107 = arith.constant 8.000000e+00 : f32
    %300 = vector.broadcast %cst_107 : f32 to vector<32x1xf32>
    %301 = arith.divf %299, %300 : vector<32x1xf32>
    %302 = vector.broadcast %301 : vector<32x1xf32> to vector<32x8xf32>
    %303 = arith.subf %297, %302 : vector<32x8xf32>
    %304 = arith.mulf %303, %303 : vector<32x8xf32>
    %cst_108 = arith.constant dense<0.000000e+00> : vector<32xf32>
    %305 = vector.multi_reduction <add>, %304, %cst_108 [1] : vector<32x8xf32> to vector<32xf32>
    %306 = vector.shape_cast %305 : vector<32xf32> to vector<32x1xf32>
    %cst_109 = arith.constant 8.000000e+00 : f32
    %307 = vector.broadcast %cst_109 : f32 to vector<32x1xf32>
    %308 = arith.divf %306, %307 : vector<32x1xf32>
    %309 = vector.broadcast %301 : vector<32x1xf32> to vector<32x8xf32>
    %310 = arith.subf %297, %309 : vector<32x8xf32>
    %cst_110 = arith.constant 9.99999974E-6 : f32
    %311 = vector.broadcast %cst_110 : f32 to vector<32x1xf32>
    %312 = arith.addf %308, %311 : vector<32x1xf32>
    %313 = math.rsqrt %312 : vector<32x1xf32>
    %314 = vector.broadcast %313 : vector<32x1xf32> to vector<32x8xf32>
    %315 = arith.mulf %310, %314 : vector<32x8xf32>
    %c0_111 = arith.constant 0 : index
    %c14 = arith.constant 14 : index
    %316 = vector.load %arg6[%c0_111, %c14] : memref<32x41xf32, #tpu.memory_space<vmem>>, vector<32x1xf32>
    %317 = vector.broadcast %316 : vector<32x1xf32> to vector<32x8xf32>
    %318 = arith.mulf %315, %317 : vector<32x8xf32>
    %c0_112 = arith.constant 0 : index
    %c15 = arith.constant 15 : index
    %319 = vector.load %arg6[%c0_112, %c15] : memref<32x41xf32, #tpu.memory_space<vmem>>, vector<32x1xf32>
    %320 = vector.broadcast %319 : vector<32x1xf32> to vector<32x8xf32>
    %321 = arith.addf %318, %320 : vector<32x8xf32>
    %322 = vector.extract_strided_slice %321 {offsets = [0, 0], sizes = [16, 8], strides = [1, 1]} : vector<32x8xf32> to vector<16x8xf32>
    %323 = vector.extract_strided_slice %321 {offsets = [16, 0], sizes = [16, 8], strides = [1, 1]} : vector<32x8xf32> to vector<16x8xf32>
    %324 = arith.negf %323 : vector<16x8xf32>
    %325 = math.exp %324 : vector<16x8xf32>
    %cst_113 = arith.constant 1.000000e+00 : f32
    %326 = vector.broadcast %cst_113 : f32 to vector<16x8xf32>
    %327 = arith.addf %326, %325 : vector<16x8xf32>
    %328 = arith.divf %326, %327 : vector<16x8xf32>
    %329 = arith.mulf %322, %328 : vector<16x8xf32>
    %330 = arith.addf %294, %329 : vector<16x8xf32>
    %cst_114 = arith.constant 0.707106769 : f32
    %331 = vector.broadcast %cst_114 : f32 to vector<16x8xf32>
    %332 = arith.mulf %330, %331 : vector<16x8xf32>
    %c4_115 = arith.constant 4 : index
    %c0_116 = arith.constant 0 : index
    %c0_117 = arith.constant 0 : index
    %333 = vector.load %arg3[%c4_115, %c0_116, %c0_117] : memref<9x32x16xf32, #tpu.memory_space<vmem>>, vector<1x32x16xf32>
    %334 = vector.shape_cast %333 : vector<1x32x16xf32> to vector<32x16xf32>
    %cst_118 = arith.constant dense<0.000000e+00> : vector<32x8xf32>
    %335 = tpu.matmul %334, %332, %cst_118 {dimension_numbers = #tpu.dot_dimension_numbers<[1], [0], [0], [1], [0, 0, 1, 1], [], []>} : vector<32x16xf32>, vector<16x8xf32>, vector<32x8xf32> -> vector<32x8xf32>
    %cst_119 = arith.constant dense<0.000000e+00> : vector<32xf32>
    %336 = vector.multi_reduction <add>, %335, %cst_119 [1] : vector<32x8xf32> to vector<32xf32>
    %337 = vector.shape_cast %336 : vector<32xf32> to vector<32x1xf32>
    %cst_120 = arith.constant 8.000000e+00 : f32
    %338 = vector.broadcast %cst_120 : f32 to vector<32x1xf32>
    %339 = arith.divf %337, %338 : vector<32x1xf32>
    %340 = vector.broadcast %339 : vector<32x1xf32> to vector<32x8xf32>
    %341 = arith.subf %335, %340 : vector<32x8xf32>
    %342 = arith.mulf %341, %341 : vector<32x8xf32>
    %cst_121 = arith.constant dense<0.000000e+00> : vector<32xf32>
    %343 = vector.multi_reduction <add>, %342, %cst_121 [1] : vector<32x8xf32> to vector<32xf32>
    %344 = vector.shape_cast %343 : vector<32xf32> to vector<32x1xf32>
    %cst_122 = arith.constant 8.000000e+00 : f32
    %345 = vector.broadcast %cst_122 : f32 to vector<32x1xf32>
    %346 = arith.divf %344, %345 : vector<32x1xf32>
    %347 = vector.broadcast %339 : vector<32x1xf32> to vector<32x8xf32>
    %348 = arith.subf %335, %347 : vector<32x8xf32>
    %cst_123 = arith.constant 9.99999974E-6 : f32
    %349 = vector.broadcast %cst_123 : f32 to vector<32x1xf32>
    %350 = arith.addf %346, %349 : vector<32x1xf32>
    %351 = math.rsqrt %350 : vector<32x1xf32>
    %352 = vector.broadcast %351 : vector<32x1xf32> to vector<32x8xf32>
    %353 = arith.mulf %348, %352 : vector<32x8xf32>
    %c0_124 = arith.constant 0 : index
    %c16 = arith.constant 16 : index
    %354 = vector.load %arg6[%c0_124, %c16] : memref<32x41xf32, #tpu.memory_space<vmem>>, vector<32x1xf32>
    %355 = vector.broadcast %354 : vector<32x1xf32> to vector<32x8xf32>
    %356 = arith.mulf %353, %355 : vector<32x8xf32>
    %c0_125 = arith.constant 0 : index
    %c17 = arith.constant 17 : index
    %357 = vector.load %arg6[%c0_125, %c17] : memref<32x41xf32, #tpu.memory_space<vmem>>, vector<32x1xf32>
    %358 = vector.broadcast %357 : vector<32x1xf32> to vector<32x8xf32>
    %359 = arith.addf %356, %358 : vector<32x8xf32>
    %360 = vector.extract_strided_slice %359 {offsets = [0, 0], sizes = [16, 8], strides = [1, 1]} : vector<32x8xf32> to vector<16x8xf32>
    %361 = vector.extract_strided_slice %359 {offsets = [16, 0], sizes = [16, 8], strides = [1, 1]} : vector<32x8xf32> to vector<16x8xf32>
    %362 = arith.negf %361 : vector<16x8xf32>
    %363 = math.exp %362 : vector<16x8xf32>
    %cst_126 = arith.constant 1.000000e+00 : f32
    %364 = vector.broadcast %cst_126 : f32 to vector<16x8xf32>
    %365 = arith.addf %364, %363 : vector<16x8xf32>
    %366 = arith.divf %364, %365 : vector<16x8xf32>
    %367 = arith.mulf %360, %366 : vector<16x8xf32>
    %368 = arith.addf %332, %367 : vector<16x8xf32>
    %cst_127 = arith.constant 0.707106769 : f32
    %369 = vector.broadcast %cst_127 : f32 to vector<16x8xf32>
    %370 = arith.mulf %368, %369 : vector<16x8xf32>
    %371 = vector.extract_strided_slice %370 {offsets = [0, 0], sizes = [8, 8], strides = [1, 1]} : vector<16x8xf32> to vector<8x8xf32>
    %cst_128 = arith.constant 0.000000e+00 : f32
    %372 = vector.broadcast %cst_128 : f32 to vector<8x8xf32>
    %373 = arith.maximumf %371, %372 : vector<8x8xf32>
    %374 = arith.addf %156, %373 : vector<8x8xf32>
    %375 = vector.extract_strided_slice %370 {offsets = [8, 0], sizes = [8, 8], strides = [1, 1]} : vector<16x8xf32> to vector<8x8xf32>
    %c1_129 = arith.constant 1 : index
    %c0_130 = arith.constant 0 : index
    %c0_131 = arith.constant 0 : index
    %376 = vector.load %arg4[%c1_129, %c0_130, %c0_131] : memref<3x16x8xf32, #tpu.memory_space<vmem>>, vector<1x16x8xf32>
    %377 = vector.shape_cast %376 : vector<1x16x8xf32> to vector<16x8xf32>
    %cst_132 = arith.constant dense<0.000000e+00> : vector<16x8xf32>
    %378 = tpu.matmul %377, %375, %cst_132 {dimension_numbers = #tpu.dot_dimension_numbers<[1], [0], [0], [1], [0, 0, 1, 1], [], []>} : vector<16x8xf32>, vector<8x8xf32>, vector<16x8xf32> -> vector<16x8xf32>
    %cst_133 = arith.constant dense<0.000000e+00> : vector<16xf32>
    %379 = vector.multi_reduction <add>, %378, %cst_133 [1] : vector<16x8xf32> to vector<16xf32>
    %380 = vector.shape_cast %379 : vector<16xf32> to vector<16x1xf32>
    %cst_134 = arith.constant 8.000000e+00 : f32
    %381 = vector.broadcast %cst_134 : f32 to vector<16x1xf32>
    %382 = arith.divf %380, %381 : vector<16x1xf32>
    %383 = vector.broadcast %382 : vector<16x1xf32> to vector<16x8xf32>
    %384 = arith.subf %378, %383 : vector<16x8xf32>
    %385 = arith.mulf %384, %384 : vector<16x8xf32>
    %cst_135 = arith.constant dense<0.000000e+00> : vector<16xf32>
    %386 = vector.multi_reduction <add>, %385, %cst_135 [1] : vector<16x8xf32> to vector<16xf32>
    %387 = vector.shape_cast %386 : vector<16xf32> to vector<16x1xf32>
    %cst_136 = arith.constant 8.000000e+00 : f32
    %388 = vector.broadcast %cst_136 : f32 to vector<16x1xf32>
    %389 = arith.divf %387, %388 : vector<16x1xf32>
    %390 = vector.broadcast %382 : vector<16x1xf32> to vector<16x8xf32>
    %391 = arith.subf %378, %390 : vector<16x8xf32>
    %cst_137 = arith.constant 9.99999974E-6 : f32
    %392 = vector.broadcast %cst_137 : f32 to vector<16x1xf32>
    %393 = arith.addf %389, %392 : vector<16x1xf32>
    %394 = math.rsqrt %393 : vector<16x1xf32>
    %395 = vector.broadcast %394 : vector<16x1xf32> to vector<16x8xf32>
    %396 = arith.mulf %391, %395 : vector<16x8xf32>
    %c0_138 = arith.constant 0 : index
    %c36 = arith.constant 36 : index
    %397 = vector.load %arg6[%c0_138, %c36] : memref<32x41xf32, #tpu.memory_space<vmem>>, vector<16x1xf32>
    %398 = vector.broadcast %397 : vector<16x1xf32> to vector<16x8xf32>
    %399 = arith.mulf %396, %398 : vector<16x8xf32>
    %c0_139 = arith.constant 0 : index
    %c37 = arith.constant 37 : index
    %400 = vector.load %arg6[%c0_139, %c37] : memref<32x41xf32, #tpu.memory_space<vmem>>, vector<16x1xf32>
    %401 = vector.broadcast %400 : vector<16x1xf32> to vector<16x8xf32>
    %402 = arith.addf %399, %401 : vector<16x8xf32>
    %cst_140 = arith.constant dense<0xFF800000> : vector<8xf32>
    %403 = vector.multi_reduction <maximumf>, %402, %cst_140 [0] : vector<16x8xf32> to vector<8xf32>
    %404 = vector.shape_cast %403 : vector<8xf32> to vector<1x8xf32>
    %405 = vector.broadcast %404 : vector<1x8xf32> to vector<16x8xf32>
    %406 = arith.subf %402, %405 : vector<16x8xf32>
    %407 = vector.shape_cast %406 : vector<16x8xf32> to vector<1x16x8xf32>
    %408 = vector.shape_cast %406 : vector<16x8xf32> to vector<16x1x8xf32>
    %409 = vector.broadcast %407 : vector<1x16x8xf32> to vector<16x16x8xf32>
    %410 = vector.broadcast %408 : vector<16x1x8xf32> to vector<16x16x8xf32>
    %411 = arith.cmpf oge, %409, %410 : vector<16x16x8xf32>
    %412 = arith.extui %411 : vector<16x16x8xi1> to vector<16x16x8xi32>
    %413 = arith.sitofp %412 : vector<16x16x8xi32> to vector<16x16x8xf32>
    %cst_141 = arith.constant dense<0.000000e+00> : vector<16x8xf32>
    %414 = vector.multi_reduction <add>, %413, %cst_141 [1] : vector<16x16x8xf32> to vector<16x8xf32>
    %415 = vector.shape_cast %406 : vector<16x8xf32> to vector<1x16x8xf32>
    %416 = vector.broadcast %415 : vector<1x16x8xf32> to vector<16x16x8xf32>
    %417 = arith.mulf %413, %416 : vector<16x16x8xf32>
    %cst_142 = arith.constant dense<0.000000e+00> : vector<16x8xf32>
    %418 = vector.multi_reduction <add>, %417, %cst_142 [1] : vector<16x16x8xf32> to vector<16x8xf32>
    %419 = arith.mulf %414, %406 : vector<16x8xf32>
    %cst_143 = arith.constant 1.000000e+00 : f32
    %420 = vector.broadcast %cst_143 : f32 to vector<16x8xf32>
    %421 = arith.addf %420, %419 : vector<16x8xf32>
    %422 = arith.cmpf ogt, %421, %418 : vector<16x8xf32>
    %cst_144 = arith.constant 0.000000e+00 : f32
    %423 = vector.broadcast %cst_144 : f32 to vector<16x8xf32>
    %424 = arith.select %422, %414, %423 : vector<16x8xi1>, vector<16x8xf32>
    %cst_145 = arith.constant dense<0xFF800000> : vector<8xf32>
    %425 = vector.multi_reduction <maximumf>, %424, %cst_145 [0] : vector<16x8xf32> to vector<8xf32>
    %426 = vector.shape_cast %425 : vector<8xf32> to vector<1x8xf32>
    %cst_146 = arith.constant 0.000000e+00 : f32
    %427 = vector.broadcast %cst_146 : f32 to vector<16x8xf32>
    %428 = arith.select %422, %406, %427 : vector<16x8xi1>, vector<16x8xf32>
    %cst_147 = arith.constant dense<0.000000e+00> : vector<8xf32>
    %429 = vector.multi_reduction <add>, %428, %cst_147 [0] : vector<16x8xf32> to vector<8xf32>
    %430 = vector.shape_cast %429 : vector<8xf32> to vector<1x8xf32>
    %cst_148 = arith.constant 1.000000e+00 : f32
    %431 = vector.broadcast %cst_148 : f32 to vector<1x8xf32>
    %432 = arith.subf %430, %431 : vector<1x8xf32>
    %433 = arith.divf %432, %426 : vector<1x8xf32>
    %434 = vector.broadcast %433 : vector<1x8xf32> to vector<16x8xf32>
    %435 = arith.subf %406, %434 : vector<16x8xf32>
    %cst_149 = arith.constant 0.000000e+00 : f32
    %436 = vector.broadcast %cst_149 : f32 to vector<16x8xf32>
    %437 = arith.maximumf %435, %436 : vector<16x8xf32>
    %c1_150 = arith.constant 1 : index
    %c0_151 = arith.constant 0 : index
    %c0_152 = arith.constant 0 : index
    %438 = vector.load %arg8[%c1_150, %c0_151, %c0_152] : memref<3x16x8xf32, #tpu.memory_space<vmem>>, vector<1x16x8xf32>
    %439 = vector.shape_cast %438 : vector<1x16x8xf32> to vector<16x8xf32>
    %440 = vector.shape_cast %437 : vector<16x8xf32> to vector<1x16x8xf32>
    tpu.vector_store %arg8[%c1_150, %c0_151, %c0_152], %440 {strides = array<i32>} : memref<3x16x8xf32, #tpu.memory_space<vmem>>, vector<1x16x8xf32>,
    %441 = arith.mulf %6, %437 : vector<16x8xf32>
    %c0_153 = arith.constant 0 : index
    %c0_154 = arith.constant 0 : index
    %442 = vector.load %arg2[%c0_153, %c0_154] : memref<32x16xf32, #tpu.memory_space<vmem>>, vector<32x16xf32>
    %cst_155 = arith.constant dense<0.000000e+00> : vector<32x8xf32>
    %443 = tpu.matmul %442, %441, %cst_155 {dimension_numbers = #tpu.dot_dimension_numbers<[1], [0], [0], [1], [0, 0, 1, 1], [], []>} : vector<32x16xf32>, vector<16x8xf32>, vector<32x8xf32> -> vector<32x8xf32>
    %cst_156 = arith.constant dense<0.000000e+00> : vector<32xf32>
    %444 = vector.multi_reduction <add>, %443, %cst_156 [1] : vector<32x8xf32> to vector<32xf32>
    %445 = vector.shape_cast %444 : vector<32xf32> to vector<32x1xf32>
    %cst_157 = arith.constant 8.000000e+00 : f32
    %446 = vector.broadcast %cst_157 : f32 to vector<32x1xf32>
    %447 = arith.divf %445, %446 : vector<32x1xf32>
    %448 = vector.broadcast %447 : vector<32x1xf32> to vector<32x8xf32>
    %449 = arith.subf %443, %448 : vector<32x8xf32>
    %450 = arith.mulf %449, %449 : vector<32x8xf32>
    %cst_158 = arith.constant dense<0.000000e+00> : vector<32xf32>
    %451 = vector.multi_reduction <add>, %450, %cst_158 [1] : vector<32x8xf32> to vector<32xf32>
    %452 = vector.shape_cast %451 : vector<32xf32> to vector<32x1xf32>
    %cst_159 = arith.constant 8.000000e+00 : f32
    %453 = vector.broadcast %cst_159 : f32 to vector<32x1xf32>
    %454 = arith.divf %452, %453 : vector<32x1xf32>
    %455 = vector.broadcast %447 : vector<32x1xf32> to vector<32x8xf32>
    %456 = arith.subf %443, %455 : vector<32x8xf32>
    %cst_160 = arith.constant 9.99999974E-6 : f32
    %457 = vector.broadcast %cst_160 : f32 to vector<32x1xf32>
    %458 = arith.addf %454, %457 : vector<32x1xf32>
    %459 = math.rsqrt %458 : vector<32x1xf32>
    %460 = vector.broadcast %459 : vector<32x1xf32> to vector<32x8xf32>
    %461 = arith.mulf %456, %460 : vector<32x8xf32>
    %c0_161 = arith.constant 0 : index
    %c18 = arith.constant 18 : index
    %462 = vector.load %arg6[%c0_161, %c18] : memref<32x41xf32, #tpu.memory_space<vmem>>, vector<32x1xf32>
    %463 = vector.broadcast %462 : vector<32x1xf32> to vector<32x8xf32>
    %464 = arith.mulf %461, %463 : vector<32x8xf32>
    %c0_162 = arith.constant 0 : index
    %c19 = arith.constant 19 : index
    %465 = vector.load %arg6[%c0_162, %c19] : memref<32x41xf32, #tpu.memory_space<vmem>>, vector<32x1xf32>
    %466 = vector.broadcast %465 : vector<32x1xf32> to vector<32x8xf32>
    %467 = arith.addf %464, %466 : vector<32x8xf32>
    %468 = vector.extract_strided_slice %467 {offsets = [0, 0], sizes = [16, 8], strides = [1, 1]} : vector<32x8xf32> to vector<16x8xf32>
    %469 = vector.extract_strided_slice %467 {offsets = [16, 0], sizes = [16, 8], strides = [1, 1]} : vector<32x8xf32> to vector<16x8xf32>
    %470 = arith.negf %469 : vector<16x8xf32>
    %471 = math.exp %470 : vector<16x8xf32>
    %cst_163 = arith.constant 1.000000e+00 : f32
    %472 = vector.broadcast %cst_163 : f32 to vector<16x8xf32>
    %473 = arith.addf %472, %471 : vector<16x8xf32>
    %474 = arith.divf %472, %473 : vector<16x8xf32>
    %475 = arith.mulf %468, %474 : vector<16x8xf32>
    %c0_164 = arith.constant 0 : index
    %c0_165 = arith.constant 0 : index
    %c0_166 = arith.constant 0 : index
    %476 = vector.load %arg3[%c0_164, %c0_165, %c0_166] : memref<9x32x16xf32, #tpu.memory_space<vmem>>, vector<1x32x16xf32>
    %477 = vector.shape_cast %476 : vector<1x32x16xf32> to vector<32x16xf32>
    %cst_167 = arith.constant dense<0.000000e+00> : vector<32x8xf32>
    %478 = tpu.matmul %477, %475, %cst_167 {dimension_numbers = #tpu.dot_dimension_numbers<[1], [0], [0], [1], [0, 0, 1, 1], [], []>} : vector<32x16xf32>, vector<16x8xf32>, vector<32x8xf32> -> vector<32x8xf32>
    %cst_168 = arith.constant dense<0.000000e+00> : vector<32xf32>
    %479 = vector.multi_reduction <add>, %478, %cst_168 [1] : vector<32x8xf32> to vector<32xf32>
    %480 = vector.shape_cast %479 : vector<32xf32> to vector<32x1xf32>
    %cst_169 = arith.constant 8.000000e+00 : f32
    %481 = vector.broadcast %cst_169 : f32 to vector<32x1xf32>
    %482 = arith.divf %480, %481 : vector<32x1xf32>
    %483 = vector.broadcast %482 : vector<32x1xf32> to vector<32x8xf32>
    %484 = arith.subf %478, %483 : vector<32x8xf32>
    %485 = arith.mulf %484, %484 : vector<32x8xf32>
    %cst_170 = arith.constant dense<0.000000e+00> : vector<32xf32>
    %486 = vector.multi_reduction <add>, %485, %cst_170 [1] : vector<32x8xf32> to vector<32xf32>
    %487 = vector.shape_cast %486 : vector<32xf32> to vector<32x1xf32>
    %cst_171 = arith.constant 8.000000e+00 : f32
    %488 = vector.broadcast %cst_171 : f32 to vector<32x1xf32>
    %489 = arith.divf %487, %488 : vector<32x1xf32>
    %490 = vector.broadcast %482 : vector<32x1xf32> to vector<32x8xf32>
    %491 = arith.subf %478, %490 : vector<32x8xf32>
    %cst_172 = arith.constant 9.99999974E-6 : f32
    %492 = vector.broadcast %cst_172 : f32 to vector<32x1xf32>
    %493 = arith.addf %489, %492 : vector<32x1xf32>
    %494 = math.rsqrt %493 : vector<32x1xf32>
    %495 = vector.broadcast %494 : vector<32x1xf32> to vector<32x8xf32>
    %496 = arith.mulf %491, %495 : vector<32x8xf32>
    %c0_173 = arith.constant 0 : index
    %c20 = arith.constant 20 : index
    %497 = vector.load %arg6[%c0_173, %c20] : memref<32x41xf32, #tpu.memory_space<vmem>>, vector<32x1xf32>
    %498 = vector.broadcast %497 : vector<32x1xf32> to vector<32x8xf32>
    %499 = arith.mulf %496, %498 : vector<32x8xf32>
    %c0_174 = arith.constant 0 : index
    %c21 = arith.constant 21 : index
    %500 = vector.load %arg6[%c0_174, %c21] : memref<32x41xf32, #tpu.memory_space<vmem>>, vector<32x1xf32>
    %501 = vector.broadcast %500 : vector<32x1xf32> to vector<32x8xf32>
    %502 = arith.addf %499, %501 : vector<32x8xf32>
    %503 = vector.extract_strided_slice %502 {offsets = [0, 0], sizes = [16, 8], strides = [1, 1]} : vector<32x8xf32> to vector<16x8xf32>
    %504 = vector.extract_strided_slice %502 {offsets = [16, 0], sizes = [16, 8], strides = [1, 1]} : vector<32x8xf32> to vector<16x8xf32>
    %505 = arith.negf %504 : vector<16x8xf32>
    %506 = math.exp %505 : vector<16x8xf32>
    %cst_175 = arith.constant 1.000000e+00 : f32
    %507 = vector.broadcast %cst_175 : f32 to vector<16x8xf32>
    %508 = arith.addf %507, %506 : vector<16x8xf32>
    %509 = arith.divf %507, %508 : vector<16x8xf32>
    %510 = arith.mulf %503, %509 : vector<16x8xf32>
    %511 = arith.addf %475, %510 : vector<16x8xf32>
    %cst_176 = arith.constant 0.707106769 : f32
    %512 = vector.broadcast %cst_176 : f32 to vector<16x8xf32>
    %513 = arith.mulf %511, %512 : vector<16x8xf32>
    %c5_177 = arith.constant 5 : index
    %c0_178 = arith.constant 0 : index
    %c0_179 = arith.constant 0 : index
    %514 = vector.load %arg3[%c5_177, %c0_178, %c0_179] : memref<9x32x16xf32, #tpu.memory_space<vmem>>, vector<1x32x16xf32>
    %515 = vector.shape_cast %514 : vector<1x32x16xf32> to vector<32x16xf32>
    %cst_180 = arith.constant dense<0.000000e+00> : vector<32x8xf32>
    %516 = tpu.matmul %515, %513, %cst_180 {dimension_numbers = #tpu.dot_dimension_numbers<[1], [0], [0], [1], [0, 0, 1, 1], [], []>} : vector<32x16xf32>, vector<16x8xf32>, vector<32x8xf32> -> vector<32x8xf32>
    %cst_181 = arith.constant dense<0.000000e+00> : vector<32xf32>
    %517 = vector.multi_reduction <add>, %516, %cst_181 [1] : vector<32x8xf32> to vector<32xf32>
    %518 = vector.shape_cast %517 : vector<32xf32> to vector<32x1xf32>
    %cst_182 = arith.constant 8.000000e+00 : f32
    %519 = vector.broadcast %cst_182 : f32 to vector<32x1xf32>
    %520 = arith.divf %518, %519 : vector<32x1xf32>
    %521 = vector.broadcast %520 : vector<32x1xf32> to vector<32x8xf32>
    %522 = arith.subf %516, %521 : vector<32x8xf32>
    %523 = arith.mulf %522, %522 : vector<32x8xf32>
    %cst_183 = arith.constant dense<0.000000e+00> : vector<32xf32>
    %524 = vector.multi_reduction <add>, %523, %cst_183 [1] : vector<32x8xf32> to vector<32xf32>
    %525 = vector.shape_cast %524 : vector<32xf32> to vector<32x1xf32>
    %cst_184 = arith.constant 8.000000e+00 : f32
    %526 = vector.broadcast %cst_184 : f32 to vector<32x1xf32>
    %527 = arith.divf %525, %526 : vector<32x1xf32>
    %528 = vector.broadcast %520 : vector<32x1xf32> to vector<32x8xf32>
    %529 = arith.subf %516, %528 : vector<32x8xf32>
    %cst_185 = arith.constant 9.99999974E-6 : f32
    %530 = vector.broadcast %cst_185 : f32 to vector<32x1xf32>
    %531 = arith.addf %527, %530 : vector<32x1xf32>
    %532 = math.rsqrt %531 : vector<32x1xf32>
    %533 = vector.broadcast %532 : vector<32x1xf32> to vector<32x8xf32>
    %534 = arith.mulf %529, %533 : vector<32x8xf32>
    %c0_186 = arith.constant 0 : index
    %c22 = arith.constant 22 : index
    %535 = vector.load %arg6[%c0_186, %c22] : memref<32x41xf32, #tpu.memory_space<vmem>>, vector<32x1xf32>
    %536 = vector.broadcast %535 : vector<32x1xf32> to vector<32x8xf32>
    %537 = arith.mulf %534, %536 : vector<32x8xf32>
    %c0_187 = arith.constant 0 : index
    %c23 = arith.constant 23 : index
    %538 = vector.load %arg6[%c0_187, %c23] : memref<32x41xf32, #tpu.memory_space<vmem>>, vector<32x1xf32>
    %539 = vector.broadcast %538 : vector<32x1xf32> to vector<32x8xf32>
    %540 = arith.addf %537, %539 : vector<32x8xf32>
    %541 = vector.extract_strided_slice %540 {offsets = [0, 0], sizes = [16, 8], strides = [1, 1]} : vector<32x8xf32> to vector<16x8xf32>
    %542 = vector.extract_strided_slice %540 {offsets = [16, 0], sizes = [16, 8], strides = [1, 1]} : vector<32x8xf32> to vector<16x8xf32>
    %543 = arith.negf %542 : vector<16x8xf32>
    %544 = math.exp %543 : vector<16x8xf32>
    %cst_188 = arith.constant 1.000000e+00 : f32
    %545 = vector.broadcast %cst_188 : f32 to vector<16x8xf32>
    %546 = arith.addf %545, %544 : vector<16x8xf32>
    %547 = arith.divf %545, %546 : vector<16x8xf32>
    %548 = arith.mulf %541, %547 : vector<16x8xf32>
    %549 = arith.addf %513, %548 : vector<16x8xf32>
    %cst_189 = arith.constant 0.707106769 : f32
    %550 = vector.broadcast %cst_189 : f32 to vector<16x8xf32>
    %551 = arith.mulf %549, %550 : vector<16x8xf32>
    %c6_190 = arith.constant 6 : index
    %c0_191 = arith.constant 0 : index
    %c0_192 = arith.constant 0 : index
    %552 = vector.load %arg3[%c6_190, %c0_191, %c0_192] : memref<9x32x16xf32, #tpu.memory_space<vmem>>, vector<1x32x16xf32>
    %553 = vector.shape_cast %552 : vector<1x32x16xf32> to vector<32x16xf32>
    %cst_193 = arith.constant dense<0.000000e+00> : vector<32x8xf32>
    %554 = tpu.matmul %553, %551, %cst_193 {dimension_numbers = #tpu.dot_dimension_numbers<[1], [0], [0], [1], [0, 0, 1, 1], [], []>} : vector<32x16xf32>, vector<16x8xf32>, vector<32x8xf32> -> vector<32x8xf32>
    %cst_194 = arith.constant dense<0.000000e+00> : vector<32xf32>
    %555 = vector.multi_reduction <add>, %554, %cst_194 [1] : vector<32x8xf32> to vector<32xf32>
    %556 = vector.shape_cast %555 : vector<32xf32> to vector<32x1xf32>
    %cst_195 = arith.constant 8.000000e+00 : f32
    %557 = vector.broadcast %cst_195 : f32 to vector<32x1xf32>
    %558 = arith.divf %556, %557 : vector<32x1xf32>
    %559 = vector.broadcast %558 : vector<32x1xf32> to vector<32x8xf32>
    %560 = arith.subf %554, %559 : vector<32x8xf32>
    %561 = arith.mulf %560, %560 : vector<32x8xf32>
    %cst_196 = arith.constant dense<0.000000e+00> : vector<32xf32>
    %562 = vector.multi_reduction <add>, %561, %cst_196 [1] : vector<32x8xf32> to vector<32xf32>
    %563 = vector.shape_cast %562 : vector<32xf32> to vector<32x1xf32>
    %cst_197 = arith.constant 8.000000e+00 : f32
    %564 = vector.broadcast %cst_197 : f32 to vector<32x1xf32>
    %565 = arith.divf %563, %564 : vector<32x1xf32>
    %566 = vector.broadcast %558 : vector<32x1xf32> to vector<32x8xf32>
    %567 = arith.subf %554, %566 : vector<32x8xf32>
    %cst_198 = arith.constant 9.99999974E-6 : f32
    %568 = vector.broadcast %cst_198 : f32 to vector<32x1xf32>
    %569 = arith.addf %565, %568 : vector<32x1xf32>
    %570 = math.rsqrt %569 : vector<32x1xf32>
    %571 = vector.broadcast %570 : vector<32x1xf32> to vector<32x8xf32>
    %572 = arith.mulf %567, %571 : vector<32x8xf32>
    %c0_199 = arith.constant 0 : index
    %c24 = arith.constant 24 : index
    %573 = vector.load %arg6[%c0_199, %c24] : memref<32x41xf32, #tpu.memory_space<vmem>>, vector<32x1xf32>
    %574 = vector.broadcast %573 : vector<32x1xf32> to vector<32x8xf32>
    %575 = arith.mulf %572, %574 : vector<32x8xf32>
    %c0_200 = arith.constant 0 : index
    %c25 = arith.constant 25 : index
    %576 = vector.load %arg6[%c0_200, %c25] : memref<32x41xf32, #tpu.memory_space<vmem>>, vector<32x1xf32>
    %577 = vector.broadcast %576 : vector<32x1xf32> to vector<32x8xf32>
    %578 = arith.addf %575, %577 : vector<32x8xf32>
    %579 = vector.extract_strided_slice %578 {offsets = [0, 0], sizes = [16, 8], strides = [1, 1]} : vector<32x8xf32> to vector<16x8xf32>
    %580 = vector.extract_strided_slice %578 {offsets = [16, 0], sizes = [16, 8], strides = [1, 1]} : vector<32x8xf32> to vector<16x8xf32>
    %581 = arith.negf %580 : vector<16x8xf32>
    %582 = math.exp %581 : vector<16x8xf32>
    %cst_201 = arith.constant 1.000000e+00 : f32
    %583 = vector.broadcast %cst_201 : f32 to vector<16x8xf32>
    %584 = arith.addf %583, %582 : vector<16x8xf32>
    %585 = arith.divf %583, %584 : vector<16x8xf32>
    %586 = arith.mulf %579, %585 : vector<16x8xf32>
    %587 = arith.addf %551, %586 : vector<16x8xf32>
    %cst_202 = arith.constant 0.707106769 : f32
    %588 = vector.broadcast %cst_202 : f32 to vector<16x8xf32>
    %589 = arith.mulf %587, %588 : vector<16x8xf32>
    %590 = vector.extract_strided_slice %589 {offsets = [0, 0], sizes = [8, 8], strides = [1, 1]} : vector<16x8xf32> to vector<8x8xf32>
    %cst_203 = arith.constant 0.000000e+00 : f32
    %591 = vector.broadcast %cst_203 : f32 to vector<8x8xf32>
    %592 = arith.maximumf %590, %591 : vector<8x8xf32>
    %593 = arith.addf %374, %592 : vector<8x8xf32>
    %594 = vector.extract_strided_slice %589 {offsets = [8, 0], sizes = [8, 8], strides = [1, 1]} : vector<16x8xf32> to vector<8x8xf32>
    %c2_204 = arith.constant 2 : index
    %c0_205 = arith.constant 0 : index
    %c0_206 = arith.constant 0 : index
    %595 = vector.load %arg4[%c2_204, %c0_205, %c0_206] : memref<3x16x8xf32, #tpu.memory_space<vmem>>, vector<1x16x8xf32>
    %596 = vector.shape_cast %595 : vector<1x16x8xf32> to vector<16x8xf32>
    %cst_207 = arith.constant dense<0.000000e+00> : vector<16x8xf32>
    %597 = tpu.matmul %596, %594, %cst_207 {dimension_numbers = #tpu.dot_dimension_numbers<[1], [0], [0], [1], [0, 0, 1, 1], [], []>} : vector<16x8xf32>, vector<8x8xf32>, vector<16x8xf32> -> vector<16x8xf32>
    %cst_208 = arith.constant dense<0.000000e+00> : vector<16xf32>
    %598 = vector.multi_reduction <add>, %597, %cst_208 [1] : vector<16x8xf32> to vector<16xf32>
    %599 = vector.shape_cast %598 : vector<16xf32> to vector<16x1xf32>
    %cst_209 = arith.constant 8.000000e+00 : f32
    %600 = vector.broadcast %cst_209 : f32 to vector<16x1xf32>
    %601 = arith.divf %599, %600 : vector<16x1xf32>
    %602 = vector.broadcast %601 : vector<16x1xf32> to vector<16x8xf32>
    %603 = arith.subf %597, %602 : vector<16x8xf32>
    %604 = arith.mulf %603, %603 : vector<16x8xf32>
    %cst_210 = arith.constant dense<0.000000e+00> : vector<16xf32>
    %605 = vector.multi_reduction <add>, %604, %cst_210 [1] : vector<16x8xf32> to vector<16xf32>
    %606 = vector.shape_cast %605 : vector<16xf32> to vector<16x1xf32>
    %cst_211 = arith.constant 8.000000e+00 : f32
    %607 = vector.broadcast %cst_211 : f32 to vector<16x1xf32>
    %608 = arith.divf %606, %607 : vector<16x1xf32>
    %609 = vector.broadcast %601 : vector<16x1xf32> to vector<16x8xf32>
    %610 = arith.subf %597, %609 : vector<16x8xf32>
    %cst_212 = arith.constant 9.99999974E-6 : f32
    %611 = vector.broadcast %cst_212 : f32 to vector<16x1xf32>
    %612 = arith.addf %608, %611 : vector<16x1xf32>
    %613 = math.rsqrt %612 : vector<16x1xf32>
    %614 = vector.broadcast %613 : vector<16x1xf32> to vector<16x8xf32>
    %615 = arith.mulf %610, %614 : vector<16x8xf32>
    %c0_213 = arith.constant 0 : index
    %c38 = arith.constant 38 : index
    %616 = vector.load %arg6[%c0_213, %c38] : memref<32x41xf32, #tpu.memory_space<vmem>>, vector<16x1xf32>
    %617 = vector.broadcast %616 : vector<16x1xf32> to vector<16x8xf32>
    %618 = arith.mulf %615, %617 : vector<16x8xf32>
    %c0_214 = arith.constant 0 : index
    %c39 = arith.constant 39 : index
    %619 = vector.load %arg6[%c0_214, %c39] : memref<32x41xf32, #tpu.memory_space<vmem>>, vector<16x1xf32>
    %620 = vector.broadcast %619 : vector<16x1xf32> to vector<16x8xf32>
    %621 = arith.addf %618, %620 : vector<16x8xf32>
    %cst_215 = arith.constant dense<0xFF800000> : vector<8xf32>
    %622 = vector.multi_reduction <maximumf>, %621, %cst_215 [0] : vector<16x8xf32> to vector<8xf32>
    %623 = vector.shape_cast %622 : vector<8xf32> to vector<1x8xf32>
    %624 = vector.broadcast %623 : vector<1x8xf32> to vector<16x8xf32>
    %625 = arith.subf %621, %624 : vector<16x8xf32>
    %626 = vector.shape_cast %625 : vector<16x8xf32> to vector<1x16x8xf32>
    %627 = vector.shape_cast %625 : vector<16x8xf32> to vector<16x1x8xf32>
    %628 = vector.broadcast %626 : vector<1x16x8xf32> to vector<16x16x8xf32>
    %629 = vector.broadcast %627 : vector<16x1x8xf32> to vector<16x16x8xf32>
    %630 = arith.cmpf oge, %628, %629 : vector<16x16x8xf32>
    %631 = arith.extui %630 : vector<16x16x8xi1> to vector<16x16x8xi32>
    %632 = arith.sitofp %631 : vector<16x16x8xi32> to vector<16x16x8xf32>
    %cst_216 = arith.constant dense<0.000000e+00> : vector<16x8xf32>
    %633 = vector.multi_reduction <add>, %632, %cst_216 [1] : vector<16x16x8xf32> to vector<16x8xf32>
    %634 = vector.shape_cast %625 : vector<16x8xf32> to vector<1x16x8xf32>
    %635 = vector.broadcast %634 : vector<1x16x8xf32> to vector<16x16x8xf32>
    %636 = arith.mulf %632, %635 : vector<16x16x8xf32>
    %cst_217 = arith.constant dense<0.000000e+00> : vector<16x8xf32>
    %637 = vector.multi_reduction <add>, %636, %cst_217 [1] : vector<16x16x8xf32> to vector<16x8xf32>
    %638 = arith.mulf %633, %625 : vector<16x8xf32>
    %cst_218 = arith.constant 1.000000e+00 : f32
    %639 = vector.broadcast %cst_218 : f32 to vector<16x8xf32>
    %640 = arith.addf %639, %638 : vector<16x8xf32>
    %641 = arith.cmpf ogt, %640, %637 : vector<16x8xf32>
    %cst_219 = arith.constant 0.000000e+00 : f32
    %642 = vector.broadcast %cst_219 : f32 to vector<16x8xf32>
    %643 = arith.select %641, %633, %642 : vector<16x8xi1>, vector<16x8xf32>
    %cst_220 = arith.constant dense<0xFF800000> : vector<8xf32>
    %644 = vector.multi_reduction <maximumf>, %643, %cst_220 [0] : vector<16x8xf32> to vector<8xf32>
    %645 = vector.shape_cast %644 : vector<8xf32> to vector<1x8xf32>
    %cst_221 = arith.constant 0.000000e+00 : f32
    %646 = vector.broadcast %cst_221 : f32 to vector<16x8xf32>
    %647 = arith.select %641, %625, %646 : vector<16x8xi1>, vector<16x8xf32>
    %cst_222 = arith.constant dense<0.000000e+00> : vector<8xf32>
    %648 = vector.multi_reduction <add>, %647, %cst_222 [0] : vector<16x8xf32> to vector<8xf32>
    %649 = vector.shape_cast %648 : vector<8xf32> to vector<1x8xf32>
    %cst_223 = arith.constant 1.000000e+00 : f32
    %650 = vector.broadcast %cst_223 : f32 to vector<1x8xf32>
    %651 = arith.subf %649, %650 : vector<1x8xf32>
    %652 = arith.divf %651, %645 : vector<1x8xf32>
    %653 = vector.broadcast %652 : vector<1x8xf32> to vector<16x8xf32>
    %654 = arith.subf %625, %653 : vector<16x8xf32>
    %cst_224 = arith.constant 0.000000e+00 : f32
    %655 = vector.broadcast %cst_224 : f32 to vector<16x8xf32>
    %656 = arith.maximumf %654, %655 : vector<16x8xf32>
    %c2_225 = arith.constant 2 : index
    %c0_226 = arith.constant 0 : index
    %c0_227 = arith.constant 0 : index
    %657 = vector.load %arg8[%c2_225, %c0_226, %c0_227] : memref<3x16x8xf32, #tpu.memory_space<vmem>>, vector<1x16x8xf32>
    %658 = vector.shape_cast %657 : vector<1x16x8xf32> to vector<16x8xf32>
    %659 = vector.shape_cast %656 : vector<16x8xf32> to vector<1x16x8xf32>
    tpu.vector_store %arg8[%c2_225, %c0_226, %c0_227], %659 {strides = array<i32>} : memref<3x16x8xf32, #tpu.memory_space<vmem>>, vector<1x16x8xf32>,
    %660 = arith.mulf %6, %656 : vector<16x8xf32>
    %c0_228 = arith.constant 0 : index
    %c0_229 = arith.constant 0 : index
    %661 = vector.load %arg2[%c0_228, %c0_229] : memref<32x16xf32, #tpu.memory_space<vmem>>, vector<32x16xf32>
    %cst_230 = arith.constant dense<0.000000e+00> : vector<32x8xf32>
    %662 = tpu.matmul %661, %660, %cst_230 {dimension_numbers = #tpu.dot_dimension_numbers<[1], [0], [0], [1], [0, 0, 1, 1], [], []>} : vector<32x16xf32>, vector<16x8xf32>, vector<32x8xf32> -> vector<32x8xf32>
    %cst_231 = arith.constant dense<0.000000e+00> : vector<32xf32>
    %663 = vector.multi_reduction <add>, %662, %cst_231 [1] : vector<32x8xf32> to vector<32xf32>
    %664 = vector.shape_cast %663 : vector<32xf32> to vector<32x1xf32>
    %cst_232 = arith.constant 8.000000e+00 : f32
    %665 = vector.broadcast %cst_232 : f32 to vector<32x1xf32>
    %666 = arith.divf %664, %665 : vector<32x1xf32>
    %667 = vector.broadcast %666 : vector<32x1xf32> to vector<32x8xf32>
    %668 = arith.subf %662, %667 : vector<32x8xf32>
    %669 = arith.mulf %668, %668 : vector<32x8xf32>
    %cst_233 = arith.constant dense<0.000000e+00> : vector<32xf32>
    %670 = vector.multi_reduction <add>, %669, %cst_233 [1] : vector<32x8xf32> to vector<32xf32>
    %671 = vector.shape_cast %670 : vector<32xf32> to vector<32x1xf32>
    %cst_234 = arith.constant 8.000000e+00 : f32
    %672 = vector.broadcast %cst_234 : f32 to vector<32x1xf32>
    %673 = arith.divf %671, %672 : vector<32x1xf32>
    %674 = vector.broadcast %666 : vector<32x1xf32> to vector<32x8xf32>
    %675 = arith.subf %662, %674 : vector<32x8xf32>
    %cst_235 = arith.constant 9.99999974E-6 : f32
    %676 = vector.broadcast %cst_235 : f32 to vector<32x1xf32>
    %677 = arith.addf %673, %676 : vector<32x1xf32>
    %678 = math.rsqrt %677 : vector<32x1xf32>
    %679 = vector.broadcast %678 : vector<32x1xf32> to vector<32x8xf32>
    %680 = arith.mulf %675, %679 : vector<32x8xf32>
    %c0_236 = arith.constant 0 : index
    %c26 = arith.constant 26 : index
    %681 = vector.load %arg6[%c0_236, %c26] : memref<32x41xf32, #tpu.memory_space<vmem>>, vector<32x1xf32>
    %682 = vector.broadcast %681 : vector<32x1xf32> to vector<32x8xf32>
    %683 = arith.mulf %680, %682 : vector<32x8xf32>
    %c0_237 = arith.constant 0 : index
    %c27 = arith.constant 27 : index
    %684 = vector.load %arg6[%c0_237, %c27] : memref<32x41xf32, #tpu.memory_space<vmem>>, vector<32x1xf32>
    %685 = vector.broadcast %684 : vector<32x1xf32> to vector<32x8xf32>
    %686 = arith.addf %683, %685 : vector<32x8xf32>
    %687 = vector.extract_strided_slice %686 {offsets = [0, 0], sizes = [16, 8], strides = [1, 1]} : vector<32x8xf32> to vector<16x8xf32>
    %688 = vector.extract_strided_slice %686 {offsets = [16, 0], sizes = [16, 8], strides = [1, 1]} : vector<32x8xf32> to vector<16x8xf32>
    %689 = arith.negf %688 : vector<16x8xf32>
    %690 = math.exp %689 : vector<16x8xf32>
    %cst_238 = arith.constant 1.000000e+00 : f32
    %691 = vector.broadcast %cst_238 : f32 to vector<16x8xf32>
    %692 = arith.addf %691, %690 : vector<16x8xf32>
    %693 = arith.divf %691, %692 : vector<16x8xf32>
    %694 = arith.mulf %687, %693 : vector<16x8xf32>
    %c0_239 = arith.constant 0 : index
    %c0_240 = arith.constant 0 : index
    %c0_241 = arith.constant 0 : index
    %695 = vector.load %arg3[%c0_239, %c0_240, %c0_241] : memref<9x32x16xf32, #tpu.memory_space<vmem>>, vector<1x32x16xf32>
    %696 = vector.shape_cast %695 : vector<1x32x16xf32> to vector<32x16xf32>
    %cst_242 = arith.constant dense<0.000000e+00> : vector<32x8xf32>
    %697 = tpu.matmul %696, %694, %cst_242 {dimension_numbers = #tpu.dot_dimension_numbers<[1], [0], [0], [1], [0, 0, 1, 1], [], []>} : vector<32x16xf32>, vector<16x8xf32>, vector<32x8xf32> -> vector<32x8xf32>
    %cst_243 = arith.constant dense<0.000000e+00> : vector<32xf32>
    %698 = vector.multi_reduction <add>, %697, %cst_243 [1] : vector<32x8xf32> to vector<32xf32>
    %699 = vector.shape_cast %698 : vector<32xf32> to vector<32x1xf32>
    %cst_244 = arith.constant 8.000000e+00 : f32
    %700 = vector.broadcast %cst_244 : f32 to vector<32x1xf32>
    %701 = arith.divf %699, %700 : vector<32x1xf32>
    %702 = vector.broadcast %701 : vector<32x1xf32> to vector<32x8xf32>
    %703 = arith.subf %697, %702 : vector<32x8xf32>
    %704 = arith.mulf %703, %703 : vector<32x8xf32>
    %cst_245 = arith.constant dense<0.000000e+00> : vector<32xf32>
    %705 = vector.multi_reduction <add>, %704, %cst_245 [1] : vector<32x8xf32> to vector<32xf32>
    %706 = vector.shape_cast %705 : vector<32xf32> to vector<32x1xf32>
    %cst_246 = arith.constant 8.000000e+00 : f32
    %707 = vector.broadcast %cst_246 : f32 to vector<32x1xf32>
    %708 = arith.divf %706, %707 : vector<32x1xf32>
    %709 = vector.broadcast %701 : vector<32x1xf32> to vector<32x8xf32>
    %710 = arith.subf %697, %709 : vector<32x8xf32>
    %cst_247 = arith.constant 9.99999974E-6 : f32
    %711 = vector.broadcast %cst_247 : f32 to vector<32x1xf32>
    %712 = arith.addf %708, %711 : vector<32x1xf32>
    %713 = math.rsqrt %712 : vector<32x1xf32>
    %714 = vector.broadcast %713 : vector<32x1xf32> to vector<32x8xf32>
    %715 = arith.mulf %710, %714 : vector<32x8xf32>
    %c0_248 = arith.constant 0 : index
    %c28 = arith.constant 28 : index
    %716 = vector.load %arg6[%c0_248, %c28] : memref<32x41xf32, #tpu.memory_space<vmem>>, vector<32x1xf32>
    %717 = vector.broadcast %716 : vector<32x1xf32> to vector<32x8xf32>
    %718 = arith.mulf %715, %717 : vector<32x8xf32>
    %c0_249 = arith.constant 0 : index
    %c29 = arith.constant 29 : index
    %719 = vector.load %arg6[%c0_249, %c29] : memref<32x41xf32, #tpu.memory_space<vmem>>, vector<32x1xf32>
    %720 = vector.broadcast %719 : vector<32x1xf32> to vector<32x8xf32>
    %721 = arith.addf %718, %720 : vector<32x8xf32>
    %722 = vector.extract_strided_slice %721 {offsets = [0, 0], sizes = [16, 8], strides = [1, 1]} : vector<32x8xf32> to vector<16x8xf32>
    %723 = vector.extract_strided_slice %721 {offsets = [16, 0], sizes = [16, 8], strides = [1, 1]} : vector<32x8xf32> to vector<16x8xf32>
    %724 = arith.negf %723 : vector<16x8xf32>
    %725 = math.exp %724 : vector<16x8xf32>
    %cst_250 = arith.constant 1.000000e+00 : f32
    %726 = vector.broadcast %cst_250 : f32 to vector<16x8xf32>
    %727 = arith.addf %726, %725 : vector<16x8xf32>
    %728 = arith.divf %726, %727 : vector<16x8xf32>
    %729 = arith.mulf %722, %728 : vector<16x8xf32>
    %730 = arith.addf %694, %729 : vector<16x8xf32>
    %cst_251 = arith.constant 0.707106769 : f32
    %731 = vector.broadcast %cst_251 : f32 to vector<16x8xf32>
    %732 = arith.mulf %730, %731 : vector<16x8xf32>
    %c7_252 = arith.constant 7 : index
    %c0_253 = arith.constant 0 : index
    %c0_254 = arith.constant 0 : index
    %733 = vector.load %arg3[%c7_252, %c0_253, %c0_254] : memref<9x32x16xf32, #tpu.memory_space<vmem>>, vector<1x32x16xf32>
    %734 = vector.shape_cast %733 : vector<1x32x16xf32> to vector<32x16xf32>
    %cst_255 = arith.constant dense<0.000000e+00> : vector<32x8xf32>
    %735 = tpu.matmul %734, %732, %cst_255 {dimension_numbers = #tpu.dot_dimension_numbers<[1], [0], [0], [1], [0, 0, 1, 1], [], []>} : vector<32x16xf32>, vector<16x8xf32>, vector<32x8xf32> -> vector<32x8xf32>
    %cst_256 = arith.constant dense<0.000000e+00> : vector<32xf32>
    %736 = vector.multi_reduction <add>, %735, %cst_256 [1] : vector<32x8xf32> to vector<32xf32>
    %737 = vector.shape_cast %736 : vector<32xf32> to vector<32x1xf32>
    %cst_257 = arith.constant 8.000000e+00 : f32
    %738 = vector.broadcast %cst_257 : f32 to vector<32x1xf32>
    %739 = arith.divf %737, %738 : vector<32x1xf32>
    %740 = vector.broadcast %739 : vector<32x1xf32> to vector<32x8xf32>
    %741 = arith.subf %735, %740 : vector<32x8xf32>
    %742 = arith.mulf %741, %741 : vector<32x8xf32>
    %cst_258 = arith.constant dense<0.000000e+00> : vector<32xf32>
    %743 = vector.multi_reduction <add>, %742, %cst_258 [1] : vector<32x8xf32> to vector<32xf32>
    %744 = vector.shape_cast %743 : vector<32xf32> to vector<32x1xf32>
    %cst_259 = arith.constant 8.000000e+00 : f32
    %745 = vector.broadcast %cst_259 : f32 to vector<32x1xf32>
    %746 = arith.divf %744, %745 : vector<32x1xf32>
    %747 = vector.broadcast %739 : vector<32x1xf32> to vector<32x8xf32>
    %748 = arith.subf %735, %747 : vector<32x8xf32>
    %cst_260 = arith.constant 9.99999974E-6 : f32
    %749 = vector.broadcast %cst_260 : f32 to vector<32x1xf32>
    %750 = arith.addf %746, %749 : vector<32x1xf32>
    %751 = math.rsqrt %750 : vector<32x1xf32>
    %752 = vector.broadcast %751 : vector<32x1xf32> to vector<32x8xf32>
    %753 = arith.mulf %748, %752 : vector<32x8xf32>
    %c0_261 = arith.constant 0 : index
    %c30 = arith.constant 30 : index
    %754 = vector.load %arg6[%c0_261, %c30] : memref<32x41xf32, #tpu.memory_space<vmem>>, vector<32x1xf32>
    %755 = vector.broadcast %754 : vector<32x1xf32> to vector<32x8xf32>
    %756 = arith.mulf %753, %755 : vector<32x8xf32>
    %c0_262 = arith.constant 0 : index
    %c31 = arith.constant 31 : index
    %757 = vector.load %arg6[%c0_262, %c31] : memref<32x41xf32, #tpu.memory_space<vmem>>, vector<32x1xf32>
    %758 = vector.broadcast %757 : vector<32x1xf32> to vector<32x8xf32>
    %759 = arith.addf %756, %758 : vector<32x8xf32>
    %760 = vector.extract_strided_slice %759 {offsets = [0, 0], sizes = [16, 8], strides = [1, 1]} : vector<32x8xf32> to vector<16x8xf32>
    %761 = vector.extract_strided_slice %759 {offsets = [16, 0], sizes = [16, 8], strides = [1, 1]} : vector<32x8xf32> to vector<16x8xf32>
    %762 = arith.negf %761 : vector<16x8xf32>
    %763 = math.exp %762 : vector<16x8xf32>
    %cst_263 = arith.constant 1.000000e+00 : f32
    %764 = vector.broadcast %cst_263 : f32 to vector<16x8xf32>
    %765 = arith.addf %764, %763 : vector<16x8xf32>
    %766 = arith.divf %764, %765 : vector<16x8xf32>
    %767 = arith.mulf %760, %766 : vector<16x8xf32>
    %768 = arith.addf %732, %767 : vector<16x8xf32>
    %cst_264 = arith.constant 0.707106769 : f32
    %769 = vector.broadcast %cst_264 : f32 to vector<16x8xf32>
    %770 = arith.mulf %768, %769 : vector<16x8xf32>
    %c8_265 = arith.constant 8 : index
    %c0_266 = arith.constant 0 : index
    %c0_267 = arith.constant 0 : index
    %771 = vector.load %arg3[%c8_265, %c0_266, %c0_267] : memref<9x32x16xf32, #tpu.memory_space<vmem>>, vector<1x32x16xf32>
    %772 = vector.shape_cast %771 : vector<1x32x16xf32> to vector<32x16xf32>
    %cst_268 = arith.constant dense<0.000000e+00> : vector<32x8xf32>
    %773 = tpu.matmul %772, %770, %cst_268 {dimension_numbers = #tpu.dot_dimension_numbers<[1], [0], [0], [1], [0, 0, 1, 1], [], []>} : vector<32x16xf32>, vector<16x8xf32>, vector<32x8xf32> -> vector<32x8xf32>
    %cst_269 = arith.constant dense<0.000000e+00> : vector<32xf32>
    %774 = vector.multi_reduction <add>, %773, %cst_269 [1] : vector<32x8xf32> to vector<32xf32>
    %775 = vector.shape_cast %774 : vector<32xf32> to vector<32x1xf32>
    %cst_270 = arith.constant 8.000000e+00 : f32
    %776 = vector.broadcast %cst_270 : f32 to vector<32x1xf32>
    %777 = arith.divf %775, %776 : vector<32x1xf32>
    %778 = vector.broadcast %777 : vector<32x1xf32> to vector<32x8xf32>
    %779 = arith.subf %773, %778 : vector<32x8xf32>
    %780 = arith.mulf %779, %779 : vector<32x8xf32>
    %cst_271 = arith.constant dense<0.000000e+00> : vector<32xf32>
    %781 = vector.multi_reduction <add>, %780, %cst_271 [1] : vector<32x8xf32> to vector<32xf32>
    %782 = vector.shape_cast %781 : vector<32xf32> to vector<32x1xf32>
    %cst_272 = arith.constant 8.000000e+00 : f32
    %783 = vector.broadcast %cst_272 : f32 to vector<32x1xf32>
    %784 = arith.divf %782, %783 : vector<32x1xf32>
    %785 = vector.broadcast %777 : vector<32x1xf32> to vector<32x8xf32>
    %786 = arith.subf %773, %785 : vector<32x8xf32>
    %cst_273 = arith.constant 9.99999974E-6 : f32
    %787 = vector.broadcast %cst_273 : f32 to vector<32x1xf32>
    %788 = arith.addf %784, %787 : vector<32x1xf32>
    %789 = math.rsqrt %788 : vector<32x1xf32>
    %790 = vector.broadcast %789 : vector<32x1xf32> to vector<32x8xf32>
    %791 = arith.mulf %786, %790 : vector<32x8xf32>
    %c0_274 = arith.constant 0 : index
    %c32 = arith.constant 32 : index
    %792 = vector.load %arg6[%c0_274, %c32] : memref<32x41xf32, #tpu.memory_space<vmem>>, vector<32x1xf32>
    %793 = vector.broadcast %792 : vector<32x1xf32> to vector<32x8xf32>
    %794 = arith.mulf %791, %793 : vector<32x8xf32>
    %c0_275 = arith.constant 0 : index
    %c33 = arith.constant 33 : index
    %795 = vector.load %arg6[%c0_275, %c33] : memref<32x41xf32, #tpu.memory_space<vmem>>, vector<32x1xf32>
    %796 = vector.broadcast %795 : vector<32x1xf32> to vector<32x8xf32>
    %797 = arith.addf %794, %796 : vector<32x8xf32>
    %798 = vector.extract_strided_slice %797 {offsets = [0, 0], sizes = [16, 8], strides = [1, 1]} : vector<32x8xf32> to vector<16x8xf32>
    %799 = vector.extract_strided_slice %797 {offsets = [16, 0], sizes = [16, 8], strides = [1, 1]} : vector<32x8xf32> to vector<16x8xf32>
    %800 = arith.negf %799 : vector<16x8xf32>
    %801 = math.exp %800 : vector<16x8xf32>
    %cst_276 = arith.constant 1.000000e+00 : f32
    %802 = vector.broadcast %cst_276 : f32 to vector<16x8xf32>
    %803 = arith.addf %802, %801 : vector<16x8xf32>
    %804 = arith.divf %802, %803 : vector<16x8xf32>
    %805 = arith.mulf %798, %804 : vector<16x8xf32>
    %806 = arith.addf %770, %805 : vector<16x8xf32>
    %cst_277 = arith.constant 0.707106769 : f32
    %807 = vector.broadcast %cst_277 : f32 to vector<16x8xf32>
    %808 = arith.mulf %806, %807 : vector<16x8xf32>
    %809 = vector.extract_strided_slice %808 {offsets = [0, 0], sizes = [8, 8], strides = [1, 1]} : vector<16x8xf32> to vector<8x8xf32>
    %cst_278 = arith.constant 0.000000e+00 : f32
    %810 = vector.broadcast %cst_278 : f32 to vector<8x8xf32>
    %811 = arith.maximumf %809, %810 : vector<8x8xf32>
    %812 = arith.addf %593, %811 : vector<8x8xf32>
    %c0_279 = arith.constant 0 : index
    %c0_280 = arith.constant 0 : index
    %813 = vector.load %arg5[%c0_279, %c0_280] : memref<4x8xf32, #tpu.memory_space<vmem>>, vector<4x8xf32>
    %cst_281 = arith.constant dense<0.000000e+00> : vector<4x8xf32>
    %814 = tpu.matmul %813, %812, %cst_281 {dimension_numbers = #tpu.dot_dimension_numbers<[1], [0], [0], [1], [0, 0, 1, 1], [], []>} : vector<4x8xf32>, vector<8x8xf32>, vector<4x8xf32> -> vector<4x8xf32>
    %c0_282 = arith.constant 0 : index
    %c40 = arith.constant 40 : index
    %815 = vector.load %arg6[%c0_282, %c40] : memref<32x41xf32, #tpu.memory_space<vmem>>, vector<4x1xf32>
    %816 = vector.broadcast %815 : vector<4x1xf32> to vector<4x8xf32>
    %817 = arith.addf %814, %816 : vector<4x8xf32>
    %c0_283 = arith.constant 0 : index
    %c0_284 = arith.constant 0 : index
    %818 = vector.load %arg7[%c0_283, %c0_284] : memref<4x8xf32, #tpu.memory_space<vmem>>, vector<4x8xf32>
    tpu.vector_store %arg7[%c0_283, %c0_284], %817 {strides = array<i32>} : memref<4x8xf32, #tpu.memory_space<vmem>>, vector<4x8xf32>,
    return
  }
  func.func @transform_0(%arg0: i32) -> (i32, i32) {
    %c0_i32 = arith.constant 0 : i32
    %c0_i32_0 = arith.constant 0 : i32
    return %c0_i32, %arg0 : i32, i32
  }
  func.func @transform_1(%arg0: i32) -> (i32, i32) {
    %c0_i32 = arith.constant 0 : i32
    %c0_i32_0 = arith.constant 0 : i32
    %c0_i32_1 = arith.constant 0 : i32
    return %c0_i32, %c0_i32_0 : i32, i32
  }
  func.func @transform_2(%arg0: i32) -> (i32, i32, i32) {
    %c0_i32 = arith.constant 0 : i32
    %c0_i32_0 = arith.constant 0 : i32
    %c0_i32_1 = arith.constant 0 : i32
    %c0_i32_2 = arith.constant 0 : i32
    return %c0_i32, %c0_i32_0, %c0_i32_1 : i32, i32, i32
  }
  func.func @transform_3(%arg0: i32) -> (i32, i32, i32) {
    %c0_i32 = arith.constant 0 : i32
    %c0_i32_0 = arith.constant 0 : i32
    %c0_i32_1 = arith.constant 0 : i32
    %c0_i32_2 = arith.constant 0 : i32
    return %c0_i32, %c0_i32_0, %c0_i32_1 : i32, i32, i32
  }
  func.func @transform_4(%arg0: i32) -> (i32, i32) {
    %c0_i32 = arith.constant 0 : i32
    %c0_i32_0 = arith.constant 0 : i32
    %c0_i32_1 = arith.constant 0 : i32
    return %c0_i32, %c0_i32_0 : i32, i32
  }
  func.func @transform_5(%arg0: i32) -> (i32, i32) {
    %c0_i32 = arith.constant 0 : i32
    %c0_i32_0 = arith.constant 0 : i32
    %c0_i32_1 = arith.constant 0 : i32
    return %c0_i32, %c0_i32_0 : i32, i32
  }
  func.func @transform_6(%arg0: i32) -> (i32, i32) {
    %c0_i32 = arith.constant 0 : i32
    %c0_i32_0 = arith.constant 0 : i32
    return %c0_i32, %arg0 : i32, i32
  }
  func.func @transform_7(%arg0: i32) -> (i32, i32, i32) {
    %c0_i32 = arith.constant 0 : i32
    %c0_i32_0 = arith.constant 0 : i32
    %c0_i32_1 = arith.constant 0 : i32
    return %c0_i32, %c0_i32_0, %arg0 : i32, i32, i32
  }
}

</mosaic_0001>

<llo_original>
// kernel: tabnet_forward.1
$region0: #{tabnet_forward.1}
  #allocation0 [shape = 'u32[]', space=smem, size = 0x4, offset = 0x4, fixed_abs, tag = 'smem constant byte address 0x4 - core index']
  #allocation1 [shape = 'u32[144,128]{1,0:T(1,128)}', space=vmem, size = 0x12000, scoped, tag = 'internal scratch']
  %s0 = inlined_call_operand.vmem [shape: f32[16,8], index: 0, kind: input, shape index: {}]
  %s1 = inlined_call_operand.vmem [shape: f32[32,16], index: 1, kind: input, shape index: {}]
  %s2 = inlined_call_operand.vmem [shape: f32[9,32,16], index: 2, kind: input, shape index: {}]
  %s3 = inlined_call_operand.vmem [shape: f32[3,16,8], index: 3, kind: input, shape index: {}]
  %s4 = inlined_call_operand.vmem [shape: f32[4,8], index: 4, kind: input, shape index: {}]
  %s5 = inlined_call_operand.vmem [shape: f32[32,41], index: 5, kind: input, shape index: {}]
  %s6 = inlined_call_operand.hbm [shape: f32[4,8], index: 6, kind: output, shape index: {0}]
  %s7 = inlined_call_operand.vmem [shape: f32[3,16,8], index: 7, kind: output, shape index: {1}]
  %8 = xla_tuple %s6, %s7
  %s9 = sld [smem:[#allocation0]]
  $region42: #{tabnet_forward.1} parent=0
    _
  %s11 = ssub.s32 1, %s9
  %s12 = scalar_select 0, %s11, %s9
  $region1: #{tabnet_forward.1} parent=0
    #allocation2 [shape = 'u8[2048]{0}', space=vmem, size = 0x800, scoped, tag = 'output window, operand 0, single buffered']
    #allocation3 [shape = 's32[1]{0}', space=sflag, size = 0x4, scoped, tag = 'scoped memory for tabnet_forward.1']
    %13 = vsyncpa [#allocation3], 0
    // Predicated region
    $region2: #{tabnet_forward.1} parent=1 // pred_check
      _
    $region3: #{tabnet_forward.1} parent=1 // pred_check_branch
      %15 = sbr.rel (0) target = $region5
    $region4: #{tabnet_forward.1} parent=1 // pred_region
      _
    $region5: #{tabnet_forward.1} parent=1 // pred_fallthru
      _
    // Predicated region
    $region6: #{tabnet_forward.1} parent=1 // pred_check
      _
    $region7: #{tabnet_forward.1} parent=1 // pred_check_branch
      %17 = sbr.rel (0) target = $region9
    $region8: #{tabnet_forward.1} parent=1 // pred_region
      _
    $region9: #{tabnet_forward.1} parent=1 // pred_fallthru
      _
    // Predicated region
    $region10: #{tabnet_forward.1} parent=1 // pred_check
      _
    $region11: #{tabnet_forward.1} parent=1 // pred_check_branch
      %19 = sbr.rel (0) target = $region13
    $region12: #{tabnet_forward.1} parent=1 // pred_region
      _
    $region13: #{tabnet_forward.1} parent=1 // pred_fallthru
      _
    // Predicated region
    $region14: #{tabnet_forward.1} parent=1 // pred_check
      _
    $region15: #{tabnet_forward.1} parent=1 // pred_check_branch
      %21 = sbr.rel (0) target = $region17
    $region16: #{tabnet_forward.1} parent=1 // pred_region
      _
    $region17: #{tabnet_forward.1} parent=1 // pred_fallthru
      _
    // Predicated region
    $region18: #{tabnet_forward.1} parent=1 // pred_check
      _
    $region19: #{tabnet_forward.1} parent=1 // pred_check_branch
      %23 = sbr.rel (0) target = $region21
    $region20: #{tabnet_forward.1} parent=1 // pred_region
      _
    $region21: #{tabnet_forward.1} parent=1 // pred_fallthru
      _
    // Predicated region
    $region22: #{tabnet_forward.1} parent=1 // pred_check
      _
    $region23: #{tabnet_forward.1} parent=1 // pred_check_branch
      %25 = sbr.rel (0) target = $region25
    $region24: #{tabnet_forward.1} parent=1 // pred_region
      _
    $region25: #{tabnet_forward.1} parent=1 // pred_fallthru
      _
    %v26 = vld [vmem:[%s0] sm:$0xff]
    %v27 = vld [vmem:[%s0 + $0x8] sm:$0xff]
    %v28 = vld [vmem:[%s5] sm:$0xff]
    %v29 = vld [vmem:[%s5 + $0x8] sm:$0xff]
    %31 = vset.pattern.permute.xlu0 0
    %32 = vperm.xlu0 %31, %v28
    %v33 = vpop.permute.xlu0 %32
    %36 = vset.pattern.permute.xlu0 0
    %37 = vperm.xlu0 %36, %v29
    %v38 = vpop.permute.xlu0 %37
    %v40 = vmul.f32 %v26, %v33
    %v41 = vmul.f32 %v27, %v38
    %42 = vset.pattern.permute.xlu0 1
    %43 = vperm.xlu0 %42, %v28
    %v44 = vpop.permute.xlu0 %43
    %46 = vset.pattern.permute.xlu0 1
    %47 = vperm.xlu0 %46, %v29
    %v48 = vpop.permute.xlu0 %47
    %v50 = vadd.f32 %v40, %v44
    %v51 = vadd.f32 %v41, %v48
    %v52 = vld [vmem:[%s1] sm:$0xff]
    %v53 = vld [vmem:[%s1 + $0x8] sm:$0xff]
    %v54 = vld [vmem:[%s1 + $0x10] sm:$0xff]
    %v55 = vld [vmem:[%s1 + $0x18] sm:$0xff]
    %vm56 = vcmask 130048
    %v58 = vsel %vm56, %v52, 0
    %v61 = vsel %vm56, %v53, 0
    %v64 = vsel %vm56, %v54, 0
    %v67 = vsel %vm56, %v55, 0
    %69 = vmatprep.subr.mxu0 0.0
    %70 = vmatpush1.msra.mxu0 %v50
    %71 = vmatprep.subr.mxu0 0.0
    %72 = vmatpush1.msra.mxu0 %v51
    %73 = vmatprep.subr.mxu0 0.0
    %74 = vmatpush1.msra.mxu0 0.0
    %75 = vmatprep.subr.mxu0 0.0
    %76 = vmatpush1.msra.mxu0 0.0
    %77 = vmatprep.subr.mxu0 0.0
    %78 = vmatpush1.msra.mxu0 0.0
    %79 = vmatprep.subr.mxu0 0.0
    %80 = vmatpush1.msra.mxu0 0.0
    %81 = vmatprep.subr.mxu0 0.0
    %82 = vmatpush1.msra.mxu0 0.0
    %83 = vmatprep.subr.mxu0 0.0
    %84 = vmatpush1.msra.mxu0 0.0
    %85 = vmatprep.subr.mxu0 0.0
    %86 = vmatpush1.msra.mxu0 0.0
    %87 = vmatprep.subr.mxu0 0.0
    %88 = vmatpush1.msra.mxu0 0.0
    %89 = vmatprep.subr.mxu0 0.0
    %90 = vmatpush1.msra.mxu0 0.0
    %91 = vmatprep.subr.mxu0 0.0
    %92 = vmatpush1.msra.mxu0 0.0
    %93 = vmatprep.subr.mxu0 0.0
    %94 = vmatpush1.msra.mxu0 0.0
    %95 = vmatprep.subr.mxu0 0.0
    %96 = vmatpush1.msra.mxu0 0.0
    %97 = vmatprep.subr.mxu0 0.0
    %98 = vmatpush1.msra.mxu0 0.0
    %99 = vmatprep.subr.mxu0 0.0
    %100 = vmatpush1.msra.mxu0 0.0
    %101 = vmatprep.subr.mxu0 0.0
    %102 = vmatpush1.msra.mxu0 0.0
    %103 = vmatprep.subr.mxu0 0.0
    %104 = vmatpush1.msra.mxu0 0.0
    %105 = vmatprep.subr.mxu0 0.0
    %106 = vmatpush1.msra.mxu0 0.0
    %107 = vmatprep.subr.mxu0 0.0
    %108 = vmatpush1.msra.mxu0 0.0
    %109 = vmatprep.subr.mxu0 0.0
    %110 = vmatpush1.msra.mxu0 0.0
    %111 = vmatprep.subr.mxu0 0.0
    %112 = vmatpush1.msra.mxu0 0.0
    %113 = vmatprep.subr.mxu0 0.0
    %114 = vmatpush1.msra.mxu0 0.0
    %115 = vmatprep.subr.mxu0 0.0
    %116 = vmatpush1.msra.mxu0 0.0
    %117 = vmatprep.subr.mxu0 0.0
    %118 = vmatpush1.msra.mxu0 0.0
    %119 = vmatprep.subr.mxu0 0.0
    %120 = vmatpush1.msra.mxu0 0.0
    %121 = vmatprep.subr.mxu0 0.0
    %122 = vmatpush1.msra.mxu0 0.0
    %123 = vmatprep.subr.mxu0 0.0
    %124 = vmatpush1.msra.mxu0 0.0
    %125 = vmatprep.subr.mxu0 0.0
    %126 = vmatpush1.msra.mxu0 0.0
    %127 = vmatprep.subr.mxu0 0.0
    %128 = vmatpush1.msra.mxu0 0.0
    %129 = vmatprep.subr.mxu0 0.0
    %130 = vmatpush1.msra.mxu0 0.0
    %131 = vmatprep.subr.mxu0 0.0
    %132 = vmatpush1.msra.mxu0 0.0
    %133 = vmatprep.mubr.f32.mxu0 0.0
    %134 = vmatmul.mubr.f32.gmra.mrb[0].mxu0 %v58
    %v135 = vpop.f32.mrb[0].mxu0
    %v136 = vadd.f32 0.0, %v135
    %v137 = vpop.f32.mrb[0].mxu0
    %138 = vmatprep.mubr.f32.mxu0 0.0
    %139 = vmatmul.mubr.f32.gmra.mrb[0].mxu0 %v61
    %v140 = vpop.f32.mrb[0].mxu0
    %v141 = vadd.f32 0.0, %v140
    %v142 = vpop.f32.mrb[0].mxu0
    %143 = vmatprep.mubr.f32.mxu0 0.0
    %144 = vmatmul.mubr.f32.gmra.mrb[0].mxu0 %v64
    %v145 = vpop.f32.mrb[0].mxu0
    %v146 = vadd.f32 0.0, %v145
    %v147 = vpop.f32.mrb[0].mxu0
    %148 = vmatprep.mubr.f32.mxu0 0.0
    %149 = vmatmul.mubr.f32.gmra.mrb[0].mxu0 %v67
    %v150 = vpop.f32.mrb[0].mxu0
    %v151 = vadd.f32 0.0, %v150
    %v152 = vpop.f32.mrb[0].mxu0
    %153 = vdwg.mxu0
    %vm154 = vcmask 64512
    %v155 = vsel %vm154, %v136, 0.0
    %156 = vadd.xlane.f32.xlu0 %v155
    %v157 = vpop.xlane.xlu0 %156
    %v158 = vsel %vm154, %v141, 0.0
    %159 = vadd.xlane.f32.xlu0 %v158
    %v160 = vpop.xlane.xlu0 %159
    %v161 = vsel %vm154, %v146, 0.0
    %162 = vadd.xlane.f32.xlu0 %v161
    %v163 = vpop.xlane.xlu0 %162
    %v164 = vsel %vm154, %v151, 0.0
    %165 = vadd.xlane.f32.xlu0 %v164
    %v166 = vpop.xlane.xlu0 %165
    %v167 = vrcp.pop 8.0
    %v168 = vmul.f32 %v157, %v167
    %v169 = vmul.f32 %v160, %v167
    %v170 = vmul.f32 %v163, %v167
    %v171 = vmul.f32 %v166, %v167
    %v172 = vsub.f32 %v136, %v168
    %v173 = vsub.f32 %v141, %v169
    %v174 = vsub.f32 %v146, %v170
    %v175 = vsub.f32 %v151, %v171
    %v176 = vmul.f32 %v172, %v172
    %v177 = vmul.f32 %v173, %v173
    %v178 = vmul.f32 %v174, %v174
    %v179 = vmul.f32 %v175, %v175
    %v180 = vsel %vm154, %v176, 0.0
    %181 = vadd.xlane.f32.xlu0 %v180
    %v182 = vpop.xlane.xlu0 %181
    %v183 = vsel %vm154, %v177, 0.0
    %184 = vadd.xlane.f32.xlu0 %v183
    %v185 = vpop.xlane.xlu0 %184
    %v186 = vsel %vm154, %v178, 0.0
    %187 = vadd.xlane.f32.xlu0 %v186
    %v188 = vpop.xlane.xlu0 %187
    %v189 = vsel %vm154, %v179, 0.0
    %190 = vadd.xlane.f32.xlu0 %v189
    %v191 = vpop.xlane.xlu0 %190
    %v192 = vmul.f32 %v182, %v167
    %v193 = vmul.f32 %v185, %v167
    %v194 = vmul.f32 %v188, %v167
    %v195 = vmul.f32 %v191, %v167
    %v196 = vadd.f32 %v192, 1e-05
    %v197 = vadd.f32 %v193, 1e-05
    %v198 = vadd.f32 %v194, 1e-05
    %v199 = vadd.f32 %v195, 1e-05
    %v200 = vrsqrt.pop %v196
    %v201 = vrsqrt.pop %v197
    %v202 = vrsqrt.pop %v198
    %v203 = vrsqrt.pop %v199
    %v204 = vmul.f32 %v172, %v200
    %v205 = vmul.f32 %v173, %v201
    %v206 = vmul.f32 %v174, %v202
    %v207 = vmul.f32 %v175, %v203
    %v208 = vld [vmem:[%s5] sm:$0xff]
    %v209 = vld [vmem:[%s5 + $0x8] sm:$0xff]
    %v210 = vld [vmem:[%s5 + $0x10] sm:$0xff]
    %v211 = vld [vmem:[%s5 + $0x18] sm:$0xff]
    %213 = vset.pattern.permute.xlu0 2
    %214 = vperm.xlu0 %213, %v208
    %v215 = vpop.permute.xlu0 %214
    %218 = vset.pattern.permute.xlu0 2
    %219 = vperm.xlu0 %218, %v209
    %v220 = vpop.permute.xlu0 %219
    %223 = vset.pattern.permute.xlu0 2
    %224 = vperm.xlu0 %223, %v210
    %v225 = vpop.permute.xlu0 %224
    %228 = vset.pattern.permute.xlu0 2
    %229 = vperm.xlu0 %228, %v211
    %v230 = vpop.permute.xlu0 %229
    %v232 = vmul.f32 %v204, %v215
    %v233 = vmul.f32 %v205, %v220
    %v234 = vmul.f32 %v206, %v225
    %v235 = vmul.f32 %v207, %v230
    %236 = vset.pattern.permute.xlu0 3
    %237 = vperm.xlu0 %236, %v208
    %v238 = vpop.permute.xlu0 %237
    %240 = vset.pattern.permute.xlu0 3
    %241 = vperm.xlu0 %240, %v209
    %v242 = vpop.permute.xlu0 %241
    %244 = vset.pattern.permute.xlu0 3
    %245 = vperm.xlu0 %244, %v210
    %v246 = vpop.permute.xlu0 %245
    %248 = vset.pattern.permute.xlu0 3
    %249 = vperm.xlu0 %248, %v211
    %v250 = vpop.permute.xlu0 %249
    %v252 = vadd.f32 %v232, %v238
    %v253 = vadd.f32 %v233, %v242
    %v254 = vadd.f32 %v234, %v246
    %v255 = vadd.f32 %v235, %v250
    %v256 = vxor.u32 %v254, 2147483648
    %v257 = vxor.u32 %v255, 2147483648
    %v258 = vmul.f32 %v256, 1.442695
    %v259 = vpow.pop %v258
    %v260 = vmul.f32 %v257, 1.442695
    %v261 = vpow.pop %v260
    %v262 = vadd.f32 %v259, 1.0
    %v263 = vadd.f32 %v261, 1.0
    %v264 = vrcp.pop %v262
    %v265 = vmul.f32 1.0, %v264
    %v266 = vrcp.pop %v263
    %v267 = vmul.f32 1.0, %v266
    %v268 = vmul.f32 %v252, %v265
    %v269 = vmul.f32 %v253, %v267
    %v270 = vld [vmem:[%s2] sm:$0xff]
    %v271 = vld [vmem:[%s2 + $0x8] sm:$0xff]
    %v272 = vld [vmem:[%s2 + $0x10] sm:$0xff]
    %v273 = vld [vmem:[%s2 + $0x18] sm:$0xff]
    %v275 = vsel %vm56, %v270, 0
    %v278 = vsel %vm56, %v271, 0
    %v281 = vsel %vm56, %v272, 0
    %v284 = vsel %vm56, %v273, 0
    %286 = vmatprep.subr.mxu0 0.0
    %287 = vmatpush1.msra.mxu0 %v268
    %288 = vmatprep.subr.mxu0 0.0
    %289 = vmatpush1.msra.mxu0 %v269
    %290 = vmatprep.subr.mxu0 0.0
    %291 = vmatpush1.msra.mxu0 0.0
    %292 = vmatprep.subr.mxu0 0.0
    %293 = vmatpush1.msra.mxu0 0.0
    %294 = vmatprep.subr.mxu0 0.0
    %295 = vmatpush1.msra.mxu0 0.0
    %296 = vmatprep.subr.mxu0 0.0
    %297 = vmatpush1.msra.mxu0 0.0
    %298 = vmatprep.subr.mxu0 0.0
    %299 = vmatpush1.msra.mxu0 0.0
    %300 = vmatprep.subr.mxu0 0.0
    %301 = vmatpush1.msra.mxu0 0.0
    %302 = vmatprep.subr.mxu0 0.0
    %303 = vmatpush1.msra.mxu0 0.0
    %304 = vmatprep.subr.mxu0 0.0
    %305 = vmatpush1.msra.mxu0 0.0
    %306 = vmatprep.subr.mxu0 0.0
    %307 = vmatpush1.msra.mxu0 0.0
    %308 = vmatprep.subr.mxu0 0.0
    %309 = vmatpush1.msra.mxu0 0.0
    %310 = vmatprep.subr.mxu0 0.0
    %311 = vmatpush1.msra.mxu0 0.0
    %312 = vmatprep.subr.mxu0 0.0
    %313 = vmatpush1.msra.mxu0 0.0
    %314 = vmatprep.subr.mxu0 0.0
    %315 = vmatpush1.msra.mxu0 0.0
    %316 = vmatprep.subr.mxu0 0.0
    %317 = vmatpush1.msra.mxu0 0.0
    %318 = vmatprep.subr.mxu0 0.0
    %319 = vmatpush1.msra.mxu0 0.0
    %320 = vmatprep.subr.mxu0 0.0
    %321 = vmatpush1.msra.mxu0 0.0
    %322 = vmatprep.subr.mxu0 0.0
    %323 = vmatpush1.msra.mxu0 0.0
    %324 = vmatprep.subr.mxu0 0.0
    %325 = vmatpush1.msra.mxu0 0.0
    %326 = vmatprep.subr.mxu0 0.0
    %327 = vmatpush1.msra.mxu0 0.0
    %328 = vmatprep.subr.mxu0 0.0
    %329 = vmatpush1.msra.mxu0 0.0
    %330 = vmatprep.subr.mxu0 0.0
    %331 = vmatpush1.msra.mxu0 0.0
    %332 = vmatprep.subr.mxu0 0.0
    %333 = vmatpush1.msra.mxu0 0.0
    %334 = vmatprep.subr.mxu0 0.0
    %335 = vmatpush1.msra.mxu0 0.0
    %336 = vmatprep.subr.mxu0 0.0
    %337 = vmatpush1.msra.mxu0 0.0
    %338 = vmatprep.subr.mxu0 0.0
    %339 = vmatpush1.msra.mxu0 0.0
    %340 = vmatprep.subr.mxu0 0.0
    %341 = vmatpush1.msra.mxu0 0.0
    %342 = vmatprep.subr.mxu0 0.0
    %343 = vmatpush1.msra.mxu0 0.0
    %344 = vmatprep.subr.mxu0 0.0
    %345 = vmatpush1.msra.mxu0 0.0
    %346 = vmatprep.subr.mxu0 0.0
    %347 = vmatpush1.msra.mxu0 0.0
    %348 = vmatprep.subr.mxu0 0.0
    %349 = vmatpush1.msra.mxu0 0.0
    %350 = vmatprep.mubr.f32.mxu0 0.0
    %351 = vmatmul.mubr.f32.gmra.mrb[0].mxu0 %v275
    %v352 = vpop.f32.mrb[0].mxu0
    %v353 = vadd.f32 0.0, %v352
    %v354 = vpop.f32.mrb[0].mxu0
    %355 = vmatprep.mubr.f32.mxu0 0.0
    %356 = vmatmul.mubr.f32.gmra.mrb[0].mxu0 %v278
    %v357 = vpop.f32.mrb[0].mxu0
    %v358 = vadd.f32 0.0, %v357
    %v359 = vpop.f32.mrb[0].mxu0
    %360 = vmatprep.mubr.f32.mxu0 0.0
    %361 = vmatmul.mubr.f32.gmra.mrb[0].mxu0 %v281
    %v362 = vpop.f32.mrb[0].mxu0
    %v363 = vadd.f32 0.0, %v362
    %v364 = vpop.f32.mrb[0].mxu0
    %365 = vmatprep.mubr.f32.mxu0 0.0
    %366 = vmatmul.mubr.f32.gmra.mrb[0].mxu0 %v284
    %v367 = vpop.f32.mrb[0].mxu0
    %v368 = vadd.f32 0.0, %v367
    %v369 = vpop.f32.mrb[0].mxu0
    %370 = vdwg.mxu0
    %v371 = vsel %vm154, %v353, 0.0
    %372 = vadd.xlane.f32.xlu0 %v371
    %v373 = vpop.xlane.xlu0 %372
    %v374 = vsel %vm154, %v358, 0.0
    %375 = vadd.xlane.f32.xlu0 %v374
    %v376 = vpop.xlane.xlu0 %375
    %v377 = vsel %vm154, %v363, 0.0
    %378 = vadd.xlane.f32.xlu0 %v377
    %v379 = vpop.xlane.xlu0 %378
    %v380 = vsel %vm154, %v368, 0.0
    %381 = vadd.xlane.f32.xlu0 %v380
    %v382 = vpop.xlane.xlu0 %381
    %v383 = vmul.f32 %v373, %v167
    %v384 = vmul.f32 %v376, %v167
    %v385 = vmul.f32 %v379, %v167
    %v386 = vmul.f32 %v382, %v167
    %v387 = vsub.f32 %v353, %v383
    %v388 = vsub.f32 %v358, %v384
    %v389 = vsub.f32 %v363, %v385
    %v390 = vsub.f32 %v368, %v386
    %v391 = vmul.f32 %v387, %v387
    %v392 = vmul.f32 %v388, %v388
    %v393 = vmul.f32 %v389, %v389
    %v394 = vmul.f32 %v390, %v390
    %v395 = vsel %vm154, %v391, 0.0
    %396 = vadd.xlane.f32.xlu0 %v395
    %v397 = vpop.xlane.xlu0 %396
    %v398 = vsel %vm154, %v392, 0.0
    %399 = vadd.xlane.f32.xlu0 %v398
    %v400 = vpop.xlane.xlu0 %399
    %v401 = vsel %vm154, %v393, 0.0
    %402 = vadd.xlane.f32.xlu0 %v401
    %v403 = vpop.xlane.xlu0 %402
    %v404 = vsel %vm154, %v394, 0.0
    %405 = vadd.xlane.f32.xlu0 %v404
    %v406 = vpop.xlane.xlu0 %405
    %v407 = vmul.f32 %v397, %v167
    %v408 = vmul.f32 %v400, %v167
    %v409 = vmul.f32 %v403, %v167
    %v410 = vmul.f32 %v406, %v167
    %v411 = vadd.f32 %v407, 1e-05
    %v412 = vadd.f32 %v408, 1e-05
    %v413 = vadd.f32 %v409, 1e-05
    %v414 = vadd.f32 %v410, 1e-05
    %v415 = vrsqrt.pop %v411
    %v416 = vrsqrt.pop %v412
    %v417 = vrsqrt.pop %v413
    %v418 = vrsqrt.pop %v414
    %v419 = vmul.f32 %v387, %v415
    %v420 = vmul.f32 %v388, %v416
    %v421 = vmul.f32 %v389, %v417
    %v422 = vmul.f32 %v390, %v418
    %423 = vset.pattern.permute.xlu0 4
    %424 = vperm.xlu0 %423, %v208
    %v425 = vpop.permute.xlu0 %424
    %427 = vset.pattern.permute.xlu0 4
    %428 = vperm.xlu0 %427, %v209
    %v429 = vpop.permute.xlu0 %428
    %431 = vset.pattern.permute.xlu0 4
    %432 = vperm.xlu0 %431, %v210
    %v433 = vpop.permute.xlu0 %432
    %435 = vset.pattern.permute.xlu0 4
    %436 = vperm.xlu0 %435, %v211
    %v437 = vpop.permute.xlu0 %436
    %v439 = vmul.f32 %v419, %v425
    %v440 = vmul.f32 %v420, %v429
    %v441 = vmul.f32 %v421, %v433
    %v442 = vmul.f32 %v422, %v437
    %443 = vset.pattern.permute.xlu0 5
    %444 = vperm.xlu0 %443, %v208
    %v445 = vpop.permute.xlu0 %444
    %447 = vset.pattern.permute.xlu0 5
    %448 = vperm.xlu0 %447, %v209
    %v449 = vpop.permute.xlu0 %448
    %451 = vset.pattern.permute.xlu0 5
    %452 = vperm.xlu0 %451, %v210
    %v453 = vpop.permute.xlu0 %452
    %455 = vset.pattern.permute.xlu0 5
    %456 = vperm.xlu0 %455, %v211
    %v457 = vpop.permute.xlu0 %456
    %v459 = vadd.f32 %v439, %v445
    %v460 = vadd.f32 %v440, %v449
    %v461 = vadd.f32 %v441, %v453
    %v462 = vadd.f32 %v442, %v457
    %v463 = vxor.u32 %v461, 2147483648
    %v464 = vxor.u32 %v462, 2147483648
    %v465 = vmul.f32 %v463, 1.442695
    %v466 = vpow.pop %v465
    %v467 = vmul.f32 %v464, 1.442695
    %v468 = vpow.pop %v467
    %v469 = vadd.f32 %v466, 1.0
    %v470 = vadd.f32 %v468, 1.0
    %v471 = vrcp.pop %v469
    %v472 = vmul.f32 1.0, %v471
    %v473 = vrcp.pop %v470
    %v474 = vmul.f32 1.0, %v473
    %v475 = vmul.f32 %v459, %v472
    %v476 = vmul.f32 %v460, %v474
    %v477 = vadd.f32 %v268, %v475
    %v478 = vadd.f32 %v269, %v476
    %v479 = vmul.f32 %v477, 0.70710677
    %v480 = vmul.f32 %v478, 0.70710677
    %s481 = scalar_lea.vmem %s2, 32
    %v482 = vld [vmem:[%s481] sm:$0xff]
    %v483 = vld [vmem:[%s481 + $0x8] sm:$0xff]
    %v484 = vld [vmem:[%s481 + $0x10] sm:$0xff]
    %v485 = vld [vmem:[%s481 + $0x18] sm:$0xff]
    %v487 = vsel %vm56, %v482, 0
    %v490 = vsel %vm56, %v483, 0
    %v493 = vsel %vm56, %v484, 0
    %v496 = vsel %vm56, %v485, 0
    %498 = vmatprep.subr.mxu0 0.0
    %499 = vmatpush1.msra.mxu0 %v479
    %500 = vmatprep.subr.mxu0 0.0
    %501 = vmatpush1.msra.mxu0 %v480
    %502 = vmatprep.subr.mxu0 0.0
    %503 = vmatpush1.msra.mxu0 0.0
    %504 = vmatprep.subr.mxu0 0.0
    %505 = vmatpush1.msra.mxu0 0.0
    %506 = vmatprep.subr.mxu0 0.0
    %507 = vmatpush1.msra.mxu0 0.0
    %508 = vmatprep.subr.mxu0 0.0
    %509 = vmatpush1.msra.mxu0 0.0
    %510 = vmatprep.subr.mxu0 0.0
    %511 = vmatpush1.msra.mxu0 0.0
    %512 = vmatprep.subr.mxu0 0.0
    %513 = vmatpush1.msra.mxu0 0.0
    %514 = vmatprep.subr.mxu0 0.0
    %515 = vmatpush1.msra.mxu0 0.0
    %516 = vmatprep.subr.mxu0 0.0
    %517 = vmatpush1.msra.mxu0 0.0
    %518 = vmatprep.subr.mxu0 0.0
    %519 = vmatpush1.msra.mxu0 0.0
    %520 = vmatprep.subr.mxu0 0.0
    %521 = vmatpush1.msra.mxu0 0.0
    %522 = vmatprep.subr.mxu0 0.0
    %523 = vmatpush1.msra.mxu0 0.0
    %524 = vmatprep.subr.mxu0 0.0
    %525 = vmatpush1.msra.mxu0 0.0
    %526 = vmatprep.subr.mxu0 0.0
    %527 = vmatpush1.msra.mxu0 0.0
    %528 = vmatprep.subr.mxu0 0.0
    %529 = vmatpush1.msra.mxu0 0.0
    %530 = vmatprep.subr.mxu0 0.0
    %531 = vmatpush1.msra.mxu0 0.0
    %532 = vmatprep.subr.mxu0 0.0
    %533 = vmatpush1.msra.mxu0 0.0
    %534 = vmatprep.subr.mxu0 0.0
    %535 = vmatpush1.msra.mxu0 0.0
    %536 = vmatprep.subr.mxu0 0.0
    %537 = vmatpush1.msra.mxu0 0.0
    %538 = vmatprep.subr.mxu0 0.0
    %539 = vmatpush1.msra.mxu0 0.0
    %540 = vmatprep.subr.mxu0 0.0
    %541 = vmatpush1.msra.mxu0 0.0
    %542 = vmatprep.subr.mxu0 0.0
    %543 = vmatpush1.msra.mxu0 0.0
    %544 = vmatprep.subr.mxu0 0.0
    %545 = vmatpush1.msra.mxu0 0.0
    %546 = vmatprep.subr.mxu0 0.0
    %547 = vmatpush1.msra.mxu0 0.0
    %548 = vmatprep.subr.mxu0 0.0
    %549 = vmatpush1.msra.mxu0 0.0
    %550 = vmatprep.subr.mxu0 0.0
    %551 = vmatpush1.msra.mxu0 0.0
    %552 = vmatprep.subr.mxu0 0.0
    %553 = vmatpush1.msra.mxu0 0.0
    %554 = vmatprep.subr.mxu0 0.0
    %555 = vmatpush1.msra.mxu0 0.0
    %556 = vmatprep.subr.mxu0 0.0
    %557 = vmatpush1.msra.mxu0 0.0
    %558 = vmatprep.subr.mxu0 0.0
    %559 = vmatpush1.msra.mxu0 0.0
    %560 = vmatprep.subr.mxu0 0.0
    %561 = vmatpush1.msra.mxu0 0.0
    %562 = vmatprep.mubr.f32.mxu0 0.0
    %563 = vmatmul.mubr.f32.gmra.mrb[0].mxu0 %v487
    %v564 = vpop.f32.mrb[0].mxu0
    %v565 = vadd.f32 0.0, %v564
    %v566 = vpop.f32.mrb[0].mxu0
    %567 = vmatprep.mubr.f32.mxu0 0.0
    %568 = vmatmul.mubr.f32.gmra.mrb[0].mxu0 %v490
    %v569 = vpop.f32.mrb[0].mxu0
    %v570 = vadd.f32 0.0, %v569
    %v571 = vpop.f32.mrb[0].mxu0
    %572 = vmatprep.mubr.f32.mxu0 0.0
    %573 = vmatmul.mubr.f32.gmra.mrb[0].mxu0 %v493
    %v574 = vpop.f32.mrb[0].mxu0
    %v575 = vadd.f32 0.0, %v574
    %v576 = vpop.f32.mrb[0].mxu0
    %577 = vmatprep.mubr.f32.mxu0 0.0
    %578 = vmatmul.mubr.f32.gmra.mrb[0].mxu0 %v496
    %v579 = vpop.f32.mrb[0].mxu0
    %v580 = vadd.f32 0.0, %v579
    %v581 = vpop.f32.mrb[0].mxu0
    %582 = vdwg.mxu0
    %v583 = vsel %vm154, %v565, 0.0
    %584 = vadd.xlane.f32.xlu0 %v583
    %v585 = vpop.xlane.xlu0 %584
    %v586 = vsel %vm154, %v570, 0.0
    %587 = vadd.xlane.f32.xlu0 %v586
    %v588 = vpop.xlane.xlu0 %587
    %v589 = vsel %vm154, %v575, 0.0
    %590 = vadd.xlane.f32.xlu0 %v589
    %v591 = vpop.xlane.xlu0 %590
    %v592 = vsel %vm154, %v580, 0.0
    %593 = vadd.xlane.f32.xlu0 %v592
    %v594 = vpop.xlane.xlu0 %593
    %v595 = vmul.f32 %v585, %v167
    %v596 = vmul.f32 %v588, %v167
    %v597 = vmul.f32 %v591, %v167
    %v598 = vmul.f32 %v594, %v167
    %v599 = vsub.f32 %v565, %v595
    %v600 = vsub.f32 %v570, %v596
    %v601 = vsub.f32 %v575, %v597
    %v602 = vsub.f32 %v580, %v598
    %v603 = vmul.f32 %v599, %v599
    %v604 = vmul.f32 %v600, %v600
    %v605 = vmul.f32 %v601, %v601
    %v606 = vmul.f32 %v602, %v602
    %v607 = vsel %vm154, %v603, 0.0
    %608 = vadd.xlane.f32.xlu0 %v607
    %v609 = vpop.xlane.xlu0 %608
    %v610 = vsel %vm154, %v604, 0.0
    %611 = vadd.xlane.f32.xlu0 %v610
    %v612 = vpop.xlane.xlu0 %611
    %v613 = vsel %vm154, %v605, 0.0
    %614 = vadd.xlane.f32.xlu0 %v613
    %v615 = vpop.xlane.xlu0 %614
    %v616 = vsel %vm154, %v606, 0.0
    %617 = vadd.xlane.f32.xlu0 %v616
    %v618 = vpop.xlane.xlu0 %617
    %v619 = vmul.f32 %v609, %v167
    %v620 = vmul.f32 %v612, %v167
    %v621 = vmul.f32 %v615, %v167
    %v622 = vmul.f32 %v618, %v167
    %v623 = vadd.f32 %v619, 1e-05
    %v624 = vadd.f32 %v620, 1e-05
    %v625 = vadd.f32 %v621, 1e-05
    %v626 = vadd.f32 %v622, 1e-05
    %v627 = vrsqrt.pop %v623
    %v628 = vrsqrt.pop %v624
    %v629 = vrsqrt.pop %v625
    %v630 = vrsqrt.pop %v626
    %v631 = vmul.f32 %v599, %v627
    %v632 = vmul.f32 %v600, %v628
    %v633 = vmul.f32 %v601, %v629
    %v634 = vmul.f32 %v602, %v630
    %635 = vset.pattern.permute.xlu0 6
    %636 = vperm.xlu0 %635, %v208
    %v637 = vpop.permute.xlu0 %636
    %639 = vset.pattern.permute.xlu0 6
    %640 = vperm.xlu0 %639, %v209
    %v641 = vpop.permute.xlu0 %640
    %643 = vset.pattern.permute.xlu0 6
    %644 = vperm.xlu0 %643, %v210
    %v645 = vpop.permute.xlu0 %644
    %647 = vset.pattern.permute.xlu0 6
    %648 = vperm.xlu0 %647, %v211
    %v649 = vpop.permute.xlu0 %648
    %v651 = vmul.f32 %v631, %v637
    %v652 = vmul.f32 %v632, %v641
    %v653 = vmul.f32 %v633, %v645
    %v654 = vmul.f32 %v634, %v649
    %655 = vset.pattern.permute.xlu0 7
    %656 = vperm.xlu0 %655, %v208
    %v657 = vpop.permute.xlu0 %656
    %659 = vset.pattern.permute.xlu0 7
    %660 = vperm.xlu0 %659, %v209
    %v661 = vpop.permute.xlu0 %660
    %663 = vset.pattern.permute.xlu0 7
    %664 = vperm.xlu0 %663, %v210
    %v665 = vpop.permute.xlu0 %664
    %667 = vset.pattern.permute.xlu0 7
    %668 = vperm.xlu0 %667, %v211
    %v669 = vpop.permute.xlu0 %668
    %v671 = vadd.f32 %v651, %v657
    %v672 = vadd.f32 %v652, %v661
    %v673 = vadd.f32 %v653, %v665
    %v674 = vadd.f32 %v654, %v669
    %v675 = vxor.u32 %v673, 2147483648
    %v676 = vxor.u32 %v674, 2147483648
    %v677 = vmul.f32 %v675, 1.442695
    %v678 = vpow.pop %v677
    %v679 = vmul.f32 %v676, 1.442695
    %v680 = vpow.pop %v679
    %v681 = vadd.f32 %v678, 1.0
    %v682 = vadd.f32 %v680, 1.0
    %v683 = vrcp.pop %v681
    %v684 = vmul.f32 1.0, %v683
    %v685 = vrcp.pop %v682
    %v686 = vmul.f32 1.0, %v685
    %v687 = vmul.f32 %v671, %v684
    %v688 = vmul.f32 %v672, %v686
    %v689 = vadd.f32 %v479, %v687
    %v690 = vadd.f32 %v480, %v688
    %v691 = vmul.f32 %v689, 0.70710677
    %v692 = vmul.f32 %v690, 0.70710677
    %s693 = scalar_lea.vmem %s2, 64
    %v694 = vld [vmem:[%s693] sm:$0xff]
    %v695 = vld [vmem:[%s693 + $0x8] sm:$0xff]
    %v696 = vld [vmem:[%s693 + $0x10] sm:$0xff]
    %v697 = vld [vmem:[%s693 + $0x18] sm:$0xff]
    %v699 = vsel %vm56, %v694, 0
    %v702 = vsel %vm56, %v695, 0
    %v705 = vsel %vm56, %v696, 0
    %v708 = vsel %vm56, %v697, 0
    %710 = vmatprep.subr.mxu0 0.0
    %711 = vmatpush1.msra.mxu0 %v691
    %712 = vmatprep.subr.mxu0 0.0
    %713 = vmatpush1.msra.mxu0 %v692
    %714 = vmatprep.subr.mxu0 0.0
    %715 = vmatpush1.msra.mxu0 0.0
    %716 = vmatprep.subr.mxu0 0.0
    %717 = vmatpush1.msra.mxu0 0.0
    %718 = vmatprep.subr.mxu0 0.0
    %719 = vmatpush1.msra.mxu0 0.0
    %720 = vmatprep.subr.mxu0 0.0
    %721 = vmatpush1.msra.mxu0 0.0
    %722 = vmatprep.subr.mxu0 0.0
    %723 = vmatpush1.msra.mxu0 0.0
    %724 = vmatprep.subr.mxu0 0.0
    %725 = vmatpush1.msra.mxu0 0.0
    %726 = vmatprep.subr.mxu0 0.0
    %727 = vmatpush1.msra.mxu0 0.0
    %728 = vmatprep.subr.mxu0 0.0
    %729 = vmatpush1.msra.mxu0 0.0
    %730 = vmatprep.subr.mxu0 0.0
    %731 = vmatpush1.msra.mxu0 0.0
    %732 = vmatprep.subr.mxu0 0.0
    %733 = vmatpush1.msra.mxu0 0.0
    %734 = vmatprep.subr.mxu0 0.0
    %735 = vmatpush1.msra.mxu0 0.0
    %736 = vmatprep.subr.mxu0 0.0
    %737 = vmatpush1.msra.mxu0 0.0
    %738 = vmatprep.subr.mxu0 0.0
    %739 = vmatpush1.msra.mxu0 0.0
    %740 = vmatprep.subr.mxu0 0.0
    %741 = vmatpush1.msra.mxu0 0.0
    %742 = vmatprep.subr.mxu0 0.0
    %743 = vmatpush1.msra.mxu0 0.0
    %744 = vmatprep.subr.mxu0 0.0
    %745 = vmatpush1.msra.mxu0 0.0
    %746 = vmatprep.subr.mxu0 0.0
    %747 = vmatpush1.msra.mxu0 0.0
    %748 = vmatprep.subr.mxu0 0.0
    %749 = vmatpush1.msra.mxu0 0.0
    %750 = vmatprep.subr.mxu0 0.0
    %751 = vmatpush1.msra.mxu0 0.0
    %752 = vmatprep.subr.mxu0 0.0
    %753 = vmatpush1.msra.mxu0 0.0
    %754 = vmatprep.subr.mxu0 0.0
    %755 = vmatpush1.msra.mxu0 0.0
    %756 = vmatprep.subr.mxu0 0.0
    %757 = vmatpush1.msra.mxu0 0.0
    %758 = vmatprep.subr.mxu0 0.0
    %759 = vmatpush1.msra.mxu0 0.0
    %760 = vmatprep.subr.mxu0 0.0
    %761 = vmatpush1.msra.mxu0 0.0
    %762 = vmatprep.subr.mxu0 0.0
    %763 = vmatpush1.msra.mxu0 0.0
    %764 = vmatprep.subr.mxu0 0.0
    %765 = vmatpush1.msra.mxu0 0.0
    %766 = vmatprep.subr.mxu0 0.0
    %767 = vmatpush1.msra.mxu0 0.0
    %768 = vmatprep.subr.mxu0 0.0
    %769 = vmatpush1.msra.mxu0 0.0
    %770 = vmatprep.subr.mxu0 0.0
    %771 = vmatpush1.msra.mxu0 0.0
    %772 = vmatprep.subr.mxu0 0.0
    %773 = vmatpush1.msra.mxu0 0.0
    %774 = vmatprep.mubr.f32.mxu0 0.0
    %775 = vmatmul.mubr.f32.gmra.mrb[0].mxu0 %v699
    %v776 = vpop.f32.mrb[0].mxu0
    %v777 = vpop.f32.mrb[0].mxu0
    %778 = vmatprep.mubr.f32.mxu0 0.0
    %779 = vmatmul.mubr.f32.gmra.mrb[0].mxu0 %v702
    %v780 = vpop.f32.mrb[0].mxu0
    %v781 = vadd.f32 0.0, %v780
    %v782 = vpop.f32.mrb[0].mxu0
    %783 = vmatprep.mubr.f32.mxu0 0.0
    %784 = vmatmul.mubr.f32.gmra.mrb[0].mxu0 %v705
    %v785 = vpop.f32.mrb[0].mxu0
    %v786 = vpop.f32.mrb[0].mxu0
    %787 = vmatprep.mubr.f32.mxu0 0.0
    %788 = vmatmul.mubr.f32.gmra.mrb[0].mxu0 %v708
    %v789 = vpop.f32.mrb[0].mxu0
    %v790 = vadd.f32 0.0, %v789
    %v791 = vpop.f32.mrb[0].mxu0
    %792 = vdwg.mxu0
    %v793 = vsel %vm154, %v781, 0.0
    %794 = vadd.xlane.f32.xlu0 %v793
    %v795 = vpop.xlane.xlu0 %794
    %v796 = vsel %vm154, %v790, 0.0
    %797 = vadd.xlane.f32.xlu0 %v796
    %v798 = vpop.xlane.xlu0 %797
    %v799 = vmul.f32 %v795, %v167
    %v800 = vmul.f32 %v798, %v167
    %v801 = vsub.f32 %v781, %v799
    %v802 = vsub.f32 %v790, %v800
    %v803 = vmul.f32 %v801, %v801
    %v804 = vmul.f32 %v802, %v802
    %v805 = vsel %vm154, %v803, 0.0
    %806 = vadd.xlane.f32.xlu0 %v805
    %v807 = vpop.xlane.xlu0 %806
    %v808 = vsel %vm154, %v804, 0.0
    %809 = vadd.xlane.f32.xlu0 %v808
    %v810 = vpop.xlane.xlu0 %809
    %v811 = vmul.f32 %v807, %v167
    %v812 = vmul.f32 %v810, %v167
    %v813 = vadd.f32 %v811, 1e-05
    %v814 = vadd.f32 %v812, 1e-05
    %v815 = vrsqrt.pop %v813
    %v816 = vrsqrt.pop %v814
    %v817 = vmul.f32 %v801, %v815
    %v818 = vmul.f32 %v802, %v816
    %819 = vset.pattern.permute.xlu0 8
    %820 = vperm.xlu0 %819, %v209
    %v821 = vpop.permute.xlu0 %820
    %823 = vset.pattern.permute.xlu0 8
    %824 = vperm.xlu0 %823, %v211
    %v825 = vpop.permute.xlu0 %824
    %v827 = vmul.f32 %v817, %v821
    %v828 = vmul.f32 %v818, %v825
    %829 = vset.pattern.permute.xlu0 9
    %830 = vperm.xlu0 %829, %v209
    %v831 = vpop.permute.xlu0 %830
    %833 = vset.pattern.permute.xlu0 9
    %834 = vperm.xlu0 %833, %v211
    %v835 = vpop.permute.xlu0 %834
    %v837 = vadd.f32 %v827, %v831
    %v838 = vadd.f32 %v828, %v835
    %v839 = vxor.u32 %v838, 2147483648
    %v840 = vmul.f32 %v839, 1.442695
    %v841 = vpow.pop %v840
    %v842 = vadd.f32 %v841, 1.0
    %v843 = vrcp.pop %v842
    %v844 = vmul.f32 1.0, %v843
    %v845 = vmul.f32 %v837, %v844
    %v846 = vadd.f32 %v692, %v845
    %v847 = vmul.f32 %v846, 0.70710677
    %v848 = vld [vmem:[%s3] sm:$0xff]
    %v849 = vld [vmem:[%s3 + $0x8] sm:$0xff]
    %v851 = vsel %vm154, %v848, 0
    %v854 = vsel %vm154, %v849, 0
    %856 = vmatprep.subr.mxu0 0.0
    %857 = vmatpush1.msra.mxu0 %v847
    %858 = vmatprep.subr.mxu0 0.0
    %859 = vmatpush1.msra.mxu0 0.0
    %860 = vmatprep.subr.mxu0 0.0
    %861 = vmatpush1.msra.mxu0 0.0
    %862 = vmatprep.subr.mxu0 0.0
    %863 = vmatpush1.msra.mxu0 0.0
    %864 = vmatprep.subr.mxu0 0.0
    %865 = vmatpush1.msra.mxu0 0.0
    %866 = vmatprep.subr.mxu0 0.0
    %867 = vmatpush1.msra.mxu0 0.0
    %868 = vmatprep.subr.mxu0 0.0
    %869 = vmatpush1.msra.mxu0 0.0
    %870 = vmatprep.subr.mxu0 0.0
    %871 = vmatpush1.msra.mxu0 0.0
    %872 = vmatprep.subr.mxu0 0.0
    %873 = vmatpush1.msra.mxu0 0.0
    %874 = vmatprep.subr.mxu0 0.0
    %875 = vmatpush1.msra.mxu0 0.0
    %876 = vmatprep.subr.mxu0 0.0
    %877 = vmatpush1.msra.mxu0 0.0
    %878 = vmatprep.subr.mxu0 0.0
    %879 = vmatpush1.msra.mxu0 0.0
    %880 = vmatprep.subr.mxu0 0.0
    %881 = vmatpush1.msra.mxu0 0.0
    %882 = vmatprep.subr.mxu0 0.0
    %883 = vmatpush1.msra.mxu0 0.0
    %884 = vmatprep.subr.mxu0 0.0
    %885 = vmatpush1.msra.mxu0 0.0
    %886 = vmatprep.subr.mxu0 0.0
    %887 = vmatpush1.msra.mxu0 0.0
    %888 = vmatprep.subr.mxu0 0.0
    %889 = vmatpush1.msra.mxu0 0.0
    %890 = vmatprep.subr.mxu0 0.0
    %891 = vmatpush1.msra.mxu0 0.0
    %892 = vmatprep.subr.mxu0 0.0
    %893 = vmatpush1.msra.mxu0 0.0
    %894 = vmatprep.subr.mxu0 0.0
    %895 = vmatpush1.msra.mxu0 0.0
    %896 = vmatprep.subr.mxu0 0.0
    %897 = vmatpush1.msra.mxu0 0.0
    %898 = vmatprep.subr.mxu0 0.0
    %899 = vmatpush1.msra.mxu0 0.0
    %900 = vmatprep.subr.mxu0 0.0
    %901 = vmatpush1.msra.mxu0 0.0
    %902 = vmatprep.subr.mxu0 0.0
    %903 = vmatpush1.msra.mxu0 0.0
    %904 = vmatprep.subr.mxu0 0.0
    %905 = vmatpush1.msra.mxu0 0.0
    %906 = vmatprep.subr.mxu0 0.0
    %907 = vmatpush1.msra.mxu0 0.0
    %908 = vmatprep.subr.mxu0 0.0
    %909 = vmatpush1.msra.mxu0 0.0
    %910 = vmatprep.subr.mxu0 0.0
    %911 = vmatpush1.msra.mxu0 0.0
    %912 = vmatprep.subr.mxu0 0.0
    %913 = vmatpush1.msra.mxu0 0.0
    %914 = vmatprep.subr.mxu0 0.0
    %915 = vmatpush1.msra.mxu0 0.0
    %916 = vmatprep.subr.mxu0 0.0
    %917 = vmatpush1.msra.mxu0 0.0
    %918 = vmatprep.subr.mxu0 0.0
    %919 = vmatpush1.msra.mxu0 0.0
    %920 = vmatprep.mubr.f32.mxu0 0.0
    %921 = vmatmul.mubr.f32.gmra.mrb[0].mxu0 %v851
    %v922 = vpop.f32.mrb[0].mxu0
    %v923 = vadd.f32 0.0, %v922
    %v924 = vpop.f32.mrb[0].mxu0
    %925 = vmatprep.mubr.f32.mxu0 0.0
    %926 = vmatmul.mubr.f32.gmra.mrb[0].mxu0 %v854
    %v927 = vpop.f32.mrb[0].mxu0
    %v928 = vadd.f32 0.0, %v927
    %v929 = vpop.f32.mrb[0].mxu0
    %930 = vdwg.mxu0
    %v931 = vsel %vm154, %v923, 0.0
    %932 = vadd.xlane.f32.xlu0 %v931
    %v933 = vpop.xlane.xlu0 %932
    %v934 = vsel %vm154, %v928, 0.0
    %935 = vadd.xlane.f32.xlu0 %v934
    %v936 = vpop.xlane.xlu0 %935
    %v937 = vmul.f32 %v933, %v167
    %v938 = vmul.f32 %v936, %v167
    %v939 = vsub.f32 %v923, %v937
    %v940 = vsub.f32 %v928, %v938
    %v941 = vmul.f32 %v939, %v939
    %v942 = vmul.f32 %v940, %v940
    %v943 = vsel %vm154, %v941, 0.0
    %944 = vadd.xlane.f32.xlu0 %v943
    %v945 = vpop.xlane.xlu0 %944
    %v946 = vsel %vm154, %v942, 0.0
    %947 = vadd.xlane.f32.xlu0 %v946
    %v948 = vpop.xlane.xlu0 %947
    %v949 = vmul.f32 %v945, %v167
    %v950 = vmul.f32 %v948, %v167
    %v951 = vadd.f32 %v949, 1e-05
    %v952 = vadd.f32 %v950, 1e-05
    %v953 = vrsqrt.pop %v951
    %v954 = vrsqrt.pop %v952
    %v955 = vmul.f32 %v939, %v953
    %v956 = vmul.f32 %v940, %v954
    %957 = vset.pattern.permute.xlu0 34
    %958 = vperm.xlu0 %957, %v28
    %v959 = vpop.permute.xlu0 %958
    %961 = vset.pattern.permute.xlu0 34
    %962 = vperm.xlu0 %961, %v29
    %v963 = vpop.permute.xlu0 %962
    %v965 = vmul.f32 %v955, %v959
    %v966 = vmul.f32 %v956, %v963
    %967 = vset.pattern.permute.xlu0 35
    %968 = vperm.xlu0 %967, %v28
    %v969 = vpop.permute.xlu0 %968
    %971 = vset.pattern.permute.xlu0 35
    %972 = vperm.xlu0 %971, %v29
    %v973 = vpop.permute.xlu0 %972
    %v975 = vadd.f32 %v965, %v969
    %v976 = vadd.f32 %v966, %v973
    %v977 = vsel %vm154, %v975, -inf
    %v978 = vsel %vm154, %v976, -inf
    %v979 = vmax.f32 %v977, %v978
    %v980 = vrot.slane %v979, 4
    %v981 = vmax.f32 %v979, %v980
    %v982 = vrot.slane %v981, 2
    %v983 = vmax.f32 %v981, %v982
    %v984 = vrot.slane %v983, 1
    %v985 = vmax.f32 %v983, %v984
    %v986 = vsub.f32 %v975, %v985
    %v987 = vsub.f32 %v976, %v985
    %v990 = vcombine.high %v986, %v986
    %v992 = vunpack.c.l.s4 1966171168
    %v993 = vunpack.c.0.s8 %v992
    %v994 = vlaneseq
    %v995 = vshrl.u32 %v994, 7
    %v996 = vsub.s32 %v993, %v995
    %v997 = vrot.slane %v986, %v996
    %v999 = vunpack.c.l.s4 1966171168
    %v1000 = vunpack.c.0.s8 %v999
    %v1001 = vlaneseq
    %v1002 = vshrl.u32 %v1001, 7
    %v1003 = vsub.s32 %v1000, %v1002
    %v1004 = vrot.slane %v990, %v1003
    %v1005 = vcombine.high %v997, %v997
    %v1006 = vcombine.high %v1004, %v1004
    %v1008 = vunpack.c.l.s4 1966171168
    %v1009 = vunpack.c.0.s8 %v1008
    %v1010 = vlaneseq
    %v1011 = vshrl.u32 %v1010, 7
    %v1012 = vsub.s32 %v1009, %v1011
    %v1013 = vrot.slane %v997, %v1012
    %v1015 = vunpack.c.l.s4 1966171168
    %v1016 = vunpack.c.0.s8 %v1015
    %v1017 = vlaneseq
    %v1018 = vshrl.u32 %v1017, 7
    %v1019 = vsub.s32 %v1016, %v1018
    %v1020 = vrot.slane %v1004, %v1019
    %v1022 = vunpack.c.l.s4 1966171168
    %v1023 = vunpack.c.0.s8 %v1022
    %v1024 = vlaneseq
    %v1025 = vshrl.u32 %v1024, 7
    %v1026 = vsub.s32 %v1023, %v1025
    %v1027 = vrot.slane %v1005, %v1026
    %v1029 = vunpack.c.l.s4 1966171168
    %v1030 = vunpack.c.0.s8 %v1029
    %v1031 = vlaneseq
    %v1032 = vshrl.u32 %v1031, 7
    %v1033 = vsub.s32 %v1030, %v1032
    %v1034 = vrot.slane %v1006, %v1033
    %v1035 = vcombine.high %v1013, %v1013
    %v1036 = vcombine.high %v1020, %v1020
    %v1037 = vcombine.high %v1027, %v1027
    %v1038 = vcombine.high %v1034, %v1034
    %v1039 = vcombine.high %v987, %v987
    %v1041 = vunpack.c.l.s4 1966171168
    %v1042 = vunpack.c.0.s8 %v1041
    %v1043 = vlaneseq
    %v1044 = vshrl.u32 %v1043, 7
    %v1045 = vsub.s32 %v1042, %v1044
    %v1046 = vrot.slane %v987, %v1045
    %v1048 = vunpack.c.l.s4 1966171168
    %v1049 = vunpack.c.0.s8 %v1048
    %v1050 = vlaneseq
    %v1051 = vshrl.u32 %v1050, 7
    %v1052 = vsub.s32 %v1049, %v1051
    %v1053 = vrot.slane %v1039, %v1052
    %v1054 = vcombine.high %v1046, %v1046
    %v1055 = vcombine.high %v1053, %v1053
    %v1057 = vunpack.c.l.s4 1966171168
    %v1058 = vunpack.c.0.s8 %v1057
    %v1059 = vlaneseq
    %v1060 = vshrl.u32 %v1059, 7
    %v1061 = vsub.s32 %v1058, %v1060
    %v1062 = vrot.slane %v1046, %v1061
    %v1064 = vunpack.c.l.s4 1966171168
    %v1065 = vunpack.c.0.s8 %v1064
    %v1066 = vlaneseq
    %v1067 = vshrl.u32 %v1066, 7
    %v1068 = vsub.s32 %v1065, %v1067
    %v1069 = vrot.slane %v1053, %v1068
    %v1071 = vunpack.c.l.s4 1966171168
    %v1072 = vunpack.c.0.s8 %v1071
    %v1073 = vlaneseq
    %v1074 = vshrl.u32 %v1073, 7
    %v1075 = vsub.s32 %v1072, %v1074
    %v1076 = vrot.slane %v1054, %v1075
    %v1078 = vunpack.c.l.s4 1966171168
    %v1079 = vunpack.c.0.s8 %v1078
    %v1080 = vlaneseq
    %v1081 = vshrl.u32 %v1080, 7
    %v1082 = vsub.s32 %v1079, %v1081
    %v1083 = vrot.slane %v1055, %v1082
    %v1084 = vcombine.high %v1062, %v1062
    %v1085 = vcombine.high %v1069, %v1069
    %v1086 = vcombine.high %v1076, %v1076
    %v1087 = vcombine.high %v1083, %v1083
    %v1088 = vlaneseq
    %v1089 = vshrl.u32 %v1088, 7
    %v1090 = vsub.s32 0, %v1089
    %v1091 = vrot.slane %v1013, %v1090
    %v1092 = vlaneseq
    %v1093 = vshrl.u32 %v1092, 7
    %v1094 = vsub.s32 0, %v1093
    %v1095 = vrot.slane %v1027, %v1094
    %v1096 = vlaneseq
    %v1097 = vshrl.u32 %v1096, 7
    %v1098 = vsub.s32 0, %v1097
    %v1099 = vrot.slane %v1035, %v1098
    %v1100 = vlaneseq
    %v1101 = vshrl.u32 %v1100, 7
    %v1102 = vsub.s32 0, %v1101
    %v1103 = vrot.slane %v1037, %v1102
    %v1104 = vlaneseq
    %v1105 = vshrl.u32 %v1104, 7
    %v1106 = vsub.s32 0, %v1105
    %v1107 = vrot.slane %v1020, %v1106
    %v1108 = vlaneseq
    %v1109 = vshrl.u32 %v1108, 7
    %v1110 = vsub.s32 0, %v1109
    %v1111 = vrot.slane %v1034, %v1110
    %v1112 = vlaneseq
    %v1113 = vshrl.u32 %v1112, 7
    %v1114 = vsub.s32 0, %v1113
    %v1115 = vrot.slane %v1036, %v1114
    %v1116 = vlaneseq
    %v1117 = vshrl.u32 %v1116, 7
    %v1118 = vsub.s32 0, %v1117
    %v1119 = vrot.slane %v1038, %v1118
    %v1120 = vlaneseq
    %v1121 = vshrl.u32 %v1120, 7
    %v1122 = vsub.s32 0, %v1121
    %v1123 = vrot.slane %v1062, %v1122
    %v1124 = vlaneseq
    %v1125 = vshrl.u32 %v1124, 7
    %v1126 = vsub.s32 0, %v1125
    %v1127 = vrot.slane %v1076, %v1126
    %v1128 = vlaneseq
    %v1129 = vshrl.u32 %v1128, 7
    %v1130 = vsub.s32 0, %v1129
    %v1131 = vrot.slane %v1084, %v1130
    %v1132 = vlaneseq
    %v1133 = vshrl.u32 %v1132, 7
    %v1134 = vsub.s32 0, %v1133
    %v1135 = vrot.slane %v1086, %v1134
    %v1136 = vlaneseq
    %v1137 = vshrl.u32 %v1136, 7
    %v1138 = vsub.s32 0, %v1137
    %v1139 = vrot.slane %v1069, %v1138
    %v1140 = vlaneseq
    %v1141 = vshrl.u32 %v1140, 7
    %v1142 = vsub.s32 0, %v1141
    %v1143 = vrot.slane %v1083, %v1142
    %v1144 = vlaneseq
    %v1145 = vshrl.u32 %v1144, 7
    %v1146 = vsub.s32 0, %v1145
    %v1147 = vrot.slane %v1085, %v1146
    %v1148 = vlaneseq
    %v1149 = vshrl.u32 %v1148, 7
    %v1150 = vsub.s32 0, %v1149
    %v1151 = vrot.slane %v1087, %v1150
    %vm1168 = vcmp.ge.f32.partialorder %v986, %v1091
    %vm1169 = vcmp.ge.f32.partialorder %v987, %v1091
    %vm1170 = vcmp.ge.f32.partialorder %v986, %v1095
    %vm1171 = vcmp.ge.f32.partialorder %v987, %v1095
    %vm1172 = vcmp.ge.f32.partialorder %v986, %v1099
    %vm1173 = vcmp.ge.f32.partialorder %v987, %v1099
    %vm1174 = vcmp.ge.f32.partialorder %v986, %v1103
    %vm1175 = vcmp.ge.f32.partialorder %v987, %v1103
    %vm1176 = vcmp.ge.f32.partialorder %v986, %v1107
    %vm1177 = vcmp.ge.f32.partialorder %v987, %v1107
    %vm1178 = vcmp.ge.f32.partialorder %v986, %v1111
    %vm1179 = vcmp.ge.f32.partialorder %v987, %v1111
    %vm1180 = vcmp.ge.f32.partialorder %v986, %v1115
    %vm1181 = vcmp.ge.f32.partialorder %v987, %v1115
    %vm1182 = vcmp.ge.f32.partialorder %v986, %v1119
    %vm1183 = vcmp.ge.f32.partialorder %v987, %v1119
    %vm1184 = vcmp.ge.f32.partialorder %v986, %v1123
    %vm1185 = vcmp.ge.f32.partialorder %v987, %v1123
    %vm1186 = vcmp.ge.f32.partialorder %v986, %v1127
    %vm1187 = vcmp.ge.f32.partialorder %v987, %v1127
    %vm1188 = vcmp.ge.f32.partialorder %v986, %v1131
    %vm1189 = vcmp.ge.f32.partialorder %v987, %v1131
    %vm1190 = vcmp.ge.f32.partialorder %v986, %v1135
    %vm1191 = vcmp.ge.f32.partialorder %v987, %v1135
    %vm1192 = vcmp.ge.f32.partialorder %v986, %v1139
    %vm1193 = vcmp.ge.f32.partialorder %v987, %v1139
    %vm1194 = vcmp.ge.f32.partialorder %v986, %v1143
    %vm1195 = vcmp.ge.f32.partialorder %v987, %v1143
    %vm1196 = vcmp.ge.f32.partialorder %v986, %v1147
    %vm1197 = vcmp.ge.f32.partialorder %v987, %v1147
    %vm1198 = vcmp.ge.f32.partialorder %v986, %v1151
    %vm1199 = vcmp.ge.f32.partialorder %v987, %v1151
    %v1200 = vsel %vm1168, 1, 0
    %v1201 = vsel %vm1169, 1, 0
    %v1202 = vsel %vm1170, 1, 0
    %v1203 = vsel %vm1171, 1, 0
    %v1204 = vsel %vm1172, 1, 0
    %v1205 = vsel %vm1173, 1, 0
    %v1206 = vsel %vm1174, 1, 0
    %v1207 = vsel %vm1175, 1, 0
    %v1208 = vsel %vm1176, 1, 0
    %v1209 = vsel %vm1177, 1, 0
    %v1210 = vsel %vm1178, 1, 0
    %v1211 = vsel %vm1179, 1, 0
    %v1212 = vsel %vm1180, 1, 0
    %v1213 = vsel %vm1181, 1, 0
    %v1214 = vsel %vm1182, 1, 0
    %v1215 = vsel %vm1183, 1, 0
    %v1216 = vsel %vm1184, 1, 0
    %v1217 = vsel %vm1185, 1, 0
    %v1218 = vsel %vm1186, 1, 0
    %v1219 = vsel %vm1187, 1, 0
    %v1220 = vsel %vm1188, 1, 0
    %v1221 = vsel %vm1189, 1, 0
    %v1222 = vsel %vm1190, 1, 0
    %v1223 = vsel %vm1191, 1, 0
    %v1224 = vsel %vm1192, 1, 0
    %v1225 = vsel %vm1193, 1, 0
    %v1226 = vsel %vm1194, 1, 0
    %v1227 = vsel %vm1195, 1, 0
    %v1228 = vsel %vm1196, 1, 0
    %v1229 = vsel %vm1197, 1, 0
    %v1230 = vsel %vm1198, 1, 0
    %v1231 = vsel %vm1199, 1, 0
    %v1232 = vcvt.s32.f32 %v1200
    %v1233 = vcvt.s32.f32 %v1201
    %v1234 = vcvt.s32.f32 %v1202
    %v1235 = vcvt.s32.f32 %v1203
    %v1236 = vcvt.s32.f32 %v1204
    %v1237 = vcvt.s32.f32 %v1205
    %v1238 = vcvt.s32.f32 %v1206
    %v1239 = vcvt.s32.f32 %v1207
    %v1240 = vcvt.s32.f32 %v1208
    %v1241 = vcvt.s32.f32 %v1209
    %v1242 = vcvt.s32.f32 %v1210
    %v1243 = vcvt.s32.f32 %v1211
    %v1244 = vcvt.s32.f32 %v1212
    %v1245 = vcvt.s32.f32 %v1213
    %v1246 = vcvt.s32.f32 %v1214
    %v1247 = vcvt.s32.f32 %v1215
    %v1248 = vcvt.s32.f32 %v1216
    %v1249 = vcvt.s32.f32 %v1217
    %v1250 = vcvt.s32.f32 %v1218
    %v1251 = vcvt.s32.f32 %v1219
    %v1252 = vcvt.s32.f32 %v1220
    %v1253 = vcvt.s32.f32 %v1221
    %v1254 = vcvt.s32.f32 %v1222
    %v1255 = vcvt.s32.f32 %v1223
    %v1256 = vcvt.s32.f32 %v1224
    %v1257 = vcvt.s32.f32 %v1225
    %v1258 = vcvt.s32.f32 %v1226
    %v1259 = vcvt.s32.f32 %v1227
    %v1260 = vcvt.s32.f32 %v1228
    %v1261 = vcvt.s32.f32 %v1229
    %v1262 = vcvt.s32.f32 %v1230
    %v1263 = vcvt.s32.f32 %v1231
    %v1264 = vsel %vm154, %v1232, 0.0
    %v1265 = vsel %vm154, %v1233, 0.0
    %v1266 = vadd.f32 %v1264, %v1265
    %v1267 = vrot.slane %v1266, 4
    %v1268 = vadd.f32 %v1266, %v1267
    %v1269 = vrot.slane %v1268, 2
    %v1270 = vadd.f32 %v1268, %v1269
    %v1271 = vrot.slane %v1270, 1
    %v1272 = vadd.f32 %v1270, %v1271
    %v1273 = vsel %vm154, %v1234, 0.0
    %v1274 = vsel %vm154, %v1235, 0.0
    %v1275 = vadd.f32 %v1273, %v1274
    %v1276 = vrot.slane %v1275, 4
    %v1277 = vadd.f32 %v1275, %v1276
    %v1278 = vrot.slane %v1277, 2
    %v1279 = vadd.f32 %v1277, %v1278
    %v1280 = vrot.slane %v1279, 1
    %v1281 = vadd.f32 %v1279, %v1280
    %v1282 = vsel %vm154, %v1236, 0.0
    %v1283 = vsel %vm154, %v1237, 0.0
    %v1284 = vadd.f32 %v1282, %v1283
    %v1285 = vrot.slane %v1284, 4
    %v1286 = vadd.f32 %v1284, %v1285
    %v1287 = vrot.slane %v1286, 2
    %v1288 = vadd.f32 %v1286, %v1287
    %v1289 = vrot.slane %v1288, 1
    %v1290 = vadd.f32 %v1288, %v1289
    %v1291 = vsel %vm154, %v1238, 0.0
    %v1292 = vsel %vm154, %v1239, 0.0
    %v1293 = vadd.f32 %v1291, %v1292
    %v1294 = vrot.slane %v1293, 4
    %v1295 = vadd.f32 %v1293, %v1294
    %v1296 = vrot.slane %v1295, 2
    %v1297 = vadd.f32 %v1295, %v1296
    %v1298 = vrot.slane %v1297, 1
    %v1299 = vadd.f32 %v1297, %v1298
    %v1300 = vsel %vm154, %v1240, 0.0
    %v1301 = vsel %vm154, %v1241, 0.0
    %v1302 = vadd.f32 %v1300, %v1301
    %v1303 = vrot.slane %v1302, 4
    %v1304 = vadd.f32 %v1302, %v1303
    %v1305 = vrot.slane %v1304, 2
    %v1306 = vadd.f32 %v1304, %v1305
    %v1307 = vrot.slane %v1306, 1
    %v1308 = vadd.f32 %v1306, %v1307
    %v1309 = vsel %vm154, %v1242, 0.0
    %v1310 = vsel %vm154, %v1243, 0.0
    %v1311 = vadd.f32 %v1309, %v1310
    %v1312 = vrot.slane %v1311, 4
    %v1313 = vadd.f32 %v1311, %v1312
    %v1314 = vrot.slane %v1313, 2
    %v1315 = vadd.f32 %v1313, %v1314
    %v1316 = vrot.slane %v1315, 1
    %v1317 = vadd.f32 %v1315, %v1316
    %v1318 = vsel %vm154, %v1244, 0.0
    %v1319 = vsel %vm154, %v1245, 0.0
    %v1320 = vadd.f32 %v1318, %v1319
    %v1321 = vrot.slane %v1320, 4
    %v1322 = vadd.f32 %v1320, %v1321
    %v1323 = vrot.slane %v1322, 2
    %v1324 = vadd.f32 %v1322, %v1323
    %v1325 = vrot.slane %v1324, 1
    %v1326 = vadd.f32 %v1324, %v1325
    %v1327 = vsel %vm154, %v1246, 0.0
    %v1328 = vsel %vm154, %v1247, 0.0
    %v1329 = vadd.f32 %v1327, %v1328
    %v1330 = vrot.slane %v1329, 4
    %v1331 = vadd.f32 %v1329, %v1330
    %v1332 = vrot.slane %v1331, 2
    %v1333 = vadd.f32 %v1331, %v1332
    %v1334 = vrot.slane %v1333, 1
    %v1335 = vadd.f32 %v1333, %v1334
    %v1336 = vsel %vm154, %v1248, 0.0
    %v1337 = vsel %vm154, %v1249, 0.0
    %v1338 = vadd.f32 %v1336, %v1337
    %v1339 = vrot.slane %v1338, 4
    %v1340 = vadd.f32 %v1338, %v1339
    %v1341 = vrot.slane %v1340, 2
    %v1342 = vadd.f32 %v1340, %v1341
    %v1343 = vrot.slane %v1342, 1
    %v1344 = vadd.f32 %v1342, %v1343
    %v1345 = vsel %vm154, %v1250, 0.0
    %v1346 = vsel %vm154, %v1251, 0.0
    %v1347 = vadd.f32 %v1345, %v1346
    %v1348 = vrot.slane %v1347, 4
    %v1349 = vadd.f32 %v1347, %v1348
    %v1350 = vrot.slane %v1349, 2
    %v1351 = vadd.f32 %v1349, %v1350
    %v1352 = vrot.slane %v1351, 1
    %v1353 = vadd.f32 %v1351, %v1352
    %v1354 = vsel %vm154, %v1252, 0.0
    %v1355 = vsel %vm154, %v1253, 0.0
    %v1356 = vadd.f32 %v1354, %v1355
    %v1357 = vrot.slane %v1356, 4
    %v1358 = vadd.f32 %v1356, %v1357
    %v1359 = vrot.slane %v1358, 2
    %v1360 = vadd.f32 %v1358, %v1359
    %v1361 = vrot.slane %v1360, 1
    %v1362 = vadd.f32 %v1360, %v1361
    %v1363 = vsel %vm154, %v1254, 0.0
    %v1364 = vsel %vm154, %v1255, 0.0
    %v1365 = vadd.f32 %v1363, %v1364
    %v1366 = vrot.slane %v1365, 4
    %v1367 = vadd.f32 %v1365, %v1366
    %v1368 = vrot.slane %v1367, 2
    %v1369 = vadd.f32 %v1367, %v1368
    %v1370 = vrot.slane %v1369, 1
    %v1371 = vadd.f32 %v1369, %v1370
    %v1372 = vsel %vm154, %v1256, 0.0
    %v1373 = vsel %vm154, %v1257, 0.0
    %v1374 = vadd.f32 %v1372, %v1373
    %v1375 = vrot.slane %v1374, 4
    %v1376 = vadd.f32 %v1374, %v1375
    %v1377 = vrot.slane %v1376, 2
    %v1378 = vadd.f32 %v1376, %v1377
    %v1379 = vrot.slane %v1378, 1
    %v1380 = vadd.f32 %v1378, %v1379
    %v1381 = vsel %vm154, %v1258, 0.0
    %v1382 = vsel %vm154, %v1259, 0.0
    %v1383 = vadd.f32 %v1381, %v1382
    %v1384 = vrot.slane %v1383, 4
    %v1385 = vadd.f32 %v1383, %v1384
    %v1386 = vrot.slane %v1385, 2
    %v1387 = vadd.f32 %v1385, %v1386
    %v1388 = vrot.slane %v1387, 1
    %v1389 = vadd.f32 %v1387, %v1388
    %v1390 = vsel %vm154, %v1260, 0.0
    %v1391 = vsel %vm154, %v1261, 0.0
    %v1392 = vadd.f32 %v1390, %v1391
    %v1393 = vrot.slane %v1392, 4
    %v1394 = vadd.f32 %v1392, %v1393
    %v1395 = vrot.slane %v1394, 2
    %v1396 = vadd.f32 %v1394, %v1395
    %v1397 = vrot.slane %v1396, 1
    %v1398 = vadd.f32 %v1396, %v1397
    %v1399 = vsel %vm154, %v1262, 0.0
    %v1400 = vsel %vm154, %v1263, 0.0
    %v1401 = vadd.f32 %v1399, %v1400
    %v1402 = vrot.slane %v1401, 4
    %v1403 = vadd.f32 %v1401, %v1402
    %v1404 = vrot.slane %v1403, 2
    %v1405 = vadd.f32 %v1403, %v1404
    %v1406 = vrot.slane %v1405, 1
    %v1407 = vadd.f32 %v1405, %v1406
    %v1408 = vmul.f32 %v1232, %v986
    %v1409 = vmul.f32 %v1233, %v987
    %v1410 = vmul.f32 %v1234, %v986
    %v1411 = vmul.f32 %v1235, %v987
    %v1412 = vmul.f32 %v1236, %v986
    %v1413 = vmul.f32 %v1237, %v987
    %v1414 = vmul.f32 %v1238, %v986
    %v1415 = vmul.f32 %v1239, %v987
    %v1416 = vmul.f32 %v1240, %v986
    %v1417 = vmul.f32 %v1241, %v987
    %v1418 = vmul.f32 %v1242, %v986
    %v1419 = vmul.f32 %v1243, %v987
    %v1420 = vmul.f32 %v1244, %v986
    %v1421 = vmul.f32 %v1245, %v987
    %v1422 = vmul.f32 %v1246, %v986
    %v1423 = vmul.f32 %v1247, %v987
    %v1424 = vmul.f32 %v1248, %v986
    %v1425 = vmul.f32 %v1249, %v987
    %v1426 = vmul.f32 %v1250, %v986
    %v1427 = vmul.f32 %v1251, %v987
    %v1428 = vmul.f32 %v1252, %v986
    %v1429 = vmul.f32 %v1253, %v987
    %v1430 = vmul.f32 %v1254, %v986
    %v1431 = vmul.f32 %v1255, %v987
    %v1432 = vmul.f32 %v1256, %v986
    %v1433 = vmul.f32 %v1257, %v987
    %v1434 = vmul.f32 %v1258, %v986
    %v1435 = vmul.f32 %v1259, %v987
    %v1436 = vmul.f32 %v1260, %v986
    %v1437 = vmul.f32 %v1261, %v987
    %v1438 = vmul.f32 %v1262, %v986
    %v1439 = vmul.f32 %v1263, %v987
    %v1440 = vsel %vm154, %v1408, 0.0
    %v1441 = vsel %vm154, %v1409, 0.0
    %v1442 = vadd.f32 %v1440, %v1441
    %v1443 = vrot.slane %v1442, 4
    %v1444 = vadd.f32 %v1442, %v1443
    %v1445 = vrot.slane %v1444, 2
    %v1446 = vadd.f32 %v1444, %v1445
    %v1447 = vrot.slane %v1446, 1
    %v1448 = vadd.f32 %v1446, %v1447
    %v1449 = vsel %vm154, %v1410, 0.0
    %v1450 = vsel %vm154, %v1411, 0.0
    %v1451 = vadd.f32 %v1449, %v1450
    %v1452 = vrot.slane %v1451, 4
    %v1453 = vadd.f32 %v1451, %v1452
    %v1454 = vrot.slane %v1453, 2
    %v1455 = vadd.f32 %v1453, %v1454
    %v1456 = vrot.slane %v1455, 1
    %v1457 = vadd.f32 %v1455, %v1456
    %v1458 = vsel %vm154, %v1412, 0.0
    %v1459 = vsel %vm154, %v1413, 0.0
    %v1460 = vadd.f32 %v1458, %v1459
    %v1461 = vrot.slane %v1460, 4
    %v1462 = vadd.f32 %v1460, %v1461
    %v1463 = vrot.slane %v1462, 2
    %v1464 = vadd.f32 %v1462, %v1463
    %v1465 = vrot.slane %v1464, 1
    %v1466 = vadd.f32 %v1464, %v1465
    %v1467 = vsel %vm154, %v1414, 0.0
    %v1468 = vsel %vm154, %v1415, 0.0
    %v1469 = vadd.f32 %v1467, %v1468
    %v1470 = vrot.slane %v1469, 4
    %v1471 = vadd.f32 %v1469, %v1470
    %v1472 = vrot.slane %v1471, 2
    %v1473 = vadd.f32 %v1471, %v1472
    %v1474 = vrot.slane %v1473, 1
    %v1475 = vadd.f32 %v1473, %v1474
    %v1476 = vsel %vm154, %v1416, 0.0
    %v1477 = vsel %vm154, %v1417, 0.0
    %v1478 = vadd.f32 %v1476, %v1477
    %v1479 = vrot.slane %v1478, 4
    %v1480 = vadd.f32 %v1478, %v1479
    %v1481 = vrot.slane %v1480, 2
    %v1482 = vadd.f32 %v1480, %v1481
    %v1483 = vrot.slane %v1482, 1
    %v1484 = vadd.f32 %v1482, %v1483
    %v1485 = vsel %vm154, %v1418, 0.0
    %v1486 = vsel %vm154, %v1419, 0.0
    %v1487 = vadd.f32 %v1485, %v1486
    %v1488 = vrot.slane %v1487, 4
    %v1489 = vadd.f32 %v1487, %v1488
    %v1490 = vrot.slane %v1489, 2
    %v1491 = vadd.f32 %v1489, %v1490
    %v1492 = vrot.slane %v1491, 1
    %v1493 = vadd.f32 %v1491, %v1492
    %v1494 = vsel %vm154, %v1420, 0.0
    %v1495 = vsel %vm154, %v1421, 0.0
    %v1496 = vadd.f32 %v1494, %v1495
    %v1497 = vrot.slane %v1496, 4
    %v1498 = vadd.f32 %v1496, %v1497
    %v1499 = vrot.slane %v1498, 2
    %v1500 = vadd.f32 %v1498, %v1499
    %v1501 = vrot.slane %v1500, 1
    %v1502 = vadd.f32 %v1500, %v1501
    %v1503 = vsel %vm154, %v1422, 0.0
    %v1504 = vsel %vm154, %v1423, 0.0
    %v1505 = vadd.f32 %v1503, %v1504
    %v1506 = vrot.slane %v1505, 4
    %v1507 = vadd.f32 %v1505, %v1506
    %v1508 = vrot.slane %v1507, 2
    %v1509 = vadd.f32 %v1507, %v1508
    %v1510 = vrot.slane %v1509, 1
    %v1511 = vadd.f32 %v1509, %v1510
    %v1512 = vsel %vm154, %v1424, 0.0
    %v1513 = vsel %vm154, %v1425, 0.0
    %v1514 = vadd.f32 %v1512, %v1513
    %v1515 = vrot.slane %v1514, 4
    %v1516 = vadd.f32 %v1514, %v1515
    %v1517 = vrot.slane %v1516, 2
    %v1518 = vadd.f32 %v1516, %v1517
    %v1519 = vrot.slane %v1518, 1
    %v1520 = vadd.f32 %v1518, %v1519
    %v1521 = vsel %vm154, %v1426, 0.0
    %v1522 = vsel %vm154, %v1427, 0.0
    %v1523 = vadd.f32 %v1521, %v1522
    %v1524 = vrot.slane %v1523, 4
    %v1525 = vadd.f32 %v1523, %v1524
    %v1526 = vrot.slane %v1525, 2
    %v1527 = vadd.f32 %v1525, %v1526
    %v1528 = vrot.slane %v1527, 1
    %v1529 = vadd.f32 %v1527, %v1528
    %v1530 = vsel %vm154, %v1428, 0.0
    %v1531 = vsel %vm154, %v1429, 0.0
    %v1532 = vadd.f32 %v1530, %v1531
    %v1533 = vrot.slane %v1532, 4
    %v1534 = vadd.f32 %v1532, %v1533
    %v1535 = vrot.slane %v1534, 2
    %v1536 = vadd.f32 %v1534, %v1535
    %v1537 = vrot.slane %v1536, 1
    %v1538 = vadd.f32 %v1536, %v1537
    %v1539 = vsel %vm154, %v1430, 0.0
    %v1540 = vsel %vm154, %v1431, 0.0
    %v1541 = vadd.f32 %v1539, %v1540
    %v1542 = vrot.slane %v1541, 4
    %v1543 = vadd.f32 %v1541, %v1542
    %v1544 = vrot.slane %v1543, 2
    %v1545 = vadd.f32 %v1543, %v1544
    %v1546 = vrot.slane %v1545, 1
    %v1547 = vadd.f32 %v1545, %v1546
    %v1548 = vsel %vm154, %v1432, 0.0
    %v1549 = vsel %vm154, %v1433, 0.0
    %v1550 = vadd.f32 %v1548, %v1549
    %v1551 = vrot.slane %v1550, 4
    %v1552 = vadd.f32 %v1550, %v1551
    %v1553 = vrot.slane %v1552, 2
    %v1554 = vadd.f32 %v1552, %v1553
    %v1555 = vrot.slane %v1554, 1
    %v1556 = vadd.f32 %v1554, %v1555
    %v1557 = vsel %vm154, %v1434, 0.0
    %v1558 = vsel %vm154, %v1435, 0.0
    %v1559 = vadd.f32 %v1557, %v1558
    %v1560 = vrot.slane %v1559, 4
    %v1561 = vadd.f32 %v1559, %v1560
    %v1562 = vrot.slane %v1561, 2
    %v1563 = vadd.f32 %v1561, %v1562
    %v1564 = vrot.slane %v1563, 1
    %v1565 = vadd.f32 %v1563, %v1564
    %v1566 = vsel %vm154, %v1436, 0.0
    %v1567 = vsel %vm154, %v1437, 0.0
    %v1568 = vadd.f32 %v1566, %v1567
    %v1569 = vrot.slane %v1568, 4
    %v1570 = vadd.f32 %v1568, %v1569
    %v1571 = vrot.slane %v1570, 2
    %v1572 = vadd.f32 %v1570, %v1571
    %v1573 = vrot.slane %v1572, 1
    %v1574 = vadd.f32 %v1572, %v1573
    %v1575 = vsel %vm154, %v1438, 0.0
    %v1576 = vsel %vm154, %v1439, 0.0
    %v1577 = vadd.f32 %v1575, %v1576
    %v1578 = vrot.slane %v1577, 4
    %v1579 = vadd.f32 %v1577, %v1578
    %v1580 = vrot.slane %v1579, 2
    %v1581 = vadd.f32 %v1579, %v1580
    %v1582 = vrot.slane %v1581, 1
    %v1583 = vadd.f32 %v1581, %v1582
    %v1584 = vrot.slane %v986, 1
    %v1585 = vrot.slane %v986, 2
    %v1586 = vrot.slane %v986, 3
    %v1587 = vrot.slane %v986, 4
    %v1588 = vrot.slane %v986, 5
    %v1589 = vrot.slane %v986, 6
    %v1590 = vrot.slane %v986, 7
    %v1591 = vrot.slane %v987, 1
    %v1592 = vrot.slane %v987, 2
    %v1593 = vrot.slane %v987, 3
    %v1594 = vrot.slane %v987, 4
    %v1595 = vrot.slane %v987, 5
    %v1596 = vrot.slane %v987, 6
    %v1597 = vrot.slane %v987, 7
    %v1614 = vmul.f32 %v1272, %v986
    %v1615 = vmul.f32 %v1281, %v1584
    %v1616 = vmul.f32 %v1290, %v1585
    %v1617 = vmul.f32 %v1299, %v1586
    %v1618 = vmul.f32 %v1308, %v1587
    %v1619 = vmul.f32 %v1317, %v1588
    %v1620 = vmul.f32 %v1326, %v1589
    %v1621 = vmul.f32 %v1335, %v1590
    %v1622 = vmul.f32 %v1344, %v987
    %v1623 = vmul.f32 %v1353, %v1591
    %v1624 = vmul.f32 %v1362, %v1592
    %v1625 = vmul.f32 %v1371, %v1593
    %v1626 = vmul.f32 %v1380, %v1594
    %v1627 = vmul.f32 %v1389, %v1595
    %v1628 = vmul.f32 %v1398, %v1596
    %v1629 = vmul.f32 %v1407, %v1597
    %v1630 = vadd.f32 %v1614, 1.0
    %v1631 = vadd.f32 %v1615, 1.0
    %v1632 = vadd.f32 %v1616, 1.0
    %v1633 = vadd.f32 %v1617, 1.0
    %v1634 = vadd.f32 %v1618, 1.0
    %v1635 = vadd.f32 %v1619, 1.0
    %v1636 = vadd.f32 %v1620, 1.0
    %v1637 = vadd.f32 %v1621, 1.0
    %v1638 = vadd.f32 %v1622, 1.0
    %v1639 = vadd.f32 %v1623, 1.0
    %v1640 = vadd.f32 %v1624, 1.0
    %v1641 = vadd.f32 %v1625, 1.0
    %v1642 = vadd.f32 %v1626, 1.0
    %v1643 = vadd.f32 %v1627, 1.0
    %v1644 = vadd.f32 %v1628, 1.0
    %v1645 = vadd.f32 %v1629, 1.0
    %vm1646 = vcmp.gt.f32.partialorder %v1630, %v1448
    %vm1647 = vcmp.gt.f32.partialorder %v1631, %v1457
    %vm1648 = vcmp.gt.f32.partialorder %v1632, %v1466
    %vm1649 = vcmp.gt.f32.partialorder %v1633, %v1475
    %vm1650 = vcmp.gt.f32.partialorder %v1634, %v1484
    %vm1651 = vcmp.gt.f32.partialorder %v1635, %v1493
    %vm1652 = vcmp.gt.f32.partialorder %v1636, %v1502
    %vm1653 = vcmp.gt.f32.partialorder %v1637, %v1511
    %vm1654 = vcmp.gt.f32.partialorder %v1638, %v1520
    %vm1655 = vcmp.gt.f32.partialorder %v1639, %v1529
    %vm1656 = vcmp.gt.f32.partialorder %v1640, %v1538
    %vm1657 = vcmp.gt.f32.partialorder %v1641, %v1547
    %vm1658 = vcmp.gt.f32.partialorder %v1642, %v1556
    %vm1659 = vcmp.gt.f32.partialorder %v1643, %v1565
    %vm1660 = vcmp.gt.f32.partialorder %v1644, %v1574
    %vm1661 = vcmp.gt.f32.partialorder %v1645, %v1583
    %v1662 = vsel %vm1646, %v1272, 0.0
    %v1663 = vsel %vm1647, %v1281, 0.0
    %v1664 = vsel %vm1648, %v1290, 0.0
    %v1665 = vsel %vm1649, %v1299, 0.0
    %v1666 = vsel %vm1650, %v1308, 0.0
    %v1667 = vsel %vm1651, %v1317, 0.0
    %v1668 = vsel %vm1652, %v1326, 0.0
    %v1669 = vsel %vm1653, %v1335, 0.0
    %v1670 = vsel %vm1654, %v1344, 0.0
    %v1671 = vsel %vm1655, %v1353, 0.0
    %v1672 = vsel %vm1656, %v1362, 0.0
    %v1673 = vsel %vm1657, %v1371, 0.0
    %v1674 = vsel %vm1658, %v1380, 0.0
    %v1675 = vsel %vm1659, %v1389, 0.0
    %v1676 = vsel %vm1660, %v1398, 0.0
    %v1677 = vsel %vm1661, %v1407, 0.0
    %vm1678 = vcmask 57344
    %v1679 = vsel %vm1678, %v1662, -inf
    %v1680 = vsel %vm1678, %v1663, -inf
    %v1681 = vsel %vm1678, %v1664, -inf
    %v1682 = vsel %vm1678, %v1665, -inf
    %v1683 = vsel %vm1678, %v1666, -inf
    %v1684 = vmax.f32 %v1679, %v1683
    %v1685 = vsel %vm1678, %v1667, -inf
    %v1686 = vmax.f32 %v1680, %v1685
    %v1687 = vsel %vm1678, %v1668, -inf
    %v1688 = vmax.f32 %v1681, %v1687
    %v1689 = vsel %vm1678, %v1669, -inf
    %v1690 = vmax.f32 %v1682, %v1689
    %v1691 = vsel %vm1678, %v1670, -inf
    %v1692 = vmax.f32 %v1684, %v1691
    %v1693 = vsel %vm1678, %v1671, -inf
    %v1694 = vmax.f32 %v1686, %v1693
    %v1695 = vsel %vm1678, %v1672, -inf
    %v1696 = vmax.f32 %v1688, %v1695
    %v1697 = vsel %vm1678, %v1673, -inf
    %v1698 = vmax.f32 %v1690, %v1697
    %v1699 = vsel %vm1678, %v1674, -inf
    %v1700 = vmax.f32 %v1692, %v1699
    %v1701 = vsel %vm1678, %v1675, -inf
    %v1702 = vmax.f32 %v1694, %v1701
    %v1703 = vsel %vm1678, %v1676, -inf
    %v1704 = vmax.f32 %v1696, %v1703
    %v1705 = vsel %vm1678, %v1677, -inf
    %v1706 = vmax.f32 %v1698, %v1705
    %v1707 = vmax.f32 %v1700, %v1702
    %v1708 = vmax.f32 %v1704, %v1706
    %v1709 = vmax.f32 %v1707, %v1708
    %v1710 = vsel %vm1646, %v986, 0.0
    %v1711 = vsel %vm1647, %v1584, 0.0
    %v1712 = vsel %vm1648, %v1585, 0.0
    %v1713 = vsel %vm1649, %v1586, 0.0
    %v1714 = vsel %vm1650, %v1587, 0.0
    %v1715 = vsel %vm1651, %v1588, 0.0
    %v1716 = vsel %vm1652, %v1589, 0.0
    %v1717 = vsel %vm1653, %v1590, 0.0
    %v1718 = vsel %vm1654, %v987, 0.0
    %v1719 = vsel %vm1655, %v1591, 0.0
    %v1720 = vsel %vm1656, %v1592, 0.0
    %v1721 = vsel %vm1657, %v1593, 0.0
    %v1722 = vsel %vm1658, %v1594, 0.0
    %v1723 = vsel %vm1659, %v1595, 0.0
    %v1724 = vsel %vm1660, %v1596, 0.0
    %v1725 = vsel %vm1661, %v1597, 0.0
    %v1742 = vrot.slane %v1711, 7
    %vm1743 = vcmask 1041409
    %v1744 = vsel %vm1743, %v1742, %v1710
    %v1745 = vrot.slane %v1712, 6
    %vm1746 = vcmask 1042434
    %v1747 = vsel %vm1746, %v1745, %v1744
    %v1748 = vrot.slane %v1713, 5
    %vm1749 = vcmask 1043459
    %v1750 = vsel %vm1749, %v1748, %v1747
    %v1751 = vrot.slane %v1714, 4
    %vm1752 = vcmask 1044484
    %v1753 = vsel %vm1752, %v1751, %v1750
    %v1754 = vrot.slane %v1715, 3
    %vm1755 = vcmask 1045509
    %v1756 = vsel %vm1755, %v1754, %v1753
    %v1757 = vrot.slane %v1716, 2
    %vm1758 = vcmask 1046534
    %v1759 = vsel %vm1758, %v1757, %v1756
    %v1760 = vrot.slane %v1717, 1
    %vm1761 = vcmask 1047559
    %v1762 = vsel %vm1761, %v1760, %v1759
    %v1763 = vrot.slane %v1719, 7
    %v1764 = vsel %vm1743, %v1763, %v1718
    %v1765 = vrot.slane %v1720, 6
    %v1766 = vsel %vm1746, %v1765, %v1764
    %v1767 = vrot.slane %v1721, 5
    %v1768 = vsel %vm1749, %v1767, %v1766
    %v1769 = vrot.slane %v1722, 4
    %v1770 = vsel %vm1752, %v1769, %v1768
    %v1771 = vrot.slane %v1723, 3
    %v1772 = vsel %vm1755, %v1771, %v1770
    %v1773 = vrot.slane %v1724, 2
    %v1774 = vsel %vm1758, %v1773, %v1772
    %v1775 = vrot.slane %v1725, 1
    %v1776 = vsel %vm1761, %v1775, %v1774
    %v1779 = vsel %vm154, %v1762, 0.0
    %v1780 = vsel %vm154, %v1776, 0.0
    %v1781 = vadd.f32 %v1779, %v1780
    %v1782 = vrot.slane %v1781, 4
    %v1783 = vadd.f32 %v1781, %v1782
    %v1784 = vrot.slane %v1783, 2
    %v1785 = vadd.f32 %v1783, %v1784
    %v1786 = vrot.slane %v1785, 1
    %v1787 = vadd.f32 %v1785, %v1786
    %v1788 = vsub.f32 %v1787, 1.0
    %v1789 = vrcp.pop %v1709
    %v1790 = vmul.f32 %v1788, %v1789
    %v1791 = vlaneseq
    %v1792 = vshrl.u32 %v1791, 7
    %v1793 = vsub.s32 0, %v1792
    %v1794 = vrot.slane %v1790, %v1793
    %v1795 = vsub.f32 %v986, %v1794
    %v1796 = vsub.f32 %v987, %v1794
    %v1797 = vmax.f32 %v1795, 0.0
    %v1798 = vmax.f32 %v1796, 0.0
    %1799 = vst.msk [vmem:[%s7] sm:$0xff] %vm154, %v1797
    %1800 = vst.msk [vmem:[%s7 + $0x8] sm:$0xff] %vm154, %v1798
    %v1801 = vmul.f32 %v50, %v1797
    %v1802 = vmul.f32 %v51, %v1798
    %v1803 = vld [vmem:[%s1] sm:$0xff]
    %v1804 = vld [vmem:[%s1 + $0x8] sm:$0xff]
    %v1805 = vld [vmem:[%s1 + $0x10] sm:$0xff]
    %v1806 = vld [vmem:[%s1 + $0x18] sm:$0xff]
    %v1808 = vsel %vm56, %v1803, 0
    %v1811 = vsel %vm56, %v1804, 0
    %v1814 = vsel %vm56, %v1805, 0
    %v1817 = vsel %vm56, %v1806, 0
    %1819 = vmatprep.subr.mxu0 0.0
    %1820 = vmatpush1.msra.mxu0 %v1801
    %1821 = vmatprep.subr.mxu0 0.0
    %1822 = vmatpush1.msra.mxu0 %v1802
    %1823 = vmatprep.subr.mxu0 0.0
    %1824 = vmatpush1.msra.mxu0 0.0
    %1825 = vmatprep.subr.mxu0 0.0
    %1826 = vmatpush1.msra.mxu0 0.0
    %1827 = vmatprep.subr.mxu0 0.0
    %1828 = vmatpush1.msra.mxu0 0.0
    %1829 = vmatprep.subr.mxu0 0.0
    %1830 = vmatpush1.msra.mxu0 0.0
    %1831 = vmatprep.subr.mxu0 0.0
    %1832 = vmatpush1.msra.mxu0 0.0
    %1833 = vmatprep.subr.mxu0 0.0
    %1834 = vmatpush1.msra.mxu0 0.0
    %1835 = vmatprep.subr.mxu0 0.0
    %1836 = vmatpush1.msra.mxu0 0.0
    %1837 = vmatprep.subr.mxu0 0.0
    %1838 = vmatpush1.msra.mxu0 0.0
    %1839 = vmatprep.subr.mxu0 0.0
    %1840 = vmatpush1.msra.mxu0 0.0
    %1841 = vmatprep.subr.mxu0 0.0
    %1842 = vmatpush1.msra.mxu0 0.0
    %1843 = vmatprep.subr.mxu0 0.0
    %1844 = vmatpush1.msra.mxu0 0.0
    %1845 = vmatprep.subr.mxu0 0.0
    %1846 = vmatpush1.msra.mxu0 0.0
    %1847 = vmatprep.subr.mxu0 0.0
    %1848 = vmatpush1.msra.mxu0 0.0
    %1849 = vmatprep.subr.mxu0 0.0
    %1850 = vmatpush1.msra.mxu0 0.0
    %1851 = vmatprep.subr.mxu0 0.0
    %1852 = vmatpush1.msra.mxu0 0.0
    %1853 = vmatprep.subr.mxu0 0.0
    %1854 = vmatpush1.msra.mxu0 0.0
    %1855 = vmatprep.subr.mxu0 0.0
    %1856 = vmatpush1.msra.mxu0 0.0
    %1857 = vmatprep.subr.mxu0 0.0
    %1858 = vmatpush1.msra.mxu0 0.0
    %1859 = vmatprep.subr.mxu0 0.0
    %1860 = vmatpush1.msra.mxu0 0.0
    %1861 = vmatprep.subr.mxu0 0.0
    %1862 = vmatpush1.msra.mxu0 0.0
    %1863 = vmatprep.subr.mxu0 0.0
    %1864 = vmatpush1.msra.mxu0 0.0
    %1865 = vmatprep.subr.mxu0 0.0
    %1866 = vmatpush1.msra.mxu0 0.0
    %1867 = vmatprep.subr.mxu0 0.0
    %1868 = vmatpush1.msra.mxu0 0.0
    %1869 = vmatprep.subr.mxu0 0.0
    %1870 = vmatpush1.msra.mxu0 0.0
    %1871 = vmatprep.subr.mxu0 0.0
    %1872 = vmatpush1.msra.mxu0 0.0
    %1873 = vmatprep.subr.mxu0 0.0
    %1874 = vmatpush1.msra.mxu0 0.0
    %1875 = vmatprep.subr.mxu0 0.0
    %1876 = vmatpush1.msra.mxu0 0.0
    %1877 = vmatprep.subr.mxu0 0.0
    %1878 = vmatpush1.msra.mxu0 0.0
    %1879 = vmatprep.subr.mxu0 0.0
    %1880 = vmatpush1.msra.mxu0 0.0
    %1881 = vmatprep.subr.mxu0 0.0
    %1882 = vmatpush1.msra.mxu0 0.0
    %1883 = vmatprep.mubr.f32.mxu0 0.0
    %1884 = vmatmul.mubr.f32.gmra.mrb[0].mxu0 %v1808
    %v1885 = vpop.f32.mrb[0].mxu0
    %v1886 = vadd.f32 0.0, %v1885
    %v1887 = vpop.f32.mrb[0].mxu0
    %1888 = vmatprep.mubr.f32.mxu0 0.0
    %1889 = vmatmul.mubr.f32.gmra.mrb[0].mxu0 %v1811
    %v1890 = vpop.f32.mrb[0].mxu0
    %v1891 = vadd.f32 0.0, %v1890
    %v1892 = vpop.f32.mrb[0].mxu0
    %1893 = vmatprep.mubr.f32.mxu0 0.0
    %1894 = vmatmul.mubr.f32.gmra.mrb[0].mxu0 %v1814
    %v1895 = vpop.f32.mrb[0].mxu0
    %v1896 = vadd.f32 0.0, %v1895
    %v1897 = vpop.f32.mrb[0].mxu0
    %1898 = vmatprep.mubr.f32.mxu0 0.0
    %1899 = vmatmul.mubr.f32.gmra.mrb[0].mxu0 %v1817
    %v1900 = vpop.f32.mrb[0].mxu0
    %v1901 = vadd.f32 0.0, %v1900
    %v1902 = vpop.f32.mrb[0].mxu0
    %1903 = vdwg.mxu0
    %v1904 = vsel %vm154, %v1886, 0.0
    %1905 = vadd.xlane.f32.xlu0 %v1904
    %v1906 = vpop.xlane.xlu0 %1905
    %v1907 = vsel %vm154, %v1891, 0.0
    %1908 = vadd.xlane.f32.xlu0 %v1907
    %v1909 = vpop.xlane.xlu0 %1908
    %v1910 = vsel %vm154, %v1896, 0.0
    %1911 = vadd.xlane.f32.xlu0 %v1910
    %v1912 = vpop.xlane.xlu0 %1911
    %v1913 = vsel %vm154, %v1901, 0.0
    %1914 = vadd.xlane.f32.xlu0 %v1913
    %v1915 = vpop.xlane.xlu0 %1914
    %v1916 = vmul.f32 %v1906, %v167
    %v1917 = vmul.f32 %v1909, %v167
    %v1918 = vmul.f32 %v1912, %v167
    %v1919 = vmul.f32 %v1915, %v167
    %v1920 = vsub.f32 %v1886, %v1916
    %v1921 = vsub.f32 %v1891, %v1917
    %v1922 = vsub.f32 %v1896, %v1918
    %v1923 = vsub.f32 %v1901, %v1919
    %v1924 = vmul.f32 %v1920, %v1920
    %v1925 = vmul.f32 %v1921, %v1921
    %v1926 = vmul.f32 %v1922, %v1922
    %v1927 = vmul.f32 %v1923, %v1923
    %v1928 = vsel %vm154, %v1924, 0.0
    %1929 = vadd.xlane.f32.xlu0 %v1928
    %v1930 = vpop.xlane.xlu0 %1929
    %v1931 = vsel %vm154, %v1925, 0.0
    %1932 = vadd.xlane.f32.xlu0 %v1931
    %v1933 = vpop.xlane.xlu0 %1932
    %v1934 = vsel %vm154, %v1926, 0.0
    %1935 = vadd.xlane.f32.xlu0 %v1934
    %v1936 = vpop.xlane.xlu0 %1935
    %v1937 = vsel %vm154, %v1927, 0.0
    %1938 = vadd.xlane.f32.xlu0 %v1937
    %v1939 = vpop.xlane.xlu0 %1938
    %v1940 = vmul.f32 %v1930, %v167
    %v1941 = vmul.f32 %v1933, %v167
    %v1942 = vmul.f32 %v1936, %v167
    %v1943 = vmul.f32 %v1939, %v167
    %v1944 = vadd.f32 %v1940, 1e-05
    %v1945 = vadd.f32 %v1941, 1e-05
    %v1946 = vadd.f32 %v1942, 1e-05
    %v1947 = vadd.f32 %v1943, 1e-05
    %v1948 = vrsqrt.pop %v1944
    %v1949 = vrsqrt.pop %v1945
    %v1950 = vrsqrt.pop %v1946
    %v1951 = vrsqrt.pop %v1947
    %v1952 = vmul.f32 %v1920, %v1948
    %v1953 = vmul.f32 %v1921, %v1949
    %v1954 = vmul.f32 %v1922, %v1950
    %v1955 = vmul.f32 %v1923, %v1951
    %v1956 = vld [vmem:[%s5] sm:$0xff]
    %v1957 = vld [vmem:[%s5 + $0x8] sm:$0xff]
    %v1958 = vld [vmem:[%s5 + $0x10] sm:$0xff]
    %v1959 = vld [vmem:[%s5 + $0x18] sm:$0xff]
    %1961 = vset.pattern.permute.xlu0 10
    %1962 = vperm.xlu0 %1961, %v1956
    %v1963 = vpop.permute.xlu0 %1962
    %1966 = vset.pattern.permute.xlu0 10
    %1967 = vperm.xlu0 %1966, %v1957
    %v1968 = vpop.permute.xlu0 %1967
    %1971 = vset.pattern.permute.xlu0 10
    %1972 = vperm.xlu0 %1971, %v1958
    %v1973 = vpop.permute.xlu0 %1972
    %1976 = vset.pattern.permute.xlu0 10
    %1977 = vperm.xlu0 %1976, %v1959
    %v1978 = vpop.permute.xlu0 %1977
    %v1980 = vmul.f32 %v1952, %v1963
    %v1981 = vmul.f32 %v1953, %v1968
    %v1982 = vmul.f32 %v1954, %v1973
    %v1983 = vmul.f32 %v1955, %v1978
    %1984 = vset.pattern.permute.xlu0 11
    %1985 = vperm.xlu0 %1984, %v1956
    %v1986 = vpop.permute.xlu0 %1985
    %1988 = vset.pattern.permute.xlu0 11
    %1989 = vperm.xlu0 %1988, %v1957
    %v1990 = vpop.permute.xlu0 %1989
    %1992 = vset.pattern.permute.xlu0 11
    %1993 = vperm.xlu0 %1992, %v1958
    %v1994 = vpop.permute.xlu0 %1993
    %1996 = vset.pattern.permute.xlu0 11
    %1997 = vperm.xlu0 %1996, %v1959
    %v1998 = vpop.permute.xlu0 %1997
    %v2000 = vadd.f32 %v1980, %v1986
    %v2001 = vadd.f32 %v1981, %v1990
    %v2002 = vadd.f32 %v1982, %v1994
    %v2003 = vadd.f32 %v1983, %v1998
    %v2004 = vxor.u32 %v2002, 2147483648
    %v2005 = vxor.u32 %v2003, 2147483648
    %v2006 = vmul.f32 %v2004, 1.442695
    %v2007 = vpow.pop %v2006
    %v2008 = vmul.f32 %v2005, 1.442695
    %v2009 = vpow.pop %v2008
    %v2010 = vadd.f32 %v2007, 1.0
    %v2011 = vadd.f32 %v2009, 1.0
    %v2012 = vrcp.pop %v2010
    %v2013 = vmul.f32 1.0, %v2012
    %v2014 = vrcp.pop %v2011
    %v2015 = vmul.f32 1.0, %v2014
    %v2016 = vmul.f32 %v2000, %v2013
    %v2017 = vmul.f32 %v2001, %v2015
    %v2018 = vld [vmem:[%s2] sm:$0xff]
    %v2019 = vld [vmem:[%s2 + $0x8] sm:$0xff]
    %v2020 = vld [vmem:[%s2 + $0x10] sm:$0xff]
    %v2021 = vld [vmem:[%s2 + $0x18] sm:$0xff]
    %v2023 = vsel %vm56, %v2018, 0
    %v2026 = vsel %vm56, %v2019, 0
    %v2029 = vsel %vm56, %v2020, 0
    %v2032 = vsel %vm56, %v2021, 0
    %2034 = vmatprep.subr.mxu0 0.0
    %2035 = vmatpush1.msra.mxu0 %v2016
    %2036 = vmatprep.subr.mxu0 0.0
    %2037 = vmatpush1.msra.mxu0 %v2017
    %2038 = vmatprep.subr.mxu0 0.0
    %2039 = vmatpush1.msra.mxu0 0.0
    %2040 = vmatprep.subr.mxu0 0.0
    %2041 = vmatpush1.msra.mxu0 0.0
    %2042 = vmatprep.subr.mxu0 0.0
    %2043 = vmatpush1.msra.mxu0 0.0
    %2044 = vmatprep.subr.mxu0 0.0
    %2045 = vmatpush1.msra.mxu0 0.0
    %2046 = vmatprep.subr.mxu0 0.0
    %2047 = vmatpush1.msra.mxu0 0.0
    %2048 = vmatprep.subr.mxu0 0.0
    %2049 = vmatpush1.msra.mxu0 0.0
    %2050 = vmatprep.subr.mxu0 0.0
    %2051 = vmatpush1.msra.mxu0 0.0
    %2052 = vmatprep.subr.mxu0 0.0
    %2053 = vmatpush1.msra.mxu0 0.0
    %2054 = vmatprep.subr.mxu0 0.0
    %2055 = vmatpush1.msra.mxu0 0.0
    %2056 = vmatprep.subr.mxu0 0.0
    %2057 = vmatpush1.msra.mxu0 0.0
    %2058 = vmatprep.subr.mxu0 0.0
    %2059 = vmatpush1.msra.mxu0 0.0
    %2060 = vmatprep.subr.mxu0 0.0
    %2061 = vmatpush1.msra.mxu0 0.0
    %2062 = vmatprep.subr.mxu0 0.0
    %2063 = vmatpush1.msra.mxu0 0.0
    %2064 = vmatprep.subr.mxu0 0.0
    %2065 = vmatpush1.msra.mxu0 0.0
    %2066 = vmatprep.subr.mxu0 0.0
    %2067 = vmatpush1.msra.mxu0 0.0
    %2068 = vmatprep.subr.mxu0 0.0
    %2069 = vmatpush1.msra.mxu0 0.0
    %2070 = vmatprep.subr.mxu0 0.0
    %2071 = vmatpush1.msra.mxu0 0.0
    %2072 = vmatprep.subr.mxu0 0.0
    %2073 = vmatpush1.msra.mxu0 0.0
    %2074 = vmatprep.subr.mxu0 0.0
    %2075 = vmatpush1.msra.mxu0 0.0
    %2076 = vmatprep.subr.mxu0 0.0
    %2077 = vmatpush1.msra.mxu0 0.0
    %2078 = vmatprep.subr.mxu0 0.0
    %2079 = vmatpush1.msra.mxu0 0.0
    %2080 = vmatprep.subr.mxu0 0.0
    %2081 = vmatpush1.msra.mxu0 0.0
    %2082 = vmatprep.subr.mxu0 0.0
    %2083 = vmatpush1.msra.mxu0 0.0
    %2084 = vmatprep.subr.mxu0 0.0
    %2085 = vmatpush1.msra.mxu0 0.0
    %2086 = vmatprep.subr.mxu0 0.0
    %2087 = vmatpush1.msra.mxu0 0.0
    %2088 = vmatprep.subr.mxu0 0.0
    %2089 = vmatpush1.msra.mxu0 0.0
    %2090 = vmatprep.subr.mxu0 0.0
    %2091 = vmatpush1.msra.mxu0 0.0
    %2092 = vmatprep.subr.mxu0 0.0
    %2093 = vmatpush1.msra.mxu0 0.0
    %2094 = vmatprep.subr.mxu0 0.0
    %2095 = vmatpush1.msra.mxu0 0.0
    %2096 = vmatprep.subr.mxu0 0.0
    %2097 = vmatpush1.msra.mxu0 0.0
    %2098 = vmatprep.mubr.f32.mxu0 0.0
    %2099 = vmatmul.mubr.f32.gmra.mrb[0].mxu0 %v2023
    %v2100 = vpop.f32.mrb[0].mxu0
    %v2101 = vadd.f32 0.0, %v2100
    %v2102 = vpop.f32.mrb[0].mxu0
    %2103 = vmatprep.mubr.f32.mxu0 0.0
    %2104 = vmatmul.mubr.f32.gmra.mrb[0].mxu0 %v2026
    %v2105 = vpop.f32.mrb[0].mxu0
    %v2106 = vadd.f32 0.0, %v2105
    %v2107 = vpop.f32.mrb[0].mxu0
    %2108 = vmatprep.mubr.f32.mxu0 0.0
    %2109 = vmatmul.mubr.f32.gmra.mrb[0].mxu0 %v2029
    %v2110 = vpop.f32.mrb[0].mxu0
    %v2111 = vadd.f32 0.0, %v2110
    %v2112 = vpop.f32.mrb[0].mxu0
    %2113 = vmatprep.mubr.f32.mxu0 0.0
    %2114 = vmatmul.mubr.f32.gmra.mrb[0].mxu0 %v2032
    %v2115 = vpop.f32.mrb[0].mxu0
    %v2116 = vadd.f32 0.0, %v2115
    %v2117 = vpop.f32.mrb[0].mxu0
    %2118 = vdwg.mxu0
    %v2119 = vsel %vm154, %v2101, 0.0
    %2120 = vadd.xlane.f32.xlu0 %v2119
    %v2121 = vpop.xlane.xlu0 %2120
    %v2122 = vsel %vm154, %v2106, 0.0
    %2123 = vadd.xlane.f32.xlu0 %v2122
    %v2124 = vpop.xlane.xlu0 %2123
    %v2125 = vsel %vm154, %v2111, 0.0
    %2126 = vadd.xlane.f32.xlu0 %v2125
    %v2127 = vpop.xlane.xlu0 %2126
    %v2128 = vsel %vm154, %v2116, 0.0
    %2129 = vadd.xlane.f32.xlu0 %v2128
    %v2130 = vpop.xlane.xlu0 %2129
    %v2131 = vmul.f32 %v2121, %v167
    %v2132 = vmul.f32 %v2124, %v167
    %v2133 = vmul.f32 %v2127, %v167
    %v2134 = vmul.f32 %v2130, %v167
    %v2135 = vsub.f32 %v2101, %v2131
    %v2136 = vsub.f32 %v2106, %v2132
    %v2137 = vsub.f32 %v2111, %v2133
    %v2138 = vsub.f32 %v2116, %v2134
    %v2139 = vmul.f32 %v2135, %v2135
    %v2140 = vmul.f32 %v2136, %v2136
    %v2141 = vmul.f32 %v2137, %v2137
    %v2142 = vmul.f32 %v2138, %v2138
    %v2143 = vsel %vm154, %v2139, 0.0
    %2144 = vadd.xlane.f32.xlu0 %v2143
    %v2145 = vpop.xlane.xlu0 %2144
    %v2146 = vsel %vm154, %v2140, 0.0
    %2147 = vadd.xlane.f32.xlu0 %v2146
    %v2148 = vpop.xlane.xlu0 %2147
    %v2149 = vsel %vm154, %v2141, 0.0
    %2150 = vadd.xlane.f32.xlu0 %v2149
    %v2151 = vpop.xlane.xlu0 %2150
    %v2152 = vsel %vm154, %v2142, 0.0
    %2153 = vadd.xlane.f32.xlu0 %v2152
    %v2154 = vpop.xlane.xlu0 %2153
    %v2155 = vmul.f32 %v2145, %v167
    %v2156 = vmul.f32 %v2148, %v167
    %v2157 = vmul.f32 %v2151, %v167
    %v2158 = vmul.f32 %v2154, %v167
    %v2159 = vadd.f32 %v2155, 1e-05
    %v2160 = vadd.f32 %v2156, 1e-05
    %v2161 = vadd.f32 %v2157, 1e-05
    %v2162 = vadd.f32 %v2158, 1e-05
    %v2163 = vrsqrt.pop %v2159
    %v2164 = vrsqrt.pop %v2160
    %v2165 = vrsqrt.pop %v2161
    %v2166 = vrsqrt.pop %v2162
    %v2167 = vmul.f32 %v2135, %v2163
    %v2168 = vmul.f32 %v2136, %v2164
    %v2169 = vmul.f32 %v2137, %v2165
    %v2170 = vmul.f32 %v2138, %v2166
    %2171 = vset.pattern.permute.xlu0 12
    %2172 = vperm.xlu0 %2171, %v1956
    %v2173 = vpop.permute.xlu0 %2172
    %2175 = vset.pattern.permute.xlu0 12
    %2176 = vperm.xlu0 %2175, %v1957
    %v2177 = vpop.permute.xlu0 %2176
    %2179 = vset.pattern.permute.xlu0 12
    %2180 = vperm.xlu0 %2179, %v1958
    %v2181 = vpop.permute.xlu0 %2180
    %2183 = vset.pattern.permute.xlu0 12
    %2184 = vperm.xlu0 %2183, %v1959
    %v2185 = vpop.permute.xlu0 %2184
    %v2187 = vmul.f32 %v2167, %v2173
    %v2188 = vmul.f32 %v2168, %v2177
    %v2189 = vmul.f32 %v2169, %v2181
    %v2190 = vmul.f32 %v2170, %v2185
    %2191 = vset.pattern.permute.xlu0 13
    %2192 = vperm.xlu0 %2191, %v1956
    %v2193 = vpop.permute.xlu0 %2192
    %2195 = vset.pattern.permute.xlu0 13
    %2196 = vperm.xlu0 %2195, %v1957
    %v2197 = vpop.permute.xlu0 %2196
    %2199 = vset.pattern.permute.xlu0 13
    %2200 = vperm.xlu0 %2199, %v1958
    %v2201 = vpop.permute.xlu0 %2200
    %2203 = vset.pattern.permute.xlu0 13
    %2204 = vperm.xlu0 %2203, %v1959
    %v2205 = vpop.permute.xlu0 %2204
    %v2207 = vadd.f32 %v2187, %v2193
    %v2208 = vadd.f32 %v2188, %v2197
    %v2209 = vadd.f32 %v2189, %v2201
    %v2210 = vadd.f32 %v2190, %v2205
    %v2211 = vxor.u32 %v2209, 2147483648
    %v2212 = vxor.u32 %v2210, 2147483648
    %v2213 = vmul.f32 %v2211, 1.442695
    %v2214 = vpow.pop %v2213
    %v2215 = vmul.f32 %v2212, 1.442695
    %v2216 = vpow.pop %v2215
    %v2217 = vadd.f32 %v2214, 1.0
    %v2218 = vadd.f32 %v2216, 1.0
    %v2219 = vrcp.pop %v2217
    %v2220 = vmul.f32 1.0, %v2219
    %v2221 = vrcp.pop %v2218
    %v2222 = vmul.f32 1.0, %v2221
    %v2223 = vmul.f32 %v2207, %v2220
    %v2224 = vmul.f32 %v2208, %v2222
    %v2225 = vadd.f32 %v2016, %v2223
    %v2226 = vadd.f32 %v2017, %v2224
    %v2227 = vmul.f32 %v2225, 0.70710677
    %v2228 = vmul.f32 %v2226, 0.70710677
    %s2229 = scalar_lea.vmem %s2, 96
    %v2230 = vld [vmem:[%s2229] sm:$0xff]
    %v2231 = vld [vmem:[%s2229 + $0x8] sm:$0xff]
    %v2232 = vld [vmem:[%s2229 + $0x10] sm:$0xff]
    %v2233 = vld [vmem:[%s2229 + $0x18] sm:$0xff]
    %v2235 = vsel %vm56, %v2230, 0
    %v2238 = vsel %vm56, %v2231, 0
    %v2241 = vsel %vm56, %v2232, 0
    %v2244 = vsel %vm56, %v2233, 0
    %2246 = vmatprep.subr.mxu0 0.0
    %2247 = vmatpush1.msra.mxu0 %v2227
    %2248 = vmatprep.subr.mxu0 0.0
    %2249 = vmatpush1.msra.mxu0 %v2228
    %2250 = vmatprep.subr.mxu0 0.0
    %2251 = vmatpush1.msra.mxu0 0.0
    %2252 = vmatprep.subr.mxu0 0.0
    %2253 = vmatpush1.msra.mxu0 0.0
    %2254 = vmatprep.subr.mxu0 0.0
    %2255 = vmatpush1.msra.mxu0 0.0
    %2256 = vmatprep.subr.mxu0 0.0
    %2257 = vmatpush1.msra.mxu0 0.0
    %2258 = vmatprep.subr.mxu0 0.0
    %2259 = vmatpush1.msra.mxu0 0.0
    %2260 = vmatprep.subr.mxu0 0.0
    %2261 = vmatpush1.msra.mxu0 0.0
    %2262 = vmatprep.subr.mxu0 0.0
    %2263 = vmatpush1.msra.mxu0 0.0
    %2264 = vmatprep.subr.mxu0 0.0
    %2265 = vmatpush1.msra.mxu0 0.0
    %2266 = vmatprep.subr.mxu0 0.0
    %2267 = vmatpush1.msra.mxu0 0.0
    %2268 = vmatprep.subr.mxu0 0.0
    %2269 = vmatpush1.msra.mxu0 0.0
    %2270 = vmatprep.subr.mxu0 0.0
    %2271 = vmatpush1.msra.mxu0 0.0
    %2272 = vmatprep.subr.mxu0 0.0
    %2273 = vmatpush1.msra.mxu0 0.0
    %2274 = vmatprep.subr.mxu0 0.0
    %2275 = vmatpush1.msra.mxu0 0.0
    %2276 = vmatprep.subr.mxu0 0.0
    %2277 = vmatpush1.msra.mxu0 0.0
    %2278 = vmatprep.subr.mxu0 0.0
    %2279 = vmatpush1.msra.mxu0 0.0
    %2280 = vmatprep.subr.mxu0 0.0
    %2281 = vmatpush1.msra.mxu0 0.0
    %2282 = vmatprep.subr.mxu0 0.0
    %2283 = vmatpush1.msra.mxu0 0.0
    %2284 = vmatprep.subr.mxu0 0.0
    %2285 = vmatpush1.msra.mxu0 0.0
    %2286 = vmatprep.subr.mxu0 0.0
    %2287 = vmatpush1.msra.mxu0 0.0
    %2288 = vmatprep.subr.mxu0 0.0
    %2289 = vmatpush1.msra.mxu0 0.0
    %2290 = vmatprep.subr.mxu0 0.0
    %2291 = vmatpush1.msra.mxu0 0.0
    %2292 = vmatprep.subr.mxu0 0.0
    %2293 = vmatpush1.msra.mxu0 0.0
    %2294 = vmatprep.subr.mxu0 0.0
    %2295 = vmatpush1.msra.mxu0 0.0
    %2296 = vmatprep.subr.mxu0 0.0
    %2297 = vmatpush1.msra.mxu0 0.0
    %2298 = vmatprep.subr.mxu0 0.0
    %2299 = vmatpush1.msra.mxu0 0.0
    %2300 = vmatprep.subr.mxu0 0.0
    %2301 = vmatpush1.msra.mxu0 0.0
    %2302 = vmatprep.subr.mxu0 0.0
    %2303 = vmatpush1.msra.mxu0 0.0
    %2304 = vmatprep.subr.mxu0 0.0
    %2305 = vmatpush1.msra.mxu0 0.0
    %2306 = vmatprep.subr.mxu0 0.0
    %2307 = vmatpush1.msra.mxu0 0.0
    %2308 = vmatprep.subr.mxu0 0.0
    %2309 = vmatpush1.msra.mxu0 0.0
    %2310 = vmatprep.mubr.f32.mxu0 0.0
    %2311 = vmatmul.mubr.f32.gmra.mrb[0].mxu0 %v2235
    %v2312 = vpop.f32.mrb[0].mxu0
    %v2313 = vadd.f32 0.0, %v2312
    %v2314 = vpop.f32.mrb[0].mxu0
    %2315 = vmatprep.mubr.f32.mxu0 0.0
    %2316 = vmatmul.mubr.f32.gmra.mrb[0].mxu0 %v2238
    %v2317 = vpop.f32.mrb[0].mxu0
    %v2318 = vadd.f32 0.0, %v2317
    %v2319 = vpop.f32.mrb[0].mxu0
    %2320 = vmatprep.mubr.f32.mxu0 0.0
    %2321 = vmatmul.mubr.f32.gmra.mrb[0].mxu0 %v2241
    %v2322 = vpop.f32.mrb[0].mxu0
    %v2323 = vadd.f32 0.0, %v2322
    %v2324 = vpop.f32.mrb[0].mxu0
    %2325 = vmatprep.mubr.f32.mxu0 0.0
    %2326 = vmatmul.mubr.f32.gmra.mrb[0].mxu0 %v2244
    %v2327 = vpop.f32.mrb[0].mxu0
    %v2328 = vadd.f32 0.0, %v2327
    %v2329 = vpop.f32.mrb[0].mxu0
    %2330 = vdwg.mxu0
    %v2331 = vsel %vm154, %v2313, 0.0
    %2332 = vadd.xlane.f32.xlu0 %v2331
    %v2333 = vpop.xlane.xlu0 %2332
    %v2334 = vsel %vm154, %v2318, 0.0
    %2335 = vadd.xlane.f32.xlu0 %v2334
    %v2336 = vpop.xlane.xlu0 %2335
    %v2337 = vsel %vm154, %v2323, 0.0
    %2338 = vadd.xlane.f32.xlu0 %v2337
    %v2339 = vpop.xlane.xlu0 %2338
    %v2340 = vsel %vm154, %v2328, 0.0
    %2341 = vadd.xlane.f32.xlu0 %v2340
    %v2342 = vpop.xlane.xlu0 %2341
    %v2343 = vmul.f32 %v2333, %v167
    %v2344 = vmul.f32 %v2336, %v167
    %v2345 = vmul.f32 %v2339, %v167
    %v2346 = vmul.f32 %v2342, %v167
    %v2347 = vsub.f32 %v2313, %v2343
    %v2348 = vsub.f32 %v2318, %v2344
    %v2349 = vsub.f32 %v2323, %v2345
    %v2350 = vsub.f32 %v2328, %v2346
    %v2351 = vmul.f32 %v2347, %v2347
    %v2352 = vmul.f32 %v2348, %v2348
    %v2353 = vmul.f32 %v2349, %v2349
    %v2354 = vmul.f32 %v2350, %v2350
    %v2355 = vsel %vm154, %v2351, 0.0
    %2356 = vadd.xlane.f32.xlu0 %v2355
    %v2357 = vpop.xlane.xlu0 %2356
    %v2358 = vsel %vm154, %v2352, 0.0
    %2359 = vadd.xlane.f32.xlu0 %v2358
    %v2360 = vpop.xlane.xlu0 %2359
    %v2361 = vsel %vm154, %v2353, 0.0
    %2362 = vadd.xlane.f32.xlu0 %v2361
    %v2363 = vpop.xlane.xlu0 %2362
    %v2364 = vsel %vm154, %v2354, 0.0
    %2365 = vadd.xlane.f32.xlu0 %v2364
    %v2366 = vpop.xlane.xlu0 %2365
    %v2367 = vmul.f32 %v2357, %v167
    %v2368 = vmul.f32 %v2360, %v167
    %v2369 = vmul.f32 %v2363, %v167
    %v2370 = vmul.f32 %v2366, %v167
    %v2371 = vadd.f32 %v2367, 1e-05
    %v2372 = vadd.f32 %v2368, 1e-05
    %v2373 = vadd.f32 %v2369, 1e-05
    %v2374 = vadd.f32 %v2370, 1e-05
    %v2375 = vrsqrt.pop %v2371
    %v2376 = vrsqrt.pop %v2372
    %v2377 = vrsqrt.pop %v2373
    %v2378 = vrsqrt.pop %v2374
    %v2379 = vmul.f32 %v2347, %v2375
    %v2380 = vmul.f32 %v2348, %v2376
    %v2381 = vmul.f32 %v2349, %v2377
    %v2382 = vmul.f32 %v2350, %v2378
    %2383 = vset.pattern.permute.xlu0 14
    %2384 = vperm.xlu0 %2383, %v1956
    %v2385 = vpop.permute.xlu0 %2384
    %2387 = vset.pattern.permute.xlu0 14
    %2388 = vperm.xlu0 %2387, %v1957
    %v2389 = vpop.permute.xlu0 %2388
    %2391 = vset.pattern.permute.xlu0 14
    %2392 = vperm.xlu0 %2391, %v1958
    %v2393 = vpop.permute.xlu0 %2392
    %2395 = vset.pattern.permute.xlu0 14
    %2396 = vperm.xlu0 %2395, %v1959
    %v2397 = vpop.permute.xlu0 %2396
    %v2399 = vmul.f32 %v2379, %v2385
    %v2400 = vmul.f32 %v2380, %v2389
    %v2401 = vmul.f32 %v2381, %v2393
    %v2402 = vmul.f32 %v2382, %v2397
    %2403 = vset.pattern.permute.xlu0 15
    %2404 = vperm.xlu0 %2403, %v1956
    %v2405 = vpop.permute.xlu0 %2404
    %2407 = vset.pattern.permute.xlu0 15
    %2408 = vperm.xlu0 %2407, %v1957
    %v2409 = vpop.permute.xlu0 %2408
    %2411 = vset.pattern.permute.xlu0 15
    %2412 = vperm.xlu0 %2411, %v1958
    %v2413 = vpop.permute.xlu0 %2412
    %2415 = vset.pattern.permute.xlu0 15
    %2416 = vperm.xlu0 %2415, %v1959
    %v2417 = vpop.permute.xlu0 %2416
    %v2419 = vadd.f32 %v2399, %v2405
    %v2420 = vadd.f32 %v2400, %v2409
    %v2421 = vadd.f32 %v2401, %v2413
    %v2422 = vadd.f32 %v2402, %v2417
    %v2423 = vxor.u32 %v2421, 2147483648
    %v2424 = vxor.u32 %v2422, 2147483648
    %v2425 = vmul.f32 %v2423, 1.442695
    %v2426 = vpow.pop %v2425
    %v2427 = vmul.f32 %v2424, 1.442695
    %v2428 = vpow.pop %v2427
    %v2429 = vadd.f32 %v2426, 1.0
    %v2430 = vadd.f32 %v2428, 1.0
    %v2431 = vrcp.pop %v2429
    %v2432 = vmul.f32 1.0, %v2431
    %v2433 = vrcp.pop %v2430
    %v2434 = vmul.f32 1.0, %v2433
    %v2435 = vmul.f32 %v2419, %v2432
    %v2436 = vmul.f32 %v2420, %v2434
    %v2437 = vadd.f32 %v2227, %v2435
    %v2438 = vadd.f32 %v2228, %v2436
    %v2439 = vmul.f32 %v2437, 0.70710677
    %v2440 = vmul.f32 %v2438, 0.70710677
    %s2441 = scalar_lea.vmem %s2, 128
    %v2442 = vld [vmem:[%s2441] sm:$0xff]
    %v2443 = vld [vmem:[%s2441 + $0x8] sm:$0xff]
    %v2444 = vld [vmem:[%s2441 + $0x10] sm:$0xff]
    %v2445 = vld [vmem:[%s2441 + $0x18] sm:$0xff]
    %v2447 = vsel %vm56, %v2442, 0
    %v2450 = vsel %vm56, %v2443, 0
    %v2453 = vsel %vm56, %v2444, 0
    %v2456 = vsel %vm56, %v2445, 0
    %2458 = vmatprep.subr.mxu0 0.0
    %2459 = vmatpush1.msra.mxu0 %v2439
    %2460 = vmatprep.subr.mxu0 0.0
    %2461 = vmatpush1.msra.mxu0 %v2440
    %2462 = vmatprep.subr.mxu0 0.0
    %2463 = vmatpush1.msra.mxu0 0.0
    %2464 = vmatprep.subr.mxu0 0.0
    %2465 = vmatpush1.msra.mxu0 0.0
    %2466 = vmatprep.subr.mxu0 0.0
    %2467 = vmatpush1.msra.mxu0 0.0
    %2468 = vmatprep.subr.mxu0 0.0
    %2469 = vmatpush1.msra.mxu0 0.0
    %2470 = vmatprep.subr.mxu0 0.0
    %2471 = vmatpush1.msra.mxu0 0.0
    %2472 = vmatprep.subr.mxu0 0.0
    %2473 = vmatpush1.msra.mxu0 0.0
    %2474 = vmatprep.subr.mxu0 0.0
    %2475 = vmatpush1.msra.mxu0 0.0
    %2476 = vmatprep.subr.mxu0 0.0
    %2477 = vmatpush1.msra.mxu0 0.0
    %2478 = vmatprep.subr.mxu0 0.0
    %2479 = vmatpush1.msra.mxu0 0.0
    %2480 = vmatprep.subr.mxu0 0.0
    %2481 = vmatpush1.msra.mxu0 0.0
    %2482 = vmatprep.subr.mxu0 0.0
    %2483 = vmatpush1.msra.mxu0 0.0
    %2484 = vmatprep.subr.mxu0 0.0
    %2485 = vmatpush1.msra.mxu0 0.0
    %2486 = vmatprep.subr.mxu0 0.0
    %2487 = vmatpush1.msra.mxu0 0.0
    %2488 = vmatprep.subr.mxu0 0.0
    %2489 = vmatpush1.msra.mxu0 0.0
    %2490 = vmatprep.subr.mxu0 0.0
    %2491 = vmatpush1.msra.mxu0 0.0
    %2492 = vmatprep.subr.mxu0 0.0
    %2493 = vmatpush1.msra.mxu0 0.0
    %2494 = vmatprep.subr.mxu0 0.0
    %2495 = vmatpush1.msra.mxu0 0.0
    %2496 = vmatprep.subr.mxu0 0.0
    %2497 = vmatpush1.msra.mxu0 0.0
    %2498 = vmatprep.subr.mxu0 0.0
    %2499 = vmatpush1.msra.mxu0 0.0
    %2500 = vmatprep.subr.mxu0 0.0
    %2501 = vmatpush1.msra.mxu0 0.0
    %2502 = vmatprep.subr.mxu0 0.0
    %2503 = vmatpush1.msra.mxu0 0.0
    %2504 = vmatprep.subr.mxu0 0.0
    %2505 = vmatpush1.msra.mxu0 0.0
    %2506 = vmatprep.subr.mxu0 0.0
    %2507 = vmatpush1.msra.mxu0 0.0
    %2508 = vmatprep.subr.mxu0 0.0
    %2509 = vmatpush1.msra.mxu0 0.0
    %2510 = vmatprep.subr.mxu0 0.0
    %2511 = vmatpush1.msra.mxu0 0.0
    %2512 = vmatprep.subr.mxu0 0.0
    %2513 = vmatpush1.msra.mxu0 0.0
    %2514 = vmatprep.subr.mxu0 0.0
    %2515 = vmatpush1.msra.mxu0 0.0
    %2516 = vmatprep.subr.mxu0 0.0
    %2517 = vmatpush1.msra.mxu0 0.0
    %2518 = vmatprep.subr.mxu0 0.0
    %2519 = vmatpush1.msra.mxu0 0.0
    %2520 = vmatprep.subr.mxu0 0.0
    %2521 = vmatpush1.msra.mxu0 0.0
    %2522 = vmatprep.mubr.f32.mxu0 0.0
    %2523 = vmatmul.mubr.f32.gmra.mrb[0].mxu0 %v2447
    %v2524 = vpop.f32.mrb[0].mxu0
    %v2525 = vadd.f32 0.0, %v2524
    %v2526 = vpop.f32.mrb[0].mxu0
    %2527 = vmatprep.mubr.f32.mxu0 0.0
    %2528 = vmatmul.mubr.f32.gmra.mrb[0].mxu0 %v2450
    %v2529 = vpop.f32.mrb[0].mxu0
    %v2530 = vadd.f32 0.0, %v2529
    %v2531 = vpop.f32.mrb[0].mxu0
    %2532 = vmatprep.mubr.f32.mxu0 0.0
    %2533 = vmatmul.mubr.f32.gmra.mrb[0].mxu0 %v2453
    %v2534 = vpop.f32.mrb[0].mxu0
    %v2535 = vadd.f32 0.0, %v2534
    %v2536 = vpop.f32.mrb[0].mxu0
    %2537 = vmatprep.mubr.f32.mxu0 0.0
    %2538 = vmatmul.mubr.f32.gmra.mrb[0].mxu0 %v2456
    %v2539 = vpop.f32.mrb[0].mxu0
    %v2540 = vadd.f32 0.0, %v2539
    %v2541 = vpop.f32.mrb[0].mxu0
    %2542 = vdwg.mxu0
    %v2543 = vsel %vm154, %v2525, 0.0
    %2544 = vadd.xlane.f32.xlu0 %v2543
    %v2545 = vpop.xlane.xlu0 %2544
    %v2546 = vsel %vm154, %v2530, 0.0
    %2547 = vadd.xlane.f32.xlu0 %v2546
    %v2548 = vpop.xlane.xlu0 %2547
    %v2549 = vsel %vm154, %v2535, 0.0
    %2550 = vadd.xlane.f32.xlu0 %v2549
    %v2551 = vpop.xlane.xlu0 %2550
    %v2552 = vsel %vm154, %v2540, 0.0
    %2553 = vadd.xlane.f32.xlu0 %v2552
    %v2554 = vpop.xlane.xlu0 %2553
    %v2555 = vmul.f32 %v2545, %v167
    %v2556 = vmul.f32 %v2548, %v167
    %v2557 = vmul.f32 %v2551, %v167
    %v2558 = vmul.f32 %v2554, %v167
    %v2559 = vsub.f32 %v2525, %v2555
    %v2560 = vsub.f32 %v2530, %v2556
    %v2561 = vsub.f32 %v2535, %v2557
    %v2562 = vsub.f32 %v2540, %v2558
    %v2563 = vmul.f32 %v2559, %v2559
    %v2564 = vmul.f32 %v2560, %v2560
    %v2565 = vmul.f32 %v2561, %v2561
    %v2566 = vmul.f32 %v2562, %v2562
    %v2567 = vsel %vm154, %v2563, 0.0
    %2568 = vadd.xlane.f32.xlu0 %v2567
    %v2569 = vpop.xlane.xlu0 %2568
    %v2570 = vsel %vm154, %v2564, 0.0
    %2571 = vadd.xlane.f32.xlu0 %v2570
    %v2572 = vpop.xlane.xlu0 %2571
    %v2573 = vsel %vm154, %v2565, 0.0
    %2574 = vadd.xlane.f32.xlu0 %v2573
    %v2575 = vpop.xlane.xlu0 %2574
    %v2576 = vsel %vm154, %v2566, 0.0
    %2577 = vadd.xlane.f32.xlu0 %v2576
    %v2578 = vpop.xlane.xlu0 %2577
    %v2579 = vmul.f32 %v2569, %v167
    %v2580 = vmul.f32 %v2572, %v167
    %v2581 = vmul.f32 %v2575, %v167
    %v2582 = vmul.f32 %v2578, %v167
    %v2583 = vadd.f32 %v2579, 1e-05
    %v2584 = vadd.f32 %v2580, 1e-05
    %v2585 = vadd.f32 %v2581, 1e-05
    %v2586 = vadd.f32 %v2582, 1e-05
    %v2587 = vrsqrt.pop %v2583
    %v2588 = vrsqrt.pop %v2584
    %v2589 = vrsqrt.pop %v2585
    %v2590 = vrsqrt.pop %v2586
    %v2591 = vmul.f32 %v2559, %v2587
    %v2592 = vmul.f32 %v2560, %v2588
    %v2593 = vmul.f32 %v2561, %v2589
    %v2594 = vmul.f32 %v2562, %v2590
    %2595 = vset.pattern.permute.xlu0 16
    %2596 = vperm.xlu0 %2595, %v1956
    %v2597 = vpop.permute.xlu0 %2596
    %2599 = vset.pattern.permute.xlu0 16
    %2600 = vperm.xlu0 %2599, %v1957
    %v2601 = vpop.permute.xlu0 %2600
    %2603 = vset.pattern.permute.xlu0 16
    %2604 = vperm.xlu0 %2603, %v1958
    %v2605 = vpop.permute.xlu0 %2604
    %2607 = vset.pattern.permute.xlu0 16
    %2608 = vperm.xlu0 %2607, %v1959
    %v2609 = vpop.permute.xlu0 %2608
    %v2611 = vmul.f32 %v2591, %v2597
    %v2612 = vmul.f32 %v2592, %v2601
    %v2613 = vmul.f32 %v2593, %v2605
    %v2614 = vmul.f32 %v2594, %v2609
    %2615 = vset.pattern.permute.xlu0 17
    %2616 = vperm.xlu0 %2615, %v1956
    %v2617 = vpop.permute.xlu0 %2616
    %2619 = vset.pattern.permute.xlu0 17
    %2620 = vperm.xlu0 %2619, %v1957
    %v2621 = vpop.permute.xlu0 %2620
    %2623 = vset.pattern.permute.xlu0 17
    %2624 = vperm.xlu0 %2623, %v1958
    %v2625 = vpop.permute.xlu0 %2624
    %2627 = vset.pattern.permute.xlu0 17
    %2628 = vperm.xlu0 %2627, %v1959
    %v2629 = vpop.permute.xlu0 %2628
    %v2631 = vadd.f32 %v2611, %v2617
    %v2632 = vadd.f32 %v2612, %v2621
    %v2633 = vadd.f32 %v2613, %v2625
    %v2634 = vadd.f32 %v2614, %v2629
    %v2635 = vxor.u32 %v2633, 2147483648
    %v2636 = vxor.u32 %v2634, 2147483648
    %v2637 = vmul.f32 %v2635, 1.442695
    %v2638 = vpow.pop %v2637
    %v2639 = vmul.f32 %v2636, 1.442695
    %v2640 = vpow.pop %v2639
    %v2641 = vadd.f32 %v2638, 1.0
    %v2642 = vadd.f32 %v2640, 1.0
    %v2643 = vrcp.pop %v2641
    %v2644 = vmul.f32 1.0, %v2643
    %v2645 = vrcp.pop %v2642
    %v2646 = vmul.f32 1.0, %v2645
    %v2647 = vmul.f32 %v2631, %v2644
    %v2648 = vmul.f32 %v2632, %v2646
    %v2649 = vadd.f32 %v2439, %v2647
    %v2650 = vadd.f32 %v2440, %v2648
    %v2651 = vmul.f32 %v2649, 0.70710677
    %v2652 = vmul.f32 %v2650, 0.70710677
    %v2653 = vmax.f32 %v2651, 0.0
    %v2654 = vadd.f32 %v2653, 0.0
    %s2655 = scalar_lea.vmem %s3, 16
    %v2656 = vld [vmem:[%s2655] sm:$0xff]
    %v2657 = vld [vmem:[%s2655 + $0x8] sm:$0xff]
    %v2659 = vsel %vm154, %v2656, 0
    %v2662 = vsel %vm154, %v2657, 0
    %2664 = vmatprep.subr.mxu0 0.0
    %2665 = vmatpush1.msra.mxu0 %v2652
    %2666 = vmatprep.subr.mxu0 0.0
    %2667 = vmatpush1.msra.mxu0 0.0
    %2668 = vmatprep.subr.mxu0 0.0
    %2669 = vmatpush1.msra.mxu0 0.0
    %2670 = vmatprep.subr.mxu0 0.0
    %2671 = vmatpush1.msra.mxu0 0.0
    %2672 = vmatprep.subr.mxu0 0.0
    %2673 = vmatpush1.msra.mxu0 0.0
    %2674 = vmatprep.subr.mxu0 0.0
    %2675 = vmatpush1.msra.mxu0 0.0
    %2676 = vmatprep.subr.mxu0 0.0
    %2677 = vmatpush1.msra.mxu0 0.0
    %2678 = vmatprep.subr.mxu0 0.0
    %2679 = vmatpush1.msra.mxu0 0.0
    %2680 = vmatprep.subr.mxu0 0.0
    %2681 = vmatpush1.msra.mxu0 0.0
    %2682 = vmatprep.subr.mxu0 0.0
    %2683 = vmatpush1.msra.mxu0 0.0
    %2684 = vmatprep.subr.mxu0 0.0
    %2685 = vmatpush1.msra.mxu0 0.0
    %2686 = vmatprep.subr.mxu0 0.0
    %2687 = vmatpush1.msra.mxu0 0.0
    %2688 = vmatprep.subr.mxu0 0.0
    %2689 = vmatpush1.msra.mxu0 0.0
    %2690 = vmatprep.subr.mxu0 0.0
    %2691 = vmatpush1.msra.mxu0 0.0
    %2692 = vmatprep.subr.mxu0 0.0
    %2693 = vmatpush1.msra.mxu0 0.0
    %2694 = vmatprep.subr.mxu0 0.0
    %2695 = vmatpush1.msra.mxu0 0.0
    %2696 = vmatprep.subr.mxu0 0.0
    %2697 = vmatpush1.msra.mxu0 0.0
    %2698 = vmatprep.subr.mxu0 0.0
    %2699 = vmatpush1.msra.mxu0 0.0
    %2700 = vmatprep.subr.mxu0 0.0
    %2701 = vmatpush1.msra.mxu0 0.0
    %2702 = vmatprep.subr.mxu0 0.0
    %2703 = vmatpush1.msra.mxu0 0.0
    %2704 = vmatprep.subr.mxu0 0.0
    %2705 = vmatpush1.msra.mxu0 0.0
    %2706 = vmatprep.subr.mxu0 0.0
    %2707 = vmatpush1.msra.mxu0 0.0
    %2708 = vmatprep.subr.mxu0 0.0
    %2709 = vmatpush1.msra.mxu0 0.0
    %2710 = vmatprep.subr.mxu0 0.0
    %2711 = vmatpush1.msra.mxu0 0.0
    %2712 = vmatprep.subr.mxu0 0.0
    %2713 = vmatpush1.msra.mxu0 0.0
    %2714 = vmatprep.subr.mxu0 0.0
    %2715 = vmatpush1.msra.mxu0 0.0
    %2716 = vmatprep.subr.mxu0 0.0
    %2717 = vmatpush1.msra.mxu0 0.0
    %2718 = vmatprep.subr.mxu0 0.0
    %2719 = vmatpush1.msra.mxu0 0.0
    %2720 = vmatprep.subr.mxu0 0.0
    %2721 = vmatpush1.msra.mxu0 0.0
    %2722 = vmatprep.subr.mxu0 0.0
    %2723 = vmatpush1.msra.mxu0 0.0
    %2724 = vmatprep.subr.mxu0 0.0
    %2725 = vmatpush1.msra.mxu0 0.0
    %2726 = vmatprep.subr.mxu0 0.0
    %2727 = vmatpush1.msra.mxu0 0.0
    %2728 = vmatprep.mubr.f32.mxu0 0.0
    %2729 = vmatmul.mubr.f32.gmra.mrb[0].mxu0 %v2659
    %v2730 = vpop.f32.mrb[0].mxu0
    %v2731 = vadd.f32 0.0, %v2730
    %v2732 = vpop.f32.mrb[0].mxu0
    %2733 = vmatprep.mubr.f32.mxu0 0.0
    %2734 = vmatmul.mubr.f32.gmra.mrb[0].mxu0 %v2662
    %v2735 = vpop.f32.mrb[0].mxu0
    %v2736 = vadd.f32 0.0, %v2735
    %v2737 = vpop.f32.mrb[0].mxu0
    %2738 = vdwg.mxu0
    %v2739 = vsel %vm154, %v2731, 0.0
    %2740 = vadd.xlane.f32.xlu0 %v2739
    %v2741 = vpop.xlane.xlu0 %2740
    %v2742 = vsel %vm154, %v2736, 0.0
    %2743 = vadd.xlane.f32.xlu0 %v2742
    %v2744 = vpop.xlane.xlu0 %2743
    %v2745 = vmul.f32 %v2741, %v167
    %v2746 = vmul.f32 %v2744, %v167
    %v2747 = vsub.f32 %v2731, %v2745
    %v2748 = vsub.f32 %v2736, %v2746
    %v2749 = vmul.f32 %v2747, %v2747
    %v2750 = vmul.f32 %v2748, %v2748
    %v2751 = vsel %vm154, %v2749, 0.0
    %2752 = vadd.xlane.f32.xlu0 %v2751
    %v2753 = vpop.xlane.xlu0 %2752
    %v2754 = vsel %vm154, %v2750, 0.0
    %2755 = vadd.xlane.f32.xlu0 %v2754
    %v2756 = vpop.xlane.xlu0 %2755
    %v2757 = vmul.f32 %v2753, %v167
    %v2758 = vmul.f32 %v2756, %v167
    %v2759 = vadd.f32 %v2757, 1e-05
    %v2760 = vadd.f32 %v2758, 1e-05
    %v2761 = vrsqrt.pop %v2759
    %v2762 = vrsqrt.pop %v2760
    %v2763 = vmul.f32 %v2747, %v2761
    %v2764 = vmul.f32 %v2748, %v2762
    %v2765 = vld [vmem:[%s5] sm:$0xff]
    %v2766 = vld [vmem:[%s5 + $0x8] sm:$0xff]
    %2768 = vset.pattern.permute.xlu0 36
    %2769 = vperm.xlu0 %2768, %v2765
    %v2770 = vpop.permute.xlu0 %2769
    %2773 = vset.pattern.permute.xlu0 36
    %2774 = vperm.xlu0 %2773, %v2766
    %v2775 = vpop.permute.xlu0 %2774
    %v2777 = vmul.f32 %v2763, %v2770
    %v2778 = vmul.f32 %v2764, %v2775
    %2779 = vset.pattern.permute.xlu0 37
    %2780 = vperm.xlu0 %2779, %v2765
    %v2781 = vpop.permute.xlu0 %2780
    %2783 = vset.pattern.permute.xlu0 37
    %2784 = vperm.xlu0 %2783, %v2766
    %v2785 = vpop.permute.xlu0 %2784
    %v2787 = vadd.f32 %v2777, %v2781
    %v2788 = vadd.f32 %v2778, %v2785
    %v2789 = vsel %vm154, %v2787, -inf
    %v2790 = vsel %vm154, %v2788, -inf
    %v2791 = vmax.f32 %v2789, %v2790
    %v2792 = vrot.slane %v2791, 4
    %v2793 = vmax.f32 %v2791, %v2792
    %v2794 = vrot.slane %v2793, 2
    %v2795 = vmax.f32 %v2793, %v2794
    %v2796 = vrot.slane %v2795, 1
    %v2797 = vmax.f32 %v2795, %v2796
    %v2798 = vsub.f32 %v2787, %v2797
    %v2799 = vsub.f32 %v2788, %v2797
    %v2802 = vcombine.high %v2798, %v2798
    %v2804 = vunpack.c.l.s4 1966171168
    %v2805 = vunpack.c.0.s8 %v2804
    %v2806 = vlaneseq
    %v2807 = vshrl.u32 %v2806, 7
    %v2808 = vsub.s32 %v2805, %v2807
    %v2809 = vrot.slane %v2798, %v2808
    %v2811 = vunpack.c.l.s4 1966171168
    %v2812 = vunpack.c.0.s8 %v2811
    %v2813 = vlaneseq
    %v2814 = vshrl.u32 %v2813, 7
    %v2815 = vsub.s32 %v2812, %v2814
    %v2816 = vrot.slane %v2802, %v2815
    %v2817 = vcombine.high %v2809, %v2809
    %v2818 = vcombine.high %v2816, %v2816
    %v2820 = vunpack.c.l.s4 1966171168
    %v2821 = vunpack.c.0.s8 %v2820
    %v2822 = vlaneseq
    %v2823 = vshrl.u32 %v2822, 7
    %v2824 = vsub.s32 %v2821, %v2823
    %v2825 = vrot.slane %v2809, %v2824
    %v2827 = vunpack.c.l.s4 1966171168
    %v2828 = vunpack.c.0.s8 %v2827
    %v2829 = vlaneseq
    %v2830 = vshrl.u32 %v2829, 7
    %v2831 = vsub.s32 %v2828, %v2830
    %v2832 = vrot.slane %v2816, %v2831
    %v2834 = vunpack.c.l.s4 1966171168
    %v2835 = vunpack.c.0.s8 %v2834
    %v2836 = vlaneseq
    %v2837 = vshrl.u32 %v2836, 7
    %v2838 = vsub.s32 %v2835, %v2837
    %v2839 = vrot.slane %v2817, %v2838
    %v2841 = vunpack.c.l.s4 1966171168
    %v2842 = vunpack.c.0.s8 %v2841
    %v2843 = vlaneseq
    %v2844 = vshrl.u32 %v2843, 7
    %v2845 = vsub.s32 %v2842, %v2844
    %v2846 = vrot.slane %v2818, %v2845
    %v2847 = vcombine.high %v2825, %v2825
    %v2848 = vcombine.high %v2832, %v2832
    %v2849 = vcombine.high %v2839, %v2839
    %v2850 = vcombine.high %v2846, %v2846
    %v2851 = vcombine.high %v2799, %v2799
    %v2853 = vunpack.c.l.s4 1966171168
    %v2854 = vunpack.c.0.s8 %v2853
    %v2855 = vlaneseq
    %v2856 = vshrl.u32 %v2855, 7
    %v2857 = vsub.s32 %v2854, %v2856
    %v2858 = vrot.slane %v2799, %v2857
    %v2860 = vunpack.c.l.s4 1966171168
    %v2861 = vunpack.c.0.s8 %v2860
    %v2862 = vlaneseq
    %v2863 = vshrl.u32 %v2862, 7
    %v2864 = vsub.s32 %v2861, %v2863
    %v2865 = vrot.slane %v2851, %v2864
    %v2866 = vcombine.high %v2858, %v2858
    %v2867 = vcombine.high %v2865, %v2865
    %v2869 = vunpack.c.l.s4 1966171168
    %v2870 = vunpack.c.0.s8 %v2869
    %v2871 = vlaneseq
    %v2872 = vshrl.u32 %v2871, 7
    %v2873 = vsub.s32 %v2870, %v2872
    %v2874 = vrot.slane %v2858, %v2873
    %v2876 = vunpack.c.l.s4 1966171168
    %v2877 = vunpack.c.0.s8 %v2876
    %v2878 = vlaneseq
    %v2879 = vshrl.u32 %v2878, 7
    %v2880 = vsub.s32 %v2877, %v2879
    %v2881 = vrot.slane %v2865, %v2880
    %v2883 = vunpack.c.l.s4 1966171168
    %v2884 = vunpack.c.0.s8 %v2883
    %v2885 = vlaneseq
    %v2886 = vshrl.u32 %v2885, 7
    %v2887 = vsub.s32 %v2884, %v2886
    %v2888 = vrot.slane %v2866, %v2887
    %v2890 = vunpack.c.l.s4 1966171168
    %v2891 = vunpack.c.0.s8 %v2890
    %v2892 = vlaneseq
    %v2893 = vshrl.u32 %v2892, 7
    %v2894 = vsub.s32 %v2891, %v2893
    %v2895 = vrot.slane %v2867, %v2894
    %v2896 = vcombine.high %v2874, %v2874
    %v2897 = vcombine.high %v2881, %v2881
    %v2898 = vcombine.high %v2888, %v2888
    %v2899 = vcombine.high %v2895, %v2895
    %v2900 = vlaneseq
    %v2901 = vshrl.u32 %v2900, 7
    %v2902 = vsub.s32 0, %v2901
    %v2903 = vrot.slane %v2825, %v2902
    %v2904 = vlaneseq
    %v2905 = vshrl.u32 %v2904, 7
    %v2906 = vsub.s32 0, %v2905
    %v2907 = vrot.slane %v2839, %v2906
    %v2908 = vlaneseq
    %v2909 = vshrl.u32 %v2908, 7
    %v2910 = vsub.s32 0, %v2909
    %v2911 = vrot.slane %v2847, %v2910
    %v2912 = vlaneseq
    %v2913 = vshrl.u32 %v2912, 7
    %v2914 = vsub.s32 0, %v2913
    %v2915 = vrot.slane %v2849, %v2914
    %v2916 = vlaneseq
    %v2917 = vshrl.u32 %v2916, 7
    %v2918 = vsub.s32 0, %v2917
    %v2919 = vrot.slane %v2832, %v2918
    %v2920 = vlaneseq
    %v2921 = vshrl.u32 %v2920, 7
    %v2922 = vsub.s32 0, %v2921
    %v2923 = vrot.slane %v2846, %v2922
    %v2924 = vlaneseq
    %v2925 = vshrl.u32 %v2924, 7
    %v2926 = vsub.s32 0, %v2925
    %v2927 = vrot.slane %v2848, %v2926
    %v2928 = vlaneseq
    %v2929 = vshrl.u32 %v2928, 7
    %v2930 = vsub.s32 0, %v2929
    %v2931 = vrot.slane %v2850, %v2930
    %v2932 = vlaneseq
    %v2933 = vshrl.u32 %v2932, 7
    %v2934 = vsub.s32 0, %v2933
    %v2935 = vrot.slane %v2874, %v2934
    %v2936 = vlaneseq
    %v2937 = vshrl.u32 %v2936, 7
    %v2938 = vsub.s32 0, %v2937
    %v2939 = vrot.slane %v2888, %v2938
    %v2940 = vlaneseq
    %v2941 = vshrl.u32 %v2940, 7
    %v2942 = vsub.s32 0, %v2941
    %v2943 = vrot.slane %v2896, %v2942
    %v2944 = vlaneseq
    %v2945 = vshrl.u32 %v2944, 7
    %v2946 = vsub.s32 0, %v2945
    %v2947 = vrot.slane %v2898, %v2946
    %v2948 = vlaneseq
    %v2949 = vshrl.u32 %v2948, 7
    %v2950 = vsub.s32 0, %v2949
    %v2951 = vrot.slane %v2881, %v2950
    %v2952 = vlaneseq
    %v2953 = vshrl.u32 %v2952, 7
    %v2954 = vsub.s32 0, %v2953
    %v2955 = vrot.slane %v2895, %v2954
    %v2956 = vlaneseq
    %v2957 = vshrl.u32 %v2956, 7
    %v2958 = vsub.s32 0, %v2957
    %v2959 = vrot.slane %v2897, %v2958
    %v2960 = vlaneseq
    %v2961 = vshrl.u32 %v2960, 7
    %v2962 = vsub.s32 0, %v2961
    %v2963 = vrot.slane %v2899, %v2962
    %vm2980 = vcmp.ge.f32.partialorder %v2798, %v2903
    %vm2981 = vcmp.ge.f32.partialorder %v2799, %v2903
    %vm2982 = vcmp.ge.f32.partialorder %v2798, %v2907
    %vm2983 = vcmp.ge.f32.partialorder %v2799, %v2907
    %vm2984 = vcmp.ge.f32.partialorder %v2798, %v2911
    %vm2985 = vcmp.ge.f32.partialorder %v2799, %v2911
    %vm2986 = vcmp.ge.f32.partialorder %v2798, %v2915
    %vm2987 = vcmp.ge.f32.partialorder %v2799, %v2915
    %vm2988 = vcmp.ge.f32.partialorder %v2798, %v2919
    %vm2989 = vcmp.ge.f32.partialorder %v2799, %v2919
    %vm2990 = vcmp.ge.f32.partialorder %v2798, %v2923
    %vm2991 = vcmp.ge.f32.partialorder %v2799, %v2923
    %vm2992 = vcmp.ge.f32.partialorder %v2798, %v2927
    %vm2993 = vcmp.ge.f32.partialorder %v2799, %v2927
    %vm2994 = vcmp.ge.f32.partialorder %v2798, %v2931
    %vm2995 = vcmp.ge.f32.partialorder %v2799, %v2931
    %vm2996 = vcmp.ge.f32.partialorder %v2798, %v2935
    %vm2997 = vcmp.ge.f32.partialorder %v2799, %v2935
    %vm2998 = vcmp.ge.f32.partialorder %v2798, %v2939
    %vm2999 = vcmp.ge.f32.partialorder %v2799, %v2939
    %vm3000 = vcmp.ge.f32.partialorder %v2798, %v2943
    %vm3001 = vcmp.ge.f32.partialorder %v2799, %v2943
    %vm3002 = vcmp.ge.f32.partialorder %v2798, %v2947
    %vm3003 = vcmp.ge.f32.partialorder %v2799, %v2947
    %vm3004 = vcmp.ge.f32.partialorder %v2798, %v2951
    %vm3005 = vcmp.ge.f32.partialorder %v2799, %v2951
    %vm3006 = vcmp.ge.f32.partialorder %v2798, %v2955
    %vm3007 = vcmp.ge.f32.partialorder %v2799, %v2955
    %vm3008 = vcmp.ge.f32.partialorder %v2798, %v2959
    %vm3009 = vcmp.ge.f32.partialorder %v2799, %v2959
    %vm3010 = vcmp.ge.f32.partialorder %v2798, %v2963
    %vm3011 = vcmp.ge.f32.partialorder %v2799, %v2963
    %v3012 = vsel %vm2980, 1, 0
    %v3013 = vsel %vm2981, 1, 0
    %v3014 = vsel %vm2982, 1, 0
    %v3015 = vsel %vm2983, 1, 0
    %v3016 = vsel %vm2984, 1, 0
    %v3017 = vsel %vm2985, 1, 0
    %v3018 = vsel %vm2986, 1, 0
    %v3019 = vsel %vm2987, 1, 0
    %v3020 = vsel %vm2988, 1, 0
    %v3021 = vsel %vm2989, 1, 0
    %v3022 = vsel %vm2990, 1, 0
    %v3023 = vsel %vm2991, 1, 0
    %v3024 = vsel %vm2992, 1, 0
    %v3025 = vsel %vm2993, 1, 0
    %v3026 = vsel %vm2994, 1, 0
    %v3027 = vsel %vm2995, 1, 0
    %v3028 = vsel %vm2996, 1, 0
    %v3029 = vsel %vm2997, 1, 0
    %v3030 = vsel %vm2998, 1, 0
    %v3031 = vsel %vm2999, 1, 0
    %v3032 = vsel %vm3000, 1, 0
    %v3033 = vsel %vm3001, 1, 0
    %v3034 = vsel %vm3002, 1, 0
    %v3035 = vsel %vm3003, 1, 0
    %v3036 = vsel %vm3004, 1, 0
    %v3037 = vsel %vm3005, 1, 0
    %v3038 = vsel %vm3006, 1, 0
    %v3039 = vsel %vm3007, 1, 0
    %v3040 = vsel %vm3008, 1, 0
    %v3041 = vsel %vm3009, 1, 0
    %v3042 = vsel %vm3010, 1, 0
    %v3043 = vsel %vm3011, 1, 0
    %v3044 = vcvt.s32.f32 %v3012
    %v3045 = vcvt.s32.f32 %v3013
    %v3046 = vcvt.s32.f32 %v3014
    %v3047 = vcvt.s32.f32 %v3015
    %v3048 = vcvt.s32.f32 %v3016
    %v3049 = vcvt.s32.f32 %v3017
    %v3050 = vcvt.s32.f32 %v3018
    %v3051 = vcvt.s32.f32 %v3019
    %v3052 = vcvt.s32.f32 %v3020
    %v3053 = vcvt.s32.f32 %v3021
    %v3054 = vcvt.s32.f32 %v3022
    %v3055 = vcvt.s32.f32 %v3023
    %v3056 = vcvt.s32.f32 %v3024
    %v3057 = vcvt.s32.f32 %v3025
    %v3058 = vcvt.s32.f32 %v3026
    %v3059 = vcvt.s32.f32 %v3027
    %v3060 = vcvt.s32.f32 %v3028
    %v3061 = vcvt.s32.f32 %v3029
    %v3062 = vcvt.s32.f32 %v3030
    %v3063 = vcvt.s32.f32 %v3031
    %v3064 = vcvt.s32.f32 %v3032
    %v3065 = vcvt.s32.f32 %v3033
    %v3066 = vcvt.s32.f32 %v3034
    %v3067 = vcvt.s32.f32 %v3035
    %v3068 = vcvt.s32.f32 %v3036
    %v3069 = vcvt.s32.f32 %v3037
    %v3070 = vcvt.s32.f32 %v3038
    %v3071 = vcvt.s32.f32 %v3039
    %v3072 = vcvt.s32.f32 %v3040
    %v3073 = vcvt.s32.f32 %v3041
    %v3074 = vcvt.s32.f32 %v3042
    %v3075 = vcvt.s32.f32 %v3043
    %v3076 = vsel %vm154, %v3044, 0.0
    %v3077 = vsel %vm154, %v3045, 0.0
    %v3078 = vadd.f32 %v3076, %v3077
    %v3079 = vrot.slane %v3078, 4
    %v3080 = vadd.f32 %v3078, %v3079
    %v3081 = vrot.slane %v3080, 2
    %v3082 = vadd.f32 %v3080, %v3081
    %v3083 = vrot.slane %v3082, 1
    %v3084 = vadd.f32 %v3082, %v3083
    %v3085 = vsel %vm154, %v3046, 0.0
    %v3086 = vsel %vm154, %v3047, 0.0
    %v3087 = vadd.f32 %v3085, %v3086
    %v3088 = vrot.slane %v3087, 4
    %v3089 = vadd.f32 %v3087, %v3088
    %v3090 = vrot.slane %v3089, 2
    %v3091 = vadd.f32 %v3089, %v3090
    %v3092 = vrot.slane %v3091, 1
    %v3093 = vadd.f32 %v3091, %v3092
    %v3094 = vsel %vm154, %v3048, 0.0
    %v3095 = vsel %vm154, %v3049, 0.0
    %v3096 = vadd.f32 %v3094, %v3095
    %v3097 = vrot.slane %v3096, 4
    %v3098 = vadd.f32 %v3096, %v3097
    %v3099 = vrot.slane %v3098, 2
    %v3100 = vadd.f32 %v3098, %v3099
    %v3101 = vrot.slane %v3100, 1
    %v3102 = vadd.f32 %v3100, %v3101
    %v3103 = vsel %vm154, %v3050, 0.0
    %v3104 = vsel %vm154, %v3051, 0.0
    %v3105 = vadd.f32 %v3103, %v3104
    %v3106 = vrot.slane %v3105, 4
    %v3107 = vadd.f32 %v3105, %v3106
    %v3108 = vrot.slane %v3107, 2
    %v3109 = vadd.f32 %v3107, %v3108
    %v3110 = vrot.slane %v3109, 1
    %v3111 = vadd.f32 %v3109, %v3110
    %v3112 = vsel %vm154, %v3052, 0.0
    %v3113 = vsel %vm154, %v3053, 0.0
    %v3114 = vadd.f32 %v3112, %v3113
    %v3115 = vrot.slane %v3114, 4
    %v3116 = vadd.f32 %v3114, %v3115
    %v3117 = vrot.slane %v3116, 2
    %v3118 = vadd.f32 %v3116, %v3117
    %v3119 = vrot.slane %v3118, 1
    %v3120 = vadd.f32 %v3118, %v3119
    %v3121 = vsel %vm154, %v3054, 0.0
    %v3122 = vsel %vm154, %v3055, 0.0
    %v3123 = vadd.f32 %v3121, %v3122
    %v3124 = vrot.slane %v3123, 4
    %v3125 = vadd.f32 %v3123, %v3124
    %v3126 = vrot.slane %v3125, 2
    %v3127 = vadd.f32 %v3125, %v3126
    %v3128 = vrot.slane %v3127, 1
    %v3129 = vadd.f32 %v3127, %v3128
    %v3130 = vsel %vm154, %v3056, 0.0
    %v3131 = vsel %vm154, %v3057, 0.0
    %v3132 = vadd.f32 %v3130, %v3131
    %v3133 = vrot.slane %v3132, 4
    %v3134 = vadd.f32 %v3132, %v3133
    %v3135 = vrot.slane %v3134, 2
    %v3136 = vadd.f32 %v3134, %v3135
    %v3137 = vrot.slane %v3136, 1
    %v3138 = vadd.f32 %v3136, %v3137
    %v3139 = vsel %vm154, %v3058, 0.0
    %v3140 = vsel %vm154, %v3059, 0.0
    %v3141 = vadd.f32 %v3139, %v3140
    %v3142 = vrot.slane %v3141, 4
    %v3143 = vadd.f32 %v3141, %v3142
    %v3144 = vrot.slane %v3143, 2
    %v3145 = vadd.f32 %v3143, %v3144
    %v3146 = vrot.slane %v3145, 1
    %v3147 = vadd.f32 %v3145, %v3146
    %v3148 = vsel %vm154, %v3060, 0.0
    %v3149 = vsel %vm154, %v3061, 0.0
    %v3150 = vadd.f32 %v3148, %v3149
    %v3151 = vrot.slane %v3150, 4
    %v3152 = vadd.f32 %v3150, %v3151
    %v3153 = vrot.slane %v3152, 2
    %v3154 = vadd.f32 %v3152, %v3153
    %v3155 = vrot.slane %v3154, 1
    %v3156 = vadd.f32 %v3154, %v3155
    %v3157 = vsel %vm154, %v3062, 0.0
    %v3158 = vsel %vm154, %v3063, 0.0
    %v3159 = vadd.f32 %v3157, %v3158
    %v3160 = vrot.slane %v3159, 4
    %v3161 = vadd.f32 %v3159, %v3160
    %v3162 = vrot.slane %v3161, 2
    %v3163 = vadd.f32 %v3161, %v3162
    %v3164 = vrot.slane %v3163, 1
    %v3165 = vadd.f32 %v3163, %v3164
    %v3166 = vsel %vm154, %v3064, 0.0
    %v3167 = vsel %vm154, %v3065, 0.0
    %v3168 = vadd.f32 %v3166, %v3167
    %v3169 = vrot.slane %v3168, 4
    %v3170 = vadd.f32 %v3168, %v3169
    %v3171 = vrot.slane %v3170, 2
    %v3172 = vadd.f32 %v3170, %v3171
    %v3173 = vrot.slane %v3172, 1
    %v3174 = vadd.f32 %v3172, %v3173
    %v3175 = vsel %vm154, %v3066, 0.0
    %v3176 = vsel %vm154, %v3067, 0.0
    %v3177 = vadd.f32 %v3175, %v3176
    %v3178 = vrot.slane %v3177, 4
    %v3179 = vadd.f32 %v3177, %v3178
    %v3180 = vrot.slane %v3179, 2
    %v3181 = vadd.f32 %v3179, %v3180
    %v3182 = vrot.slane %v3181, 1
    %v3183 = vadd.f32 %v3181, %v3182
    %v3184 = vsel %vm154, %v3068, 0.0
    %v3185 = vsel %vm154, %v3069, 0.0
    %v3186 = vadd.f32 %v3184, %v3185
    %v3187 = vrot.slane %v3186, 4
    %v3188 = vadd.f32 %v3186, %v3187
    %v3189 = vrot.slane %v3188, 2
    %v3190 = vadd.f32 %v3188, %v3189
    %v3191 = vrot.slane %v3190, 1
    %v3192 = vadd.f32 %v3190, %v3191
    %v3193 = vsel %vm154, %v3070, 0.0
    %v3194 = vsel %vm154, %v3071, 0.0
    %v3195 = vadd.f32 %v3193, %v3194
    %v3196 = vrot.slane %v3195, 4
    %v3197 = vadd.f32 %v3195, %v3196
    %v3198 = vrot.slane %v3197, 2
    %v3199 = vadd.f32 %v3197, %v3198
    %v3200 = vrot.slane %v3199, 1
    %v3201 = vadd.f32 %v3199, %v3200
    %v3202 = vsel %vm154, %v3072, 0.0
    %v3203 = vsel %vm154, %v3073, 0.0
    %v3204 = vadd.f32 %v3202, %v3203
    %v3205 = vrot.slane %v3204, 4
    %v3206 = vadd.f32 %v3204, %v3205
    %v3207 = vrot.slane %v3206, 2
    %v3208 = vadd.f32 %v3206, %v3207
    %v3209 = vrot.slane %v3208, 1
    %v3210 = vadd.f32 %v3208, %v3209
    %v3211 = vsel %vm154, %v3074, 0.0
    %v3212 = vsel %vm154, %v3075, 0.0
    %v3213 = vadd.f32 %v3211, %v3212
    %v3214 = vrot.slane %v3213, 4
    %v3215 = vadd.f32 %v3213, %v3214
    %v3216 = vrot.slane %v3215, 2
    %v3217 = vadd.f32 %v3215, %v3216
    %v3218 = vrot.slane %v3217, 1
    %v3219 = vadd.f32 %v3217, %v3218
    %v3220 = vmul.f32 %v3044, %v2798
    %v3221 = vmul.f32 %v3045, %v2799
    %v3222 = vmul.f32 %v3046, %v2798
    %v3223 = vmul.f32 %v3047, %v2799
    %v3224 = vmul.f32 %v3048, %v2798
    %v3225 = vmul.f32 %v3049, %v2799
    %v3226 = vmul.f32 %v3050, %v2798
    %v3227 = vmul.f32 %v3051, %v2799
    %v3228 = vmul.f32 %v3052, %v2798
    %v3229 = vmul.f32 %v3053, %v2799
    %v3230 = vmul.f32 %v3054, %v2798
    %v3231 = vmul.f32 %v3055, %v2799
    %v3232 = vmul.f32 %v3056, %v2798
    %v3233 = vmul.f32 %v3057, %v2799
    %v3234 = vmul.f32 %v3058, %v2798
    %v3235 = vmul.f32 %v3059, %v2799
    %v3236 = vmul.f32 %v3060, %v2798
    %v3237 = vmul.f32 %v3061, %v2799
    %v3238 = vmul.f32 %v3062, %v2798
    %v3239 = vmul.f32 %v3063, %v2799
    %v3240 = vmul.f32 %v3064, %v2798
    %v3241 = vmul.f32 %v3065, %v2799
    %v3242 = vmul.f32 %v3066, %v2798
    %v3243 = vmul.f32 %v3067, %v2799
    %v3244 = vmul.f32 %v3068, %v2798
    %v3245 = vmul.f32 %v3069, %v2799
    %v3246 = vmul.f32 %v3070, %v2798
    %v3247 = vmul.f32 %v3071, %v2799
    %v3248 = vmul.f32 %v3072, %v2798
    %v3249 = vmul.f32 %v3073, %v2799
    %v3250 = vmul.f32 %v3074, %v2798
    %v3251 = vmul.f32 %v3075, %v2799
    %v3252 = vsel %vm154, %v3220, 0.0
    %v3253 = vsel %vm154, %v3221, 0.0
    %v3254 = vadd.f32 %v3252, %v3253
    %v3255 = vrot.slane %v3254, 4
    %v3256 = vadd.f32 %v3254, %v3255
    %v3257 = vrot.slane %v3256, 2
    %v3258 = vadd.f32 %v3256, %v3257
    %v3259 = vrot.slane %v3258, 1
    %v3260 = vadd.f32 %v3258, %v3259
    %v3261 = vsel %vm154, %v3222, 0.0
    %v3262 = vsel %vm154, %v3223, 0.0
    %v3263 = vadd.f32 %v3261, %v3262
    %v3264 = vrot.slane %v3263, 4
    %v3265 = vadd.f32 %v3263, %v3264
    %v3266 = vrot.slane %v3265, 2
    %v3267 = vadd.f32 %v3265, %v3266
    %v3268 = vrot.slane %v3267, 1
    %v3269 = vadd.f32 %v3267, %v3268
    %v3270 = vsel %vm154, %v3224, 0.0
    %v3271 = vsel %vm154, %v3225, 0.0
    %v3272 = vadd.f32 %v3270, %v3271
    %v3273 = vrot.slane %v3272, 4
    %v3274 = vadd.f32 %v3272, %v3273
    %v3275 = vrot.slane %v3274, 2
    %v3276 = vadd.f32 %v3274, %v3275
    %v3277 = vrot.slane %v3276, 1
    %v3278 = vadd.f32 %v3276, %v3277
    %v3279 = vsel %vm154, %v3226, 0.0
    %v3280 = vsel %vm154, %v3227, 0.0
    %v3281 = vadd.f32 %v3279, %v3280
    %v3282 = vrot.slane %v3281, 4
    %v3283 = vadd.f32 %v3281, %v3282
    %v3284 = vrot.slane %v3283, 2
    %v3285 = vadd.f32 %v3283, %v3284
    %v3286 = vrot.slane %v3285, 1
    %v3287 = vadd.f32 %v3285, %v3286
    %v3288 = vsel %vm154, %v3228, 0.0
    %v3289 = vsel %vm154, %v3229, 0.0
    %v3290 = vadd.f32 %v3288, %v3289
    %v3291 = vrot.slane %v3290, 4
    %v3292 = vadd.f32 %v3290, %v3291
    %v3293 = vrot.slane %v3292, 2
    %v3294 = vadd.f32 %v3292, %v3293
    %v3295 = vrot.slane %v3294, 1
    %v3296 = vadd.f32 %v3294, %v3295
    %v3297 = vsel %vm154, %v3230, 0.0
    %v3298 = vsel %vm154, %v3231, 0.0
    %v3299 = vadd.f32 %v3297, %v3298
    %v3300 = vrot.slane %v3299, 4
    %v3301 = vadd.f32 %v3299, %v3300
    %v3302 = vrot.slane %v3301, 2
    %v3303 = vadd.f32 %v3301, %v3302
    %v3304 = vrot.slane %v3303, 1
    %v3305 = vadd.f32 %v3303, %v3304
    %v3306 = vsel %vm154, %v3232, 0.0
    %v3307 = vsel %vm154, %v3233, 0.0
    %v3308 = vadd.f32 %v3306, %v3307
    %v3309 = vrot.slane %v3308, 4
    %v3310 = vadd.f32 %v3308, %v3309
    %v3311 = vrot.slane %v3310, 2
    %v3312 = vadd.f32 %v3310, %v3311
    %v3313 = vrot.slane %v3312, 1
    %v3314 = vadd.f32 %v3312, %v3313
    %v3315 = vsel %vm154, %v3234, 0.0
    %v3316 = vsel %vm154, %v3235, 0.0
    %v3317 = vadd.f32 %v3315, %v3316
    %v3318 = vrot.slane %v3317, 4
    %v3319 = vadd.f32 %v3317, %v3318
    %v3320 = vrot.slane %v3319, 2
    %v3321 = vadd.f32 %v3319, %v3320
    %v3322 = vrot.slane %v3321, 1
    %v3323 = vadd.f32 %v3321, %v3322
    %v3324 = vsel %vm154, %v3236, 0.0
    %v3325 = vsel %vm154, %v3237, 0.0
    %v3326 = vadd.f32 %v3324, %v3325
    %v3327 = vrot.slane %v3326, 4
    %v3328 = vadd.f32 %v3326, %v3327
    %v3329 = vrot.slane %v3328, 2
    %v3330 = vadd.f32 %v3328, %v3329
    %v3331 = vrot.slane %v3330, 1
    %v3332 = vadd.f32 %v3330, %v3331
    %v3333 = vsel %vm154, %v3238, 0.0
    %v3334 = vsel %vm154, %v3239, 0.0
    %v3335 = vadd.f32 %v3333, %v3334
    %v3336 = vrot.slane %v3335, 4
    %v3337 = vadd.f32 %v3335, %v3336
    %v3338 = vrot.slane %v3337, 2
    %v3339 = vadd.f32 %v3337, %v3338
    %v3340 = vrot.slane %v3339, 1
    %v3341 = vadd.f32 %v3339, %v3340
    %v3342 = vsel %vm154, %v3240, 0.0
    %v3343 = vsel %vm154, %v3241, 0.0
    %v3344 = vadd.f32 %v3342, %v3343
    %v3345 = vrot.slane %v3344, 4
    %v3346 = vadd.f32 %v3344, %v3345
    %v3347 = vrot.slane %v3346, 2
    %v3348 = vadd.f32 %v3346, %v3347
    %v3349 = vrot.slane %v3348, 1
    %v3350 = vadd.f32 %v3348, %v3349
    %v3351 = vsel %vm154, %v3242, 0.0
    %v3352 = vsel %vm154, %v3243, 0.0
    %v3353 = vadd.f32 %v3351, %v3352
    %v3354 = vrot.slane %v3353, 4
    %v3355 = vadd.f32 %v3353, %v3354
    %v3356 = vrot.slane %v3355, 2
    %v3357 = vadd.f32 %v3355, %v3356
    %v3358 = vrot.slane %v3357, 1
    %v3359 = vadd.f32 %v3357, %v3358
    %v3360 = vsel %vm154, %v3244, 0.0
    %v3361 = vsel %vm154, %v3245, 0.0
    %v3362 = vadd.f32 %v3360, %v3361
    %v3363 = vrot.slane %v3362, 4
    %v3364 = vadd.f32 %v3362, %v3363
    %v3365 = vrot.slane %v3364, 2
    %v3366 = vadd.f32 %v3364, %v3365
    %v3367 = vrot.slane %v3366, 1
    %v3368 = vadd.f32 %v3366, %v3367
    %v3369 = vsel %vm154, %v3246, 0.0
    %v3370 = vsel %vm154, %v3247, 0.0
    %v3371 = vadd.f32 %v3369, %v3370
    %v3372 = vrot.slane %v3371, 4
    %v3373 = vadd.f32 %v3371, %v3372
    %v3374 = vrot.slane %v3373, 2
    %v3375 = vadd.f32 %v3373, %v3374
    %v3376 = vrot.slane %v3375, 1
    %v3377 = vadd.f32 %v3375, %v3376
    %v3378 = vsel %vm154, %v3248, 0.0
    %v3379 = vsel %vm154, %v3249, 0.0
    %v3380 = vadd.f32 %v3378, %v3379
    %v3381 = vrot.slane %v3380, 4
    %v3382 = vadd.f32 %v3380, %v3381
    %v3383 = vrot.slane %v3382, 2
    %v3384 = vadd.f32 %v3382, %v3383
    %v3385 = vrot.slane %v3384, 1
    %v3386 = vadd.f32 %v3384, %v3385
    %v3387 = vsel %vm154, %v3250, 0.0
    %v3388 = vsel %vm154, %v3251, 0.0
    %v3389 = vadd.f32 %v3387, %v3388
    %v3390 = vrot.slane %v3389, 4
    %v3391 = vadd.f32 %v3389, %v3390
    %v3392 = vrot.slane %v3391, 2
    %v3393 = vadd.f32 %v3391, %v3392
    %v3394 = vrot.slane %v3393, 1
    %v3395 = vadd.f32 %v3393, %v3394
    %v3396 = vrot.slane %v2798, 1
    %v3397 = vrot.slane %v2798, 2
    %v3398 = vrot.slane %v2798, 3
    %v3399 = vrot.slane %v2798, 4
    %v3400 = vrot.slane %v2798, 5
    %v3401 = vrot.slane %v2798, 6
    %v3402 = vrot.slane %v2798, 7
    %v3403 = vrot.slane %v2799, 1
    %v3404 = vrot.slane %v2799, 2
    %v3405 = vrot.slane %v2799, 3
    %v3406 = vrot.slane %v2799, 4
    %v3407 = vrot.slane %v2799, 5
    %v3408 = vrot.slane %v2799, 6
    %v3409 = vrot.slane %v2799, 7
    %v3426 = vmul.f32 %v3084, %v2798
    %v3427 = vmul.f32 %v3093, %v3396
    %v3428 = vmul.f32 %v3102, %v3397
    %v3429 = vmul.f32 %v3111, %v3398
    %v3430 = vmul.f32 %v3120, %v3399
    %v3431 = vmul.f32 %v3129, %v3400
    %v3432 = vmul.f32 %v3138, %v3401
    %v3433 = vmul.f32 %v3147, %v3402
    %v3434 = vmul.f32 %v3156, %v2799
    %v3435 = vmul.f32 %v3165, %v3403
    %v3436 = vmul.f32 %v3174, %v3404
    %v3437 = vmul.f32 %v3183, %v3405
    %v3438 = vmul.f32 %v3192, %v3406
    %v3439 = vmul.f32 %v3201, %v3407
    %v3440 = vmul.f32 %v3210, %v3408
    %v3441 = vmul.f32 %v3219, %v3409
    %v3442 = vadd.f32 %v3426, 1.0
    %v3443 = vadd.f32 %v3427, 1.0
    %v3444 = vadd.f32 %v3428, 1.0
    %v3445 = vadd.f32 %v3429, 1.0
    %v3446 = vadd.f32 %v3430, 1.0
    %v3447 = vadd.f32 %v3431, 1.0
    %v3448 = vadd.f32 %v3432, 1.0
    %v3449 = vadd.f32 %v3433, 1.0
    %v3450 = vadd.f32 %v3434, 1.0
    %v3451 = vadd.f32 %v3435, 1.0
    %v3452 = vadd.f32 %v3436, 1.0
    %v3453 = vadd.f32 %v3437, 1.0
    %v3454 = vadd.f32 %v3438, 1.0
    %v3455 = vadd.f32 %v3439, 1.0
    %v3456 = vadd.f32 %v3440, 1.0
    %v3457 = vadd.f32 %v3441, 1.0
    %vm3458 = vcmp.gt.f32.partialorder %v3442, %v3260
    %vm3459 = vcmp.gt.f32.partialorder %v3443, %v3269
    %vm3460 = vcmp.gt.f32.partialorder %v3444, %v3278
    %vm3461 = vcmp.gt.f32.partialorder %v3445, %v3287
    %vm3462 = vcmp.gt.f32.partialorder %v3446, %v3296
    %vm3463 = vcmp.gt.f32.partialorder %v3447, %v3305
    %vm3464 = vcmp.gt.f32.partialorder %v3448, %v3314
    %vm3465 = vcmp.gt.f32.partialorder %v3449, %v3323
    %vm3466 = vcmp.gt.f32.partialorder %v3450, %v3332
    %vm3467 = vcmp.gt.f32.partialorder %v3451, %v3341
    %vm3468 = vcmp.gt.f32.partialorder %v3452, %v3350
    %vm3469 = vcmp.gt.f32.partialorder %v3453, %v3359
    %vm3470 = vcmp.gt.f32.partialorder %v3454, %v3368
    %vm3471 = vcmp.gt.f32.partialorder %v3455, %v3377
    %vm3472 = vcmp.gt.f32.partialorder %v3456, %v3386
    %vm3473 = vcmp.gt.f32.partialorder %v3457, %v3395
    %v3474 = vsel %vm3458, %v3084, 0.0
    %v3475 = vsel %vm3459, %v3093, 0.0
    %v3476 = vsel %vm3460, %v3102, 0.0
    %v3477 = vsel %vm3461, %v3111, 0.0
    %v3478 = vsel %vm3462, %v3120, 0.0
    %v3479 = vsel %vm3463, %v3129, 0.0
    %v3480 = vsel %vm3464, %v3138, 0.0
    %v3481 = vsel %vm3465, %v3147, 0.0
    %v3482 = vsel %vm3466, %v3156, 0.0
    %v3483 = vsel %vm3467, %v3165, 0.0
    %v3484 = vsel %vm3468, %v3174, 0.0
    %v3485 = vsel %vm3469, %v3183, 0.0
    %v3486 = vsel %vm3470, %v3192, 0.0
    %v3487 = vsel %vm3471, %v3201, 0.0
    %v3488 = vsel %vm3472, %v3210, 0.0
    %v3489 = vsel %vm3473, %v3219, 0.0
    %v3490 = vsel %vm1678, %v3474, -inf
    %v3491 = vsel %vm1678, %v3475, -inf
    %v3492 = vsel %vm1678, %v3476, -inf
    %v3493 = vsel %vm1678, %v3477, -inf
    %v3494 = vsel %vm1678, %v3478, -inf
    %v3495 = vmax.f32 %v3490, %v3494
    %v3496 = vsel %vm1678, %v3479, -inf
    %v3497 = vmax.f32 %v3491, %v3496
    %v3498 = vsel %vm1678, %v3480, -inf
    %v3499 = vmax.f32 %v3492, %v3498
    %v3500 = vsel %vm1678, %v3481, -inf
    %v3501 = vmax.f32 %v3493, %v3500
    %v3502 = vsel %vm1678, %v3482, -inf
    %v3503 = vmax.f32 %v3495, %v3502
    %v3504 = vsel %vm1678, %v3483, -inf
    %v3505 = vmax.f32 %v3497, %v3504
    %v3506 = vsel %vm1678, %v3484, -inf
    %v3507 = vmax.f32 %v3499, %v3506
    %v3508 = vsel %vm1678, %v3485, -inf
    %v3509 = vmax.f32 %v3501, %v3508
    %v3510 = vsel %vm1678, %v3486, -inf
    %v3511 = vmax.f32 %v3503, %v3510
    %v3512 = vsel %vm1678, %v3487, -inf
    %v3513 = vmax.f32 %v3505, %v3512
    %v3514 = vsel %vm1678, %v3488, -inf
    %v3515 = vmax.f32 %v3507, %v3514
    %v3516 = vsel %vm1678, %v3489, -inf
    %v3517 = vmax.f32 %v3509, %v3516
    %v3518 = vmax.f32 %v3511, %v3513
    %v3519 = vmax.f32 %v3515, %v3517
    %v3520 = vmax.f32 %v3518, %v3519
    %v3521 = vsel %vm3458, %v2798, 0.0
    %v3522 = vsel %vm3459, %v3396, 0.0
    %v3523 = vsel %vm3460, %v3397, 0.0
    %v3524 = vsel %vm3461, %v3398, 0.0
    %v3525 = vsel %vm3462, %v3399, 0.0
    %v3526 = vsel %vm3463, %v3400, 0.0
    %v3527 = vsel %vm3464, %v3401, 0.0
    %v3528 = vsel %vm3465, %v3402, 0.0
    %v3529 = vsel %vm3466, %v2799, 0.0
    %v3530 = vsel %vm3467, %v3403, 0.0
    %v3531 = vsel %vm3468, %v3404, 0.0
    %v3532 = vsel %vm3469, %v3405, 0.0
    %v3533 = vsel %vm3470, %v3406, 0.0
    %v3534 = vsel %vm3471, %v3407, 0.0
    %v3535 = vsel %vm3472, %v3408, 0.0
    %v3536 = vsel %vm3473, %v3409, 0.0
    %v3553 = vrot.slane %v3522, 7
    %v3554 = vsel %vm1743, %v3553, %v3521
    %v3555 = vrot.slane %v3523, 6
    %v3556 = vsel %vm1746, %v3555, %v3554
    %v3557 = vrot.slane %v3524, 5
    %v3558 = vsel %vm1749, %v3557, %v3556
    %v3559 = vrot.slane %v3525, 4
    %v3560 = vsel %vm1752, %v3559, %v3558
    %v3561 = vrot.slane %v3526, 3
    %v3562 = vsel %vm1755, %v3561, %v3560
    %v3563 = vrot.slane %v3527, 2
    %v3564 = vsel %vm1758, %v3563, %v3562
    %v3565 = vrot.slane %v3528, 1
    %v3566 = vsel %vm1761, %v3565, %v3564
    %v3567 = vrot.slane %v3530, 7
    %v3568 = vsel %vm1743, %v3567, %v3529
    %v3569 = vrot.slane %v3531, 6
    %v3570 = vsel %vm1746, %v3569, %v3568
    %v3571 = vrot.slane %v3532, 5
    %v3572 = vsel %vm1749, %v3571, %v3570
    %v3573 = vrot.slane %v3533, 4
    %v3574 = vsel %vm1752, %v3573, %v3572
    %v3575 = vrot.slane %v3534, 3
    %v3576 = vsel %vm1755, %v3575, %v3574
    %v3577 = vrot.slane %v3535, 2
    %v3578 = vsel %vm1758, %v3577, %v3576
    %v3579 = vrot.slane %v3536, 1
    %v3580 = vsel %vm1761, %v3579, %v3578
    %v3583 = vsel %vm154, %v3566, 0.0
    %v3584 = vsel %vm154, %v3580, 0.0
    %v3585 = vadd.f32 %v3583, %v3584
    %v3586 = vrot.slane %v3585, 4
    %v3587 = vadd.f32 %v3585, %v3586
    %v3588 = vrot.slane %v3587, 2
    %v3589 = vadd.f32 %v3587, %v3588
    %v3590 = vrot.slane %v3589, 1
    %v3591 = vadd.f32 %v3589, %v3590
    %v3592 = vsub.f32 %v3591, 1.0
    %v3593 = vrcp.pop %v3520
    %v3594 = vmul.f32 %v3592, %v3593
    %v3595 = vlaneseq
    %v3596 = vshrl.u32 %v3595, 7
    %v3597 = vsub.s32 0, %v3596
    %v3598 = vrot.slane %v3594, %v3597
    %v3599 = vsub.f32 %v2798, %v3598
    %v3600 = vsub.f32 %v2799, %v3598
    %v3601 = vmax.f32 %v3599, 0.0
    %v3602 = vmax.f32 %v3600, 0.0
    %s3603 = scalar_lea.vmem %s7, 16
    %3604 = vst.msk [vmem:[%s3603] sm:$0xff] %vm154, %v3601
    %3605 = vst.msk [vmem:[%s3603 + $0x8] sm:$0xff] %vm154, %v3602
    %v3606 = vmul.f32 %v50, %v3601
    %v3607 = vmul.f32 %v51, %v3602
    %v3608 = vld [vmem:[%s1] sm:$0xff]
    %v3609 = vld [vmem:[%s1 + $0x8] sm:$0xff]
    %v3610 = vld [vmem:[%s1 + $0x10] sm:$0xff]
    %v3611 = vld [vmem:[%s1 + $0x18] sm:$0xff]
    %v3613 = vsel %vm56, %v3608, 0
    %v3616 = vsel %vm56, %v3609, 0
    %v3619 = vsel %vm56, %v3610, 0
    %v3622 = vsel %vm56, %v3611, 0
    %3624 = vmatprep.subr.mxu0 0.0
    %3625 = vmatpush1.msra.mxu0 %v3606
    %3626 = vmatprep.subr.mxu0 0.0
    %3627 = vmatpush1.msra.mxu0 %v3607
    %3628 = vmatprep.subr.mxu0 0.0
    %3629 = vmatpush1.msra.mxu0 0.0
    %3630 = vmatprep.subr.mxu0 0.0
    %3631 = vmatpush1.msra.mxu0 0.0
    %3632 = vmatprep.subr.mxu0 0.0
    %3633 = vmatpush1.msra.mxu0 0.0
    %3634 = vmatprep.subr.mxu0 0.0
    %3635 = vmatpush1.msra.mxu0 0.0
    %3636 = vmatprep.subr.mxu0 0.0
    %3637 = vmatpush1.msra.mxu0 0.0
    %3638 = vmatprep.subr.mxu0 0.0
    %3639 = vmatpush1.msra.mxu0 0.0
    %3640 = vmatprep.subr.mxu0 0.0
    %3641 = vmatpush1.msra.mxu0 0.0
    %3642 = vmatprep.subr.mxu0 0.0
    %3643 = vmatpush1.msra.mxu0 0.0
    %3644 = vmatprep.subr.mxu0 0.0
    %3645 = vmatpush1.msra.mxu0 0.0
    %3646 = vmatprep.subr.mxu0 0.0
    %3647 = vmatpush1.msra.mxu0 0.0
    %3648 = vmatprep.subr.mxu0 0.0
    %3649 = vmatpush1.msra.mxu0 0.0
    %3650 = vmatprep.subr.mxu0 0.0
    %3651 = vmatpush1.msra.mxu0 0.0
    %3652 = vmatprep.subr.mxu0 0.0
    %3653 = vmatpush1.msra.mxu0 0.0
    %3654 = vmatprep.subr.mxu0 0.0
    %3655 = vmatpush1.msra.mxu0 0.0
    %3656 = vmatprep.subr.mxu0 0.0
    %3657 = vmatpush1.msra.mxu0 0.0
    %3658 = vmatprep.subr.mxu0 0.0
    %3659 = vmatpush1.msra.mxu0 0.0
    %3660 = vmatprep.subr.mxu0 0.0
    %3661 = vmatpush1.msra.mxu0 0.0
    %3662 = vmatprep.subr.mxu0 0.0
    %3663 = vmatpush1.msra.mxu0 0.0
    %3664 = vmatprep.subr.mxu0 0.0
    %3665 = vmatpush1.msra.mxu0 0.0
    %3666 = vmatprep.subr.mxu0 0.0
    %3667 = vmatpush1.msra.mxu0 0.0
    %3668 = vmatprep.subr.mxu0 0.0
    %3669 = vmatpush1.msra.mxu0 0.0
    %3670 = vmatprep.subr.mxu0 0.0
    %3671 = vmatpush1.msra.mxu0 0.0
    %3672 = vmatprep.subr.mxu0 0.0
    %3673 = vmatpush1.msra.mxu0 0.0
    %3674 = vmatprep.subr.mxu0 0.0
    %3675 = vmatpush1.msra.mxu0 0.0
    %3676 = vmatprep.subr.mxu0 0.0
    %3677 = vmatpush1.msra.mxu0 0.0
    %3678 = vmatprep.subr.mxu0 0.0
    %3679 = vmatpush1.msra.mxu0 0.0
    %3680 = vmatprep.subr.mxu0 0.0
    %3681 = vmatpush1.msra.mxu0 0.0
    %3682 = vmatprep.subr.mxu0 0.0
    %3683 = vmatpush1.msra.mxu0 0.0
    %3684 = vmatprep.subr.mxu0 0.0
    %3685 = vmatpush1.msra.mxu0 0.0
    %3686 = vmatprep.subr.mxu0 0.0
    %3687 = vmatpush1.msra.mxu0 0.0
    %3688 = vmatprep.mubr.f32.mxu0 0.0
    %3689 = vmatmul.mubr.f32.gmra.mrb[0].mxu0 %v3613
    %v3690 = vpop.f32.mrb[0].mxu0
    %v3691 = vadd.f32 0.0, %v3690
    %v3692 = vpop.f32.mrb[0].mxu0
    %3693 = vmatprep.mubr.f32.mxu0 0.0
    %3694 = vmatmul.mubr.f32.gmra.mrb[0].mxu0 %v3616
    %v3695 = vpop.f32.mrb[0].mxu0
    %v3696 = vadd.f32 0.0, %v3695
    %v3697 = vpop.f32.mrb[0].mxu0
    %3698 = vmatprep.mubr.f32.mxu0 0.0
    %3699 = vmatmul.mubr.f32.gmra.mrb[0].mxu0 %v3619
    %v3700 = vpop.f32.mrb[0].mxu0
    %v3701 = vadd.f32 0.0, %v3700
    %v3702 = vpop.f32.mrb[0].mxu0
    %3703 = vmatprep.mubr.f32.mxu0 0.0
    %3704 = vmatmul.mubr.f32.gmra.mrb[0].mxu0 %v3622
    %v3705 = vpop.f32.mrb[0].mxu0
    %v3706 = vadd.f32 0.0, %v3705
    %v3707 = vpop.f32.mrb[0].mxu0
    %3708 = vdwg.mxu0
    %v3709 = vsel %vm154, %v3691, 0.0
    %3710 = vadd.xlane.f32.xlu0 %v3709
    %v3711 = vpop.xlane.xlu0 %3710
    %v3712 = vsel %vm154, %v3696, 0.0
    %3713 = vadd.xlane.f32.xlu0 %v3712
    %v3714 = vpop.xlane.xlu0 %3713
    %v3715 = vsel %vm154, %v3701, 0.0
    %3716 = vadd.xlane.f32.xlu0 %v3715
    %v3717 = vpop.xlane.xlu0 %3716
    %v3718 = vsel %vm154, %v3706, 0.0
    %3719 = vadd.xlane.f32.xlu0 %v3718
    %v3720 = vpop.xlane.xlu0 %3719
    %v3721 = vmul.f32 %v3711, %v167
    %v3722 = vmul.f32 %v3714, %v167
    %v3723 = vmul.f32 %v3717, %v167
    %v3724 = vmul.f32 %v3720, %v167
    %v3725 = vsub.f32 %v3691, %v3721
    %v3726 = vsub.f32 %v3696, %v3722
    %v3727 = vsub.f32 %v3701, %v3723
    %v3728 = vsub.f32 %v3706, %v3724
    %v3729 = vmul.f32 %v3725, %v3725
    %v3730 = vmul.f32 %v3726, %v3726
    %v3731 = vmul.f32 %v3727, %v3727
    %v3732 = vmul.f32 %v3728, %v3728
    %v3733 = vsel %vm154, %v3729, 0.0
    %3734 = vadd.xlane.f32.xlu0 %v3733
    %v3735 = vpop.xlane.xlu0 %3734
    %v3736 = vsel %vm154, %v3730, 0.0
    %3737 = vadd.xlane.f32.xlu0 %v3736
    %v3738 = vpop.xlane.xlu0 %3737
    %v3739 = vsel %vm154, %v3731, 0.0
    %3740 = vadd.xlane.f32.xlu0 %v3739
    %v3741 = vpop.xlane.xlu0 %3740
    %v3742 = vsel %vm154, %v3732, 0.0
    %3743 = vadd.xlane.f32.xlu0 %v3742
    %v3744 = vpop.xlane.xlu0 %3743
    %v3745 = vmul.f32 %v3735, %v167
    %v3746 = vmul.f32 %v3738, %v167
    %v3747 = vmul.f32 %v3741, %v167
    %v3748 = vmul.f32 %v3744, %v167
    %v3749 = vadd.f32 %v3745, 1e-05
    %v3750 = vadd.f32 %v3746, 1e-05
    %v3751 = vadd.f32 %v3747, 1e-05
    %v3752 = vadd.f32 %v3748, 1e-05
    %v3753 = vrsqrt.pop %v3749
    %v3754 = vrsqrt.pop %v3750
    %v3755 = vrsqrt.pop %v3751
    %v3756 = vrsqrt.pop %v3752
    %v3757 = vmul.f32 %v3725, %v3753
    %v3758 = vmul.f32 %v3726, %v3754
    %v3759 = vmul.f32 %v3727, %v3755
    %v3760 = vmul.f32 %v3728, %v3756
    %v3761 = vld [vmem:[%s5] sm:$0xff]
    %v3762 = vld [vmem:[%s5 + $0x8] sm:$0xff]
    %v3763 = vld [vmem:[%s5 + $0x10] sm:$0xff]
    %v3764 = vld [vmem:[%s5 + $0x18] sm:$0xff]
    %3766 = vset.pattern.permute.xlu0 18
    %3767 = vperm.xlu0 %3766, %v3761
    %v3768 = vpop.permute.xlu0 %3767
    %3771 = vset.pattern.permute.xlu0 18
    %3772 = vperm.xlu0 %3771, %v3762
    %v3773 = vpop.permute.xlu0 %3772
    %3776 = vset.pattern.permute.xlu0 18
    %3777 = vperm.xlu0 %3776, %v3763
    %v3778 = vpop.permute.xlu0 %3777
    %3781 = vset.pattern.permute.xlu0 18
    %3782 = vperm.xlu0 %3781, %v3764
    %v3783 = vpop.permute.xlu0 %3782
    %v3785 = vmul.f32 %v3757, %v3768
    %v3786 = vmul.f32 %v3758, %v3773
    %v3787 = vmul.f32 %v3759, %v3778
    %v3788 = vmul.f32 %v3760, %v3783
    %3789 = vset.pattern.permute.xlu0 19
    %3790 = vperm.xlu0 %3789, %v3761
    %v3791 = vpop.permute.xlu0 %3790
    %3793 = vset.pattern.permute.xlu0 19
    %3794 = vperm.xlu0 %3793, %v3762
    %v3795 = vpop.permute.xlu0 %3794
    %3797 = vset.pattern.permute.xlu0 19
    %3798 = vperm.xlu0 %3797, %v3763
    %v3799 = vpop.permute.xlu0 %3798
    %3801 = vset.pattern.permute.xlu0 19
    %3802 = vperm.xlu0 %3801, %v3764
    %v3803 = vpop.permute.xlu0 %3802
    %v3805 = vadd.f32 %v3785, %v3791
    %v3806 = vadd.f32 %v3786, %v3795
    %v3807 = vadd.f32 %v3787, %v3799
    %v3808 = vadd.f32 %v3788, %v3803
    %v3809 = vxor.u32 %v3807, 2147483648
    %v3810 = vxor.u32 %v3808, 2147483648
    %v3811 = vmul.f32 %v3809, 1.442695
    %v3812 = vpow.pop %v3811
    %v3813 = vmul.f32 %v3810, 1.442695
    %v3814 = vpow.pop %v3813
    %v3815 = vadd.f32 %v3812, 1.0
    %v3816 = vadd.f32 %v3814, 1.0
    %v3817 = vrcp.pop %v3815
    %v3818 = vmul.f32 1.0, %v3817
    %v3819 = vrcp.pop %v3816
    %v3820 = vmul.f32 1.0, %v3819
    %v3821 = vmul.f32 %v3805, %v3818
    %v3822 = vmul.f32 %v3806, %v3820
    %v3823 = vld [vmem:[%s2] sm:$0xff]
    %v3824 = vld [vmem:[%s2 + $0x8] sm:$0xff]
    %v3825 = vld [vmem:[%s2 + $0x10] sm:$0xff]
    %v3826 = vld [vmem:[%s2 + $0x18] sm:$0xff]
    %v3828 = vsel %vm56, %v3823, 0
    %v3831 = vsel %vm56, %v3824, 0
    %v3834 = vsel %vm56, %v3825, 0
    %v3837 = vsel %vm56, %v3826, 0
    %3839 = vmatprep.subr.mxu0 0.0
    %3840 = vmatpush1.msra.mxu0 %v3821
    %3841 = vmatprep.subr.mxu0 0.0
    %3842 = vmatpush1.msra.mxu0 %v3822
    %3843 = vmatprep.subr.mxu0 0.0
    %3844 = vmatpush1.msra.mxu0 0.0
    %3845 = vmatprep.subr.mxu0 0.0
    %3846 = vmatpush1.msra.mxu0 0.0
    %3847 = vmatprep.subr.mxu0 0.0
    %3848 = vmatpush1.msra.mxu0 0.0
    %3849 = vmatprep.subr.mxu0 0.0
    %3850 = vmatpush1.msra.mxu0 0.0
    %3851 = vmatprep.subr.mxu0 0.0
    %3852 = vmatpush1.msra.mxu0 0.0
    %3853 = vmatprep.subr.mxu0 0.0
    %3854 = vmatpush1.msra.mxu0 0.0
    %3855 = vmatprep.subr.mxu0 0.0
    %3856 = vmatpush1.msra.mxu0 0.0
    %3857 = vmatprep.subr.mxu0 0.0
    %3858 = vmatpush1.msra.mxu0 0.0
    %3859 = vmatprep.subr.mxu0 0.0
    %3860 = vmatpush1.msra.mxu0 0.0
    %3861 = vmatprep.subr.mxu0 0.0
    %3862 = vmatpush1.msra.mxu0 0.0
    %3863 = vmatprep.subr.mxu0 0.0
    %3864 = vmatpush1.msra.mxu0 0.0
    %3865 = vmatprep.subr.mxu0 0.0
    %3866 = vmatpush1.msra.mxu0 0.0
    %3867 = vmatprep.subr.mxu0 0.0
    %3868 = vmatpush1.msra.mxu0 0.0
    %3869 = vmatprep.subr.mxu0 0.0
    %3870 = vmatpush1.msra.mxu0 0.0
    %3871 = vmatprep.subr.mxu0 0.0
    %3872 = vmatpush1.msra.mxu0 0.0
    %3873 = vmatprep.subr.mxu0 0.0
    %3874 = vmatpush1.msra.mxu0 0.0
    %3875 = vmatprep.subr.mxu0 0.0
    %3876 = vmatpush1.msra.mxu0 0.0
    %3877 = vmatprep.subr.mxu0 0.0
    %3878 = vmatpush1.msra.mxu0 0.0
    %3879 = vmatprep.subr.mxu0 0.0
    %3880 = vmatpush1.msra.mxu0 0.0
    %3881 = vmatprep.subr.mxu0 0.0
    %3882 = vmatpush1.msra.mxu0 0.0
    %3883 = vmatprep.subr.mxu0 0.0
    %3884 = vmatpush1.msra.mxu0 0.0
    %3885 = vmatprep.subr.mxu0 0.0
    %3886 = vmatpush1.msra.mxu0 0.0
    %3887 = vmatprep.subr.mxu0 0.0
    %3888 = vmatpush1.msra.mxu0 0.0
    %3889 = vmatprep.subr.mxu0 0.0
    %3890 = vmatpush1.msra.mxu0 0.0
    %3891 = vmatprep.subr.mxu0 0.0
    %3892 = vmatpush1.msra.mxu0 0.0
    %3893 = vmatprep.subr.mxu0 0.0
    %3894 = vmatpush1.msra.mxu0 0.0
    %3895 = vmatprep.subr.mxu0 0.0
    %3896 = vmatpush1.msra.mxu0 0.0
    %3897 = vmatprep.subr.mxu0 0.0
    %3898 = vmatpush1.msra.mxu0 0.0
    %3899 = vmatprep.subr.mxu0 0.0
    %3900 = vmatpush1.msra.mxu0 0.0
    %3901 = vmatprep.subr.mxu0 0.0
    %3902 = vmatpush1.msra.mxu0 0.0
    %3903 = vmatprep.mubr.f32.mxu0 0.0
    %3904 = vmatmul.mubr.f32.gmra.mrb[0].mxu0 %v3828
    %v3905 = vpop.f32.mrb[0].mxu0
    %v3906 = vadd.f32 0.0, %v3905
    %v3907 = vpop.f32.mrb[0].mxu0
    %3908 = vmatprep.mubr.f32.mxu0 0.0
    %3909 = vmatmul.mubr.f32.gmra.mrb[0].mxu0 %v3831
    %v3910 = vpop.f32.mrb[0].mxu0
    %v3911 = vadd.f32 0.0, %v3910
    %v3912 = vpop.f32.mrb[0].mxu0
    %3913 = vmatprep.mubr.f32.mxu0 0.0
    %3914 = vmatmul.mubr.f32.gmra.mrb[0].mxu0 %v3834
    %v3915 = vpop.f32.mrb[0].mxu0
    %v3916 = vadd.f32 0.0, %v3915
    %v3917 = vpop.f32.mrb[0].mxu0
    %3918 = vmatprep.mubr.f32.mxu0 0.0
    %3919 = vmatmul.mubr.f32.gmra.mrb[0].mxu0 %v3837
    %v3920 = vpop.f32.mrb[0].mxu0
    %v3921 = vadd.f32 0.0, %v3920
    %v3922 = vpop.f32.mrb[0].mxu0
    %3923 = vdwg.mxu0
    %v3924 = vsel %vm154, %v3906, 0.0
    %3925 = vadd.xlane.f32.xlu0 %v3924
    %v3926 = vpop.xlane.xlu0 %3925
    %v3927 = vsel %vm154, %v3911, 0.0
    %3928 = vadd.xlane.f32.xlu0 %v3927
    %v3929 = vpop.xlane.xlu0 %3928
    %v3930 = vsel %vm154, %v3916, 0.0
    %3931 = vadd.xlane.f32.xlu0 %v3930
    %v3932 = vpop.xlane.xlu0 %3931
    %v3933 = vsel %vm154, %v3921, 0.0
    %3934 = vadd.xlane.f32.xlu0 %v3933
    %v3935 = vpop.xlane.xlu0 %3934
    %v3936 = vmul.f32 %v3926, %v167
    %v3937 = vmul.f32 %v3929, %v167
    %v3938 = vmul.f32 %v3932, %v167
    %v3939 = vmul.f32 %v3935, %v167
    %v3940 = vsub.f32 %v3906, %v3936
    %v3941 = vsub.f32 %v3911, %v3937
    %v3942 = vsub.f32 %v3916, %v3938
    %v3943 = vsub.f32 %v3921, %v3939
    %v3944 = vmul.f32 %v3940, %v3940
    %v3945 = vmul.f32 %v3941, %v3941
    %v3946 = vmul.f32 %v3942, %v3942
    %v3947 = vmul.f32 %v3943, %v3943
    %v3948 = vsel %vm154, %v3944, 0.0
    %3949 = vadd.xlane.f32.xlu0 %v3948
    %v3950 = vpop.xlane.xlu0 %3949
    %v3951 = vsel %vm154, %v3945, 0.0
    %3952 = vadd.xlane.f32.xlu0 %v3951
    %v3953 = vpop.xlane.xlu0 %3952
    %v3954 = vsel %vm154, %v3946, 0.0
    %3955 = vadd.xlane.f32.xlu0 %v3954
    %v3956 = vpop.xlane.xlu0 %3955
    %v3957 = vsel %vm154, %v3947, 0.0
    %3958 = vadd.xlane.f32.xlu0 %v3957
    %v3959 = vpop.xlane.xlu0 %3958
    %v3960 = vmul.f32 %v3950, %v167
    %v3961 = vmul.f32 %v3953, %v167
    %v3962 = vmul.f32 %v3956, %v167
    %v3963 = vmul.f32 %v3959, %v167
    %v3964 = vadd.f32 %v3960, 1e-05
    %v3965 = vadd.f32 %v3961, 1e-05
    %v3966 = vadd.f32 %v3962, 1e-05
    %v3967 = vadd.f32 %v3963, 1e-05
    %v3968 = vrsqrt.pop %v3964
    %v3969 = vrsqrt.pop %v3965
    %v3970 = vrsqrt.pop %v3966
    %v3971 = vrsqrt.pop %v3967
    %v3972 = vmul.f32 %v3940, %v3968
    %v3973 = vmul.f32 %v3941, %v3969
    %v3974 = vmul.f32 %v3942, %v3970
    %v3975 = vmul.f32 %v3943, %v3971
    %3976 = vset.pattern.permute.xlu0 20
    %3977 = vperm.xlu0 %3976, %v3761
    %v3978 = vpop.permute.xlu0 %3977
    %3980 = vset.pattern.permute.xlu0 20
    %3981 = vperm.xlu0 %3980, %v3762
    %v3982 = vpop.permute.xlu0 %3981
    %3984 = vset.pattern.permute.xlu0 20
    %3985 = vperm.xlu0 %3984, %v3763
    %v3986 = vpop.permute.xlu0 %3985
    %3988 = vset.pattern.permute.xlu0 20
    %3989 = vperm.xlu0 %3988, %v3764
    %v3990 = vpop.permute.xlu0 %3989
    %v3992 = vmul.f32 %v3972, %v3978
    %v3993 = vmul.f32 %v3973, %v3982
    %v3994 = vmul.f32 %v3974, %v3986
    %v3995 = vmul.f32 %v3975, %v3990
    %3996 = vset.pattern.permute.xlu0 21
    %3997 = vperm.xlu0 %3996, %v3761
    %v3998 = vpop.permute.xlu0 %3997
    %4000 = vset.pattern.permute.xlu0 21
    %4001 = vperm.xlu0 %4000, %v3762
    %v4002 = vpop.permute.xlu0 %4001
    %4004 = vset.pattern.permute.xlu0 21
    %4005 = vperm.xlu0 %4004, %v3763
    %v4006 = vpop.permute.xlu0 %4005
    %4008 = vset.pattern.permute.xlu0 21
    %4009 = vperm.xlu0 %4008, %v3764
    %v4010 = vpop.permute.xlu0 %4009
    %v4012 = vadd.f32 %v3992, %v3998
    %v4013 = vadd.f32 %v3993, %v4002
    %v4014 = vadd.f32 %v3994, %v4006
    %v4015 = vadd.f32 %v3995, %v4010
    %v4016 = vxor.u32 %v4014, 2147483648
    %v4017 = vxor.u32 %v4015, 2147483648
    %v4018 = vmul.f32 %v4016, 1.442695
    %v4019 = vpow.pop %v4018
    %v4020 = vmul.f32 %v4017, 1.442695
    %v4021 = vpow.pop %v4020
    %v4022 = vadd.f32 %v4019, 1.0
    %v4023 = vadd.f32 %v4021, 1.0
    %v4024 = vrcp.pop %v4022
    %v4025 = vmul.f32 1.0, %v4024
    %v4026 = vrcp.pop %v4023
    %v4027 = vmul.f32 1.0, %v4026
    %v4028 = vmul.f32 %v4012, %v4025
    %v4029 = vmul.f32 %v4013, %v4027
    %v4030 = vadd.f32 %v3821, %v4028
    %v4031 = vadd.f32 %v3822, %v4029
    %v4032 = vmul.f32 %v4030, 0.70710677
    %v4033 = vmul.f32 %v4031, 0.70710677
    %s4034 = scalar_lea.vmem %s2, 160
    %v4035 = vld [vmem:[%s4034] sm:$0xff]
    %v4036 = vld [vmem:[%s4034 + $0x8] sm:$0xff]
    %v4037 = vld [vmem:[%s4034 + $0x10] sm:$0xff]
    %v4038 = vld [vmem:[%s4034 + $0x18] sm:$0xff]
    %v4040 = vsel %vm56, %v4035, 0
    %v4043 = vsel %vm56, %v4036, 0
    %v4046 = vsel %vm56, %v4037, 0
    %v4049 = vsel %vm56, %v4038, 0
    %4051 = vmatprep.subr.mxu0 0.0
    %4052 = vmatpush1.msra.mxu0 %v4032
    %4053 = vmatprep.subr.mxu0 0.0
    %4054 = vmatpush1.msra.mxu0 %v4033
    %4055 = vmatprep.subr.mxu0 0.0
    %4056 = vmatpush1.msra.mxu0 0.0
    %4057 = vmatprep.subr.mxu0 0.0
    %4058 = vmatpush1.msra.mxu0 0.0
    %4059 = vmatprep.subr.mxu0 0.0
    %4060 = vmatpush1.msra.mxu0 0.0
    %4061 = vmatprep.subr.mxu0 0.0
    %4062 = vmatpush1.msra.mxu0 0.0
    %4063 = vmatprep.subr.mxu0 0.0
    %4064 = vmatpush1.msra.mxu0 0.0
    %4065 = vmatprep.subr.mxu0 0.0
    %4066 = vmatpush1.msra.mxu0 0.0
    %4067 = vmatprep.subr.mxu0 0.0
    %4068 = vmatpush1.msra.mxu0 0.0
    %4069 = vmatprep.subr.mxu0 0.0
    %4070 = vmatpush1.msra.mxu0 0.0
    %4071 = vmatprep.subr.mxu0 0.0
    %4072 = vmatpush1.msra.mxu0 0.0
    %4073 = vmatprep.subr.mxu0 0.0
    %4074 = vmatpush1.msra.mxu0 0.0
    %4075 = vmatprep.subr.mxu0 0.0
    %4076 = vmatpush1.msra.mxu0 0.0
    %4077 = vmatprep.subr.mxu0 0.0
    %4078 = vmatpush1.msra.mxu0 0.0
    %4079 = vmatprep.subr.mxu0 0.0
    %4080 = vmatpush1.msra.mxu0 0.0
    %4081 = vmatprep.subr.mxu0 0.0
    %4082 = vmatpush1.msra.mxu0 0.0
    %4083 = vmatprep.subr.mxu0 0.0
    %4084 = vmatpush1.msra.mxu0 0.0
    %4085 = vmatprep.subr.mxu0 0.0
    %4086 = vmatpush1.msra.mxu0 0.0
    %4087 = vmatprep.subr.mxu0 0.0
    %4088 = vmatpush1.msra.mxu0 0.0
    %4089 = vmatprep.subr.mxu0 0.0
    %4090 = vmatpush1.msra.mxu0 0.0
    %4091 = vmatprep.subr.mxu0 0.0
    %4092 = vmatpush1.msra.mxu0 0.0
    %4093 = vmatprep.subr.mxu0 0.0
    %4094 = vmatpush1.msra.mxu0 0.0
    %4095 = vmatprep.subr.mxu0 0.0
    %4096 = vmatpush1.msra.mxu0 0.0
    %4097 = vmatprep.subr.mxu0 0.0
    %4098 = vmatpush1.msra.mxu0 0.0
    %4099 = vmatprep.subr.mxu0 0.0
    %4100 = vmatpush1.msra.mxu0 0.0
    %4101 = vmatprep.subr.mxu0 0.0
    %4102 = vmatpush1.msra.mxu0 0.0
    %4103 = vmatprep.subr.mxu0 0.0
    %4104 = vmatpush1.msra.mxu0 0.0
    %4105 = vmatprep.subr.mxu0 0.0
    %4106 = vmatpush1.msra.mxu0 0.0
    %4107 = vmatprep.subr.mxu0 0.0
    %4108 = vmatpush1.msra.mxu0 0.0
    %4109 = vmatprep.subr.mxu0 0.0
    %4110 = vmatpush1.msra.mxu0 0.0
    %4111 = vmatprep.subr.mxu0 0.0
    %4112 = vmatpush1.msra.mxu0 0.0
    %4113 = vmatprep.subr.mxu0 0.0
    %4114 = vmatpush1.msra.mxu0 0.0
    %4115 = vmatprep.mubr.f32.mxu0 0.0
    %4116 = vmatmul.mubr.f32.gmra.mrb[0].mxu0 %v4040
    %v4117 = vpop.f32.mrb[0].mxu0
    %v4118 = vadd.f32 0.0, %v4117
    %v4119 = vpop.f32.mrb[0].mxu0
    %4120 = vmatprep.mubr.f32.mxu0 0.0
    %4121 = vmatmul.mubr.f32.gmra.mrb[0].mxu0 %v4043
    %v4122 = vpop.f32.mrb[0].mxu0
    %v4123 = vadd.f32 0.0, %v4122
    %v4124 = vpop.f32.mrb[0].mxu0
    %4125 = vmatprep.mubr.f32.mxu0 0.0
    %4126 = vmatmul.mubr.f32.gmra.mrb[0].mxu0 %v4046
    %v4127 = vpop.f32.mrb[0].mxu0
    %v4128 = vadd.f32 0.0, %v4127
    %v4129 = vpop.f32.mrb[0].mxu0
    %4130 = vmatprep.mubr.f32.mxu0 0.0
    %4131 = vmatmul.mubr.f32.gmra.mrb[0].mxu0 %v4049
    %v4132 = vpop.f32.mrb[0].mxu0
    %v4133 = vadd.f32 0.0, %v4132
    %v4134 = vpop.f32.mrb[0].mxu0
    %4135 = vdwg.mxu0
    %v4136 = vsel %vm154, %v4118, 0.0
    %4137 = vadd.xlane.f32.xlu0 %v4136
    %v4138 = vpop.xlane.xlu0 %4137
    %v4139 = vsel %vm154, %v4123, 0.0
    %4140 = vadd.xlane.f32.xlu0 %v4139
    %v4141 = vpop.xlane.xlu0 %4140
    %v4142 = vsel %vm154, %v4128, 0.0
    %4143 = vadd.xlane.f32.xlu0 %v4142
    %v4144 = vpop.xlane.xlu0 %4143
    %v4145 = vsel %vm154, %v4133, 0.0
    %4146 = vadd.xlane.f32.xlu0 %v4145
    %v4147 = vpop.xlane.xlu0 %4146
    %v4148 = vmul.f32 %v4138, %v167
    %v4149 = vmul.f32 %v4141, %v167
    %v4150 = vmul.f32 %v4144, %v167
    %v4151 = vmul.f32 %v4147, %v167
    %v4152 = vsub.f32 %v4118, %v4148
    %v4153 = vsub.f32 %v4123, %v4149
    %v4154 = vsub.f32 %v4128, %v4150
    %v4155 = vsub.f32 %v4133, %v4151
    %v4156 = vmul.f32 %v4152, %v4152
    %v4157 = vmul.f32 %v4153, %v4153
    %v4158 = vmul.f32 %v4154, %v4154
    %v4159 = vmul.f32 %v4155, %v4155
    %v4160 = vsel %vm154, %v4156, 0.0
    %4161 = vadd.xlane.f32.xlu0 %v4160
    %v4162 = vpop.xlane.xlu0 %4161
    %v4163 = vsel %vm154, %v4157, 0.0
    %4164 = vadd.xlane.f32.xlu0 %v4163
    %v4165 = vpop.xlane.xlu0 %4164
    %v4166 = vsel %vm154, %v4158, 0.0
    %4167 = vadd.xlane.f32.xlu0 %v4166
    %v4168 = vpop.xlane.xlu0 %4167
    %v4169 = vsel %vm154, %v4159, 0.0
    %4170 = vadd.xlane.f32.xlu0 %v4169
    %v4171 = vpop.xlane.xlu0 %4170
    %v4172 = vmul.f32 %v4162, %v167
    %v4173 = vmul.f32 %v4165, %v167
    %v4174 = vmul.f32 %v4168, %v167
    %v4175 = vmul.f32 %v4171, %v167
    %v4176 = vadd.f32 %v4172, 1e-05
    %v4177 = vadd.f32 %v4173, 1e-05
    %v4178 = vadd.f32 %v4174, 1e-05
    %v4179 = vadd.f32 %v4175, 1e-05
    %v4180 = vrsqrt.pop %v4176
    %v4181 = vrsqrt.pop %v4177
    %v4182 = vrsqrt.pop %v4178
    %v4183 = vrsqrt.pop %v4179
    %v4184 = vmul.f32 %v4152, %v4180
    %v4185 = vmul.f32 %v4153, %v4181
    %v4186 = vmul.f32 %v4154, %v4182
    %v4187 = vmul.f32 %v4155, %v4183
    %4188 = vset.pattern.permute.xlu0 22
    %4189 = vperm.xlu0 %4188, %v3761
    %v4190 = vpop.permute.xlu0 %4189
    %4192 = vset.pattern.permute.xlu0 22
    %4193 = vperm.xlu0 %4192, %v3762
    %v4194 = vpop.permute.xlu0 %4193
    %4196 = vset.pattern.permute.xlu0 22
    %4197 = vperm.xlu0 %4196, %v3763
    %v4198 = vpop.permute.xlu0 %4197
    %4200 = vset.pattern.permute.xlu0 22
    %4201 = vperm.xlu0 %4200, %v3764
    %v4202 = vpop.permute.xlu0 %4201
    %v4204 = vmul.f32 %v4184, %v4190
    %v4205 = vmul.f32 %v4185, %v4194
    %v4206 = vmul.f32 %v4186, %v4198
    %v4207 = vmul.f32 %v4187, %v4202
    %4208 = vset.pattern.permute.xlu0 23
    %4209 = vperm.xlu0 %4208, %v3761
    %v4210 = vpop.permute.xlu0 %4209
    %4212 = vset.pattern.permute.xlu0 23
    %4213 = vperm.xlu0 %4212, %v3762
    %v4214 = vpop.permute.xlu0 %4213
    %4216 = vset.pattern.permute.xlu0 23
    %4217 = vperm.xlu0 %4216, %v3763
    %v4218 = vpop.permute.xlu0 %4217
    %4220 = vset.pattern.permute.xlu0 23
    %4221 = vperm.xlu0 %4220, %v3764
    %v4222 = vpop.permute.xlu0 %4221
    %v4224 = vadd.f32 %v4204, %v4210
    %v4225 = vadd.f32 %v4205, %v4214
    %v4226 = vadd.f32 %v4206, %v4218
    %v4227 = vadd.f32 %v4207, %v4222
    %v4228 = vxor.u32 %v4226, 2147483648
    %v4229 = vxor.u32 %v4227, 2147483648
    %v4230 = vmul.f32 %v4228, 1.442695
    %v4231 = vpow.pop %v4230
    %v4232 = vmul.f32 %v4229, 1.442695
    %v4233 = vpow.pop %v4232
    %v4234 = vadd.f32 %v4231, 1.0
    %v4235 = vadd.f32 %v4233, 1.0
    %v4236 = vrcp.pop %v4234
    %v4237 = vmul.f32 1.0, %v4236
    %v4238 = vrcp.pop %v4235
    %v4239 = vmul.f32 1.0, %v4238
    %v4240 = vmul.f32 %v4224, %v4237
    %v4241 = vmul.f32 %v4225, %v4239
    %v4242 = vadd.f32 %v4032, %v4240
    %v4243 = vadd.f32 %v4033, %v4241
    %v4244 = vmul.f32 %v4242, 0.70710677
    %v4245 = vmul.f32 %v4243, 0.70710677
    %s4246 = scalar_lea.vmem %s2, 192
    %v4247 = vld [vmem:[%s4246] sm:$0xff]
    %v4248 = vld [vmem:[%s4246 + $0x8] sm:$0xff]
    %v4249 = vld [vmem:[%s4246 + $0x10] sm:$0xff]
    %v4250 = vld [vmem:[%s4246 + $0x18] sm:$0xff]
    %v4252 = vsel %vm56, %v4247, 0
    %v4255 = vsel %vm56, %v4248, 0
    %v4258 = vsel %vm56, %v4249, 0
    %v4261 = vsel %vm56, %v4250, 0
    %4263 = vmatprep.subr.mxu0 0.0
    %4264 = vmatpush1.msra.mxu0 %v4244
    %4265 = vmatprep.subr.mxu0 0.0
    %4266 = vmatpush1.msra.mxu0 %v4245
    %4267 = vmatprep.subr.mxu0 0.0
    %4268 = vmatpush1.msra.mxu0 0.0
    %4269 = vmatprep.subr.mxu0 0.0
    %4270 = vmatpush1.msra.mxu0 0.0
    %4271 = vmatprep.subr.mxu0 0.0
    %4272 = vmatpush1.msra.mxu0 0.0
    %4273 = vmatprep.subr.mxu0 0.0
    %4274 = vmatpush1.msra.mxu0 0.0
    %4275 = vmatprep.subr.mxu0 0.0
    %4276 = vmatpush1.msra.mxu0 0.0
    %4277 = vmatprep.subr.mxu0 0.0
    %4278 = vmatpush1.msra.mxu0 0.0
    %4279 = vmatprep.subr.mxu0 0.0
    %4280 = vmatpush1.msra.mxu0 0.0
    %4281 = vmatprep.subr.mxu0 0.0
    %4282 = vmatpush1.msra.mxu0 0.0
    %4283 = vmatprep.subr.mxu0 0.0
    %4284 = vmatpush1.msra.mxu0 0.0
    %4285 = vmatprep.subr.mxu0 0.0
    %4286 = vmatpush1.msra.mxu0 0.0
    %4287 = vmatprep.subr.mxu0 0.0
    %4288 = vmatpush1.msra.mxu0 0.0
    %4289 = vmatprep.subr.mxu0 0.0
    %4290 = vmatpush1.msra.mxu0 0.0
    %4291 = vmatprep.subr.mxu0 0.0
    %4292 = vmatpush1.msra.mxu0 0.0
    %4293 = vmatprep.subr.mxu0 0.0
    %4294 = vmatpush1.msra.mxu0 0.0
    %4295 = vmatprep.subr.mxu0 0.0
    %4296 = vmatpush1.msra.mxu0 0.0
    %4297 = vmatprep.subr.mxu0 0.0
    %4298 = vmatpush1.msra.mxu0 0.0
    %4299 = vmatprep.subr.mxu0 0.0
    %4300 = vmatpush1.msra.mxu0 0.0
    %4301 = vmatprep.subr.mxu0 0.0
    %4302 = vmatpush1.msra.mxu0 0.0
    %4303 = vmatprep.subr.mxu0 0.0
    %4304 = vmatpush1.msra.mxu0 0.0
    %4305 = vmatprep.subr.mxu0 0.0
    %4306 = vmatpush1.msra.mxu0 0.0
    %4307 = vmatprep.subr.mxu0 0.0
    %4308 = vmatpush1.msra.mxu0 0.0
    %4309 = vmatprep.subr.mxu0 0.0
    %4310 = vmatpush1.msra.mxu0 0.0
    %4311 = vmatprep.subr.mxu0 0.0
    %4312 = vmatpush1.msra.mxu0 0.0
    %4313 = vmatprep.subr.mxu0 0.0
    %4314 = vmatpush1.msra.mxu0 0.0
    %4315 = vmatprep.subr.mxu0 0.0
    %4316 = vmatpush1.msra.mxu0 0.0
    %4317 = vmatprep.subr.mxu0 0.0
    %4318 = vmatpush1.msra.mxu0 0.0
    %4319 = vmatprep.subr.mxu0 0.0
    %4320 = vmatpush1.msra.mxu0 0.0
    %4321 = vmatprep.subr.mxu0 0.0
    %4322 = vmatpush1.msra.mxu0 0.0
    %4323 = vmatprep.subr.mxu0 0.0
    %4324 = vmatpush1.msra.mxu0 0.0
    %4325 = vmatprep.subr.mxu0 0.0
    %4326 = vmatpush1.msra.mxu0 0.0
    %4327 = vmatprep.mubr.f32.mxu0 0.0
    %4328 = vmatmul.mubr.f32.gmra.mrb[0].mxu0 %v4252
    %v4329 = vpop.f32.mrb[0].mxu0
    %v4330 = vadd.f32 0.0, %v4329
    %v4331 = vpop.f32.mrb[0].mxu0
    %4332 = vmatprep.mubr.f32.mxu0 0.0
    %4333 = vmatmul.mubr.f32.gmra.mrb[0].mxu0 %v4255
    %v4334 = vpop.f32.mrb[0].mxu0
    %v4335 = vadd.f32 0.0, %v4334
    %v4336 = vpop.f32.mrb[0].mxu0
    %4337 = vmatprep.mubr.f32.mxu0 0.0
    %4338 = vmatmul.mubr.f32.gmra.mrb[0].mxu0 %v4258
    %v4339 = vpop.f32.mrb[0].mxu0
    %v4340 = vadd.f32 0.0, %v4339
    %v4341 = vpop.f32.mrb[0].mxu0
    %4342 = vmatprep.mubr.f32.mxu0 0.0
    %4343 = vmatmul.mubr.f32.gmra.mrb[0].mxu0 %v4261
    %v4344 = vpop.f32.mrb[0].mxu0
    %v4345 = vadd.f32 0.0, %v4344
    %v4346 = vpop.f32.mrb[0].mxu0
    %4347 = vdwg.mxu0
    %v4348 = vsel %vm154, %v4330, 0.0
    %4349 = vadd.xlane.f32.xlu0 %v4348
    %v4350 = vpop.xlane.xlu0 %4349
    %v4351 = vsel %vm154, %v4335, 0.0
    %4352 = vadd.xlane.f32.xlu0 %v4351
    %v4353 = vpop.xlane.xlu0 %4352
    %v4354 = vsel %vm154, %v4340, 0.0
    %4355 = vadd.xlane.f32.xlu0 %v4354
    %v4356 = vpop.xlane.xlu0 %4355
    %v4357 = vsel %vm154, %v4345, 0.0
    %4358 = vadd.xlane.f32.xlu0 %v4357
    %v4359 = vpop.xlane.xlu0 %4358
    %v4360 = vmul.f32 %v4350, %v167
    %v4361 = vmul.f32 %v4353, %v167
    %v4362 = vmul.f32 %v4356, %v167
    %v4363 = vmul.f32 %v4359, %v167
    %v4364 = vsub.f32 %v4330, %v4360
    %v4365 = vsub.f32 %v4335, %v4361
    %v4366 = vsub.f32 %v4340, %v4362
    %v4367 = vsub.f32 %v4345, %v4363
    %v4368 = vmul.f32 %v4364, %v4364
    %v4369 = vmul.f32 %v4365, %v4365
    %v4370 = vmul.f32 %v4366, %v4366
    %v4371 = vmul.f32 %v4367, %v4367
    %v4372 = vsel %vm154, %v4368, 0.0
    %4373 = vadd.xlane.f32.xlu0 %v4372
    %v4374 = vpop.xlane.xlu0 %4373
    %v4375 = vsel %vm154, %v4369, 0.0
    %4376 = vadd.xlane.f32.xlu0 %v4375
    %v4377 = vpop.xlane.xlu0 %4376
    %v4378 = vsel %vm154, %v4370, 0.0
    %4379 = vadd.xlane.f32.xlu0 %v4378
    %v4380 = vpop.xlane.xlu0 %4379
    %v4381 = vsel %vm154, %v4371, 0.0
    %4382 = vadd.xlane.f32.xlu0 %v4381
    %v4383 = vpop.xlane.xlu0 %4382
    %v4384 = vmul.f32 %v4374, %v167
    %v4385 = vmul.f32 %v4377, %v167
    %v4386 = vmul.f32 %v4380, %v167
    %v4387 = vmul.f32 %v4383, %v167
    %v4388 = vadd.f32 %v4384, 1e-05
    %v4389 = vadd.f32 %v4385, 1e-05
    %v4390 = vadd.f32 %v4386, 1e-05
    %v4391 = vadd.f32 %v4387, 1e-05
    %v4392 = vrsqrt.pop %v4388
    %v4393 = vrsqrt.pop %v4389
    %v4394 = vrsqrt.pop %v4390
    %v4395 = vrsqrt.pop %v4391
    %v4396 = vmul.f32 %v4364, %v4392
    %v4397 = vmul.f32 %v4365, %v4393
    %v4398 = vmul.f32 %v4366, %v4394
    %v4399 = vmul.f32 %v4367, %v4395
    %4400 = vset.pattern.permute.xlu0 24
    %4401 = vperm.xlu0 %4400, %v3761
    %v4402 = vpop.permute.xlu0 %4401
    %4404 = vset.pattern.permute.xlu0 24
    %4405 = vperm.xlu0 %4404, %v3762
    %v4406 = vpop.permute.xlu0 %4405
    %4408 = vset.pattern.permute.xlu0 24
    %4409 = vperm.xlu0 %4408, %v3763
    %v4410 = vpop.permute.xlu0 %4409
    %4412 = vset.pattern.permute.xlu0 24
    %4413 = vperm.xlu0 %4412, %v3764
    %v4414 = vpop.permute.xlu0 %4413
    %v4416 = vmul.f32 %v4396, %v4402
    %v4417 = vmul.f32 %v4397, %v4406
    %v4418 = vmul.f32 %v4398, %v4410
    %v4419 = vmul.f32 %v4399, %v4414
    %4420 = vset.pattern.permute.xlu0 25
    %4421 = vperm.xlu0 %4420, %v3761
    %v4422 = vpop.permute.xlu0 %4421
    %4424 = vset.pattern.permute.xlu0 25
    %4425 = vperm.xlu0 %4424, %v3762
    %v4426 = vpop.permute.xlu0 %4425
    %4428 = vset.pattern.permute.xlu0 25
    %4429 = vperm.xlu0 %4428, %v3763
    %v4430 = vpop.permute.xlu0 %4429
    %4432 = vset.pattern.permute.xlu0 25
    %4433 = vperm.xlu0 %4432, %v3764
    %v4434 = vpop.permute.xlu0 %4433
    %v4436 = vadd.f32 %v4416, %v4422
    %v4437 = vadd.f32 %v4417, %v4426
    %v4438 = vadd.f32 %v4418, %v4430
    %v4439 = vadd.f32 %v4419, %v4434
    %v4440 = vxor.u32 %v4438, 2147483648
    %v4441 = vxor.u32 %v4439, 2147483648
    %v4442 = vmul.f32 %v4440, 1.442695
    %v4443 = vpow.pop %v4442
    %v4444 = vmul.f32 %v4441, 1.442695
    %v4445 = vpow.pop %v4444
    %v4446 = vadd.f32 %v4443, 1.0
    %v4447 = vadd.f32 %v4445, 1.0
    %v4448 = vrcp.pop %v4446
    %v4449 = vmul.f32 1.0, %v4448
    %v4450 = vrcp.pop %v4447
    %v4451 = vmul.f32 1.0, %v4450
    %v4452 = vmul.f32 %v4436, %v4449
    %v4453 = vmul.f32 %v4437, %v4451
    %v4454 = vadd.f32 %v4244, %v4452
    %v4455 = vadd.f32 %v4245, %v4453
    %v4456 = vmul.f32 %v4454, 0.70710677
    %v4457 = vmul.f32 %v4455, 0.70710677
    %v4458 = vmax.f32 %v4456, 0.0
    %v4459 = vadd.f32 %v2654, %v4458
    %s4460 = scalar_lea.vmem %s3, 32
    %v4461 = vld [vmem:[%s4460] sm:$0xff]
    %v4462 = vld [vmem:[%s4460 + $0x8] sm:$0xff]
    %v4464 = vsel %vm154, %v4461, 0
    %v4467 = vsel %vm154, %v4462, 0
    %4469 = vmatprep.subr.mxu0 0.0
    %4470 = vmatpush1.msra.mxu0 %v4457
    %4471 = vmatprep.subr.mxu0 0.0
    %4472 = vmatpush1.msra.mxu0 0.0
    %4473 = vmatprep.subr.mxu0 0.0
    %4474 = vmatpush1.msra.mxu0 0.0
    %4475 = vmatprep.subr.mxu0 0.0
    %4476 = vmatpush1.msra.mxu0 0.0
    %4477 = vmatprep.subr.mxu0 0.0
    %4478 = vmatpush1.msra.mxu0 0.0
    %4479 = vmatprep.subr.mxu0 0.0
    %4480 = vmatpush1.msra.mxu0 0.0
    %4481 = vmatprep.subr.mxu0 0.0
    %4482 = vmatpush1.msra.mxu0 0.0
    %4483 = vmatprep.subr.mxu0 0.0
    %4484 = vmatpush1.msra.mxu0 0.0
    %4485 = vmatprep.subr.mxu0 0.0
    %4486 = vmatpush1.msra.mxu0 0.0
    %4487 = vmatprep.subr.mxu0 0.0
    %4488 = vmatpush1.msra.mxu0 0.0
    %4489 = vmatprep.subr.mxu0 0.0
    %4490 = vmatpush1.msra.mxu0 0.0
    %4491 = vmatprep.subr.mxu0 0.0
    %4492 = vmatpush1.msra.mxu0 0.0
    %4493 = vmatprep.subr.mxu0 0.0
    %4494 = vmatpush1.msra.mxu0 0.0
    %4495 = vmatprep.subr.mxu0 0.0
    %4496 = vmatpush1.msra.mxu0 0.0
    %4497 = vmatprep.subr.mxu0 0.0
    %4498 = vmatpush1.msra.mxu0 0.0
    %4499 = vmatprep.subr.mxu0 0.0
    %4500 = vmatpush1.msra.mxu0 0.0
    %4501 = vmatprep.subr.mxu0 0.0
    %4502 = vmatpush1.msra.mxu0 0.0
    %4503 = vmatprep.subr.mxu0 0.0
    %4504 = vmatpush1.msra.mxu0 0.0
    %4505 = vmatprep.subr.mxu0 0.0
    %4506 = vmatpush1.msra.mxu0 0.0
    %4507 = vmatprep.subr.mxu0 0.0
    %4508 = vmatpush1.msra.mxu0 0.0
    %4509 = vmatprep.subr.mxu0 0.0
    %4510 = vmatpush1.msra.mxu0 0.0
    %4511 = vmatprep.subr.mxu0 0.0
    %4512 = vmatpush1.msra.mxu0 0.0
    %4513 = vmatprep.subr.mxu0 0.0
    %4514 = vmatpush1.msra.mxu0 0.0
    %4515 = vmatprep.subr.mxu0 0.0
    %4516 = vmatpush1.msra.mxu0 0.0
    %4517 = vmatprep.subr.mxu0 0.0
    %4518 = vmatpush1.msra.mxu0 0.0
    %4519 = vmatprep.subr.mxu0 0.0
    %4520 = vmatpush1.msra.mxu0 0.0
    %4521 = vmatprep.subr.mxu0 0.0
    %4522 = vmatpush1.msra.mxu0 0.0
    %4523 = vmatprep.subr.mxu0 0.0
    %4524 = vmatpush1.msra.mxu0 0.0
    %4525 = vmatprep.subr.mxu0 0.0
    %4526 = vmatpush1.msra.mxu0 0.0
    %4527 = vmatprep.subr.mxu0 0.0
    %4528 = vmatpush1.msra.mxu0 0.0
    %4529 = vmatprep.subr.mxu0 0.0
    %4530 = vmatpush1.msra.mxu0 0.0
    %4531 = vmatprep.subr.mxu0 0.0
    %4532 = vmatpush1.msra.mxu0 0.0
    %4533 = vmatprep.mubr.f32.mxu0 0.0
    %4534 = vmatmul.mubr.f32.gmra.mrb[0].mxu0 %v4464
    %v4535 = vpop.f32.mrb[0].mxu0
    %v4536 = vadd.f32 0.0, %v4535
    %v4537 = vpop.f32.mrb[0].mxu0
    %4538 = vmatprep.mubr.f32.mxu0 0.0
    %4539 = vmatmul.mubr.f32.gmra.mrb[0].mxu0 %v4467
    %v4540 = vpop.f32.mrb[0].mxu0
    %v4541 = vadd.f32 0.0, %v4540
    %v4542 = vpop.f32.mrb[0].mxu0
    %4543 = vdwg.mxu0
    %v4544 = vsel %vm154, %v4536, 0.0
    %4545 = vadd.xlane.f32.xlu0 %v4544
    %v4546 = vpop.xlane.xlu0 %4545
    %v4547 = vsel %vm154, %v4541, 0.0
    %4548 = vadd.xlane.f32.xlu0 %v4547
    %v4549 = vpop.xlane.xlu0 %4548
    %v4550 = vmul.f32 %v4546, %v167
    %v4551 = vmul.f32 %v4549, %v167
    %v4552 = vsub.f32 %v4536, %v4550
    %v4553 = vsub.f32 %v4541, %v4551
    %v4554 = vmul.f32 %v4552, %v4552
    %v4555 = vmul.f32 %v4553, %v4553
    %v4556 = vsel %vm154, %v4554, 0.0
    %4557 = vadd.xlane.f32.xlu0 %v4556
    %v4558 = vpop.xlane.xlu0 %4557
    %v4559 = vsel %vm154, %v4555, 0.0
    %4560 = vadd.xlane.f32.xlu0 %v4559
    %v4561 = vpop.xlane.xlu0 %4560
    %v4562 = vmul.f32 %v4558, %v167
    %v4563 = vmul.f32 %v4561, %v167
    %v4564 = vadd.f32 %v4562, 1e-05
    %v4565 = vadd.f32 %v4563, 1e-05
    %v4566 = vrsqrt.pop %v4564
    %v4567 = vrsqrt.pop %v4565
    %v4568 = vmul.f32 %v4552, %v4566
    %v4569 = vmul.f32 %v4553, %v4567
    %v4570 = vld [vmem:[%s5] sm:$0xff]
    %v4571 = vld [vmem:[%s5 + $0x8] sm:$0xff]
    %4573 = vset.pattern.permute.xlu0 38
    %4574 = vperm.xlu0 %4573, %v4570
    %v4575 = vpop.permute.xlu0 %4574
    %4578 = vset.pattern.permute.xlu0 38
    %4579 = vperm.xlu0 %4578, %v4571
    %v4580 = vpop.permute.xlu0 %4579
    %v4582 = vmul.f32 %v4568, %v4575
    %v4583 = vmul.f32 %v4569, %v4580
    %4584 = vset.pattern.permute.xlu0 39
    %4585 = vperm.xlu0 %4584, %v4570
    %v4586 = vpop.permute.xlu0 %4585
    %4588 = vset.pattern.permute.xlu0 39
    %4589 = vperm.xlu0 %4588, %v4571
    %v4590 = vpop.permute.xlu0 %4589
    %v4592 = vadd.f32 %v4582, %v4586
    %v4593 = vadd.f32 %v4583, %v4590
    %v4594 = vsel %vm154, %v4592, -inf
    %v4595 = vsel %vm154, %v4593, -inf
    %v4596 = vmax.f32 %v4594, %v4595
    %v4597 = vrot.slane %v4596, 4
    %v4598 = vmax.f32 %v4596, %v4597
    %v4599 = vrot.slane %v4598, 2
    %v4600 = vmax.f32 %v4598, %v4599
    %v4601 = vrot.slane %v4600, 1
    %v4602 = vmax.f32 %v4600, %v4601
    %v4603 = vsub.f32 %v4592, %v4602
    %v4604 = vsub.f32 %v4593, %v4602
    %v4607 = vcombine.high %v4603, %v4603
    %v4609 = vunpack.c.l.s4 1966171168
    %v4610 = vunpack.c.0.s8 %v4609
    %v4611 = vlaneseq
    %v4612 = vshrl.u32 %v4611, 7
    %v4613 = vsub.s32 %v4610, %v4612
    %v4614 = vrot.slane %v4603, %v4613
    %v4616 = vunpack.c.l.s4 1966171168
    %v4617 = vunpack.c.0.s8 %v4616
    %v4618 = vlaneseq
    %v4619 = vshrl.u32 %v4618, 7
    %v4620 = vsub.s32 %v4617, %v4619
    %v4621 = vrot.slane %v4607, %v4620
    %v4622 = vcombine.high %v4614, %v4614
    %v4623 = vcombine.high %v4621, %v4621
    %v4625 = vunpack.c.l.s4 1966171168
    %v4626 = vunpack.c.0.s8 %v4625
    %v4627 = vlaneseq
    %v4628 = vshrl.u32 %v4627, 7
    %v4629 = vsub.s32 %v4626, %v4628
    %v4630 = vrot.slane %v4614, %v4629
    %v4632 = vunpack.c.l.s4 1966171168
    %v4633 = vunpack.c.0.s8 %v4632
    %v4634 = vlaneseq
    %v4635 = vshrl.u32 %v4634, 7
    %v4636 = vsub.s32 %v4633, %v4635
    %v4637 = vrot.slane %v4621, %v4636
    %v4639 = vunpack.c.l.s4 1966171168
    %v4640 = vunpack.c.0.s8 %v4639
    %v4641 = vlaneseq
    %v4642 = vshrl.u32 %v4641, 7
    %v4643 = vsub.s32 %v4640, %v4642
    %v4644 = vrot.slane %v4622, %v4643
    %v4646 = vunpack.c.l.s4 1966171168
    %v4647 = vunpack.c.0.s8 %v4646
    %v4648 = vlaneseq
    %v4649 = vshrl.u32 %v4648, 7
    %v4650 = vsub.s32 %v4647, %v4649
    %v4651 = vrot.slane %v4623, %v4650
    %v4652 = vcombine.high %v4630, %v4630
    %v4653 = vcombine.high %v4637, %v4637
    %v4654 = vcombine.high %v4644, %v4644
    %v4655 = vcombine.high %v4651, %v4651
    %v4656 = vcombine.high %v4604, %v4604
    %v4658 = vunpack.c.l.s4 1966171168
    %v4659 = vunpack.c.0.s8 %v4658
    %v4660 = vlaneseq
    %v4661 = vshrl.u32 %v4660, 7
    %v4662 = vsub.s32 %v4659, %v4661
    %v4663 = vrot.slane %v4604, %v4662
    %v4665 = vunpack.c.l.s4 1966171168
    %v4666 = vunpack.c.0.s8 %v4665
    %v4667 = vlaneseq
    %v4668 = vshrl.u32 %v4667, 7
    %v4669 = vsub.s32 %v4666, %v4668
    %v4670 = vrot.slane %v4656, %v4669
    %v4671 = vcombine.high %v4663, %v4663
    %v4672 = vcombine.high %v4670, %v4670
    %v4674 = vunpack.c.l.s4 1966171168
    %v4675 = vunpack.c.0.s8 %v4674
    %v4676 = vlaneseq
    %v4677 = vshrl.u32 %v4676, 7
    %v4678 = vsub.s32 %v4675, %v4677
    %v4679 = vrot.slane %v4663, %v4678
    %v4681 = vunpack.c.l.s4 1966171168
    %v4682 = vunpack.c.0.s8 %v4681
    %v4683 = vlaneseq
    %v4684 = vshrl.u32 %v4683, 7
    %v4685 = vsub.s32 %v4682, %v4684
    %v4686 = vrot.slane %v4670, %v4685
    %v4688 = vunpack.c.l.s4 1966171168
    %v4689 = vunpack.c.0.s8 %v4688
    %v4690 = vlaneseq
    %v4691 = vshrl.u32 %v4690, 7
    %v4692 = vsub.s32 %v4689, %v4691
    %v4693 = vrot.slane %v4671, %v4692
    %v4695 = vunpack.c.l.s4 1966171168
    %v4696 = vunpack.c.0.s8 %v4695
    %v4697 = vlaneseq
    %v4698 = vshrl.u32 %v4697, 7
    %v4699 = vsub.s32 %v4696, %v4698
    %v4700 = vrot.slane %v4672, %v4699
    %v4701 = vcombine.high %v4679, %v4679
    %v4702 = vcombine.high %v4686, %v4686
    %v4703 = vcombine.high %v4693, %v4693
    %v4704 = vcombine.high %v4700, %v4700
    %v4705 = vlaneseq
    %v4706 = vshrl.u32 %v4705, 7
    %v4707 = vsub.s32 0, %v4706
    %v4708 = vrot.slane %v4630, %v4707
    %v4709 = vlaneseq
    %v4710 = vshrl.u32 %v4709, 7
    %v4711 = vsub.s32 0, %v4710
    %v4712 = vrot.slane %v4644, %v4711
    %v4713 = vlaneseq
    %v4714 = vshrl.u32 %v4713, 7
    %v4715 = vsub.s32 0, %v4714
    %v4716 = vrot.slane %v4652, %v4715
    %v4717 = vlaneseq
    %v4718 = vshrl.u32 %v4717, 7
    %v4719 = vsub.s32 0, %v4718
    %v4720 = vrot.slane %v4654, %v4719
    %v4721 = vlaneseq
    %v4722 = vshrl.u32 %v4721, 7
    %v4723 = vsub.s32 0, %v4722
    %v4724 = vrot.slane %v4637, %v4723
    %v4725 = vlaneseq
    %v4726 = vshrl.u32 %v4725, 7
    %v4727 = vsub.s32 0, %v4726
    %v4728 = vrot.slane %v4651, %v4727
    %v4729 = vlaneseq
    %v4730 = vshrl.u32 %v4729, 7
    %v4731 = vsub.s32 0, %v4730
    %v4732 = vrot.slane %v4653, %v4731
    %v4733 = vlaneseq
    %v4734 = vshrl.u32 %v4733, 7
    %v4735 = vsub.s32 0, %v4734
    %v4736 = vrot.slane %v4655, %v4735
    %v4737 = vlaneseq
    %v4738 = vshrl.u32 %v4737, 7
    %v4739 = vsub.s32 0, %v4738
    %v4740 = vrot.slane %v4679, %v4739
    %v4741 = vlaneseq
    %v4742 = vshrl.u32 %v4741, 7
    %v4743 = vsub.s32 0, %v4742
    %v4744 = vrot.slane %v4693, %v4743
    %v4745 = vlaneseq
    %v4746 = vshrl.u32 %v4745, 7
    %v4747 = vsub.s32 0, %v4746
    %v4748 = vrot.slane %v4701, %v4747
    %v4749 = vlaneseq
    %v4750 = vshrl.u32 %v4749, 7
    %v4751 = vsub.s32 0, %v4750
    %v4752 = vrot.slane %v4703, %v4751
    %v4753 = vlaneseq
    %v4754 = vshrl.u32 %v4753, 7
    %v4755 = vsub.s32 0, %v4754
    %v4756 = vrot.slane %v4686, %v4755
    %v4757 = vlaneseq
    %v4758 = vshrl.u32 %v4757, 7
    %v4759 = vsub.s32 0, %v4758
    %v4760 = vrot.slane %v4700, %v4759
    %v4761 = vlaneseq
    %v4762 = vshrl.u32 %v4761, 7
    %v4763 = vsub.s32 0, %v4762
    %v4764 = vrot.slane %v4702, %v4763
    %v4765 = vlaneseq
    %v4766 = vshrl.u32 %v4765, 7
    %v4767 = vsub.s32 0, %v4766
    %v4768 = vrot.slane %v4704, %v4767
    %vm4785 = vcmp.ge.f32.partialorder %v4603, %v4708
    %vm4786 = vcmp.ge.f32.partialorder %v4604, %v4708
    %vm4787 = vcmp.ge.f32.partialorder %v4603, %v4712
    %vm4788 = vcmp.ge.f32.partialorder %v4604, %v4712
    %vm4789 = vcmp.ge.f32.partialorder %v4603, %v4716
    %vm4790 = vcmp.ge.f32.partialorder %v4604, %v4716
    %vm4791 = vcmp.ge.f32.partialorder %v4603, %v4720
    %vm4792 = vcmp.ge.f32.partialorder %v4604, %v4720
    %vm4793 = vcmp.ge.f32.partialorder %v4603, %v4724
    %vm4794 = vcmp.ge.f32.partialorder %v4604, %v4724
    %vm4795 = vcmp.ge.f32.partialorder %v4603, %v4728
    %vm4796 = vcmp.ge.f32.partialorder %v4604, %v4728
    %vm4797 = vcmp.ge.f32.partialorder %v4603, %v4732
    %vm4798 = vcmp.ge.f32.partialorder %v4604, %v4732
    %vm4799 = vcmp.ge.f32.partialorder %v4603, %v4736
    %vm4800 = vcmp.ge.f32.partialorder %v4604, %v4736
    %vm4801 = vcmp.ge.f32.partialorder %v4603, %v4740
    %vm4802 = vcmp.ge.f32.partialorder %v4604, %v4740
    %vm4803 = vcmp.ge.f32.partialorder %v4603, %v4744
    %vm4804 = vcmp.ge.f32.partialorder %v4604, %v4744
    %vm4805 = vcmp.ge.f32.partialorder %v4603, %v4748
    %vm4806 = vcmp.ge.f32.partialorder %v4604, %v4748
    %vm4807 = vcmp.ge.f32.partialorder %v4603, %v4752
    %vm4808 = vcmp.ge.f32.partialorder %v4604, %v4752
    %vm4809 = vcmp.ge.f32.partialorder %v4603, %v4756
    %vm4810 = vcmp.ge.f32.partialorder %v4604, %v4756
    %vm4811 = vcmp.ge.f32.partialorder %v4603, %v4760
    %vm4812 = vcmp.ge.f32.partialorder %v4604, %v4760
    %vm4813 = vcmp.ge.f32.partialorder %v4603, %v4764
    %vm4814 = vcmp.ge.f32.partialorder %v4604, %v4764
    %vm4815 = vcmp.ge.f32.partialorder %v4603, %v4768
    %vm4816 = vcmp.ge.f32.partialorder %v4604, %v4768
    %v4817 = vsel %vm4785, 1, 0
    %v4818 = vsel %vm4786, 1, 0
    %v4819 = vsel %vm4787, 1, 0
    %v4820 = vsel %vm4788, 1, 0
    %v4821 = vsel %vm4789, 1, 0
    %v4822 = vsel %vm4790, 1, 0
    %v4823 = vsel %vm4791, 1, 0
    %v4824 = vsel %vm4792, 1, 0
    %v4825 = vsel %vm4793, 1, 0
    %v4826 = vsel %vm4794, 1, 0
    %v4827 = vsel %vm4795, 1, 0
    %v4828 = vsel %vm4796, 1, 0
    %v4829 = vsel %vm4797, 1, 0
    %v4830 = vsel %vm4798, 1, 0
    %v4831 = vsel %vm4799, 1, 0
    %v4832 = vsel %vm4800, 1, 0
    %v4833 = vsel %vm4801, 1, 0
    %v4834 = vsel %vm4802, 1, 0
    %v4835 = vsel %vm4803, 1, 0
    %v4836 = vsel %vm4804, 1, 0
    %v4837 = vsel %vm4805, 1, 0
    %v4838 = vsel %vm4806, 1, 0
    %v4839 = vsel %vm4807, 1, 0
    %v4840 = vsel %vm4808, 1, 0
    %v4841 = vsel %vm4809, 1, 0
    %v4842 = vsel %vm4810, 1, 0
    %v4843 = vsel %vm4811, 1, 0
    %v4844 = vsel %vm4812, 1, 0
    %v4845 = vsel %vm4813, 1, 0
    %v4846 = vsel %vm4814, 1, 0
    %v4847 = vsel %vm4815, 1, 0
    %v4848 = vsel %vm4816, 1, 0
    %v4849 = vcvt.s32.f32 %v4817
    %v4850 = vcvt.s32.f32 %v4818
    %v4851 = vcvt.s32.f32 %v4819
    %v4852 = vcvt.s32.f32 %v4820
    %v4853 = vcvt.s32.f32 %v4821
    %v4854 = vcvt.s32.f32 %v4822
    %v4855 = vcvt.s32.f32 %v4823
    %v4856 = vcvt.s32.f32 %v4824
    %v4857 = vcvt.s32.f32 %v4825
    %v4858 = vcvt.s32.f32 %v4826
    %v4859 = vcvt.s32.f32 %v4827
    %v4860 = vcvt.s32.f32 %v4828
    %v4861 = vcvt.s32.f32 %v4829
    %v4862 = vcvt.s32.f32 %v4830
    %v4863 = vcvt.s32.f32 %v4831
    %v4864 = vcvt.s32.f32 %v4832
    %v4865 = vcvt.s32.f32 %v4833
    %v4866 = vcvt.s32.f32 %v4834
    %v4867 = vcvt.s32.f32 %v4835
    %v4868 = vcvt.s32.f32 %v4836
    %v4869 = vcvt.s32.f32 %v4837
    %v4870 = vcvt.s32.f32 %v4838
    %v4871 = vcvt.s32.f32 %v4839
    %v4872 = vcvt.s32.f32 %v4840
    %v4873 = vcvt.s32.f32 %v4841
    %v4874 = vcvt.s32.f32 %v4842
    %v4875 = vcvt.s32.f32 %v4843
    %v4876 = vcvt.s32.f32 %v4844
    %v4877 = vcvt.s32.f32 %v4845
    %v4878 = vcvt.s32.f32 %v4846
    %v4879 = vcvt.s32.f32 %v4847
    %v4880 = vcvt.s32.f32 %v4848
    %v4881 = vsel %vm154, %v4849, 0.0
    %v4882 = vsel %vm154, %v4850, 0.0
    %v4883 = vadd.f32 %v4881, %v4882
    %v4884 = vrot.slane %v4883, 4
    %v4885 = vadd.f32 %v4883, %v4884
    %v4886 = vrot.slane %v4885, 2
    %v4887 = vadd.f32 %v4885, %v4886
    %v4888 = vrot.slane %v4887, 1
    %v4889 = vadd.f32 %v4887, %v4888
    %v4890 = vsel %vm154, %v4851, 0.0
    %v4891 = vsel %vm154, %v4852, 0.0
    %v4892 = vadd.f32 %v4890, %v4891
    %v4893 = vrot.slane %v4892, 4
    %v4894 = vadd.f32 %v4892, %v4893
    %v4895 = vrot.slane %v4894, 2
    %v4896 = vadd.f32 %v4894, %v4895
    %v4897 = vrot.slane %v4896, 1
    %v4898 = vadd.f32 %v4896, %v4897
    %v4899 = vsel %vm154, %v4853, 0.0
    %v4900 = vsel %vm154, %v4854, 0.0
    %v4901 = vadd.f32 %v4899, %v4900
    %v4902 = vrot.slane %v4901, 4
    %v4903 = vadd.f32 %v4901, %v4902
    %v4904 = vrot.slane %v4903, 2
    %v4905 = vadd.f32 %v4903, %v4904
    %v4906 = vrot.slane %v4905, 1
    %v4907 = vadd.f32 %v4905, %v4906
    %v4908 = vsel %vm154, %v4855, 0.0
    %v4909 = vsel %vm154, %v4856, 0.0
    %v4910 = vadd.f32 %v4908, %v4909
    %v4911 = vrot.slane %v4910, 4
    %v4912 = vadd.f32 %v4910, %v4911
    %v4913 = vrot.slane %v4912, 2
    %v4914 = vadd.f32 %v4912, %v4913
    %v4915 = vrot.slane %v4914, 1
    %v4916 = vadd.f32 %v4914, %v4915
    %v4917 = vsel %vm154, %v4857, 0.0
    %v4918 = vsel %vm154, %v4858, 0.0
    %v4919 = vadd.f32 %v4917, %v4918
    %v4920 = vrot.slane %v4919, 4
    %v4921 = vadd.f32 %v4919, %v4920
    %v4922 = vrot.slane %v4921, 2
    %v4923 = vadd.f32 %v4921, %v4922
    %v4924 = vrot.slane %v4923, 1
    %v4925 = vadd.f32 %v4923, %v4924
    %v4926 = vsel %vm154, %v4859, 0.0
    %v4927 = vsel %vm154, %v4860, 0.0
    %v4928 = vadd.f32 %v4926, %v4927
    %v4929 = vrot.slane %v4928, 4
    %v4930 = vadd.f32 %v4928, %v4929
    %v4931 = vrot.slane %v4930, 2
    %v4932 = vadd.f32 %v4930, %v4931
    %v4933 = vrot.slane %v4932, 1
    %v4934 = vadd.f32 %v4932, %v4933
    %v4935 = vsel %vm154, %v4861, 0.0
    %v4936 = vsel %vm154, %v4862, 0.0
    %v4937 = vadd.f32 %v4935, %v4936
    %v4938 = vrot.slane %v4937, 4
    %v4939 = vadd.f32 %v4937, %v4938
    %v4940 = vrot.slane %v4939, 2
    %v4941 = vadd.f32 %v4939, %v4940
    %v4942 = vrot.slane %v4941, 1
    %v4943 = vadd.f32 %v4941, %v4942
    %v4944 = vsel %vm154, %v4863, 0.0
    %v4945 = vsel %vm154, %v4864, 0.0
    %v4946 = vadd.f32 %v4944, %v4945
    %v4947 = vrot.slane %v4946, 4
    %v4948 = vadd.f32 %v4946, %v4947
    %v4949 = vrot.slane %v4948, 2
    %v4950 = vadd.f32 %v4948, %v4949
    %v4951 = vrot.slane %v4950, 1
    %v4952 = vadd.f32 %v4950, %v4951
    %v4953 = vsel %vm154, %v4865, 0.0
    %v4954 = vsel %vm154, %v4866, 0.0
    %v4955 = vadd.f32 %v4953, %v4954
    %v4956 = vrot.slane %v4955, 4
    %v4957 = vadd.f32 %v4955, %v4956
    %v4958 = vrot.slane %v4957, 2
    %v4959 = vadd.f32 %v4957, %v4958
    %v4960 = vrot.slane %v4959, 1
    %v4961 = vadd.f32 %v4959, %v4960
    %v4962 = vsel %vm154, %v4867, 0.0
    %v4963 = vsel %vm154, %v4868, 0.0
    %v4964 = vadd.f32 %v4962, %v4963
    %v4965 = vrot.slane %v4964, 4
    %v4966 = vadd.f32 %v4964, %v4965
    %v4967 = vrot.slane %v4966, 2
    %v4968 = vadd.f32 %v4966, %v4967
    %v4969 = vrot.slane %v4968, 1
    %v4970 = vadd.f32 %v4968, %v4969
    %v4971 = vsel %vm154, %v4869, 0.0
    %v4972 = vsel %vm154, %v4870, 0.0
    %v4973 = vadd.f32 %v4971, %v4972
    %v4974 = vrot.slane %v4973, 4
    %v4975 = vadd.f32 %v4973, %v4974
    %v4976 = vrot.slane %v4975, 2
    %v4977 = vadd.f32 %v4975, %v4976
    %v4978 = vrot.slane %v4977, 1
    %v4979 = vadd.f32 %v4977, %v4978
    %v4980 = vsel %vm154, %v4871, 0.0
    %v4981 = vsel %vm154, %v4872, 0.0
    %v4982 = vadd.f32 %v4980, %v4981
    %v4983 = vrot.slane %v4982, 4
    %v4984 = vadd.f32 %v4982, %v4983
    %v4985 = vrot.slane %v4984, 2
    %v4986 = vadd.f32 %v4984, %v4985
    %v4987 = vrot.slane %v4986, 1
    %v4988 = vadd.f32 %v4986, %v4987
    %v4989 = vsel %vm154, %v4873, 0.0
    %v4990 = vsel %vm154, %v4874, 0.0
    %v4991 = vadd.f32 %v4989, %v4990
    %v4992 = vrot.slane %v4991, 4
    %v4993 = vadd.f32 %v4991, %v4992
    %v4994 = vrot.slane %v4993, 2
    %v4995 = vadd.f32 %v4993, %v4994
    %v4996 = vrot.slane %v4995, 1
    %v4997 = vadd.f32 %v4995, %v4996
    %v4998 = vsel %vm154, %v4875, 0.0
    %v4999 = vsel %vm154, %v4876, 0.0
    %v5000 = vadd.f32 %v4998, %v4999
    %v5001 = vrot.slane %v5000, 4
    %v5002 = vadd.f32 %v5000, %v5001
    %v5003 = vrot.slane %v5002, 2
    %v5004 = vadd.f32 %v5002, %v5003
    %v5005 = vrot.slane %v5004, 1
    %v5006 = vadd.f32 %v5004, %v5005
    %v5007 = vsel %vm154, %v4877, 0.0
    %v5008 = vsel %vm154, %v4878, 0.0
    %v5009 = vadd.f32 %v5007, %v5008
    %v5010 = vrot.slane %v5009, 4
    %v5011 = vadd.f32 %v5009, %v5010
    %v5012 = vrot.slane %v5011, 2
    %v5013 = vadd.f32 %v5011, %v5012
    %v5014 = vrot.slane %v5013, 1
    %v5015 = vadd.f32 %v5013, %v5014
    %v5016 = vsel %vm154, %v4879, 0.0
    %v5017 = vsel %vm154, %v4880, 0.0
    %v5018 = vadd.f32 %v5016, %v5017
    %v5019 = vrot.slane %v5018, 4
    %v5020 = vadd.f32 %v5018, %v5019
    %v5021 = vrot.slane %v5020, 2
    %v5022 = vadd.f32 %v5020, %v5021
    %v5023 = vrot.slane %v5022, 1
    %v5024 = vadd.f32 %v5022, %v5023
    %v5025 = vmul.f32 %v4849, %v4603
    %v5026 = vmul.f32 %v4850, %v4604
    %v5027 = vmul.f32 %v4851, %v4603
    %v5028 = vmul.f32 %v4852, %v4604
    %v5029 = vmul.f32 %v4853, %v4603
    %v5030 = vmul.f32 %v4854, %v4604
    %v5031 = vmul.f32 %v4855, %v4603
    %v5032 = vmul.f32 %v4856, %v4604
    %v5033 = vmul.f32 %v4857, %v4603
    %v5034 = vmul.f32 %v4858, %v4604
    %v5035 = vmul.f32 %v4859, %v4603
    %v5036 = vmul.f32 %v4860, %v4604
    %v5037 = vmul.f32 %v4861, %v4603
    %v5038 = vmul.f32 %v4862, %v4604
    %v5039 = vmul.f32 %v4863, %v4603
    %v5040 = vmul.f32 %v4864, %v4604
    %v5041 = vmul.f32 %v4865, %v4603
    %v5042 = vmul.f32 %v4866, %v4604
    %v5043 = vmul.f32 %v4867, %v4603
    %v5044 = vmul.f32 %v4868, %v4604
    %v5045 = vmul.f32 %v4869, %v4603
    %v5046 = vmul.f32 %v4870, %v4604
    %v5047 = vmul.f32 %v4871, %v4603
    %v5048 = vmul.f32 %v4872, %v4604
    %v5049 = vmul.f32 %v4873, %v4603
    %v5050 = vmul.f32 %v4874, %v4604
    %v5051 = vmul.f32 %v4875, %v4603
    %v5052 = vmul.f32 %v4876, %v4604
    %v5053 = vmul.f32 %v4877, %v4603
    %v5054 = vmul.f32 %v4878, %v4604
    %v5055 = vmul.f32 %v4879, %v4603
    %v5056 = vmul.f32 %v4880, %v4604
    %v5057 = vsel %vm154, %v5025, 0.0
    %v5058 = vsel %vm154, %v5026, 0.0
    %v5059 = vadd.f32 %v5057, %v5058
    %v5060 = vrot.slane %v5059, 4
    %v5061 = vadd.f32 %v5059, %v5060
    %v5062 = vrot.slane %v5061, 2
    %v5063 = vadd.f32 %v5061, %v5062
    %v5064 = vrot.slane %v5063, 1
    %v5065 = vadd.f32 %v5063, %v5064
    %v5066 = vsel %vm154, %v5027, 0.0
    %v5067 = vsel %vm154, %v5028, 0.0
    %v5068 = vadd.f32 %v5066, %v5067
    %v5069 = vrot.slane %v5068, 4
    %v5070 = vadd.f32 %v5068, %v5069
    %v5071 = vrot.slane %v5070, 2
    %v5072 = vadd.f32 %v5070, %v5071
    %v5073 = vrot.slane %v5072, 1
    %v5074 = vadd.f32 %v5072, %v5073
    %v5075 = vsel %vm154, %v5029, 0.0
    %v5076 = vsel %vm154, %v5030, 0.0
    %v5077 = vadd.f32 %v5075, %v5076
    %v5078 = vrot.slane %v5077, 4
    %v5079 = vadd.f32 %v5077, %v5078
    %v5080 = vrot.slane %v5079, 2
    %v5081 = vadd.f32 %v5079, %v5080
    %v5082 = vrot.slane %v5081, 1
    %v5083 = vadd.f32 %v5081, %v5082
    %v5084 = vsel %vm154, %v5031, 0.0
    %v5085 = vsel %vm154, %v5032, 0.0
    %v5086 = vadd.f32 %v5084, %v5085
    %v5087 = vrot.slane %v5086, 4
    %v5088 = vadd.f32 %v5086, %v5087
    %v5089 = vrot.slane %v5088, 2
    %v5090 = vadd.f32 %v5088, %v5089
    %v5091 = vrot.slane %v5090, 1
    %v5092 = vadd.f32 %v5090, %v5091
    %v5093 = vsel %vm154, %v5033, 0.0
    %v5094 = vsel %vm154, %v5034, 0.0
    %v5095 = vadd.f32 %v5093, %v5094
    %v5096 = vrot.slane %v5095, 4
    %v5097 = vadd.f32 %v5095, %v5096
    %v5098 = vrot.slane %v5097, 2
    %v5099 = vadd.f32 %v5097, %v5098
    %v5100 = vrot.slane %v5099, 1
    %v5101 = vadd.f32 %v5099, %v5100
    %v5102 = vsel %vm154, %v5035, 0.0
    %v5103 = vsel %vm154, %v5036, 0.0
    %v5104 = vadd.f32 %v5102, %v5103
    %v5105 = vrot.slane %v5104, 4
    %v5106 = vadd.f32 %v5104, %v5105
    %v5107 = vrot.slane %v5106, 2
    %v5108 = vadd.f32 %v5106, %v5107
    %v5109 = vrot.slane %v5108, 1
    %v5110 = vadd.f32 %v5108, %v5109
    %v5111 = vsel %vm154, %v5037, 0.0
    %v5112 = vsel %vm154, %v5038, 0.0
    %v5113 = vadd.f32 %v5111, %v5112
    %v5114 = vrot.slane %v5113, 4
    %v5115 = vadd.f32 %v5113, %v5114
    %v5116 = vrot.slane %v5115, 2
    %v5117 = vadd.f32 %v5115, %v5116
    %v5118 = vrot.slane %v5117, 1
    %v5119 = vadd.f32 %v5117, %v5118
    %v5120 = vsel %vm154, %v5039, 0.0
    %v5121 = vsel %vm154, %v5040, 0.0
    %v5122 = vadd.f32 %v5120, %v5121
    %v5123 = vrot.slane %v5122, 4
    %v5124 = vadd.f32 %v5122, %v5123
    %v5125 = vrot.slane %v5124, 2
    %v5126 = vadd.f32 %v5124, %v5125
    %v5127 = vrot.slane %v5126, 1
    %v5128 = vadd.f32 %v5126, %v5127
    %v5129 = vsel %vm154, %v5041, 0.0
    %v5130 = vsel %vm154, %v5042, 0.0
    %v5131 = vadd.f32 %v5129, %v5130
    %v5132 = vrot.slane %v5131, 4
    %v5133 = vadd.f32 %v5131, %v5132
    %v5134 = vrot.slane %v5133, 2
    %v5135 = vadd.f32 %v5133, %v5134
    %v5136 = vrot.slane %v5135, 1
    %v5137 = vadd.f32 %v5135, %v5136
    %v5138 = vsel %vm154, %v5043, 0.0
    %v5139 = vsel %vm154, %v5044, 0.0
    %v5140 = vadd.f32 %v5138, %v5139
    %v5141 = vrot.slane %v5140, 4
    %v5142 = vadd.f32 %v5140, %v5141
    %v5143 = vrot.slane %v5142, 2
    %v5144 = vadd.f32 %v5142, %v5143
    %v5145 = vrot.slane %v5144, 1
    %v5146 = vadd.f32 %v5144, %v5145
    %v5147 = vsel %vm154, %v5045, 0.0
    %v5148 = vsel %vm154, %v5046, 0.0
    %v5149 = vadd.f32 %v5147, %v5148
    %v5150 = vrot.slane %v5149, 4
    %v5151 = vadd.f32 %v5149, %v5150
    %v5152 = vrot.slane %v5151, 2
    %v5153 = vadd.f32 %v5151, %v5152
    %v5154 = vrot.slane %v5153, 1
    %v5155 = vadd.f32 %v5153, %v5154
    %v5156 = vsel %vm154, %v5047, 0.0
    %v5157 = vsel %vm154, %v5048, 0.0
    %v5158 = vadd.f32 %v5156, %v5157
    %v5159 = vrot.slane %v5158, 4
    %v5160 = vadd.f32 %v5158, %v5159
    %v5161 = vrot.slane %v5160, 2
    %v5162 = vadd.f32 %v5160, %v5161
    %v5163 = vrot.slane %v5162, 1
    %v5164 = vadd.f32 %v5162, %v5163
    %v5165 = vsel %vm154, %v5049, 0.0
    %v5166 = vsel %vm154, %v5050, 0.0
    %v5167 = vadd.f32 %v5165, %v5166
    %v5168 = vrot.slane %v5167, 4
    %v5169 = vadd.f32 %v5167, %v5168
    %v5170 = vrot.slane %v5169, 2
    %v5171 = vadd.f32 %v5169, %v5170
    %v5172 = vrot.slane %v5171, 1
    %v5173 = vadd.f32 %v5171, %v5172
    %v5174 = vsel %vm154, %v5051, 0.0
    %v5175 = vsel %vm154, %v5052, 0.0
    %v5176 = vadd.f32 %v5174, %v5175
    %v5177 = vrot.slane %v5176, 4
    %v5178 = vadd.f32 %v5176, %v5177
    %v5179 = vrot.slane %v5178, 2
    %v5180 = vadd.f32 %v5178, %v5179
    %v5181 = vrot.slane %v5180, 1
    %v5182 = vadd.f32 %v5180, %v5181
    %v5183 = vsel %vm154, %v5053, 0.0
    %v5184 = vsel %vm154, %v5054, 0.0
    %v5185 = vadd.f32 %v5183, %v5184
    %v5186 = vrot.slane %v5185, 4
    %v5187 = vadd.f32 %v5185, %v5186
    %v5188 = vrot.slane %v5187, 2
    %v5189 = vadd.f32 %v5187, %v5188
    %v5190 = vrot.slane %v5189, 1
    %v5191 = vadd.f32 %v5189, %v5190
    %v5192 = vsel %vm154, %v5055, 0.0
    %v5193 = vsel %vm154, %v5056, 0.0
    %v5194 = vadd.f32 %v5192, %v5193
    %v5195 = vrot.slane %v5194, 4
    %v5196 = vadd.f32 %v5194, %v5195
    %v5197 = vrot.slane %v5196, 2
    %v5198 = vadd.f32 %v5196, %v5197
    %v5199 = vrot.slane %v5198, 1
    %v5200 = vadd.f32 %v5198, %v5199
    %v5201 = vrot.slane %v4603, 1
    %v5202 = vrot.slane %v4603, 2
    %v5203 = vrot.slane %v4603, 3
    %v5204 = vrot.slane %v4603, 4
    %v5205 = vrot.slane %v4603, 5
    %v5206 = vrot.slane %v4603, 6
    %v5207 = vrot.slane %v4603, 7
    %v5208 = vrot.slane %v4604, 1
    %v5209 = vrot.slane %v4604, 2
    %v5210 = vrot.slane %v4604, 3
    %v5211 = vrot.slane %v4604, 4
    %v5212 = vrot.slane %v4604, 5
    %v5213 = vrot.slane %v4604, 6
    %v5214 = vrot.slane %v4604, 7
    %v5231 = vmul.f32 %v4889, %v4603
    %v5232 = vmul.f32 %v4898, %v5201
    %v5233 = vmul.f32 %v4907, %v5202
    %v5234 = vmul.f32 %v4916, %v5203
    %v5235 = vmul.f32 %v4925, %v5204
    %v5236 = vmul.f32 %v4934, %v5205
    %v5237 = vmul.f32 %v4943, %v5206
    %v5238 = vmul.f32 %v4952, %v5207
    %v5239 = vmul.f32 %v4961, %v4604
    %v5240 = vmul.f32 %v4970, %v5208
    %v5241 = vmul.f32 %v4979, %v5209
    %v5242 = vmul.f32 %v4988, %v5210
    %v5243 = vmul.f32 %v4997, %v5211
    %v5244 = vmul.f32 %v5006, %v5212
    %v5245 = vmul.f32 %v5015, %v5213
    %v5246 = vmul.f32 %v5024, %v5214
    %v5247 = vadd.f32 %v5231, 1.0
    %v5248 = vadd.f32 %v5232, 1.0
    %v5249 = vadd.f32 %v5233, 1.0
    %v5250 = vadd.f32 %v5234, 1.0
    %v5251 = vadd.f32 %v5235, 1.0
    %v5252 = vadd.f32 %v5236, 1.0
    %v5253 = vadd.f32 %v5237, 1.0
    %v5254 = vadd.f32 %v5238, 1.0
    %v5255 = vadd.f32 %v5239, 1.0
    %v5256 = vadd.f32 %v5240, 1.0
    %v5257 = vadd.f32 %v5241, 1.0
    %v5258 = vadd.f32 %v5242, 1.0
    %v5259 = vadd.f32 %v5243, 1.0
    %v5260 = vadd.f32 %v5244, 1.0
    %v5261 = vadd.f32 %v5245, 1.0
    %v5262 = vadd.f32 %v5246, 1.0
    %vm5263 = vcmp.gt.f32.partialorder %v5247, %v5065
    %vm5264 = vcmp.gt.f32.partialorder %v5248, %v5074
    %vm5265 = vcmp.gt.f32.partialorder %v5249, %v5083
    %vm5266 = vcmp.gt.f32.partialorder %v5250, %v5092
    %vm5267 = vcmp.gt.f32.partialorder %v5251, %v5101
    %vm5268 = vcmp.gt.f32.partialorder %v5252, %v5110
    %vm5269 = vcmp.gt.f32.partialorder %v5253, %v5119
    %vm5270 = vcmp.gt.f32.partialorder %v5254, %v5128
    %vm5271 = vcmp.gt.f32.partialorder %v5255, %v5137
    %vm5272 = vcmp.gt.f32.partialorder %v5256, %v5146
    %vm5273 = vcmp.gt.f32.partialorder %v5257, %v5155
    %vm5274 = vcmp.gt.f32.partialorder %v5258, %v5164
    %vm5275 = vcmp.gt.f32.partialorder %v5259, %v5173
    %vm5276 = vcmp.gt.f32.partialorder %v5260, %v5182
    %vm5277 = vcmp.gt.f32.partialorder %v5261, %v5191
    %vm5278 = vcmp.gt.f32.partialorder %v5262, %v5200
    %v5279 = vsel %vm5263, %v4889, 0.0
    %v5280 = vsel %vm5264, %v4898, 0.0
    %v5281 = vsel %vm5265, %v4907, 0.0
    %v5282 = vsel %vm5266, %v4916, 0.0
    %v5283 = vsel %vm5267, %v4925, 0.0
    %v5284 = vsel %vm5268, %v4934, 0.0
    %v5285 = vsel %vm5269, %v4943, 0.0
    %v5286 = vsel %vm5270, %v4952, 0.0
    %v5287 = vsel %vm5271, %v4961, 0.0
    %v5288 = vsel %vm5272, %v4970, 0.0
    %v5289 = vsel %vm5273, %v4979, 0.0
    %v5290 = vsel %vm5274, %v4988, 0.0
    %v5291 = vsel %vm5275, %v4997, 0.0
    %v5292 = vsel %vm5276, %v5006, 0.0
    %v5293 = vsel %vm5277, %v5015, 0.0
    %v5294 = vsel %vm5278, %v5024, 0.0
    %v5295 = vsel %vm1678, %v5279, -inf
    %v5296 = vsel %vm1678, %v5280, -inf
    %v5297 = vsel %vm1678, %v5281, -inf
    %v5298 = vsel %vm1678, %v5282, -inf
    %v5299 = vsel %vm1678, %v5283, -inf
    %v5300 = vmax.f32 %v5295, %v5299
    %v5301 = vsel %vm1678, %v5284, -inf
    %v5302 = vmax.f32 %v5296, %v5301
    %v5303 = vsel %vm1678, %v5285, -inf
    %v5304 = vmax.f32 %v5297, %v5303
    %v5305 = vsel %vm1678, %v5286, -inf
    %v5306 = vmax.f32 %v5298, %v5305
    %v5307 = vsel %vm1678, %v5287, -inf
    %v5308 = vmax.f32 %v5300, %v5307
    %v5309 = vsel %vm1678, %v5288, -inf
    %v5310 = vmax.f32 %v5302, %v5309
    %v5311 = vsel %vm1678, %v5289, -inf
    %v5312 = vmax.f32 %v5304, %v5311
    %v5313 = vsel %vm1678, %v5290, -inf
    %v5314 = vmax.f32 %v5306, %v5313
    %v5315 = vsel %vm1678, %v5291, -inf
    %v5316 = vmax.f32 %v5308, %v5315
    %v5317 = vsel %vm1678, %v5292, -inf
    %v5318 = vmax.f32 %v5310, %v5317
    %v5319 = vsel %vm1678, %v5293, -inf
    %v5320 = vmax.f32 %v5312, %v5319
    %v5321 = vsel %vm1678, %v5294, -inf
    %v5322 = vmax.f32 %v5314, %v5321
    %v5323 = vmax.f32 %v5316, %v5318
    %v5324 = vmax.f32 %v5320, %v5322
    %v5325 = vmax.f32 %v5323, %v5324
    %v5326 = vsel %vm5263, %v4603, 0.0
    %v5327 = vsel %vm5264, %v5201, 0.0
    %v5328 = vsel %vm5265, %v5202, 0.0
    %v5329 = vsel %vm5266, %v5203, 0.0
    %v5330 = vsel %vm5267, %v5204, 0.0
    %v5331 = vsel %vm5268, %v5205, 0.0
    %v5332 = vsel %vm5269, %v5206, 0.0
    %v5333 = vsel %vm5270, %v5207, 0.0
    %v5334 = vsel %vm5271, %v4604, 0.0
    %v5335 = vsel %vm5272, %v5208, 0.0
    %v5336 = vsel %vm5273, %v5209, 0.0
    %v5337 = vsel %vm5274, %v5210, 0.0
    %v5338 = vsel %vm5275, %v5211, 0.0
    %v5339 = vsel %vm5276, %v5212, 0.0
    %v5340 = vsel %vm5277, %v5213, 0.0
    %v5341 = vsel %vm5278, %v5214, 0.0
    %v5358 = vrot.slane %v5327, 7
    %v5359 = vsel %vm1743, %v5358, %v5326
    %v5360 = vrot.slane %v5328, 6
    %v5361 = vsel %vm1746, %v5360, %v5359
    %v5362 = vrot.slane %v5329, 5
    %v5363 = vsel %vm1749, %v5362, %v5361
    %v5364 = vrot.slane %v5330, 4
    %v5365 = vsel %vm1752, %v5364, %v5363
    %v5366 = vrot.slane %v5331, 3
    %v5367 = vsel %vm1755, %v5366, %v5365
    %v5368 = vrot.slane %v5332, 2
    %v5369 = vsel %vm1758, %v5368, %v5367
    %v5370 = vrot.slane %v5333, 1
    %v5371 = vsel %vm1761, %v5370, %v5369
    %v5372 = vrot.slane %v5335, 7
    %v5373 = vsel %vm1743, %v5372, %v5334
    %v5374 = vrot.slane %v5336, 6
    %v5375 = vsel %vm1746, %v5374, %v5373
    %v5376 = vrot.slane %v5337, 5
    %v5377 = vsel %vm1749, %v5376, %v5375
    %v5378 = vrot.slane %v5338, 4
    %v5379 = vsel %vm1752, %v5378, %v5377
    %v5380 = vrot.slane %v5339, 3
    %v5381 = vsel %vm1755, %v5380, %v5379
    %v5382 = vrot.slane %v5340, 2
    %v5383 = vsel %vm1758, %v5382, %v5381
    %v5384 = vrot.slane %v5341, 1
    %v5385 = vsel %vm1761, %v5384, %v5383
    %v5388 = vsel %vm154, %v5371, 0.0
    %v5389 = vsel %vm154, %v5385, 0.0
    %v5390 = vadd.f32 %v5388, %v5389
    %v5391 = vrot.slane %v5390, 4
    %v5392 = vadd.f32 %v5390, %v5391
    %v5393 = vrot.slane %v5392, 2
    %v5394 = vadd.f32 %v5392, %v5393
    %v5395 = vrot.slane %v5394, 1
    %v5396 = vadd.f32 %v5394, %v5395
    %v5397 = vsub.f32 %v5396, 1.0
    %v5398 = vrcp.pop %v5325
    %v5399 = vmul.f32 %v5397, %v5398
    %v5400 = vlaneseq
    %v5401 = vshrl.u32 %v5400, 7
    %v5402 = vsub.s32 0, %v5401
    %v5403 = vrot.slane %v5399, %v5402
    %v5404 = vsub.f32 %v4603, %v5403
    %v5405 = vsub.f32 %v4604, %v5403
    %v5406 = vmax.f32 %v5404, 0.0
    %v5407 = vmax.f32 %v5405, 0.0
    %s5408 = scalar_lea.vmem %s7, 32
    %5409 = vst.msk [vmem:[%s5408] sm:$0xff] %vm154, %v5406
    %5410 = vst.msk [vmem:[%s5408 + $0x8] sm:$0xff] %vm154, %v5407
    %v5411 = vmul.f32 %v50, %v5406
    %v5412 = vmul.f32 %v51, %v5407
    %v5413 = vld [vmem:[%s1] sm:$0xff]
    %v5414 = vld [vmem:[%s1 + $0x8] sm:$0xff]
    %v5415 = vld [vmem:[%s1 + $0x10] sm:$0xff]
    %v5416 = vld [vmem:[%s1 + $0x18] sm:$0xff]
    %v5418 = vsel %vm56, %v5413, 0
    %v5421 = vsel %vm56, %v5414, 0
    %v5424 = vsel %vm56, %v5415, 0
    %v5427 = vsel %vm56, %v5416, 0
    %5429 = vmatprep.subr.mxu0 0.0
    %5430 = vmatpush1.msra.mxu0 %v5411
    %5431 = vmatprep.subr.mxu0 0.0
    %5432 = vmatpush1.msra.mxu0 %v5412
    %5433 = vmatprep.subr.mxu0 0.0
    %5434 = vmatpush1.msra.mxu0 0.0
    %5435 = vmatprep.subr.mxu0 0.0
    %5436 = vmatpush1.msra.mxu0 0.0
    %5437 = vmatprep.subr.mxu0 0.0
    %5438 = vmatpush1.msra.mxu0 0.0
    %5439 = vmatprep.subr.mxu0 0.0
    %5440 = vmatpush1.msra.mxu0 0.0
    %5441 = vmatprep.subr.mxu0 0.0
    %5442 = vmatpush1.msra.mxu0 0.0
    %5443 = vmatprep.subr.mxu0 0.0
    %5444 = vmatpush1.msra.mxu0 0.0
    %5445 = vmatprep.subr.mxu0 0.0
    %5446 = vmatpush1.msra.mxu0 0.0
    %5447 = vmatprep.subr.mxu0 0.0
    %5448 = vmatpush1.msra.mxu0 0.0
    %5449 = vmatprep.subr.mxu0 0.0
    %5450 = vmatpush1.msra.mxu0 0.0
    %5451 = vmatprep.subr.mxu0 0.0
    %5452 = vmatpush1.msra.mxu0 0.0
    %5453 = vmatprep.subr.mxu0 0.0
    %5454 = vmatpush1.msra.mxu0 0.0
    %5455 = vmatprep.subr.mxu0 0.0
    %5456 = vmatpush1.msra.mxu0 0.0
    %5457 = vmatprep.subr.mxu0 0.0
    %5458 = vmatpush1.msra.mxu0 0.0
    %5459 = vmatprep.subr.mxu0 0.0
    %5460 = vmatpush1.msra.mxu0 0.0
    %5461 = vmatprep.subr.mxu0 0.0
    %5462 = vmatpush1.msra.mxu0 0.0
    %5463 = vmatprep.subr.mxu0 0.0
    %5464 = vmatpush1.msra.mxu0 0.0
    %5465 = vmatprep.subr.mxu0 0.0
    %5466 = vmatpush1.msra.mxu0 0.0
    %5467 = vmatprep.subr.mxu0 0.0
    %5468 = vmatpush1.msra.mxu0 0.0
    %5469 = vmatprep.subr.mxu0 0.0
    %5470 = vmatpush1.msra.mxu0 0.0
    %5471 = vmatprep.subr.mxu0 0.0
    %5472 = vmatpush1.msra.mxu0 0.0
    %5473 = vmatprep.subr.mxu0 0.0
    %5474 = vmatpush1.msra.mxu0 0.0
    %5475 = vmatprep.subr.mxu0 0.0
    %5476 = vmatpush1.msra.mxu0 0.0
    %5477 = vmatprep.subr.mxu0 0.0
    %5478 = vmatpush1.msra.mxu0 0.0
    %5479 = vmatprep.subr.mxu0 0.0
    %5480 = vmatpush1.msra.mxu0 0.0
    %5481 = vmatprep.subr.mxu0 0.0
    %5482 = vmatpush1.msra.mxu0 0.0
    %5483 = vmatprep.subr.mxu0 0.0
    %5484 = vmatpush1.msra.mxu0 0.0
    %5485 = vmatprep.subr.mxu0 0.0
    %5486 = vmatpush1.msra.mxu0 0.0
    %5487 = vmatprep.subr.mxu0 0.0
    %5488 = vmatpush1.msra.mxu0 0.0
    %5489 = vmatprep.subr.mxu0 0.0
    %5490 = vmatpush1.msra.mxu0 0.0
    %5491 = vmatprep.subr.mxu0 0.0
    %5492 = vmatpush1.msra.mxu0 0.0
    %5493 = vmatprep.mubr.f32.mxu0 0.0
    %5494 = vmatmul.mubr.f32.gmra.mrb[0].mxu0 %v5418
    %v5495 = vpop.f32.mrb[0].mxu0
    %v5496 = vadd.f32 0.0, %v5495
    %v5497 = vpop.f32.mrb[0].mxu0
    %5498 = vmatprep.mubr.f32.mxu0 0.0
    %5499 = vmatmul.mubr.f32.gmra.mrb[0].mxu0 %v5421
    %v5500 = vpop.f32.mrb[0].mxu0
    %v5501 = vadd.f32 0.0, %v5500
    %v5502 = vpop.f32.mrb[0].mxu0
    %5503 = vmatprep.mubr.f32.mxu0 0.0
    %5504 = vmatmul.mubr.f32.gmra.mrb[0].mxu0 %v5424
    %v5505 = vpop.f32.mrb[0].mxu0
    %v5506 = vadd.f32 0.0, %v5505
    %v5507 = vpop.f32.mrb[0].mxu0
    %5508 = vmatprep.mubr.f32.mxu0 0.0
    %5509 = vmatmul.mubr.f32.gmra.mrb[0].mxu0 %v5427
    %v5510 = vpop.f32.mrb[0].mxu0
    %v5511 = vadd.f32 0.0, %v5510
    %v5512 = vpop.f32.mrb[0].mxu0
    %5513 = vdwg.mxu0
    %v5514 = vsel %vm154, %v5496, 0.0
    %5515 = vadd.xlane.f32.xlu0 %v5514
    %v5516 = vpop.xlane.xlu0 %5515
    %v5517 = vsel %vm154, %v5501, 0.0
    %5518 = vadd.xlane.f32.xlu0 %v5517
    %v5519 = vpop.xlane.xlu0 %5518
    %v5520 = vsel %vm154, %v5506, 0.0
    %5521 = vadd.xlane.f32.xlu0 %v5520
    %v5522 = vpop.xlane.xlu0 %5521
    %v5523 = vsel %vm154, %v5511, 0.0
    %5524 = vadd.xlane.f32.xlu0 %v5523
    %v5525 = vpop.xlane.xlu0 %5524
    %v5526 = vmul.f32 %v5516, %v167
    %v5527 = vmul.f32 %v5519, %v167
    %v5528 = vmul.f32 %v5522, %v167
    %v5529 = vmul.f32 %v5525, %v167
    %v5530 = vsub.f32 %v5496, %v5526
    %v5531 = vsub.f32 %v5501, %v5527
    %v5532 = vsub.f32 %v5506, %v5528
    %v5533 = vsub.f32 %v5511, %v5529
    %v5534 = vmul.f32 %v5530, %v5530
    %v5535 = vmul.f32 %v5531, %v5531
    %v5536 = vmul.f32 %v5532, %v5532
    %v5537 = vmul.f32 %v5533, %v5533
    %v5538 = vsel %vm154, %v5534, 0.0
    %5539 = vadd.xlane.f32.xlu0 %v5538
    %v5540 = vpop.xlane.xlu0 %5539
    %v5541 = vsel %vm154, %v5535, 0.0
    %5542 = vadd.xlane.f32.xlu0 %v5541
    %v5543 = vpop.xlane.xlu0 %5542
    %v5544 = vsel %vm154, %v5536, 0.0
    %5545 = vadd.xlane.f32.xlu0 %v5544
    %v5546 = vpop.xlane.xlu0 %5545
    %v5547 = vsel %vm154, %v5537, 0.0
    %5548 = vadd.xlane.f32.xlu0 %v5547
    %v5549 = vpop.xlane.xlu0 %5548
    %v5550 = vmul.f32 %v5540, %v167
    %v5551 = vmul.f32 %v5543, %v167
    %v5552 = vmul.f32 %v5546, %v167
    %v5553 = vmul.f32 %v5549, %v167
    %v5554 = vadd.f32 %v5550, 1e-05
    %v5555 = vadd.f32 %v5551, 1e-05
    %v5556 = vadd.f32 %v5552, 1e-05
    %v5557 = vadd.f32 %v5553, 1e-05
    %v5558 = vrsqrt.pop %v5554
    %v5559 = vrsqrt.pop %v5555
    %v5560 = vrsqrt.pop %v5556
    %v5561 = vrsqrt.pop %v5557
    %v5562 = vmul.f32 %v5530, %v5558
    %v5563 = vmul.f32 %v5531, %v5559
    %v5564 = vmul.f32 %v5532, %v5560
    %v5565 = vmul.f32 %v5533, %v5561
    %v5566 = vld [vmem:[%s5] sm:$0xff]
    %v5567 = vld [vmem:[%s5 + $0x8] sm:$0xff]
    %v5568 = vld [vmem:[%s5 + $0x10] sm:$0xff]
    %v5569 = vld [vmem:[%s5 + $0x18] sm:$0xff]
    %5571 = vset.pattern.permute.xlu0 26
    %5572 = vperm.xlu0 %5571, %v5566
    %v5573 = vpop.permute.xlu0 %5572
    %5576 = vset.pattern.permute.xlu0 26
    %5577 = vperm.xlu0 %5576, %v5567
    %v5578 = vpop.permute.xlu0 %5577
    %5581 = vset.pattern.permute.xlu0 26
    %5582 = vperm.xlu0 %5581, %v5568
    %v5583 = vpop.permute.xlu0 %5582
    %5586 = vset.pattern.permute.xlu0 26
    %5587 = vperm.xlu0 %5586, %v5569
    %v5588 = vpop.permute.xlu0 %5587
    %v5590 = vmul.f32 %v5562, %v5573
    %v5591 = vmul.f32 %v5563, %v5578
    %v5592 = vmul.f32 %v5564, %v5583
    %v5593 = vmul.f32 %v5565, %v5588
    %5594 = vset.pattern.permute.xlu0 27
    %5595 = vperm.xlu0 %5594, %v5566
    %v5596 = vpop.permute.xlu0 %5595
    %5598 = vset.pattern.permute.xlu0 27
    %5599 = vperm.xlu0 %5598, %v5567
    %v5600 = vpop.permute.xlu0 %5599
    %5602 = vset.pattern.permute.xlu0 27
    %5603 = vperm.xlu0 %5602, %v5568
    %v5604 = vpop.permute.xlu0 %5603
    %5606 = vset.pattern.permute.xlu0 27
    %5607 = vperm.xlu0 %5606, %v5569
    %v5608 = vpop.permute.xlu0 %5607
    %v5610 = vadd.f32 %v5590, %v5596
    %v5611 = vadd.f32 %v5591, %v5600
    %v5612 = vadd.f32 %v5592, %v5604
    %v5613 = vadd.f32 %v5593, %v5608
    %v5614 = vxor.u32 %v5612, 2147483648
    %v5615 = vxor.u32 %v5613, 2147483648
    %v5616 = vmul.f32 %v5614, 1.442695
    %v5617 = vpow.pop %v5616
    %v5618 = vmul.f32 %v5615, 1.442695
    %v5619 = vpow.pop %v5618
    %v5620 = vadd.f32 %v5617, 1.0
    %v5621 = vadd.f32 %v5619, 1.0
    %v5622 = vrcp.pop %v5620
    %v5623 = vmul.f32 1.0, %v5622
    %v5624 = vrcp.pop %v5621
    %v5625 = vmul.f32 1.0, %v5624
    %v5626 = vmul.f32 %v5610, %v5623
    %v5627 = vmul.f32 %v5611, %v5625
    %v5628 = vld [vmem:[%s2] sm:$0xff]
    %v5629 = vld [vmem:[%s2 + $0x8] sm:$0xff]
    %v5630 = vld [vmem:[%s2 + $0x10] sm:$0xff]
    %v5631 = vld [vmem:[%s2 + $0x18] sm:$0xff]
    %v5633 = vsel %vm56, %v5628, 0
    %v5636 = vsel %vm56, %v5629, 0
    %v5639 = vsel %vm56, %v5630, 0
    %v5642 = vsel %vm56, %v5631, 0
    %5644 = vmatprep.subr.mxu0 0.0
    %5645 = vmatpush1.msra.mxu0 %v5626
    %5646 = vmatprep.subr.mxu0 0.0
    %5647 = vmatpush1.msra.mxu0 %v5627
    %5648 = vmatprep.subr.mxu0 0.0
    %5649 = vmatpush1.msra.mxu0 0.0
    %5650 = vmatprep.subr.mxu0 0.0
    %5651 = vmatpush1.msra.mxu0 0.0
    %5652 = vmatprep.subr.mxu0 0.0
    %5653 = vmatpush1.msra.mxu0 0.0
    %5654 = vmatprep.subr.mxu0 0.0
    %5655 = vmatpush1.msra.mxu0 0.0
    %5656 = vmatprep.subr.mxu0 0.0
    %5657 = vmatpush1.msra.mxu0 0.0
    %5658 = vmatprep.subr.mxu0 0.0
    %5659 = vmatpush1.msra.mxu0 0.0
    %5660 = vmatprep.subr.mxu0 0.0
    %5661 = vmatpush1.msra.mxu0 0.0
    %5662 = vmatprep.subr.mxu0 0.0
    %5663 = vmatpush1.msra.mxu0 0.0
    %5664 = vmatprep.subr.mxu0 0.0
    %5665 = vmatpush1.msra.mxu0 0.0
    %5666 = vmatprep.subr.mxu0 0.0
    %5667 = vmatpush1.msra.mxu0 0.0
    %5668 = vmatprep.subr.mxu0 0.0
    %5669 = vmatpush1.msra.mxu0 0.0
    %5670 = vmatprep.subr.mxu0 0.0
    %5671 = vmatpush1.msra.mxu0 0.0
    %5672 = vmatprep.subr.mxu0 0.0
    %5673 = vmatpush1.msra.mxu0 0.0
    %5674 = vmatprep.subr.mxu0 0.0
    %5675 = vmatpush1.msra.mxu0 0.0
    %5676 = vmatprep.subr.mxu0 0.0
    %5677 = vmatpush1.msra.mxu0 0.0
    %5678 = vmatprep.subr.mxu0 0.0
    %5679 = vmatpush1.msra.mxu0 0.0
    %5680 = vmatprep.subr.mxu0 0.0
    %5681 = vmatpush1.msra.mxu0 0.0
    %5682 = vmatprep.subr.mxu0 0.0
    %5683 = vmatpush1.msra.mxu0 0.0
    %5684 = vmatprep.subr.mxu0 0.0
    %5685 = vmatpush1.msra.mxu0 0.0
    %5686 = vmatprep.subr.mxu0 0.0
    %5687 = vmatpush1.msra.mxu0 0.0
    %5688 = vmatprep.subr.mxu0 0.0
    %5689 = vmatpush1.msra.mxu0 0.0
    %5690 = vmatprep.subr.mxu0 0.0
    %5691 = vmatpush1.msra.mxu0 0.0
    %5692 = vmatprep.subr.mxu0 0.0
    %5693 = vmatpush1.msra.mxu0 0.0
    %5694 = vmatprep.subr.mxu0 0.0
    %5695 = vmatpush1.msra.mxu0 0.0
    %5696 = vmatprep.subr.mxu0 0.0
    %5697 = vmatpush1.msra.mxu0 0.0
    %5698 = vmatprep.subr.mxu0 0.0
    %5699 = vmatpush1.msra.mxu0 0.0
    %5700 = vmatprep.subr.mxu0 0.0
    %5701 = vmatpush1.msra.mxu0 0.0
    %5702 = vmatprep.subr.mxu0 0.0
    %5703 = vmatpush1.msra.mxu0 0.0
    %5704 = vmatprep.subr.mxu0 0.0
    %5705 = vmatpush1.msra.mxu0 0.0
    %5706 = vmatprep.subr.mxu0 0.0
    %5707 = vmatpush1.msra.mxu0 0.0
    %5708 = vmatprep.mubr.f32.mxu0 0.0
    %5709 = vmatmul.mubr.f32.gmra.mrb[0].mxu0 %v5633
    %v5710 = vpop.f32.mrb[0].mxu0
    %v5711 = vadd.f32 0.0, %v5710
    %v5712 = vpop.f32.mrb[0].mxu0
    %5713 = vmatprep.mubr.f32.mxu0 0.0
    %5714 = vmatmul.mubr.f32.gmra.mrb[0].mxu0 %v5636
    %v5715 = vpop.f32.mrb[0].mxu0
    %v5716 = vadd.f32 0.0, %v5715
    %v5717 = vpop.f32.mrb[0].mxu0
    %5718 = vmatprep.mubr.f32.mxu0 0.0
    %5719 = vmatmul.mubr.f32.gmra.mrb[0].mxu0 %v5639
    %v5720 = vpop.f32.mrb[0].mxu0
    %v5721 = vadd.f32 0.0, %v5720
    %v5722 = vpop.f32.mrb[0].mxu0
    %5723 = vmatprep.mubr.f32.mxu0 0.0
    %5724 = vmatmul.mubr.f32.gmra.mrb[0].mxu0 %v5642
    %v5725 = vpop.f32.mrb[0].mxu0
    %v5726 = vadd.f32 0.0, %v5725
    %v5727 = vpop.f32.mrb[0].mxu0
    %5728 = vdwg.mxu0
    %v5729 = vsel %vm154, %v5711, 0.0
    %5730 = vadd.xlane.f32.xlu0 %v5729
    %v5731 = vpop.xlane.xlu0 %5730
    %v5732 = vsel %vm154, %v5716, 0.0
    %5733 = vadd.xlane.f32.xlu0 %v5732
    %v5734 = vpop.xlane.xlu0 %5733
    %v5735 = vsel %vm154, %v5721, 0.0
    %5736 = vadd.xlane.f32.xlu0 %v5735
    %v5737 = vpop.xlane.xlu0 %5736
    %v5738 = vsel %vm154, %v5726, 0.0
    %5739 = vadd.xlane.f32.xlu0 %v5738
    %v5740 = vpop.xlane.xlu0 %5739
    %v5741 = vmul.f32 %v5731, %v167
    %v5742 = vmul.f32 %v5734, %v167
    %v5743 = vmul.f32 %v5737, %v167
    %v5744 = vmul.f32 %v5740, %v167
    %v5745 = vsub.f32 %v5711, %v5741
    %v5746 = vsub.f32 %v5716, %v5742
    %v5747 = vsub.f32 %v5721, %v5743
    %v5748 = vsub.f32 %v5726, %v5744
    %v5749 = vmul.f32 %v5745, %v5745
    %v5750 = vmul.f32 %v5746, %v5746
    %v5751 = vmul.f32 %v5747, %v5747
    %v5752 = vmul.f32 %v5748, %v5748
    %v5753 = vsel %vm154, %v5749, 0.0
    %5754 = vadd.xlane.f32.xlu0 %v5753
    %v5755 = vpop.xlane.xlu0 %5754
    %v5756 = vsel %vm154, %v5750, 0.0
    %5757 = vadd.xlane.f32.xlu0 %v5756
    %v5758 = vpop.xlane.xlu0 %5757
    %v5759 = vsel %vm154, %v5751, 0.0
    %5760 = vadd.xlane.f32.xlu0 %v5759
    %v5761 = vpop.xlane.xlu0 %5760
    %v5762 = vsel %vm154, %v5752, 0.0
    %5763 = vadd.xlane.f32.xlu0 %v5762
    %v5764 = vpop.xlane.xlu0 %5763
    %v5765 = vmul.f32 %v5755, %v167
    %v5766 = vmul.f32 %v5758, %v167
    %v5767 = vmul.f32 %v5761, %v167
    %v5768 = vmul.f32 %v5764, %v167
    %v5769 = vadd.f32 %v5765, 1e-05
    %v5770 = vadd.f32 %v5766, 1e-05
    %v5771 = vadd.f32 %v5767, 1e-05
    %v5772 = vadd.f32 %v5768, 1e-05
    %v5773 = vrsqrt.pop %v5769
    %v5774 = vrsqrt.pop %v5770
    %v5775 = vrsqrt.pop %v5771
    %v5776 = vrsqrt.pop %v5772
    %v5777 = vmul.f32 %v5745, %v5773
    %v5778 = vmul.f32 %v5746, %v5774
    %v5779 = vmul.f32 %v5747, %v5775
    %v5780 = vmul.f32 %v5748, %v5776
    %5781 = vset.pattern.permute.xlu0 28
    %5782 = vperm.xlu0 %5781, %v5566
    %v5783 = vpop.permute.xlu0 %5782
    %5785 = vset.pattern.permute.xlu0 28
    %5786 = vperm.xlu0 %5785, %v5567
    %v5787 = vpop.permute.xlu0 %5786
    %5789 = vset.pattern.permute.xlu0 28
    %5790 = vperm.xlu0 %5789, %v5568
    %v5791 = vpop.permute.xlu0 %5790
    %5793 = vset.pattern.permute.xlu0 28
    %5794 = vperm.xlu0 %5793, %v5569
    %v5795 = vpop.permute.xlu0 %5794
    %v5797 = vmul.f32 %v5777, %v5783
    %v5798 = vmul.f32 %v5778, %v5787
    %v5799 = vmul.f32 %v5779, %v5791
    %v5800 = vmul.f32 %v5780, %v5795
    %5801 = vset.pattern.permute.xlu0 29
    %5802 = vperm.xlu0 %5801, %v5566
    %v5803 = vpop.permute.xlu0 %5802
    %5805 = vset.pattern.permute.xlu0 29
    %5806 = vperm.xlu0 %5805, %v5567
    %v5807 = vpop.permute.xlu0 %5806
    %5809 = vset.pattern.permute.xlu0 29
    %5810 = vperm.xlu0 %5809, %v5568
    %v5811 = vpop.permute.xlu0 %5810
    %5813 = vset.pattern.permute.xlu0 29
    %5814 = vperm.xlu0 %5813, %v5569
    %v5815 = vpop.permute.xlu0 %5814
    %v5817 = vadd.f32 %v5797, %v5803
    %v5818 = vadd.f32 %v5798, %v5807
    %v5819 = vadd.f32 %v5799, %v5811
    %v5820 = vadd.f32 %v5800, %v5815
    %v5821 = vxor.u32 %v5819, 2147483648
    %v5822 = vxor.u32 %v5820, 2147483648
    %v5823 = vmul.f32 %v5821, 1.442695
    %v5824 = vpow.pop %v5823
    %v5825 = vmul.f32 %v5822, 1.442695
    %v5826 = vpow.pop %v5825
    %v5827 = vadd.f32 %v5824, 1.0
    %v5828 = vadd.f32 %v5826, 1.0
    %v5829 = vrcp.pop %v5827
    %v5830 = vmul.f32 1.0, %v5829
    %v5831 = vrcp.pop %v5828
    %v5832 = vmul.f32 1.0, %v5831
    %v5833 = vmul.f32 %v5817, %v5830
    %v5834 = vmul.f32 %v5818, %v5832
    %v5835 = vadd.f32 %v5626, %v5833
    %v5836 = vadd.f32 %v5627, %v5834
    %v5837 = vmul.f32 %v5835, 0.70710677
    %v5838 = vmul.f32 %v5836, 0.70710677
    %s5839 = scalar_lea.vmem %s2, 224
    %v5840 = vld [vmem:[%s5839] sm:$0xff]
    %v5841 = vld [vmem:[%s5839 + $0x8] sm:$0xff]
    %v5842 = vld [vmem:[%s5839 + $0x10] sm:$0xff]
    %v5843 = vld [vmem:[%s5839 + $0x18] sm:$0xff]
    %v5845 = vsel %vm56, %v5840, 0
    %v5848 = vsel %vm56, %v5841, 0
    %v5851 = vsel %vm56, %v5842, 0
    %v5854 = vsel %vm56, %v5843, 0
    %5856 = vmatprep.subr.mxu0 0.0
    %5857 = vmatpush1.msra.mxu0 %v5837
    %5858 = vmatprep.subr.mxu0 0.0
    %5859 = vmatpush1.msra.mxu0 %v5838
    %5860 = vmatprep.subr.mxu0 0.0
    %5861 = vmatpush1.msra.mxu0 0.0
    %5862 = vmatprep.subr.mxu0 0.0
    %5863 = vmatpush1.msra.mxu0 0.0
    %5864 = vmatprep.subr.mxu0 0.0
    %5865 = vmatpush1.msra.mxu0 0.0
    %5866 = vmatprep.subr.mxu0 0.0
    %5867 = vmatpush1.msra.mxu0 0.0
    %5868 = vmatprep.subr.mxu0 0.0
    %5869 = vmatpush1.msra.mxu0 0.0
    %5870 = vmatprep.subr.mxu0 0.0
    %5871 = vmatpush1.msra.mxu0 0.0
    %5872 = vmatprep.subr.mxu0 0.0
    %5873 = vmatpush1.msra.mxu0 0.0
    %5874 = vmatprep.subr.mxu0 0.0
    %5875 = vmatpush1.msra.mxu0 0.0
    %5876 = vmatprep.subr.mxu0 0.0
    %5877 = vmatpush1.msra.mxu0 0.0
    %5878 = vmatprep.subr.mxu0 0.0
    %5879 = vmatpush1.msra.mxu0 0.0
    %5880 = vmatprep.subr.mxu0 0.0
    %5881 = vmatpush1.msra.mxu0 0.0
    %5882 = vmatprep.subr.mxu0 0.0
    %5883 = vmatpush1.msra.mxu0 0.0
    %5884 = vmatprep.subr.mxu0 0.0
    %5885 = vmatpush1.msra.mxu0 0.0
    %5886 = vmatprep.subr.mxu0 0.0
    %5887 = vmatpush1.msra.mxu0 0.0
    %5888 = vmatprep.subr.mxu0 0.0
    %5889 = vmatpush1.msra.mxu0 0.0
    %5890 = vmatprep.subr.mxu0 0.0
    %5891 = vmatpush1.msra.mxu0 0.0
    %5892 = vmatprep.subr.mxu0 0.0
    %5893 = vmatpush1.msra.mxu0 0.0
    %5894 = vmatprep.subr.mxu0 0.0
    %5895 = vmatpush1.msra.mxu0 0.0
    %5896 = vmatprep.subr.mxu0 0.0
    %5897 = vmatpush1.msra.mxu0 0.0
    %5898 = vmatprep.subr.mxu0 0.0
    %5899 = vmatpush1.msra.mxu0 0.0
    %5900 = vmatprep.subr.mxu0 0.0
    %5901 = vmatpush1.msra.mxu0 0.0
    %5902 = vmatprep.subr.mxu0 0.0
    %5903 = vmatpush1.msra.mxu0 0.0
    %5904 = vmatprep.subr.mxu0 0.0
    %5905 = vmatpush1.msra.mxu0 0.0
    %5906 = vmatprep.subr.mxu0 0.0
    %5907 = vmatpush1.msra.mxu0 0.0
    %5908 = vmatprep.subr.mxu0 0.0
    %5909 = vmatpush1.msra.mxu0 0.0
    %5910 = vmatprep.subr.mxu0 0.0
    %5911 = vmatpush1.msra.mxu0 0.0
    %5912 = vmatprep.subr.mxu0 0.0
    %5913 = vmatpush1.msra.mxu0 0.0
    %5914 = vmatprep.subr.mxu0 0.0
    %5915 = vmatpush1.msra.mxu0 0.0
    %5916 = vmatprep.subr.mxu0 0.0
    %5917 = vmatpush1.msra.mxu0 0.0
    %5918 = vmatprep.subr.mxu0 0.0
    %5919 = vmatpush1.msra.mxu0 0.0
    %5920 = vmatprep.mubr.f32.mxu0 0.0
    %5921 = vmatmul.mubr.f32.gmra.mrb[0].mxu0 %v5845
    %v5922 = vpop.f32.mrb[0].mxu0
    %v5923 = vadd.f32 0.0, %v5922
    %v5924 = vpop.f32.mrb[0].mxu0
    %5925 = vmatprep.mubr.f32.mxu0 0.0
    %5926 = vmatmul.mubr.f32.gmra.mrb[0].mxu0 %v5848
    %v5927 = vpop.f32.mrb[0].mxu0
    %v5928 = vadd.f32 0.0, %v5927
    %v5929 = vpop.f32.mrb[0].mxu0
    %5930 = vmatprep.mubr.f32.mxu0 0.0
    %5931 = vmatmul.mubr.f32.gmra.mrb[0].mxu0 %v5851
    %v5932 = vpop.f32.mrb[0].mxu0
    %v5933 = vadd.f32 0.0, %v5932
    %v5934 = vpop.f32.mrb[0].mxu0
    %5935 = vmatprep.mubr.f32.mxu0 0.0
    %5936 = vmatmul.mubr.f32.gmra.mrb[0].mxu0 %v5854
    %v5937 = vpop.f32.mrb[0].mxu0
    %v5938 = vadd.f32 0.0, %v5937
    %v5939 = vpop.f32.mrb[0].mxu0
    %5940 = vdwg.mxu0
    %v5941 = vsel %vm154, %v5923, 0.0
    %5942 = vadd.xlane.f32.xlu0 %v5941
    %v5943 = vpop.xlane.xlu0 %5942
    %v5944 = vsel %vm154, %v5928, 0.0
    %5945 = vadd.xlane.f32.xlu0 %v5944
    %v5946 = vpop.xlane.xlu0 %5945
    %v5947 = vsel %vm154, %v5933, 0.0
    %5948 = vadd.xlane.f32.xlu0 %v5947
    %v5949 = vpop.xlane.xlu0 %5948
    %v5950 = vsel %vm154, %v5938, 0.0
    %5951 = vadd.xlane.f32.xlu0 %v5950
    %v5952 = vpop.xlane.xlu0 %5951
    %v5953 = vmul.f32 %v5943, %v167
    %v5954 = vmul.f32 %v5946, %v167
    %v5955 = vmul.f32 %v5949, %v167
    %v5956 = vmul.f32 %v5952, %v167
    %v5957 = vsub.f32 %v5923, %v5953
    %v5958 = vsub.f32 %v5928, %v5954
    %v5959 = vsub.f32 %v5933, %v5955
    %v5960 = vsub.f32 %v5938, %v5956
    %v5961 = vmul.f32 %v5957, %v5957
    %v5962 = vmul.f32 %v5958, %v5958
    %v5963 = vmul.f32 %v5959, %v5959
    %v5964 = vmul.f32 %v5960, %v5960
    %v5965 = vsel %vm154, %v5961, 0.0
    %5966 = vadd.xlane.f32.xlu0 %v5965
    %v5967 = vpop.xlane.xlu0 %5966
    %v5968 = vsel %vm154, %v5962, 0.0
    %5969 = vadd.xlane.f32.xlu0 %v5968
    %v5970 = vpop.xlane.xlu0 %5969
    %v5971 = vsel %vm154, %v5963, 0.0
    %5972 = vadd.xlane.f32.xlu0 %v5971
    %v5973 = vpop.xlane.xlu0 %5972
    %v5974 = vsel %vm154, %v5964, 0.0
    %5975 = vadd.xlane.f32.xlu0 %v5974
    %v5976 = vpop.xlane.xlu0 %5975
    %v5977 = vmul.f32 %v5967, %v167
    %v5978 = vmul.f32 %v5970, %v167
    %v5979 = vmul.f32 %v5973, %v167
    %v5980 = vmul.f32 %v5976, %v167
    %v5981 = vadd.f32 %v5977, 1e-05
    %v5982 = vadd.f32 %v5978, 1e-05
    %v5983 = vadd.f32 %v5979, 1e-05
    %v5984 = vadd.f32 %v5980, 1e-05
    %v5985 = vrsqrt.pop %v5981
    %v5986 = vrsqrt.pop %v5982
    %v5987 = vrsqrt.pop %v5983
    %v5988 = vrsqrt.pop %v5984
    %v5989 = vmul.f32 %v5957, %v5985
    %v5990 = vmul.f32 %v5958, %v5986
    %v5991 = vmul.f32 %v5959, %v5987
    %v5992 = vmul.f32 %v5960, %v5988
    %5993 = vset.pattern.permute.xlu0 30
    %5994 = vperm.xlu0 %5993, %v5566
    %v5995 = vpop.permute.xlu0 %5994
    %5997 = vset.pattern.permute.xlu0 30
    %5998 = vperm.xlu0 %5997, %v5567
    %v5999 = vpop.permute.xlu0 %5998
    %6001 = vset.pattern.permute.xlu0 30
    %6002 = vperm.xlu0 %6001, %v5568
    %v6003 = vpop.permute.xlu0 %6002
    %6005 = vset.pattern.permute.xlu0 30
    %6006 = vperm.xlu0 %6005, %v5569
    %v6007 = vpop.permute.xlu0 %6006
    %v6009 = vmul.f32 %v5989, %v5995
    %v6010 = vmul.f32 %v5990, %v5999
    %v6011 = vmul.f32 %v5991, %v6003
    %v6012 = vmul.f32 %v5992, %v6007
    %6013 = vset.pattern.permute.xlu0 31
    %6014 = vperm.xlu0 %6013, %v5566
    %v6015 = vpop.permute.xlu0 %6014
    %6017 = vset.pattern.permute.xlu0 31
    %6018 = vperm.xlu0 %6017, %v5567
    %v6019 = vpop.permute.xlu0 %6018
    %6021 = vset.pattern.permute.xlu0 31
    %6022 = vperm.xlu0 %6021, %v5568
    %v6023 = vpop.permute.xlu0 %6022
    %6025 = vset.pattern.permute.xlu0 31
    %6026 = vperm.xlu0 %6025, %v5569
    %v6027 = vpop.permute.xlu0 %6026
    %v6029 = vadd.f32 %v6009, %v6015
    %v6030 = vadd.f32 %v6010, %v6019
    %v6031 = vadd.f32 %v6011, %v6023
    %v6032 = vadd.f32 %v6012, %v6027
    %v6033 = vxor.u32 %v6031, 2147483648
    %v6034 = vxor.u32 %v6032, 2147483648
    %v6035 = vmul.f32 %v6033, 1.442695
    %v6036 = vpow.pop %v6035
    %v6037 = vmul.f32 %v6034, 1.442695
    %v6038 = vpow.pop %v6037
    %v6039 = vadd.f32 %v6036, 1.0
    %v6040 = vadd.f32 %v6038, 1.0
    %v6041 = vrcp.pop %v6039
    %v6042 = vmul.f32 1.0, %v6041
    %v6043 = vrcp.pop %v6040
    %v6044 = vmul.f32 1.0, %v6043
    %v6045 = vmul.f32 %v6029, %v6042
    %v6046 = vmul.f32 %v6030, %v6044
    %v6047 = vadd.f32 %v5837, %v6045
    %v6048 = vadd.f32 %v5838, %v6046
    %v6049 = vmul.f32 %v6047, 0.70710677
    %v6050 = vmul.f32 %v6048, 0.70710677
    %s6051 = scalar_lea.vmem %s2, 256
    %v6052 = vld [vmem:[%s6051] sm:$0xff]
    %v6053 = vld [vmem:[%s6051 + $0x8] sm:$0xff]
    %v6054 = vld [vmem:[%s6051 + $0x10] sm:$0xff]
    %v6055 = vld [vmem:[%s6051 + $0x18] sm:$0xff]
    %v6057 = vsel %vm56, %v6052, 0
    %v6060 = vsel %vm56, %v6053, 0
    %v6063 = vsel %vm56, %v6054, 0
    %v6066 = vsel %vm56, %v6055, 0
    %6068 = vmatprep.subr.mxu0 0.0
    %6069 = vmatpush1.msra.mxu0 %v6049
    %6070 = vmatprep.subr.mxu0 0.0
    %6071 = vmatpush1.msra.mxu0 %v6050
    %6072 = vmatprep.subr.mxu0 0.0
    %6073 = vmatpush1.msra.mxu0 0.0
    %6074 = vmatprep.subr.mxu0 0.0
    %6075 = vmatpush1.msra.mxu0 0.0
    %6076 = vmatprep.subr.mxu0 0.0
    %6077 = vmatpush1.msra.mxu0 0.0
    %6078 = vmatprep.subr.mxu0 0.0
    %6079 = vmatpush1.msra.mxu0 0.0
    %6080 = vmatprep.subr.mxu0 0.0
    %6081 = vmatpush1.msra.mxu0 0.0
    %6082 = vmatprep.subr.mxu0 0.0
    %6083 = vmatpush1.msra.mxu0 0.0
    %6084 = vmatprep.subr.mxu0 0.0
    %6085 = vmatpush1.msra.mxu0 0.0
    %6086 = vmatprep.subr.mxu0 0.0
    %6087 = vmatpush1.msra.mxu0 0.0
    %6088 = vmatprep.subr.mxu0 0.0
    %6089 = vmatpush1.msra.mxu0 0.0
    %6090 = vmatprep.subr.mxu0 0.0
    %6091 = vmatpush1.msra.mxu0 0.0
    %6092 = vmatprep.subr.mxu0 0.0
    %6093 = vmatpush1.msra.mxu0 0.0
    %6094 = vmatprep.subr.mxu0 0.0
    %6095 = vmatpush1.msra.mxu0 0.0
    %6096 = vmatprep.subr.mxu0 0.0
    %6097 = vmatpush1.msra.mxu0 0.0
    %6098 = vmatprep.subr.mxu0 0.0
    %6099 = vmatpush1.msra.mxu0 0.0
    %6100 = vmatprep.subr.mxu0 0.0
    %6101 = vmatpush1.msra.mxu0 0.0
    %6102 = vmatprep.subr.mxu0 0.0
    %6103 = vmatpush1.msra.mxu0 0.0
    %6104 = vmatprep.subr.mxu0 0.0
    %6105 = vmatpush1.msra.mxu0 0.0
    %6106 = vmatprep.subr.mxu0 0.0
    %6107 = vmatpush1.msra.mxu0 0.0
    %6108 = vmatprep.subr.mxu0 0.0
    %6109 = vmatpush1.msra.mxu0 0.0
    %6110 = vmatprep.subr.mxu0 0.0
    %6111 = vmatpush1.msra.mxu0 0.0
    %6112 = vmatprep.subr.mxu0 0.0
    %6113 = vmatpush1.msra.mxu0 0.0
    %6114 = vmatprep.subr.mxu0 0.0
    %6115 = vmatpush1.msra.mxu0 0.0
    %6116 = vmatprep.subr.mxu0 0.0
    %6117 = vmatpush1.msra.mxu0 0.0
    %6118 = vmatprep.subr.mxu0 0.0
    %6119 = vmatpush1.msra.mxu0 0.0
    %6120 = vmatprep.subr.mxu0 0.0
    %6121 = vmatpush1.msra.mxu0 0.0
    %6122 = vmatprep.subr.mxu0 0.0
    %6123 = vmatpush1.msra.mxu0 0.0
    %6124 = vmatprep.subr.mxu0 0.0
    %6125 = vmatpush1.msra.mxu0 0.0
    %6126 = vmatprep.subr.mxu0 0.0
    %6127 = vmatpush1.msra.mxu0 0.0
    %6128 = vmatprep.subr.mxu0 0.0
    %6129 = vmatpush1.msra.mxu0 0.0
    %6130 = vmatprep.subr.mxu0 0.0
    %6131 = vmatpush1.msra.mxu0 0.0
    %6132 = vmatprep.mubr.f32.mxu0 0.0
    %6133 = vmatmul.mubr.f32.gmra.mrb[0].mxu0 %v6057
    %v6134 = vpop.f32.mrb[0].mxu0
    %v6135 = vadd.f32 0.0, %v6134
    %v6136 = vpop.f32.mrb[0].mxu0
    %6137 = vmatprep.mubr.f32.mxu0 0.0
    %6138 = vmatmul.mubr.f32.gmra.mrb[0].mxu0 %v6060
    %v6139 = vpop.f32.mrb[0].mxu0
    %v6140 = vpop.f32.mrb[0].mxu0
    %6141 = vmatprep.mubr.f32.mxu0 0.0
    %6142 = vmatmul.mubr.f32.gmra.mrb[0].mxu0 %v6063
    %v6143 = vpop.f32.mrb[0].mxu0
    %v6144 = vadd.f32 0.0, %v6143
    %v6145 = vpop.f32.mrb[0].mxu0
    %6146 = vmatprep.mubr.f32.mxu0 0.0
    %6147 = vmatmul.mubr.f32.gmra.mrb[0].mxu0 %v6066
    %v6148 = vpop.f32.mrb[0].mxu0
    %v6149 = vpop.f32.mrb[0].mxu0
    %6150 = vdwg.mxu0
    %v6151 = vsel %vm154, %v6135, 0.0
    %6152 = vadd.xlane.f32.xlu0 %v6151
    %v6153 = vpop.xlane.xlu0 %6152
    %v6154 = vsel %vm154, %v6144, 0.0
    %6155 = vadd.xlane.f32.xlu0 %v6154
    %v6156 = vpop.xlane.xlu0 %6155
    %v6157 = vmul.f32 %v6153, %v167
    %v6158 = vmul.f32 %v6156, %v167
    %v6159 = vsub.f32 %v6135, %v6157
    %v6160 = vsub.f32 %v6144, %v6158
    %v6161 = vmul.f32 %v6159, %v6159
    %v6162 = vmul.f32 %v6160, %v6160
    %v6163 = vsel %vm154, %v6161, 0.0
    %6164 = vadd.xlane.f32.xlu0 %v6163
    %v6165 = vpop.xlane.xlu0 %6164
    %v6166 = vsel %vm154, %v6162, 0.0
    %6167 = vadd.xlane.f32.xlu0 %v6166
    %v6168 = vpop.xlane.xlu0 %6167
    %v6169 = vmul.f32 %v6165, %v167
    %v6170 = vmul.f32 %v6168, %v167
    %v6171 = vadd.f32 %v6169, 1e-05
    %v6172 = vadd.f32 %v6170, 1e-05
    %v6173 = vrsqrt.pop %v6171
    %v6174 = vrsqrt.pop %v6172
    %v6175 = vmul.f32 %v6159, %v6173
    %v6176 = vmul.f32 %v6160, %v6174
    %6177 = vset.pattern.permute.xlu0 32
    %6178 = vperm.xlu0 %6177, %v5566
    %v6179 = vpop.permute.xlu0 %6178
    %6181 = vset.pattern.permute.xlu0 32
    %6182 = vperm.xlu0 %6181, %v5568
    %v6183 = vpop.permute.xlu0 %6182
    %v6185 = vmul.f32 %v6175, %v6179
    %v6186 = vmul.f32 %v6176, %v6183
    %6187 = vset.pattern.permute.xlu0 33
    %6188 = vperm.xlu0 %6187, %v5566
    %v6189 = vpop.permute.xlu0 %6188
    %6191 = vset.pattern.permute.xlu0 33
    %6192 = vperm.xlu0 %6191, %v5568
    %v6193 = vpop.permute.xlu0 %6192
    %v6195 = vadd.f32 %v6185, %v6189
    %v6196 = vadd.f32 %v6186, %v6193
    %v6197 = vxor.u32 %v6196, 2147483648
    %v6198 = vmul.f32 %v6197, 1.442695
    %v6199 = vpow.pop %v6198
    %v6200 = vadd.f32 %v6199, 1.0
    %v6201 = vrcp.pop %v6200
    %v6202 = vmul.f32 1.0, %v6201
    %v6203 = vmul.f32 %v6195, %v6202
    %v6204 = vadd.f32 %v6049, %v6203
    %v6205 = vmul.f32 %v6204, 0.70710677
    %v6206 = vmax.f32 %v6205, 0.0
    %v6207 = vadd.f32 %v4459, %v6206
    %v6208 = vld [vmem:[%s4] sm:$0xf]
    %v6209 = vld [vmem:[%s5] sm:$0xf]
    %6211 = vset.pattern.permute.xlu0 40
    %6212 = vperm.xlu0 %6211, %v6209
    %v6213 = vpop.permute.xlu0 %6212
    %v6216 = vsel %vm154, %v6208, 0
    %6218 = vmatprep.subr.mxu0 0.0
    %6219 = vmatpush1.msra.mxu0 %v6207
    %6220 = vmatprep.subr.mxu0 0.0
    %6221 = vmatpush1.msra.mxu0 0.0
    %6222 = vmatprep.subr.mxu0 0.0
    %6223 = vmatpush1.msra.mxu0 0.0
    %6224 = vmatprep.subr.mxu0 0.0
    %6225 = vmatpush1.msra.mxu0 0.0
    %6226 = vmatprep.subr.mxu0 0.0
    %6227 = vmatpush1.msra.mxu0 0.0
    %6228 = vmatprep.subr.mxu0 0.0
    %6229 = vmatpush1.msra.mxu0 0.0
    %6230 = vmatprep.subr.mxu0 0.0
    %6231 = vmatpush1.msra.mxu0 0.0
    %6232 = vmatprep.subr.mxu0 0.0
    %6233 = vmatpush1.msra.mxu0 0.0
    %6234 = vmatprep.subr.mxu0 0.0
    %6235 = vmatpush1.msra.mxu0 0.0
    %6236 = vmatprep.subr.mxu0 0.0
    %6237 = vmatpush1.msra.mxu0 0.0
    %6238 = vmatprep.subr.mxu0 0.0
    %6239 = vmatpush1.msra.mxu0 0.0
    %6240 = vmatprep.subr.mxu0 0.0
    %6241 = vmatpush1.msra.mxu0 0.0
    %6242 = vmatprep.subr.mxu0 0.0
    %6243 = vmatpush1.msra.mxu0 0.0
    %6244 = vmatprep.subr.mxu0 0.0
    %6245 = vmatpush1.msra.mxu0 0.0
    %6246 = vmatprep.subr.mxu0 0.0
    %6247 = vmatpush1.msra.mxu0 0.0
    %6248 = vmatprep.subr.mxu0 0.0
    %6249 = vmatpush1.msra.mxu0 0.0
    %6250 = vmatprep.subr.mxu0 0.0
    %6251 = vmatpush1.msra.mxu0 0.0
    %6252 = vmatprep.subr.mxu0 0.0
    %6253 = vmatpush1.msra.mxu0 0.0
    %6254 = vmatprep.subr.mxu0 0.0
    %6255 = vmatpush1.msra.mxu0 0.0
    %6256 = vmatprep.subr.mxu0 0.0
    %6257 = vmatpush1.msra.mxu0 0.0
    %6258 = vmatprep.subr.mxu0 0.0
    %6259 = vmatpush1.msra.mxu0 0.0
    %6260 = vmatprep.subr.mxu0 0.0
    %6261 = vmatpush1.msra.mxu0 0.0
    %6262 = vmatprep.subr.mxu0 0.0
    %6263 = vmatpush1.msra.mxu0 0.0
    %6264 = vmatprep.subr.mxu0 0.0
    %6265 = vmatpush1.msra.mxu0 0.0
    %6266 = vmatprep.subr.mxu0 0.0
    %6267 = vmatpush1.msra.mxu0 0.0
    %6268 = vmatprep.subr.mxu0 0.0
    %6269 = vmatpush1.msra.mxu0 0.0
    %6270 = vmatprep.subr.mxu0 0.0
    %6271 = vmatpush1.msra.mxu0 0.0
    %6272 = vmatprep.subr.mxu0 0.0
    %6273 = vmatpush1.msra.mxu0 0.0
    %6274 = vmatprep.subr.mxu0 0.0
    %6275 = vmatpush1.msra.mxu0 0.0
    %6276 = vmatprep.subr.mxu0 0.0
    %6277 = vmatpush1.msra.mxu0 0.0
    %6278 = vmatprep.subr.mxu0 0.0
    %6279 = vmatpush1.msra.mxu0 0.0
    %6280 = vmatprep.subr.mxu0 0.0
    %6281 = vmatpush1.msra.mxu0 0.0
    %6282 = vmatprep.mubr.f32.mxu0 0.0
    %6283 = vmatmul.mubr.f32.gmra.mrb[0].mxu0 %v6216
    %v6284 = vpop.f32.mrb[0].mxu0
    %v6285 = vadd.f32 %v6213, %v6284
    %v6286 = vpop.f32.mrb[0].mxu0
    %6287 = vdwg.mxu0
    %vm6288 = vcmask 60416
    %6289 = vst.msk [vmem:[#allocation2] sm:$0xf] %vm6288, %v6285
    // Predicated region
    $region26: #{tabnet_forward.1} parent=1 // pred_check
      _
    $region27: #{tabnet_forward.1} parent=1 // pred_check_branch
      %6291 = sbr.rel (0) target = $region29
    $region28: #{tabnet_forward.1} parent=1 // pred_region
      %s6293 = ssub.s32 64, 64
      %6294 = vsyncadd [#allocation3], %s6293
      %s6296 = sshll.u32 [#allocation2], 4
      %s6297 = int_to_ptr.vmem [resolvable:$true] %s6296
      %6299 = dma.vmem_to_hbm [thread:$0]  %s6297, 64, %s6, [#allocation3]
    $region29: #{tabnet_forward.1} parent=1 // pred_fallthru
      _
    // Predicated region
    $region30: #{tabnet_forward.1} parent=1 // pred_check
      _
    $region31: #{tabnet_forward.1} parent=1 // pred_check_branch
      %6301 = sbr.rel (0) target = $region33
    $region32: #{tabnet_forward.1} parent=1 // pred_region
      _
    $region33: #{tabnet_forward.1} parent=1 // pred_fallthru
      _
    // Predicated region
    $region34: #{tabnet_forward.1} parent=1 // pred_check
      _
    $region35: #{tabnet_forward.1} parent=1 // pred_check_branch
      %6303 = sbr.rel (0) target = $region37
    $region36: #{tabnet_forward.1} parent=1 // pred_region
      %6304 = dma.done [#allocation3], 64
    $region37: #{tabnet_forward.1} parent=1 // pred_fallthru
      _
    // Predicated region
    $region38: #{tabnet_forward.1} parent=1 // pred_check
      _
    $region39: #{tabnet_forward.1} parent=1 // pred_check_branch
      %6306 = sbr.rel (0) target = $region41
    $region40: #{tabnet_forward.1} parent=1 // pred_region
      _
    $region41: #{tabnet_forward.1} parent=1 // pred_fallthru
      _
    %6307 = vsyncpa [#allocation3], 1

</llo_original>
